<compile_context>
chip_gen: v7x
topology: tpu7x:2x2x1
jax: 0.10.0
libtpu: 0.0.40
codegen_flags: <defaults>
</compile_context>

<pallas_src>
import functools

import jax
import jax.numpy as jnp
from jax import lax
from jax.experimental import pallas as pl
from jax.experimental.pallas import tpu as pltpu  # noqa: F401  (TPU backend assumed)

# ----------------------------- small config -----------------------------
VOCAB = 50            # vocab_size
SEQ = 8               # max_seq_num (tokens must have seq == max_seq_num)
DIM = 32              # feature_dim
HEADS = 4             # n_heads
HEAD_DIM = DIM // HEADS
FFN = 64              # dim_feedforward (small synthetic choice)
DECODER_NUM = 2       # outer reuse count of decoder_block
DECODE_LAYER_NUM = 2  # num_layers inside TransformerEncoder (distinct weights)
BATCH = 2
LN_EPS = 1e-5
VOCAB_PAD = ((VOCAB + 127) // 128) * 128   # lane-dense padded logits width (=128)


# ----------------------------- kernel helpers -----------------------------
def _layer_norm(x, g, b, eps=LN_EPS):
    mu = jnp.mean(x, axis=-1, keepdims=True)
    var = jnp.mean((x - mu) ** 2, axis=-1, keepdims=True)
    return (x - mu) * lax.rsqrt(var + eps) * g + b


def _mm(a_f32, w_bf16):
    # bf16 MXU operands, f32 accumulation.
    return jnp.dot(a_f32.astype(jnp.bfloat16), w_bf16,
                   preferred_element_type=jnp.float32)


# ----------------------------- fused kernel -----------------------------
def fused_gpt_kernel(x_ref,
                     w_in_ref, b_in_ref, w_out_ref, b_out_ref,
                     ln1_g_ref, ln1_b_ref, w1_ref, b1_ref, w2_ref, b2_ref,
                     ln2_g_ref, ln2_b_ref,
                     lnf_g_ref, lnf_b_ref, wv_ref, bv_ref,
                     o_ref, *, batch, seq, n_heads, head_dim,
                     decoder_num, n_layers):
    B, S, H, Dh = batch, seq, n_heads, head_dim
    D = H * Dh
    BS = B * S

    x = x_ref[...]                                   # (B*S, D) f32

    # causal (square subsequent) mask, built once, reused across layers/heads
    row = lax.broadcasted_iota(jnp.int32, (S, S), 0)
    col = lax.broadcasted_iota(jnp.int32, (S, S), 1)
    neg_mask = jnp.where(col <= row, 0.0, -1e30).astype(jnp.float32)[None]  # (1,S,S)

    scale = 1.0 / (float(Dh) ** 0.5)

    for _ in range(decoder_num):
        for l in range(n_layers):
            # ---- causal multi-head self-attention (torch post-norm layer) ----
            qkv = _mm(x, w_in_ref[l]) + b_in_ref[l]            # (BS, 3D) f32
            q = (qkv[:, :D] * scale).reshape(B, S, D).astype(jnp.bfloat16)
            k = qkv[:, D:2 * D].reshape(B, S, D).astype(jnp.bfloat16)
            v = qkv[:, 2 * D:].reshape(B, S, D).astype(jnp.bfloat16)

            ctx_heads = []
            for h in range(H):
                sl = slice(h * Dh, (h + 1) * Dh)
                s = jnp.einsum('bqd,bkd->bqk', q[:, :, sl], k[:, :, sl],
                               preferred_element_type=jnp.float32)
                s = s + neg_mask
                s = s - jnp.max(s, axis=-1, keepdims=True)
                p = jnp.exp(s)                                  # f32 softmax
                p = p * pl.reciprocal(jnp.sum(p, axis=-1, keepdims=True),
                                      approx=True)
                ctx_heads.append(
                    jnp.einsum('bqk,bkd->bqd', p.astype(jnp.bfloat16),
                               v[:, :, sl],
                               preferred_element_type=jnp.float32))
            ctx = jnp.concatenate(ctx_heads, axis=-1).reshape(BS, D)

            attn_out = _mm(ctx, w_out_ref[l]) + b_out_ref[l]
            x = _layer_norm(x + attn_out, ln1_g_ref[l], ln1_b_ref[l])

            # ---- ReLU feed-forward ----
            h1 = jnp.maximum(_mm(x, w1_ref[l]) + b1_ref[l], 0.0)
            ff = _mm(h1, w2_ref[l]) + b2_ref[l]
            x = _layer_norm(x + ff, ln2_g_ref[l], ln2_b_ref[l])

        # shared LayerNorm applied after every decoder block
        x = _layer_norm(x, lnf_g_ref[...], lnf_b_ref[...])

    # vocab projection, lane-dense padded output (single unmasked (BS,128) store)
    o_ref[...] = _mm(x, wv_ref[...]) + bv_ref[...]


# ----------------------------- pallas_call wrapper -----------------------------
def gpt_decoder_pallas(x_flat, p):
    kern = functools.partial(
        fused_gpt_kernel, batch=BATCH, seq=SEQ, n_heads=HEADS, head_dim=HEAD_DIM,
        decoder_num=DECODER_NUM, n_layers=DECODE_LAYER_NUM)
    args = (x_flat,
            p["w_in_T"], p["b_in"], p["w_out_T"], p["b_out"],
            p["ln1_g"], p["ln1_b"], p["w1_T"], p["b1"], p["w2_T"], p["b2"],
            p["ln2_g"], p["ln2_b"],
            p["ln_g"], p["ln_b"], p["ffn_w_T"], p["ffn_b"])
    # Single call, no grid: every operand is a full-array VMEM block (total <1 MiB,
    # fits the scoped VMEM limit on v5e/v6e/v7x alike).
    return pl.pallas_call(
        kern,
        out_shape=jax.ShapeDtypeStruct((BATCH * SEQ, VOCAB_PAD), jnp.float32),
    )(*args)


# ----------------------------- params & forward -----------------------------
def init_params(key):
    def nrm(k, shape, scale=0.02):
        return scale * jax.random.normal(k, shape, dtype=jnp.float32)

    L = DECODE_LAYER_NUM
    keys = jax.random.split(key, 3 + L)

    w_in, w_out, w1, w2 = [], [], [], []
    for li in range(L):
        lk = jax.random.split(keys[3 + li], 4)
        w_in.append(nrm(lk[0], (DIM, 3 * DIM)))   # in_proj_weight.T
        w_out.append(nrm(lk[1], (DIM, DIM)))      # out_proj.weight.T
        w1.append(nrm(lk[2], (DIM, FFN)))         # linear1.weight.T
        w2.append(nrm(lk[3], (FFN, DIM)))         # linear2.weight.T

    params = {
        "tok_emb": nrm(keys[0], (VOCAB, DIM), 1.0),
        "pos_emb": nrm(keys[1], (SEQ, DIM), 1.0),
        # stacked per-layer encoder weights; matmul weights stored as bf16 (f32 accum in-kernel)
        "w_in_T": jnp.stack(w_in).astype(jnp.bfloat16),     # (L, D, 3D)
        "b_in": jnp.zeros((L, 1, 3 * DIM), jnp.float32),
        "w_out_T": jnp.stack(w_out).astype(jnp.bfloat16),   # (L, D, D)
        "b_out": jnp.zeros((L, 1, DIM), jnp.float32),
        "ln1_g": jnp.ones((L, 1, DIM), jnp.float32),
        "ln1_b": jnp.zeros((L, 1, DIM), jnp.float32),
        "w1_T": jnp.stack(w1).astype(jnp.bfloat16),          # (L, D, FFN)
        "b1": jnp.zeros((L, 1, FFN), jnp.float32),
        "w2_T": jnp.stack(w2).astype(jnp.bfloat16),          # (L, FFN, D)
        "b2": jnp.zeros((L, 1, DIM), jnp.float32),
        "ln2_g": jnp.ones((L, 1, DIM), jnp.float32),
        "ln2_b": jnp.zeros((L, 1, DIM), jnp.float32),
        # shared block-level LayerNorm + vocab projection (padded to 128 lanes, zeros in pad)
        "ln_g": jnp.ones((1, DIM), jnp.float32),
        "ln_b": jnp.zeros((1, DIM), jnp.float32),
        "ffn_w_T": jnp.pad(nrm(keys[2], (DIM, VOCAB)),
                           ((0, 0), (0, VOCAB_PAD - VOCAB))).astype(jnp.bfloat16),
        "ffn_b": jnp.zeros((1, VOCAB_PAD), jnp.float32),
    }
    return params


@jax.jit
def gpt_decoder_forward(tokens, params):
    # token / position embedding gather + add kept in plain JAX (data-dependent gather glue)
    x = jnp.take(params["tok_emb"], tokens, axis=0) + params["pos_emb"][None]   # (B, S, D)
    x = x.reshape(BATCH * SEQ, DIM)
    # torch transposes to (S, B, D) here; attention is per-batch and all other ops are
    # per-token, so the fused kernel's (B*S, D) layout is semantically identical.
    logits_pad = gpt_decoder_pallas(x, params)                                  # (B*S, 128)
    return logits_pad.reshape(BATCH, SEQ, VOCAB_PAD)[:, :, :VOCAB]              # (B, S, V)


if __name__ == "__main__":
    key = jax.random.PRNGKey(0)
    pkey, tkey = jax.random.split(key)
    params = init_params(pkey)
    tokens = jax.random.randint(tkey, (BATCH, SEQ), 0, VOCAB, dtype=jnp.int32)

    logits = gpt_decoder_forward(tokens, params)
    jax.block_until_ready(logits)

    assert logits.shape == (BATCH, SEQ, VOCAB)
    assert bool(jnp.all(jnp.isfinite(logits)))
    print("KERNEL_OK")
</pallas_src>

<mosaic_0001>
module attributes {stable_mosaic.version = 11 : i64} {
  func.func @fused_gpt_kernel(%arg0: memref<16x32xf32, #tpu.memory_space<vmem>>, %arg1: memref<2x32x96xbf16, #tpu.memory_space<vmem>>, %arg2: memref<2x1x96xf32, #tpu.memory_space<vmem>>, %arg3: memref<2x32x32xbf16, #tpu.memory_space<vmem>>, %arg4: memref<2x1x32xf32, #tpu.memory_space<vmem>>, %arg5: memref<2x1x32xf32, #tpu.memory_space<vmem>>, %arg6: memref<2x1x32xf32, #tpu.memory_space<vmem>>, %arg7: memref<2x32x64xbf16, #tpu.memory_space<vmem>>, %arg8: memref<2x1x64xf32, #tpu.memory_space<vmem>>, %arg9: memref<2x64x32xbf16, #tpu.memory_space<vmem>>, %arg10: memref<2x1x32xf32, #tpu.memory_space<vmem>>, %arg11: memref<2x1x32xf32, #tpu.memory_space<vmem>>, %arg12: memref<2x1x32xf32, #tpu.memory_space<vmem>>, %arg13: memref<1x32xf32, #tpu.memory_space<vmem>>, %arg14: memref<1x32xf32, #tpu.memory_space<vmem>>, %arg15: memref<32x128xbf16, #tpu.memory_space<vmem>>, %arg16: memref<1x128xf32, #tpu.memory_space<vmem>>, %arg17: memref<16x128xf32, #tpu.memory_space<vmem>>) attributes {dimension_semantics = [], scalar_prefetch = 0 : i64, scratch_operands = 0 : i64, tpu.core_type = #tpu.core_type<tc>} {
    %c0 = arith.constant 0 : index
    %c0_0 = arith.constant 0 : index
    %0 = vector.load %arg0[%c0, %c0_0] : memref<16x32xf32, #tpu.memory_space<vmem>>, vector<16x32xf32>
    %1 = tpu.iota {dimensions = array<i32: 0>} : vector<8x8xi32>
    %2 = tpu.iota {dimensions = array<i32: 1>} : vector<8x8xi32>
    %3 = arith.cmpi sle, %2, %1 : vector<8x8xi32>
    %cst = arith.constant 0.000000e+00 : f32
    %cst_1 = arith.constant -1.000000e+30 : f32
    %4 = vector.broadcast %cst : f32 to vector<8x8xf32>
    %5 = vector.broadcast %cst_1 : f32 to vector<8x8xf32>
    %6 = arith.select %3, %4, %5 : vector<8x8xi1>, vector<8x8xf32>
    %7 = vector.shape_cast %6 : vector<8x8xf32> to vector<1x8x8xf32>
    %c0_2 = arith.constant 0 : index
    %c0_3 = arith.constant 0 : index
    %c0_4 = arith.constant 0 : index
    %8 = vector.load %arg1[%c0_2, %c0_3, %c0_4] : memref<2x32x96xbf16, #tpu.memory_space<vmem>>, vector<1x32x96xbf16>
    %9 = vector.shape_cast %8 : vector<1x32x96xbf16> to vector<32x96xbf16>
    %10 = arith.truncf %0 : vector<16x32xf32> to vector<16x32xbf16>
    %cst_5 = arith.constant dense<0.000000e+00> : vector<16x96xf32>
    %11 = tpu.matmul %10, %9, %cst_5 {dimension_numbers = #tpu.dot_dimension_numbers<[1], [0], [0], [1], [0, 0, 1, 1], [], []>} : vector<16x32xbf16>, vector<32x96xbf16>, vector<16x96xf32> -> vector<16x96xf32>
    %c0_6 = arith.constant 0 : index
    %c0_7 = arith.constant 0 : index
    %c0_8 = arith.constant 0 : index
    %12 = vector.load %arg2[%c0_6, %c0_7, %c0_8] : memref<2x1x96xf32, #tpu.memory_space<vmem>>, vector<1x1x96xf32>
    %13 = vector.shape_cast %12 : vector<1x1x96xf32> to vector<1x96xf32>
    %14 = vector.broadcast %13 : vector<1x96xf32> to vector<16x96xf32>
    %15 = arith.addf %11, %14 : vector<16x96xf32>
    %16 = vector.extract_strided_slice %15 {offsets = [0, 0], sizes = [16, 32], strides = [1, 1]} : vector<16x96xf32> to vector<16x32xf32>
    %cst_9 = arith.constant 0.353553385 : f32
    %17 = vector.broadcast %cst_9 : f32 to vector<16x32xf32>
    %18 = arith.mulf %16, %17 : vector<16x32xf32>
    %19 = vector.shape_cast %18 : vector<16x32xf32> to vector<2x8x32xf32>
    %20 = arith.truncf %19 : vector<2x8x32xf32> to vector<2x8x32xbf16>
    %21 = vector.extract_strided_slice %15 {offsets = [0, 32], sizes = [16, 32], strides = [1, 1]} : vector<16x96xf32> to vector<16x32xf32>
    %22 = vector.shape_cast %21 : vector<16x32xf32> to vector<2x8x32xf32>
    %23 = arith.truncf %22 : vector<2x8x32xf32> to vector<2x8x32xbf16>
    %24 = vector.extract_strided_slice %15 {offsets = [0, 64], sizes = [16, 32], strides = [1, 1]} : vector<16x96xf32> to vector<16x32xf32>
    %25 = vector.shape_cast %24 : vector<16x32xf32> to vector<2x8x32xf32>
    %26 = arith.truncf %25 : vector<2x8x32xf32> to vector<2x8x32xbf16>
    %27 = vector.extract_strided_slice %20 {offsets = [0, 0, 0], sizes = [2, 8, 8], strides = [1, 1, 1]} : vector<2x8x32xbf16> to vector<2x8x8xbf16>
    %28 = vector.extract_strided_slice %23 {offsets = [0, 0, 0], sizes = [2, 8, 8], strides = [1, 1, 1]} : vector<2x8x32xbf16> to vector<2x8x8xbf16>
    "tpu.trace_start"() <{level = 10 : i32, message = "bqd,bkd->bqk"}> : () -> ()
    %cst_10 = arith.constant dense<0.000000e+00> : vector<2x8x8xf32>
    %29 = tpu.matmul %27, %28, %cst_10 {dimension_numbers = #tpu.dot_dimension_numbers<[2], [2], [1], [1], [0, 0, 0, 1, 1, 1], [0], [0]>} : vector<2x8x8xbf16>, vector<2x8x8xbf16>, vector<2x8x8xf32> -> vector<2x8x8xf32>
    "tpu.trace_stop"() : () -> ()
    %30 = vector.broadcast %7 : vector<1x8x8xf32> to vector<2x8x8xf32>
    %31 = arith.addf %29, %30 : vector<2x8x8xf32>
    %cst_11 = arith.constant dense<0xFF800000> : vector<2x8xf32>
    %32 = vector.multi_reduction <maximumf>, %31, %cst_11 [2] : vector<2x8x8xf32> to vector<2x8xf32>
    %33 = vector.shape_cast %32 : vector<2x8xf32> to vector<2x8x1xf32>
    %34 = vector.broadcast %33 : vector<2x8x1xf32> to vector<2x8x8xf32>
    %35 = arith.subf %31, %34 : vector<2x8x8xf32>
    %36 = math.exp %35 : vector<2x8x8xf32>
    %cst_12 = arith.constant dense<0.000000e+00> : vector<2x8xf32>
    %37 = vector.multi_reduction <add>, %36, %cst_12 [2] : vector<2x8x8xf32> to vector<2x8xf32>
    %38 = vector.shape_cast %37 : vector<2x8xf32> to vector<2x8x1xf32>
    %39 = tpu.reciprocal %38 {approx = true} : vector<2x8x1xf32> -> vector<2x8x1xf32>
    %40 = vector.broadcast %39 : vector<2x8x1xf32> to vector<2x8x8xf32>
    %41 = arith.mulf %36, %40 : vector<2x8x8xf32>
    %42 = arith.truncf %41 : vector<2x8x8xf32> to vector<2x8x8xbf16>
    %43 = vector.extract_strided_slice %26 {offsets = [0, 0, 0], sizes = [2, 8, 8], strides = [1, 1, 1]} : vector<2x8x32xbf16> to vector<2x8x8xbf16>
    "tpu.trace_start"() <{level = 10 : i32, message = "bqk,bkd->bqd"}> : () -> ()
    %cst_13 = arith.constant dense<0.000000e+00> : vector<2x8x8xf32>
    %44 = tpu.matmul %42, %43, %cst_13 {dimension_numbers = #tpu.dot_dimension_numbers<[2], [1], [1], [2], [0, 0, 0, 1, 1, 2], [0], [0]>} : vector<2x8x8xbf16>, vector<2x8x8xbf16>, vector<2x8x8xf32> -> vector<2x8x8xf32>
    "tpu.trace_stop"() : () -> ()
    %45 = vector.extract_strided_slice %20 {offsets = [0, 0, 8], sizes = [2, 8, 8], strides = [1, 1, 1]} : vector<2x8x32xbf16> to vector<2x8x8xbf16>
    %46 = vector.extract_strided_slice %23 {offsets = [0, 0, 8], sizes = [2, 8, 8], strides = [1, 1, 1]} : vector<2x8x32xbf16> to vector<2x8x8xbf16>
    "tpu.trace_start"() <{level = 10 : i32, message = "bqd,bkd->bqk"}> : () -> ()
    %cst_14 = arith.constant dense<0.000000e+00> : vector<2x8x8xf32>
    %47 = tpu.matmul %45, %46, %cst_14 {dimension_numbers = #tpu.dot_dimension_numbers<[2], [2], [1], [1], [0, 0, 0, 1, 1, 1], [0], [0]>} : vector<2x8x8xbf16>, vector<2x8x8xbf16>, vector<2x8x8xf32> -> vector<2x8x8xf32>
    "tpu.trace_stop"() : () -> ()
    %48 = vector.broadcast %7 : vector<1x8x8xf32> to vector<2x8x8xf32>
    %49 = arith.addf %47, %48 : vector<2x8x8xf32>
    %cst_15 = arith.constant dense<0xFF800000> : vector<2x8xf32>
    %50 = vector.multi_reduction <maximumf>, %49, %cst_15 [2] : vector<2x8x8xf32> to vector<2x8xf32>
    %51 = vector.shape_cast %50 : vector<2x8xf32> to vector<2x8x1xf32>
    %52 = vector.broadcast %51 : vector<2x8x1xf32> to vector<2x8x8xf32>
    %53 = arith.subf %49, %52 : vector<2x8x8xf32>
    %54 = math.exp %53 : vector<2x8x8xf32>
    %cst_16 = arith.constant dense<0.000000e+00> : vector<2x8xf32>
    %55 = vector.multi_reduction <add>, %54, %cst_16 [2] : vector<2x8x8xf32> to vector<2x8xf32>
    %56 = vector.shape_cast %55 : vector<2x8xf32> to vector<2x8x1xf32>
    %57 = tpu.reciprocal %56 {approx = true} : vector<2x8x1xf32> -> vector<2x8x1xf32>
    %58 = vector.broadcast %57 : vector<2x8x1xf32> to vector<2x8x8xf32>
    %59 = arith.mulf %54, %58 : vector<2x8x8xf32>
    %60 = arith.truncf %59 : vector<2x8x8xf32> to vector<2x8x8xbf16>
    %61 = vector.extract_strided_slice %26 {offsets = [0, 0, 8], sizes = [2, 8, 8], strides = [1, 1, 1]} : vector<2x8x32xbf16> to vector<2x8x8xbf16>
    "tpu.trace_start"() <{level = 10 : i32, message = "bqk,bkd->bqd"}> : () -> ()
    %cst_17 = arith.constant dense<0.000000e+00> : vector<2x8x8xf32>
    %62 = tpu.matmul %60, %61, %cst_17 {dimension_numbers = #tpu.dot_dimension_numbers<[2], [1], [1], [2], [0, 0, 0, 1, 1, 2], [0], [0]>} : vector<2x8x8xbf16>, vector<2x8x8xbf16>, vector<2x8x8xf32> -> vector<2x8x8xf32>
    "tpu.trace_stop"() : () -> ()
    %63 = vector.extract_strided_slice %20 {offsets = [0, 0, 16], sizes = [2, 8, 8], strides = [1, 1, 1]} : vector<2x8x32xbf16> to vector<2x8x8xbf16>
    %64 = vector.extract_strided_slice %23 {offsets = [0, 0, 16], sizes = [2, 8, 8], strides = [1, 1, 1]} : vector<2x8x32xbf16> to vector<2x8x8xbf16>
    "tpu.trace_start"() <{level = 10 : i32, message = "bqd,bkd->bqk"}> : () -> ()
    %cst_18 = arith.constant dense<0.000000e+00> : vector<2x8x8xf32>
    %65 = tpu.matmul %63, %64, %cst_18 {dimension_numbers = #tpu.dot_dimension_numbers<[2], [2], [1], [1], [0, 0, 0, 1, 1, 1], [0], [0]>} : vector<2x8x8xbf16>, vector<2x8x8xbf16>, vector<2x8x8xf32> -> vector<2x8x8xf32>
    "tpu.trace_stop"() : () -> ()
    %66 = vector.broadcast %7 : vector<1x8x8xf32> to vector<2x8x8xf32>
    %67 = arith.addf %65, %66 : vector<2x8x8xf32>
    %cst_19 = arith.constant dense<0xFF800000> : vector<2x8xf32>
    %68 = vector.multi_reduction <maximumf>, %67, %cst_19 [2] : vector<2x8x8xf32> to vector<2x8xf32>
    %69 = vector.shape_cast %68 : vector<2x8xf32> to vector<2x8x1xf32>
    %70 = vector.broadcast %69 : vector<2x8x1xf32> to vector<2x8x8xf32>
    %71 = arith.subf %67, %70 : vector<2x8x8xf32>
    %72 = math.exp %71 : vector<2x8x8xf32>
    %cst_20 = arith.constant dense<0.000000e+00> : vector<2x8xf32>
    %73 = vector.multi_reduction <add>, %72, %cst_20 [2] : vector<2x8x8xf32> to vector<2x8xf32>
    %74 = vector.shape_cast %73 : vector<2x8xf32> to vector<2x8x1xf32>
    %75 = tpu.reciprocal %74 {approx = true} : vector<2x8x1xf32> -> vector<2x8x1xf32>
    %76 = vector.broadcast %75 : vector<2x8x1xf32> to vector<2x8x8xf32>
    %77 = arith.mulf %72, %76 : vector<2x8x8xf32>
    %78 = arith.truncf %77 : vector<2x8x8xf32> to vector<2x8x8xbf16>
    %79 = vector.extract_strided_slice %26 {offsets = [0, 0, 16], sizes = [2, 8, 8], strides = [1, 1, 1]} : vector<2x8x32xbf16> to vector<2x8x8xbf16>
    "tpu.trace_start"() <{level = 10 : i32, message = "bqk,bkd->bqd"}> : () -> ()
    %cst_21 = arith.constant dense<0.000000e+00> : vector<2x8x8xf32>
    %80 = tpu.matmul %78, %79, %cst_21 {dimension_numbers = #tpu.dot_dimension_numbers<[2], [1], [1], [2], [0, 0, 0, 1, 1, 2], [0], [0]>} : vector<2x8x8xbf16>, vector<2x8x8xbf16>, vector<2x8x8xf32> -> vector<2x8x8xf32>
    "tpu.trace_stop"() : () -> ()
    %81 = vector.extract_strided_slice %20 {offsets = [0, 0, 24], sizes = [2, 8, 8], strides = [1, 1, 1]} : vector<2x8x32xbf16> to vector<2x8x8xbf16>
    %82 = vector.extract_strided_slice %23 {offsets = [0, 0, 24], sizes = [2, 8, 8], strides = [1, 1, 1]} : vector<2x8x32xbf16> to vector<2x8x8xbf16>
    "tpu.trace_start"() <{level = 10 : i32, message = "bqd,bkd->bqk"}> : () -> ()
    %cst_22 = arith.constant dense<0.000000e+00> : vector<2x8x8xf32>
    %83 = tpu.matmul %81, %82, %cst_22 {dimension_numbers = #tpu.dot_dimension_numbers<[2], [2], [1], [1], [0, 0, 0, 1, 1, 1], [0], [0]>} : vector<2x8x8xbf16>, vector<2x8x8xbf16>, vector<2x8x8xf32> -> vector<2x8x8xf32>
    "tpu.trace_stop"() : () -> ()
    %84 = vector.broadcast %7 : vector<1x8x8xf32> to vector<2x8x8xf32>
    %85 = arith.addf %83, %84 : vector<2x8x8xf32>
    %cst_23 = arith.constant dense<0xFF800000> : vector<2x8xf32>
    %86 = vector.multi_reduction <maximumf>, %85, %cst_23 [2] : vector<2x8x8xf32> to vector<2x8xf32>
    %87 = vector.shape_cast %86 : vector<2x8xf32> to vector<2x8x1xf32>
    %88 = vector.broadcast %87 : vector<2x8x1xf32> to vector<2x8x8xf32>
    %89 = arith.subf %85, %88 : vector<2x8x8xf32>
    %90 = math.exp %89 : vector<2x8x8xf32>
    %cst_24 = arith.constant dense<0.000000e+00> : vector<2x8xf32>
    %91 = vector.multi_reduction <add>, %90, %cst_24 [2] : vector<2x8x8xf32> to vector<2x8xf32>
    %92 = vector.shape_cast %91 : vector<2x8xf32> to vector<2x8x1xf32>
    %93 = tpu.reciprocal %92 {approx = true} : vector<2x8x1xf32> -> vector<2x8x1xf32>
    %94 = vector.broadcast %93 : vector<2x8x1xf32> to vector<2x8x8xf32>
    %95 = arith.mulf %90, %94 : vector<2x8x8xf32>
    %96 = arith.truncf %95 : vector<2x8x8xf32> to vector<2x8x8xbf16>
    %97 = vector.extract_strided_slice %26 {offsets = [0, 0, 24], sizes = [2, 8, 8], strides = [1, 1, 1]} : vector<2x8x32xbf16> to vector<2x8x8xbf16>
    "tpu.trace_start"() <{level = 10 : i32, message = "bqk,bkd->bqd"}> : () -> ()
    %cst_25 = arith.constant dense<0.000000e+00> : vector<2x8x8xf32>
    %98 = tpu.matmul %96, %97, %cst_25 {dimension_numbers = #tpu.dot_dimension_numbers<[2], [1], [1], [2], [0, 0, 0, 1, 1, 2], [0], [0]>} : vector<2x8x8xbf16>, vector<2x8x8xbf16>, vector<2x8x8xf32> -> vector<2x8x8xf32>
    "tpu.trace_stop"() : () -> ()
    %99 = tpu.concatenate %44, %62, %80, %98 in 2 : vector<2x8x8xf32>, vector<2x8x8xf32>, vector<2x8x8xf32>, vector<2x8x8xf32> -> vector<2x8x32xf32>
    %100 = vector.shape_cast %99 : vector<2x8x32xf32> to vector<16x32xf32>
    %c0_26 = arith.constant 0 : index
    %c0_27 = arith.constant 0 : index
    %c0_28 = arith.constant 0 : index
    %101 = vector.load %arg3[%c0_26, %c0_27, %c0_28] : memref<2x32x32xbf16, #tpu.memory_space<vmem>>, vector<1x32x32xbf16>
    %102 = vector.shape_cast %101 : vector<1x32x32xbf16> to vector<32x32xbf16>
    %103 = arith.truncf %100 : vector<16x32xf32> to vector<16x32xbf16>
    %cst_29 = arith.constant dense<0.000000e+00> : vector<16x32xf32>
    %104 = tpu.matmul %103, %102, %cst_29 {dimension_numbers = #tpu.dot_dimension_numbers<[1], [0], [0], [1], [0, 0, 1, 1], [], []>} : vector<16x32xbf16>, vector<32x32xbf16>, vector<16x32xf32> -> vector<16x32xf32>
    %c0_30 = arith.constant 0 : index
    %c0_31 = arith.constant 0 : index
    %c0_32 = arith.constant 0 : index
    %105 = vector.load %arg4[%c0_30, %c0_31, %c0_32] : memref<2x1x32xf32, #tpu.memory_space<vmem>>, vector<1x1x32xf32>
    %106 = vector.shape_cast %105 : vector<1x1x32xf32> to vector<1x32xf32>
    %107 = vector.broadcast %106 : vector<1x32xf32> to vector<16x32xf32>
    %108 = arith.addf %104, %107 : vector<16x32xf32>
    %109 = arith.addf %0, %108 : vector<16x32xf32>
    %c0_33 = arith.constant 0 : index
    %c0_34 = arith.constant 0 : index
    %c0_35 = arith.constant 0 : index
    %110 = vector.load %arg5[%c0_33, %c0_34, %c0_35] : memref<2x1x32xf32, #tpu.memory_space<vmem>>, vector<1x1x32xf32>
    %111 = vector.shape_cast %110 : vector<1x1x32xf32> to vector<1x32xf32>
    %c0_36 = arith.constant 0 : index
    %c0_37 = arith.constant 0 : index
    %c0_38 = arith.constant 0 : index
    %112 = vector.load %arg6[%c0_36, %c0_37, %c0_38] : memref<2x1x32xf32, #tpu.memory_space<vmem>>, vector<1x1x32xf32>
    %113 = vector.shape_cast %112 : vector<1x1x32xf32> to vector<1x32xf32>
    %cst_39 = arith.constant dense<0.000000e+00> : vector<16xf32>
    %114 = vector.multi_reduction <add>, %109, %cst_39 [1] : vector<16x32xf32> to vector<16xf32>
    %115 = vector.shape_cast %114 : vector<16xf32> to vector<16x1xf32>
    %cst_40 = arith.constant 3.200000e+01 : f32
    %116 = vector.broadcast %cst_40 : f32 to vector<16x1xf32>
    %117 = arith.divf %115, %116 : vector<16x1xf32>
    %118 = vector.broadcast %117 : vector<16x1xf32> to vector<16x32xf32>
    %119 = arith.subf %109, %118 : vector<16x32xf32>
    %120 = arith.mulf %119, %119 : vector<16x32xf32>
    %cst_41 = arith.constant dense<0.000000e+00> : vector<16xf32>
    %121 = vector.multi_reduction <add>, %120, %cst_41 [1] : vector<16x32xf32> to vector<16xf32>
    %122 = vector.shape_cast %121 : vector<16xf32> to vector<16x1xf32>
    %cst_42 = arith.constant 3.200000e+01 : f32
    %123 = vector.broadcast %cst_42 : f32 to vector<16x1xf32>
    %124 = arith.divf %122, %123 : vector<16x1xf32>
    %125 = vector.broadcast %117 : vector<16x1xf32> to vector<16x32xf32>
    %126 = arith.subf %109, %125 : vector<16x32xf32>
    %cst_43 = arith.constant 9.99999974E-6 : f32
    %127 = vector.broadcast %cst_43 : f32 to vector<16x1xf32>
    %128 = arith.addf %124, %127 : vector<16x1xf32>
    %129 = math.rsqrt %128 : vector<16x1xf32>
    %130 = vector.broadcast %129 : vector<16x1xf32> to vector<16x32xf32>
    %131 = arith.mulf %126, %130 : vector<16x32xf32>
    %132 = vector.broadcast %111 : vector<1x32xf32> to vector<16x32xf32>
    %133 = arith.mulf %131, %132 : vector<16x32xf32>
    %134 = vector.broadcast %113 : vector<1x32xf32> to vector<16x32xf32>
    %135 = arith.addf %133, %134 : vector<16x32xf32>
    %c0_44 = arith.constant 0 : index
    %c0_45 = arith.constant 0 : index
    %c0_46 = arith.constant 0 : index
    %136 = vector.load %arg7[%c0_44, %c0_45, %c0_46] : memref<2x32x64xbf16, #tpu.memory_space<vmem>>, vector<1x32x64xbf16>
    %137 = vector.shape_cast %136 : vector<1x32x64xbf16> to vector<32x64xbf16>
    %138 = arith.truncf %135 : vector<16x32xf32> to vector<16x32xbf16>
    %cst_47 = arith.constant dense<0.000000e+00> : vector<16x64xf32>
    %139 = tpu.matmul %138, %137, %cst_47 {dimension_numbers = #tpu.dot_dimension_numbers<[1], [0], [0], [1], [0, 0, 1, 1], [], []>} : vector<16x32xbf16>, vector<32x64xbf16>, vector<16x64xf32> -> vector<16x64xf32>
    %c0_48 = arith.constant 0 : index
    %c0_49 = arith.constant 0 : index
    %c0_50 = arith.constant 0 : index
    %140 = vector.load %arg8[%c0_48, %c0_49, %c0_50] : memref<2x1x64xf32, #tpu.memory_space<vmem>>, vector<1x1x64xf32>
    %141 = vector.shape_cast %140 : vector<1x1x64xf32> to vector<1x64xf32>
    %142 = vector.broadcast %141 : vector<1x64xf32> to vector<16x64xf32>
    %143 = arith.addf %139, %142 : vector<16x64xf32>
    %cst_51 = arith.constant 0.000000e+00 : f32
    %144 = vector.broadcast %cst_51 : f32 to vector<16x64xf32>
    %145 = arith.maximumf %143, %144 : vector<16x64xf32>
    %c0_52 = arith.constant 0 : index
    %c0_53 = arith.constant 0 : index
    %c0_54 = arith.constant 0 : index
    %146 = vector.load %arg9[%c0_52, %c0_53, %c0_54] : memref<2x64x32xbf16, #tpu.memory_space<vmem>>, vector<1x64x32xbf16>
    %147 = vector.shape_cast %146 : vector<1x64x32xbf16> to vector<64x32xbf16>
    %148 = arith.truncf %145 : vector<16x64xf32> to vector<16x64xbf16>
    %cst_55 = arith.constant dense<0.000000e+00> : vector<16x32xf32>
    %149 = tpu.matmul %148, %147, %cst_55 {dimension_numbers = #tpu.dot_dimension_numbers<[1], [0], [0], [1], [0, 0, 1, 1], [], []>} : vector<16x64xbf16>, vector<64x32xbf16>, vector<16x32xf32> -> vector<16x32xf32>
    %c0_56 = arith.constant 0 : index
    %c0_57 = arith.constant 0 : index
    %c0_58 = arith.constant 0 : index
    %150 = vector.load %arg10[%c0_56, %c0_57, %c0_58] : memref<2x1x32xf32, #tpu.memory_space<vmem>>, vector<1x1x32xf32>
    %151 = vector.shape_cast %150 : vector<1x1x32xf32> to vector<1x32xf32>
    %152 = vector.broadcast %151 : vector<1x32xf32> to vector<16x32xf32>
    %153 = arith.addf %149, %152 : vector<16x32xf32>
    %154 = arith.addf %135, %153 : vector<16x32xf32>
    %c0_59 = arith.constant 0 : index
    %c0_60 = arith.constant 0 : index
    %c0_61 = arith.constant 0 : index
    %155 = vector.load %arg11[%c0_59, %c0_60, %c0_61] : memref<2x1x32xf32, #tpu.memory_space<vmem>>, vector<1x1x32xf32>
    %156 = vector.shape_cast %155 : vector<1x1x32xf32> to vector<1x32xf32>
    %c0_62 = arith.constant 0 : index
    %c0_63 = arith.constant 0 : index
    %c0_64 = arith.constant 0 : index
    %157 = vector.load %arg12[%c0_62, %c0_63, %c0_64] : memref<2x1x32xf32, #tpu.memory_space<vmem>>, vector<1x1x32xf32>
    %158 = vector.shape_cast %157 : vector<1x1x32xf32> to vector<1x32xf32>
    %cst_65 = arith.constant dense<0.000000e+00> : vector<16xf32>
    %159 = vector.multi_reduction <add>, %154, %cst_65 [1] : vector<16x32xf32> to vector<16xf32>
    %160 = vector.shape_cast %159 : vector<16xf32> to vector<16x1xf32>
    %cst_66 = arith.constant 3.200000e+01 : f32
    %161 = vector.broadcast %cst_66 : f32 to vector<16x1xf32>
    %162 = arith.divf %160, %161 : vector<16x1xf32>
    %163 = vector.broadcast %162 : vector<16x1xf32> to vector<16x32xf32>
    %164 = arith.subf %154, %163 : vector<16x32xf32>
    %165 = arith.mulf %164, %164 : vector<16x32xf32>
    %cst_67 = arith.constant dense<0.000000e+00> : vector<16xf32>
    %166 = vector.multi_reduction <add>, %165, %cst_67 [1] : vector<16x32xf32> to vector<16xf32>
    %167 = vector.shape_cast %166 : vector<16xf32> to vector<16x1xf32>
    %cst_68 = arith.constant 3.200000e+01 : f32
    %168 = vector.broadcast %cst_68 : f32 to vector<16x1xf32>
    %169 = arith.divf %167, %168 : vector<16x1xf32>
    %170 = vector.broadcast %162 : vector<16x1xf32> to vector<16x32xf32>
    %171 = arith.subf %154, %170 : vector<16x32xf32>
    %cst_69 = arith.constant 9.99999974E-6 : f32
    %172 = vector.broadcast %cst_69 : f32 to vector<16x1xf32>
    %173 = arith.addf %169, %172 : vector<16x1xf32>
    %174 = math.rsqrt %173 : vector<16x1xf32>
    %175 = vector.broadcast %174 : vector<16x1xf32> to vector<16x32xf32>
    %176 = arith.mulf %171, %175 : vector<16x32xf32>
    %177 = vector.broadcast %156 : vector<1x32xf32> to vector<16x32xf32>
    %178 = arith.mulf %176, %177 : vector<16x32xf32>
    %179 = vector.broadcast %158 : vector<1x32xf32> to vector<16x32xf32>
    %180 = arith.addf %178, %179 : vector<16x32xf32>
    %c1 = arith.constant 1 : index
    %c0_70 = arith.constant 0 : index
    %c0_71 = arith.constant 0 : index
    %181 = vector.load %arg1[%c1, %c0_70, %c0_71] : memref<2x32x96xbf16, #tpu.memory_space<vmem>>, vector<1x32x96xbf16>
    %182 = vector.shape_cast %181 : vector<1x32x96xbf16> to vector<32x96xbf16>
    %183 = arith.truncf %180 : vector<16x32xf32> to vector<16x32xbf16>
    %cst_72 = arith.constant dense<0.000000e+00> : vector<16x96xf32>
    %184 = tpu.matmul %183, %182, %cst_72 {dimension_numbers = #tpu.dot_dimension_numbers<[1], [0], [0], [1], [0, 0, 1, 1], [], []>} : vector<16x32xbf16>, vector<32x96xbf16>, vector<16x96xf32> -> vector<16x96xf32>
    %c1_73 = arith.constant 1 : index
    %c0_74 = arith.constant 0 : index
    %c0_75 = arith.constant 0 : index
    %185 = vector.load %arg2[%c1_73, %c0_74, %c0_75] : memref<2x1x96xf32, #tpu.memory_space<vmem>>, vector<1x1x96xf32>
    %186 = vector.shape_cast %185 : vector<1x1x96xf32> to vector<1x96xf32>
    %187 = vector.broadcast %186 : vector<1x96xf32> to vector<16x96xf32>
    %188 = arith.addf %184, %187 : vector<16x96xf32>
    %189 = vector.extract_strided_slice %188 {offsets = [0, 0], sizes = [16, 32], strides = [1, 1]} : vector<16x96xf32> to vector<16x32xf32>
    %cst_76 = arith.constant 0.353553385 : f32
    %190 = vector.broadcast %cst_76 : f32 to vector<16x32xf32>
    %191 = arith.mulf %189, %190 : vector<16x32xf32>
    %192 = vector.shape_cast %191 : vector<16x32xf32> to vector<2x8x32xf32>
    %193 = arith.truncf %192 : vector<2x8x32xf32> to vector<2x8x32xbf16>
    %194 = vector.extract_strided_slice %188 {offsets = [0, 32], sizes = [16, 32], strides = [1, 1]} : vector<16x96xf32> to vector<16x32xf32>
    %195 = vector.shape_cast %194 : vector<16x32xf32> to vector<2x8x32xf32>
    %196 = arith.truncf %195 : vector<2x8x32xf32> to vector<2x8x32xbf16>
    %197 = vector.extract_strided_slice %188 {offsets = [0, 64], sizes = [16, 32], strides = [1, 1]} : vector<16x96xf32> to vector<16x32xf32>
    %198 = vector.shape_cast %197 : vector<16x32xf32> to vector<2x8x32xf32>
    %199 = arith.truncf %198 : vector<2x8x32xf32> to vector<2x8x32xbf16>
    %200 = vector.extract_strided_slice %193 {offsets = [0, 0, 0], sizes = [2, 8, 8], strides = [1, 1, 1]} : vector<2x8x32xbf16> to vector<2x8x8xbf16>
    %201 = vector.extract_strided_slice %196 {offsets = [0, 0, 0], sizes = [2, 8, 8], strides = [1, 1, 1]} : vector<2x8x32xbf16> to vector<2x8x8xbf16>
    "tpu.trace_start"() <{level = 10 : i32, message = "bqd,bkd->bqk"}> : () -> ()
    %cst_77 = arith.constant dense<0.000000e+00> : vector<2x8x8xf32>
    %202 = tpu.matmul %200, %201, %cst_77 {dimension_numbers = #tpu.dot_dimension_numbers<[2], [2], [1], [1], [0, 0, 0, 1, 1, 1], [0], [0]>} : vector<2x8x8xbf16>, vector<2x8x8xbf16>, vector<2x8x8xf32> -> vector<2x8x8xf32>
    "tpu.trace_stop"() : () -> ()
    %203 = vector.broadcast %7 : vector<1x8x8xf32> to vector<2x8x8xf32>
    %204 = arith.addf %202, %203 : vector<2x8x8xf32>
    %cst_78 = arith.constant dense<0xFF800000> : vector<2x8xf32>
    %205 = vector.multi_reduction <maximumf>, %204, %cst_78 [2] : vector<2x8x8xf32> to vector<2x8xf32>
    %206 = vector.shape_cast %205 : vector<2x8xf32> to vector<2x8x1xf32>
    %207 = vector.broadcast %206 : vector<2x8x1xf32> to vector<2x8x8xf32>
    %208 = arith.subf %204, %207 : vector<2x8x8xf32>
    %209 = math.exp %208 : vector<2x8x8xf32>
    %cst_79 = arith.constant dense<0.000000e+00> : vector<2x8xf32>
    %210 = vector.multi_reduction <add>, %209, %cst_79 [2] : vector<2x8x8xf32> to vector<2x8xf32>
    %211 = vector.shape_cast %210 : vector<2x8xf32> to vector<2x8x1xf32>
    %212 = tpu.reciprocal %211 {approx = true} : vector<2x8x1xf32> -> vector<2x8x1xf32>
    %213 = vector.broadcast %212 : vector<2x8x1xf32> to vector<2x8x8xf32>
    %214 = arith.mulf %209, %213 : vector<2x8x8xf32>
    %215 = arith.truncf %214 : vector<2x8x8xf32> to vector<2x8x8xbf16>
    %216 = vector.extract_strided_slice %199 {offsets = [0, 0, 0], sizes = [2, 8, 8], strides = [1, 1, 1]} : vector<2x8x32xbf16> to vector<2x8x8xbf16>
    "tpu.trace_start"() <{level = 10 : i32, message = "bqk,bkd->bqd"}> : () -> ()
    %cst_80 = arith.constant dense<0.000000e+00> : vector<2x8x8xf32>
    %217 = tpu.matmul %215, %216, %cst_80 {dimension_numbers = #tpu.dot_dimension_numbers<[2], [1], [1], [2], [0, 0, 0, 1, 1, 2], [0], [0]>} : vector<2x8x8xbf16>, vector<2x8x8xbf16>, vector<2x8x8xf32> -> vector<2x8x8xf32>
    "tpu.trace_stop"() : () -> ()
    %218 = vector.extract_strided_slice %193 {offsets = [0, 0, 8], sizes = [2, 8, 8], strides = [1, 1, 1]} : vector<2x8x32xbf16> to vector<2x8x8xbf16>
    %219 = vector.extract_strided_slice %196 {offsets = [0, 0, 8], sizes = [2, 8, 8], strides = [1, 1, 1]} : vector<2x8x32xbf16> to vector<2x8x8xbf16>
    "tpu.trace_start"() <{level = 10 : i32, message = "bqd,bkd->bqk"}> : () -> ()
    %cst_81 = arith.constant dense<0.000000e+00> : vector<2x8x8xf32>
    %220 = tpu.matmul %218, %219, %cst_81 {dimension_numbers = #tpu.dot_dimension_numbers<[2], [2], [1], [1], [0, 0, 0, 1, 1, 1], [0], [0]>} : vector<2x8x8xbf16>, vector<2x8x8xbf16>, vector<2x8x8xf32> -> vector<2x8x8xf32>
    "tpu.trace_stop"() : () -> ()
    %221 = vector.broadcast %7 : vector<1x8x8xf32> to vector<2x8x8xf32>
    %222 = arith.addf %220, %221 : vector<2x8x8xf32>
    %cst_82 = arith.constant dense<0xFF800000> : vector<2x8xf32>
    %223 = vector.multi_reduction <maximumf>, %222, %cst_82 [2] : vector<2x8x8xf32> to vector<2x8xf32>
    %224 = vector.shape_cast %223 : vector<2x8xf32> to vector<2x8x1xf32>
    %225 = vector.broadcast %224 : vector<2x8x1xf32> to vector<2x8x8xf32>
    %226 = arith.subf %222, %225 : vector<2x8x8xf32>
    %227 = math.exp %226 : vector<2x8x8xf32>
    %cst_83 = arith.constant dense<0.000000e+00> : vector<2x8xf32>
    %228 = vector.multi_reduction <add>, %227, %cst_83 [2] : vector<2x8x8xf32> to vector<2x8xf32>
    %229 = vector.shape_cast %228 : vector<2x8xf32> to vector<2x8x1xf32>
    %230 = tpu.reciprocal %229 {approx = true} : vector<2x8x1xf32> -> vector<2x8x1xf32>
    %231 = vector.broadcast %230 : vector<2x8x1xf32> to vector<2x8x8xf32>
    %232 = arith.mulf %227, %231 : vector<2x8x8xf32>
    %233 = arith.truncf %232 : vector<2x8x8xf32> to vector<2x8x8xbf16>
    %234 = vector.extract_strided_slice %199 {offsets = [0, 0, 8], sizes = [2, 8, 8], strides = [1, 1, 1]} : vector<2x8x32xbf16> to vector<2x8x8xbf16>
    "tpu.trace_start"() <{level = 10 : i32, message = "bqk,bkd->bqd"}> : () -> ()
    %cst_84 = arith.constant dense<0.000000e+00> : vector<2x8x8xf32>
    %235 = tpu.matmul %233, %234, %cst_84 {dimension_numbers = #tpu.dot_dimension_numbers<[2], [1], [1], [2], [0, 0, 0, 1, 1, 2], [0], [0]>} : vector<2x8x8xbf16>, vector<2x8x8xbf16>, vector<2x8x8xf32> -> vector<2x8x8xf32>
    "tpu.trace_stop"() : () -> ()
    %236 = vector.extract_strided_slice %193 {offsets = [0, 0, 16], sizes = [2, 8, 8], strides = [1, 1, 1]} : vector<2x8x32xbf16> to vector<2x8x8xbf16>
    %237 = vector.extract_strided_slice %196 {offsets = [0, 0, 16], sizes = [2, 8, 8], strides = [1, 1, 1]} : vector<2x8x32xbf16> to vector<2x8x8xbf16>
    "tpu.trace_start"() <{level = 10 : i32, message = "bqd,bkd->bqk"}> : () -> ()
    %cst_85 = arith.constant dense<0.000000e+00> : vector<2x8x8xf32>
    %238 = tpu.matmul %236, %237, %cst_85 {dimension_numbers = #tpu.dot_dimension_numbers<[2], [2], [1], [1], [0, 0, 0, 1, 1, 1], [0], [0]>} : vector<2x8x8xbf16>, vector<2x8x8xbf16>, vector<2x8x8xf32> -> vector<2x8x8xf32>
    "tpu.trace_stop"() : () -> ()
    %239 = vector.broadcast %7 : vector<1x8x8xf32> to vector<2x8x8xf32>
    %240 = arith.addf %238, %239 : vector<2x8x8xf32>
    %cst_86 = arith.constant dense<0xFF800000> : vector<2x8xf32>
    %241 = vector.multi_reduction <maximumf>, %240, %cst_86 [2] : vector<2x8x8xf32> to vector<2x8xf32>
    %242 = vector.shape_cast %241 : vector<2x8xf32> to vector<2x8x1xf32>
    %243 = vector.broadcast %242 : vector<2x8x1xf32> to vector<2x8x8xf32>
    %244 = arith.subf %240, %243 : vector<2x8x8xf32>
    %245 = math.exp %244 : vector<2x8x8xf32>
    %cst_87 = arith.constant dense<0.000000e+00> : vector<2x8xf32>
    %246 = vector.multi_reduction <add>, %245, %cst_87 [2] : vector<2x8x8xf32> to vector<2x8xf32>
    %247 = vector.shape_cast %246 : vector<2x8xf32> to vector<2x8x1xf32>
    %248 = tpu.reciprocal %247 {approx = true} : vector<2x8x1xf32> -> vector<2x8x1xf32>
    %249 = vector.broadcast %248 : vector<2x8x1xf32> to vector<2x8x8xf32>
    %250 = arith.mulf %245, %249 : vector<2x8x8xf32>
    %251 = arith.truncf %250 : vector<2x8x8xf32> to vector<2x8x8xbf16>
    %252 = vector.extract_strided_slice %199 {offsets = [0, 0, 16], sizes = [2, 8, 8], strides = [1, 1, 1]} : vector<2x8x32xbf16> to vector<2x8x8xbf16>
    "tpu.trace_start"() <{level = 10 : i32, message = "bqk,bkd->bqd"}> : () -> ()
    %cst_88 = arith.constant dense<0.000000e+00> : vector<2x8x8xf32>
    %253 = tpu.matmul %251, %252, %cst_88 {dimension_numbers = #tpu.dot_dimension_numbers<[2], [1], [1], [2], [0, 0, 0, 1, 1, 2], [0], [0]>} : vector<2x8x8xbf16>, vector<2x8x8xbf16>, vector<2x8x8xf32> -> vector<2x8x8xf32>
    "tpu.trace_stop"() : () -> ()
    %254 = vector.extract_strided_slice %193 {offsets = [0, 0, 24], sizes = [2, 8, 8], strides = [1, 1, 1]} : vector<2x8x32xbf16> to vector<2x8x8xbf16>
    %255 = vector.extract_strided_slice %196 {offsets = [0, 0, 24], sizes = [2, 8, 8], strides = [1, 1, 1]} : vector<2x8x32xbf16> to vector<2x8x8xbf16>
    "tpu.trace_start"() <{level = 10 : i32, message = "bqd,bkd->bqk"}> : () -> ()
    %cst_89 = arith.constant dense<0.000000e+00> : vector<2x8x8xf32>
    %256 = tpu.matmul %254, %255, %cst_89 {dimension_numbers = #tpu.dot_dimension_numbers<[2], [2], [1], [1], [0, 0, 0, 1, 1, 1], [0], [0]>} : vector<2x8x8xbf16>, vector<2x8x8xbf16>, vector<2x8x8xf32> -> vector<2x8x8xf32>
    "tpu.trace_stop"() : () -> ()
    %257 = vector.broadcast %7 : vector<1x8x8xf32> to vector<2x8x8xf32>
    %258 = arith.addf %256, %257 : vector<2x8x8xf32>
    %cst_90 = arith.constant dense<0xFF800000> : vector<2x8xf32>
    %259 = vector.multi_reduction <maximumf>, %258, %cst_90 [2] : vector<2x8x8xf32> to vector<2x8xf32>
    %260 = vector.shape_cast %259 : vector<2x8xf32> to vector<2x8x1xf32>
    %261 = vector.broadcast %260 : vector<2x8x1xf32> to vector<2x8x8xf32>
    %262 = arith.subf %258, %261 : vector<2x8x8xf32>
    %263 = math.exp %262 : vector<2x8x8xf32>
    %cst_91 = arith.constant dense<0.000000e+00> : vector<2x8xf32>
    %264 = vector.multi_reduction <add>, %263, %cst_91 [2] : vector<2x8x8xf32> to vector<2x8xf32>
    %265 = vector.shape_cast %264 : vector<2x8xf32> to vector<2x8x1xf32>
    %266 = tpu.reciprocal %265 {approx = true} : vector<2x8x1xf32> -> vector<2x8x1xf32>
    %267 = vector.broadcast %266 : vector<2x8x1xf32> to vector<2x8x8xf32>
    %268 = arith.mulf %263, %267 : vector<2x8x8xf32>
    %269 = arith.truncf %268 : vector<2x8x8xf32> to vector<2x8x8xbf16>
    %270 = vector.extract_strided_slice %199 {offsets = [0, 0, 24], sizes = [2, 8, 8], strides = [1, 1, 1]} : vector<2x8x32xbf16> to vector<2x8x8xbf16>
    "tpu.trace_start"() <{level = 10 : i32, message = "bqk,bkd->bqd"}> : () -> ()
    %cst_92 = arith.constant dense<0.000000e+00> : vector<2x8x8xf32>
    %271 = tpu.matmul %269, %270, %cst_92 {dimension_numbers = #tpu.dot_dimension_numbers<[2], [1], [1], [2], [0, 0, 0, 1, 1, 2], [0], [0]>} : vector<2x8x8xbf16>, vector<2x8x8xbf16>, vector<2x8x8xf32> -> vector<2x8x8xf32>
    "tpu.trace_stop"() : () -> ()
    %272 = tpu.concatenate %217, %235, %253, %271 in 2 : vector<2x8x8xf32>, vector<2x8x8xf32>, vector<2x8x8xf32>, vector<2x8x8xf32> -> vector<2x8x32xf32>
    %273 = vector.shape_cast %272 : vector<2x8x32xf32> to vector<16x32xf32>
    %c1_93 = arith.constant 1 : index
    %c0_94 = arith.constant 0 : index
    %c0_95 = arith.constant 0 : index
    %274 = vector.load %arg3[%c1_93, %c0_94, %c0_95] : memref<2x32x32xbf16, #tpu.memory_space<vmem>>, vector<1x32x32xbf16>
    %275 = vector.shape_cast %274 : vector<1x32x32xbf16> to vector<32x32xbf16>
    %276 = arith.truncf %273 : vector<16x32xf32> to vector<16x32xbf16>
    %cst_96 = arith.constant dense<0.000000e+00> : vector<16x32xf32>
    %277 = tpu.matmul %276, %275, %cst_96 {dimension_numbers = #tpu.dot_dimension_numbers<[1], [0], [0], [1], [0, 0, 1, 1], [], []>} : vector<16x32xbf16>, vector<32x32xbf16>, vector<16x32xf32> -> vector<16x32xf32>
    %c1_97 = arith.constant 1 : index
    %c0_98 = arith.constant 0 : index
    %c0_99 = arith.constant 0 : index
    %278 = vector.load %arg4[%c1_97, %c0_98, %c0_99] : memref<2x1x32xf32, #tpu.memory_space<vmem>>, vector<1x1x32xf32>
    %279 = vector.shape_cast %278 : vector<1x1x32xf32> to vector<1x32xf32>
    %280 = vector.broadcast %279 : vector<1x32xf32> to vector<16x32xf32>
    %281 = arith.addf %277, %280 : vector<16x32xf32>
    %282 = arith.addf %180, %281 : vector<16x32xf32>
    %c1_100 = arith.constant 1 : index
    %c0_101 = arith.constant 0 : index
    %c0_102 = arith.constant 0 : index
    %283 = vector.load %arg5[%c1_100, %c0_101, %c0_102] : memref<2x1x32xf32, #tpu.memory_space<vmem>>, vector<1x1x32xf32>
    %284 = vector.shape_cast %283 : vector<1x1x32xf32> to vector<1x32xf32>
    %c1_103 = arith.constant 1 : index
    %c0_104 = arith.constant 0 : index
    %c0_105 = arith.constant 0 : index
    %285 = vector.load %arg6[%c1_103, %c0_104, %c0_105] : memref<2x1x32xf32, #tpu.memory_space<vmem>>, vector<1x1x32xf32>
    %286 = vector.shape_cast %285 : vector<1x1x32xf32> to vector<1x32xf32>
    %cst_106 = arith.constant dense<0.000000e+00> : vector<16xf32>
    %287 = vector.multi_reduction <add>, %282, %cst_106 [1] : vector<16x32xf32> to vector<16xf32>
    %288 = vector.shape_cast %287 : vector<16xf32> to vector<16x1xf32>
    %cst_107 = arith.constant 3.200000e+01 : f32
    %289 = vector.broadcast %cst_107 : f32 to vector<16x1xf32>
    %290 = arith.divf %288, %289 : vector<16x1xf32>
    %291 = vector.broadcast %290 : vector<16x1xf32> to vector<16x32xf32>
    %292 = arith.subf %282, %291 : vector<16x32xf32>
    %293 = arith.mulf %292, %292 : vector<16x32xf32>
    %cst_108 = arith.constant dense<0.000000e+00> : vector<16xf32>
    %294 = vector.multi_reduction <add>, %293, %cst_108 [1] : vector<16x32xf32> to vector<16xf32>
    %295 = vector.shape_cast %294 : vector<16xf32> to vector<16x1xf32>
    %cst_109 = arith.constant 3.200000e+01 : f32
    %296 = vector.broadcast %cst_109 : f32 to vector<16x1xf32>
    %297 = arith.divf %295, %296 : vector<16x1xf32>
    %298 = vector.broadcast %290 : vector<16x1xf32> to vector<16x32xf32>
    %299 = arith.subf %282, %298 : vector<16x32xf32>
    %cst_110 = arith.constant 9.99999974E-6 : f32
    %300 = vector.broadcast %cst_110 : f32 to vector<16x1xf32>
    %301 = arith.addf %297, %300 : vector<16x1xf32>
    %302 = math.rsqrt %301 : vector<16x1xf32>
    %303 = vector.broadcast %302 : vector<16x1xf32> to vector<16x32xf32>
    %304 = arith.mulf %299, %303 : vector<16x32xf32>
    %305 = vector.broadcast %284 : vector<1x32xf32> to vector<16x32xf32>
    %306 = arith.mulf %304, %305 : vector<16x32xf32>
    %307 = vector.broadcast %286 : vector<1x32xf32> to vector<16x32xf32>
    %308 = arith.addf %306, %307 : vector<16x32xf32>
    %c1_111 = arith.constant 1 : index
    %c0_112 = arith.constant 0 : index
    %c0_113 = arith.constant 0 : index
    %309 = vector.load %arg7[%c1_111, %c0_112, %c0_113] : memref<2x32x64xbf16, #tpu.memory_space<vmem>>, vector<1x32x64xbf16>
    %310 = vector.shape_cast %309 : vector<1x32x64xbf16> to vector<32x64xbf16>
    %311 = arith.truncf %308 : vector<16x32xf32> to vector<16x32xbf16>
    %cst_114 = arith.constant dense<0.000000e+00> : vector<16x64xf32>
    %312 = tpu.matmul %311, %310, %cst_114 {dimension_numbers = #tpu.dot_dimension_numbers<[1], [0], [0], [1], [0, 0, 1, 1], [], []>} : vector<16x32xbf16>, vector<32x64xbf16>, vector<16x64xf32> -> vector<16x64xf32>
    %c1_115 = arith.constant 1 : index
    %c0_116 = arith.constant 0 : index
    %c0_117 = arith.constant 0 : index
    %313 = vector.load %arg8[%c1_115, %c0_116, %c0_117] : memref<2x1x64xf32, #tpu.memory_space<vmem>>, vector<1x1x64xf32>
    %314 = vector.shape_cast %313 : vector<1x1x64xf32> to vector<1x64xf32>
    %315 = vector.broadcast %314 : vector<1x64xf32> to vector<16x64xf32>
    %316 = arith.addf %312, %315 : vector<16x64xf32>
    %cst_118 = arith.constant 0.000000e+00 : f32
    %317 = vector.broadcast %cst_118 : f32 to vector<16x64xf32>
    %318 = arith.maximumf %316, %317 : vector<16x64xf32>
    %c1_119 = arith.constant 1 : index
    %c0_120 = arith.constant 0 : index
    %c0_121 = arith.constant 0 : index
    %319 = vector.load %arg9[%c1_119, %c0_120, %c0_121] : memref<2x64x32xbf16, #tpu.memory_space<vmem>>, vector<1x64x32xbf16>
    %320 = vector.shape_cast %319 : vector<1x64x32xbf16> to vector<64x32xbf16>
    %321 = arith.truncf %318 : vector<16x64xf32> to vector<16x64xbf16>
    %cst_122 = arith.constant dense<0.000000e+00> : vector<16x32xf32>
    %322 = tpu.matmul %321, %320, %cst_122 {dimension_numbers = #tpu.dot_dimension_numbers<[1], [0], [0], [1], [0, 0, 1, 1], [], []>} : vector<16x64xbf16>, vector<64x32xbf16>, vector<16x32xf32> -> vector<16x32xf32>
    %c1_123 = arith.constant 1 : index
    %c0_124 = arith.constant 0 : index
    %c0_125 = arith.constant 0 : index
    %323 = vector.load %arg10[%c1_123, %c0_124, %c0_125] : memref<2x1x32xf32, #tpu.memory_space<vmem>>, vector<1x1x32xf32>
    %324 = vector.shape_cast %323 : vector<1x1x32xf32> to vector<1x32xf32>
    %325 = vector.broadcast %324 : vector<1x32xf32> to vector<16x32xf32>
    %326 = arith.addf %322, %325 : vector<16x32xf32>
    %327 = arith.addf %308, %326 : vector<16x32xf32>
    %c1_126 = arith.constant 1 : index
    %c0_127 = arith.constant 0 : index
    %c0_128 = arith.constant 0 : index
    %328 = vector.load %arg11[%c1_126, %c0_127, %c0_128] : memref<2x1x32xf32, #tpu.memory_space<vmem>>, vector<1x1x32xf32>
    %329 = vector.shape_cast %328 : vector<1x1x32xf32> to vector<1x32xf32>
    %c1_129 = arith.constant 1 : index
    %c0_130 = arith.constant 0 : index
    %c0_131 = arith.constant 0 : index
    %330 = vector.load %arg12[%c1_129, %c0_130, %c0_131] : memref<2x1x32xf32, #tpu.memory_space<vmem>>, vector<1x1x32xf32>
    %331 = vector.shape_cast %330 : vector<1x1x32xf32> to vector<1x32xf32>
    %cst_132 = arith.constant dense<0.000000e+00> : vector<16xf32>
    %332 = vector.multi_reduction <add>, %327, %cst_132 [1] : vector<16x32xf32> to vector<16xf32>
    %333 = vector.shape_cast %332 : vector<16xf32> to vector<16x1xf32>
    %cst_133 = arith.constant 3.200000e+01 : f32
    %334 = vector.broadcast %cst_133 : f32 to vector<16x1xf32>
    %335 = arith.divf %333, %334 : vector<16x1xf32>
    %336 = vector.broadcast %335 : vector<16x1xf32> to vector<16x32xf32>
    %337 = arith.subf %327, %336 : vector<16x32xf32>
    %338 = arith.mulf %337, %337 : vector<16x32xf32>
    %cst_134 = arith.constant dense<0.000000e+00> : vector<16xf32>
    %339 = vector.multi_reduction <add>, %338, %cst_134 [1] : vector<16x32xf32> to vector<16xf32>
    %340 = vector.shape_cast %339 : vector<16xf32> to vector<16x1xf32>
    %cst_135 = arith.constant 3.200000e+01 : f32
    %341 = vector.broadcast %cst_135 : f32 to vector<16x1xf32>
    %342 = arith.divf %340, %341 : vector<16x1xf32>
    %343 = vector.broadcast %335 : vector<16x1xf32> to vector<16x32xf32>
    %344 = arith.subf %327, %343 : vector<16x32xf32>
    %cst_136 = arith.constant 9.99999974E-6 : f32
    %345 = vector.broadcast %cst_136 : f32 to vector<16x1xf32>
    %346 = arith.addf %342, %345 : vector<16x1xf32>
    %347 = math.rsqrt %346 : vector<16x1xf32>
    %348 = vector.broadcast %347 : vector<16x1xf32> to vector<16x32xf32>
    %349 = arith.mulf %344, %348 : vector<16x32xf32>
    %350 = vector.broadcast %329 : vector<1x32xf32> to vector<16x32xf32>
    %351 = arith.mulf %349, %350 : vector<16x32xf32>
    %352 = vector.broadcast %331 : vector<1x32xf32> to vector<16x32xf32>
    %353 = arith.addf %351, %352 : vector<16x32xf32>
    %c0_137 = arith.constant 0 : index
    %c0_138 = arith.constant 0 : index
    %354 = vector.load %arg13[%c0_137, %c0_138] : memref<1x32xf32, #tpu.memory_space<vmem>>, vector<1x32xf32>
    %c0_139 = arith.constant 0 : index
    %c0_140 = arith.constant 0 : index
    %355 = vector.load %arg14[%c0_139, %c0_140] : memref<1x32xf32, #tpu.memory_space<vmem>>, vector<1x32xf32>
    %cst_141 = arith.constant dense<0.000000e+00> : vector<16xf32>
    %356 = vector.multi_reduction <add>, %353, %cst_141 [1] : vector<16x32xf32> to vector<16xf32>
    %357 = vector.shape_cast %356 : vector<16xf32> to vector<16x1xf32>
    %cst_142 = arith.constant 3.200000e+01 : f32
    %358 = vector.broadcast %cst_142 : f32 to vector<16x1xf32>
    %359 = arith.divf %357, %358 : vector<16x1xf32>
    %360 = vector.broadcast %359 : vector<16x1xf32> to vector<16x32xf32>
    %361 = arith.subf %353, %360 : vector<16x32xf32>
    %362 = arith.mulf %361, %361 : vector<16x32xf32>
    %cst_143 = arith.constant dense<0.000000e+00> : vector<16xf32>
    %363 = vector.multi_reduction <add>, %362, %cst_143 [1] : vector<16x32xf32> to vector<16xf32>
    %364 = vector.shape_cast %363 : vector<16xf32> to vector<16x1xf32>
    %cst_144 = arith.constant 3.200000e+01 : f32
    %365 = vector.broadcast %cst_144 : f32 to vector<16x1xf32>
    %366 = arith.divf %364, %365 : vector<16x1xf32>
    %367 = vector.broadcast %359 : vector<16x1xf32> to vector<16x32xf32>
    %368 = arith.subf %353, %367 : vector<16x32xf32>
    %cst_145 = arith.constant 9.99999974E-6 : f32
    %369 = vector.broadcast %cst_145 : f32 to vector<16x1xf32>
    %370 = arith.addf %366, %369 : vector<16x1xf32>
    %371 = math.rsqrt %370 : vector<16x1xf32>
    %372 = vector.broadcast %371 : vector<16x1xf32> to vector<16x32xf32>
    %373 = arith.mulf %368, %372 : vector<16x32xf32>
    %374 = vector.broadcast %354 : vector<1x32xf32> to vector<16x32xf32>
    %375 = arith.mulf %373, %374 : vector<16x32xf32>
    %376 = vector.broadcast %355 : vector<1x32xf32> to vector<16x32xf32>
    %377 = arith.addf %375, %376 : vector<16x32xf32>
    %c0_146 = arith.constant 0 : index
    %c0_147 = arith.constant 0 : index
    %c0_148 = arith.constant 0 : index
    %378 = vector.load %arg1[%c0_146, %c0_147, %c0_148] : memref<2x32x96xbf16, #tpu.memory_space<vmem>>, vector<1x32x96xbf16>
    %379 = vector.shape_cast %378 : vector<1x32x96xbf16> to vector<32x96xbf16>
    %380 = arith.truncf %377 : vector<16x32xf32> to vector<16x32xbf16>
    %cst_149 = arith.constant dense<0.000000e+00> : vector<16x96xf32>
    %381 = tpu.matmul %380, %379, %cst_149 {dimension_numbers = #tpu.dot_dimension_numbers<[1], [0], [0], [1], [0, 0, 1, 1], [], []>} : vector<16x32xbf16>, vector<32x96xbf16>, vector<16x96xf32> -> vector<16x96xf32>
    %c0_150 = arith.constant 0 : index
    %c0_151 = arith.constant 0 : index
    %c0_152 = arith.constant 0 : index
    %382 = vector.load %arg2[%c0_150, %c0_151, %c0_152] : memref<2x1x96xf32, #tpu.memory_space<vmem>>, vector<1x1x96xf32>
    %383 = vector.shape_cast %382 : vector<1x1x96xf32> to vector<1x96xf32>
    %384 = vector.broadcast %383 : vector<1x96xf32> to vector<16x96xf32>
    %385 = arith.addf %381, %384 : vector<16x96xf32>
    %386 = vector.extract_strided_slice %385 {offsets = [0, 0], sizes = [16, 32], strides = [1, 1]} : vector<16x96xf32> to vector<16x32xf32>
    %cst_153 = arith.constant 0.353553385 : f32
    %387 = vector.broadcast %cst_153 : f32 to vector<16x32xf32>
    %388 = arith.mulf %386, %387 : vector<16x32xf32>
    %389 = vector.shape_cast %388 : vector<16x32xf32> to vector<2x8x32xf32>
    %390 = arith.truncf %389 : vector<2x8x32xf32> to vector<2x8x32xbf16>
    %391 = vector.extract_strided_slice %385 {offsets = [0, 32], sizes = [16, 32], strides = [1, 1]} : vector<16x96xf32> to vector<16x32xf32>
    %392 = vector.shape_cast %391 : vector<16x32xf32> to vector<2x8x32xf32>
    %393 = arith.truncf %392 : vector<2x8x32xf32> to vector<2x8x32xbf16>
    %394 = vector.extract_strided_slice %385 {offsets = [0, 64], sizes = [16, 32], strides = [1, 1]} : vector<16x96xf32> to vector<16x32xf32>
    %395 = vector.shape_cast %394 : vector<16x32xf32> to vector<2x8x32xf32>
    %396 = arith.truncf %395 : vector<2x8x32xf32> to vector<2x8x32xbf16>
    %397 = vector.extract_strided_slice %390 {offsets = [0, 0, 0], sizes = [2, 8, 8], strides = [1, 1, 1]} : vector<2x8x32xbf16> to vector<2x8x8xbf16>
    %398 = vector.extract_strided_slice %393 {offsets = [0, 0, 0], sizes = [2, 8, 8], strides = [1, 1, 1]} : vector<2x8x32xbf16> to vector<2x8x8xbf16>
    "tpu.trace_start"() <{level = 10 : i32, message = "bqd,bkd->bqk"}> : () -> ()
    %cst_154 = arith.constant dense<0.000000e+00> : vector<2x8x8xf32>
    %399 = tpu.matmul %397, %398, %cst_154 {dimension_numbers = #tpu.dot_dimension_numbers<[2], [2], [1], [1], [0, 0, 0, 1, 1, 1], [0], [0]>} : vector<2x8x8xbf16>, vector<2x8x8xbf16>, vector<2x8x8xf32> -> vector<2x8x8xf32>
    "tpu.trace_stop"() : () -> ()
    %400 = vector.broadcast %7 : vector<1x8x8xf32> to vector<2x8x8xf32>
    %401 = arith.addf %399, %400 : vector<2x8x8xf32>
    %cst_155 = arith.constant dense<0xFF800000> : vector<2x8xf32>
    %402 = vector.multi_reduction <maximumf>, %401, %cst_155 [2] : vector<2x8x8xf32> to vector<2x8xf32>
    %403 = vector.shape_cast %402 : vector<2x8xf32> to vector<2x8x1xf32>
    %404 = vector.broadcast %403 : vector<2x8x1xf32> to vector<2x8x8xf32>
    %405 = arith.subf %401, %404 : vector<2x8x8xf32>
    %406 = math.exp %405 : vector<2x8x8xf32>
    %cst_156 = arith.constant dense<0.000000e+00> : vector<2x8xf32>
    %407 = vector.multi_reduction <add>, %406, %cst_156 [2] : vector<2x8x8xf32> to vector<2x8xf32>
    %408 = vector.shape_cast %407 : vector<2x8xf32> to vector<2x8x1xf32>
    %409 = tpu.reciprocal %408 {approx = true} : vector<2x8x1xf32> -> vector<2x8x1xf32>
    %410 = vector.broadcast %409 : vector<2x8x1xf32> to vector<2x8x8xf32>
    %411 = arith.mulf %406, %410 : vector<2x8x8xf32>
    %412 = arith.truncf %411 : vector<2x8x8xf32> to vector<2x8x8xbf16>
    %413 = vector.extract_strided_slice %396 {offsets = [0, 0, 0], sizes = [2, 8, 8], strides = [1, 1, 1]} : vector<2x8x32xbf16> to vector<2x8x8xbf16>
    "tpu.trace_start"() <{level = 10 : i32, message = "bqk,bkd->bqd"}> : () -> ()
    %cst_157 = arith.constant dense<0.000000e+00> : vector<2x8x8xf32>
    %414 = tpu.matmul %412, %413, %cst_157 {dimension_numbers = #tpu.dot_dimension_numbers<[2], [1], [1], [2], [0, 0, 0, 1, 1, 2], [0], [0]>} : vector<2x8x8xbf16>, vector<2x8x8xbf16>, vector<2x8x8xf32> -> vector<2x8x8xf32>
    "tpu.trace_stop"() : () -> ()
    %415 = vector.extract_strided_slice %390 {offsets = [0, 0, 8], sizes = [2, 8, 8], strides = [1, 1, 1]} : vector<2x8x32xbf16> to vector<2x8x8xbf16>
    %416 = vector.extract_strided_slice %393 {offsets = [0, 0, 8], sizes = [2, 8, 8], strides = [1, 1, 1]} : vector<2x8x32xbf16> to vector<2x8x8xbf16>
    "tpu.trace_start"() <{level = 10 : i32, message = "bqd,bkd->bqk"}> : () -> ()
    %cst_158 = arith.constant dense<0.000000e+00> : vector<2x8x8xf32>
    %417 = tpu.matmul %415, %416, %cst_158 {dimension_numbers = #tpu.dot_dimension_numbers<[2], [2], [1], [1], [0, 0, 0, 1, 1, 1], [0], [0]>} : vector<2x8x8xbf16>, vector<2x8x8xbf16>, vector<2x8x8xf32> -> vector<2x8x8xf32>
    "tpu.trace_stop"() : () -> ()
    %418 = vector.broadcast %7 : vector<1x8x8xf32> to vector<2x8x8xf32>
    %419 = arith.addf %417, %418 : vector<2x8x8xf32>
    %cst_159 = arith.constant dense<0xFF800000> : vector<2x8xf32>
    %420 = vector.multi_reduction <maximumf>, %419, %cst_159 [2] : vector<2x8x8xf32> to vector<2x8xf32>
    %421 = vector.shape_cast %420 : vector<2x8xf32> to vector<2x8x1xf32>
    %422 = vector.broadcast %421 : vector<2x8x1xf32> to vector<2x8x8xf32>
    %423 = arith.subf %419, %422 : vector<2x8x8xf32>
    %424 = math.exp %423 : vector<2x8x8xf32>
    %cst_160 = arith.constant dense<0.000000e+00> : vector<2x8xf32>
    %425 = vector.multi_reduction <add>, %424, %cst_160 [2] : vector<2x8x8xf32> to vector<2x8xf32>
    %426 = vector.shape_cast %425 : vector<2x8xf32> to vector<2x8x1xf32>
    %427 = tpu.reciprocal %426 {approx = true} : vector<2x8x1xf32> -> vector<2x8x1xf32>
    %428 = vector.broadcast %427 : vector<2x8x1xf32> to vector<2x8x8xf32>
    %429 = arith.mulf %424, %428 : vector<2x8x8xf32>
    %430 = arith.truncf %429 : vector<2x8x8xf32> to vector<2x8x8xbf16>
    %431 = vector.extract_strided_slice %396 {offsets = [0, 0, 8], sizes = [2, 8, 8], strides = [1, 1, 1]} : vector<2x8x32xbf16> to vector<2x8x8xbf16>
    "tpu.trace_start"() <{level = 10 : i32, message = "bqk,bkd->bqd"}> : () -> ()
    %cst_161 = arith.constant dense<0.000000e+00> : vector<2x8x8xf32>
    %432 = tpu.matmul %430, %431, %cst_161 {dimension_numbers = #tpu.dot_dimension_numbers<[2], [1], [1], [2], [0, 0, 0, 1, 1, 2], [0], [0]>} : vector<2x8x8xbf16>, vector<2x8x8xbf16>, vector<2x8x8xf32> -> vector<2x8x8xf32>
    "tpu.trace_stop"() : () -> ()
    %433 = vector.extract_strided_slice %390 {offsets = [0, 0, 16], sizes = [2, 8, 8], strides = [1, 1, 1]} : vector<2x8x32xbf16> to vector<2x8x8xbf16>
    %434 = vector.extract_strided_slice %393 {offsets = [0, 0, 16], sizes = [2, 8, 8], strides = [1, 1, 1]} : vector<2x8x32xbf16> to vector<2x8x8xbf16>
    "tpu.trace_start"() <{level = 10 : i32, message = "bqd,bkd->bqk"}> : () -> ()
    %cst_162 = arith.constant dense<0.000000e+00> : vector<2x8x8xf32>
    %435 = tpu.matmul %433, %434, %cst_162 {dimension_numbers = #tpu.dot_dimension_numbers<[2], [2], [1], [1], [0, 0, 0, 1, 1, 1], [0], [0]>} : vector<2x8x8xbf16>, vector<2x8x8xbf16>, vector<2x8x8xf32> -> vector<2x8x8xf32>
    "tpu.trace_stop"() : () -> ()
    %436 = vector.broadcast %7 : vector<1x8x8xf32> to vector<2x8x8xf32>
    %437 = arith.addf %435, %436 : vector<2x8x8xf32>
    %cst_163 = arith.constant dense<0xFF800000> : vector<2x8xf32>
    %438 = vector.multi_reduction <maximumf>, %437, %cst_163 [2] : vector<2x8x8xf32> to vector<2x8xf32>
    %439 = vector.shape_cast %438 : vector<2x8xf32> to vector<2x8x1xf32>
    %440 = vector.broadcast %439 : vector<2x8x1xf32> to vector<2x8x8xf32>
    %441 = arith.subf %437, %440 : vector<2x8x8xf32>
    %442 = math.exp %441 : vector<2x8x8xf32>
    %cst_164 = arith.constant dense<0.000000e+00> : vector<2x8xf32>
    %443 = vector.multi_reduction <add>, %442, %cst_164 [2] : vector<2x8x8xf32> to vector<2x8xf32>
    %444 = vector.shape_cast %443 : vector<2x8xf32> to vector<2x8x1xf32>
    %445 = tpu.reciprocal %444 {approx = true} : vector<2x8x1xf32> -> vector<2x8x1xf32>
    %446 = vector.broadcast %445 : vector<2x8x1xf32> to vector<2x8x8xf32>
    %447 = arith.mulf %442, %446 : vector<2x8x8xf32>
    %448 = arith.truncf %447 : vector<2x8x8xf32> to vector<2x8x8xbf16>
    %449 = vector.extract_strided_slice %396 {offsets = [0, 0, 16], sizes = [2, 8, 8], strides = [1, 1, 1]} : vector<2x8x32xbf16> to vector<2x8x8xbf16>
    "tpu.trace_start"() <{level = 10 : i32, message = "bqk,bkd->bqd"}> : () -> ()
    %cst_165 = arith.constant dense<0.000000e+00> : vector<2x8x8xf32>
    %450 = tpu.matmul %448, %449, %cst_165 {dimension_numbers = #tpu.dot_dimension_numbers<[2], [1], [1], [2], [0, 0, 0, 1, 1, 2], [0], [0]>} : vector<2x8x8xbf16>, vector<2x8x8xbf16>, vector<2x8x8xf32> -> vector<2x8x8xf32>
    "tpu.trace_stop"() : () -> ()
    %451 = vector.extract_strided_slice %390 {offsets = [0, 0, 24], sizes = [2, 8, 8], strides = [1, 1, 1]} : vector<2x8x32xbf16> to vector<2x8x8xbf16>
    %452 = vector.extract_strided_slice %393 {offsets = [0, 0, 24], sizes = [2, 8, 8], strides = [1, 1, 1]} : vector<2x8x32xbf16> to vector<2x8x8xbf16>
    "tpu.trace_start"() <{level = 10 : i32, message = "bqd,bkd->bqk"}> : () -> ()
    %cst_166 = arith.constant dense<0.000000e+00> : vector<2x8x8xf32>
    %453 = tpu.matmul %451, %452, %cst_166 {dimension_numbers = #tpu.dot_dimension_numbers<[2], [2], [1], [1], [0, 0, 0, 1, 1, 1], [0], [0]>} : vector<2x8x8xbf16>, vector<2x8x8xbf16>, vector<2x8x8xf32> -> vector<2x8x8xf32>
    "tpu.trace_stop"() : () -> ()
    %454 = vector.broadcast %7 : vector<1x8x8xf32> to vector<2x8x8xf32>
    %455 = arith.addf %453, %454 : vector<2x8x8xf32>
    %cst_167 = arith.constant dense<0xFF800000> : vector<2x8xf32>
    %456 = vector.multi_reduction <maximumf>, %455, %cst_167 [2] : vector<2x8x8xf32> to vector<2x8xf32>
    %457 = vector.shape_cast %456 : vector<2x8xf32> to vector<2x8x1xf32>
    %458 = vector.broadcast %457 : vector<2x8x1xf32> to vector<2x8x8xf32>
    %459 = arith.subf %455, %458 : vector<2x8x8xf32>
    %460 = math.exp %459 : vector<2x8x8xf32>
    %cst_168 = arith.constant dense<0.000000e+00> : vector<2x8xf32>
    %461 = vector.multi_reduction <add>, %460, %cst_168 [2] : vector<2x8x8xf32> to vector<2x8xf32>
    %462 = vector.shape_cast %461 : vector<2x8xf32> to vector<2x8x1xf32>
    %463 = tpu.reciprocal %462 {approx = true} : vector<2x8x1xf32> -> vector<2x8x1xf32>
    %464 = vector.broadcast %463 : vector<2x8x1xf32> to vector<2x8x8xf32>
    %465 = arith.mulf %460, %464 : vector<2x8x8xf32>
    %466 = arith.truncf %465 : vector<2x8x8xf32> to vector<2x8x8xbf16>
    %467 = vector.extract_strided_slice %396 {offsets = [0, 0, 24], sizes = [2, 8, 8], strides = [1, 1, 1]} : vector<2x8x32xbf16> to vector<2x8x8xbf16>
    "tpu.trace_start"() <{level = 10 : i32, message = "bqk,bkd->bqd"}> : () -> ()
    %cst_169 = arith.constant dense<0.000000e+00> : vector<2x8x8xf32>
    %468 = tpu.matmul %466, %467, %cst_169 {dimension_numbers = #tpu.dot_dimension_numbers<[2], [1], [1], [2], [0, 0, 0, 1, 1, 2], [0], [0]>} : vector<2x8x8xbf16>, vector<2x8x8xbf16>, vector<2x8x8xf32> -> vector<2x8x8xf32>
    "tpu.trace_stop"() : () -> ()
    %469 = tpu.concatenate %414, %432, %450, %468 in 2 : vector<2x8x8xf32>, vector<2x8x8xf32>, vector<2x8x8xf32>, vector<2x8x8xf32> -> vector<2x8x32xf32>
    %470 = vector.shape_cast %469 : vector<2x8x32xf32> to vector<16x32xf32>
    %c0_170 = arith.constant 0 : index
    %c0_171 = arith.constant 0 : index
    %c0_172 = arith.constant 0 : index
    %471 = vector.load %arg3[%c0_170, %c0_171, %c0_172] : memref<2x32x32xbf16, #tpu.memory_space<vmem>>, vector<1x32x32xbf16>
    %472 = vector.shape_cast %471 : vector<1x32x32xbf16> to vector<32x32xbf16>
    %473 = arith.truncf %470 : vector<16x32xf32> to vector<16x32xbf16>
    %cst_173 = arith.constant dense<0.000000e+00> : vector<16x32xf32>
    %474 = tpu.matmul %473, %472, %cst_173 {dimension_numbers = #tpu.dot_dimension_numbers<[1], [0], [0], [1], [0, 0, 1, 1], [], []>} : vector<16x32xbf16>, vector<32x32xbf16>, vector<16x32xf32> -> vector<16x32xf32>
    %c0_174 = arith.constant 0 : index
    %c0_175 = arith.constant 0 : index
    %c0_176 = arith.constant 0 : index
    %475 = vector.load %arg4[%c0_174, %c0_175, %c0_176] : memref<2x1x32xf32, #tpu.memory_space<vmem>>, vector<1x1x32xf32>
    %476 = vector.shape_cast %475 : vector<1x1x32xf32> to vector<1x32xf32>
    %477 = vector.broadcast %476 : vector<1x32xf32> to vector<16x32xf32>
    %478 = arith.addf %474, %477 : vector<16x32xf32>
    %479 = arith.addf %377, %478 : vector<16x32xf32>
    %c0_177 = arith.constant 0 : index
    %c0_178 = arith.constant 0 : index
    %c0_179 = arith.constant 0 : index
    %480 = vector.load %arg5[%c0_177, %c0_178, %c0_179] : memref<2x1x32xf32, #tpu.memory_space<vmem>>, vector<1x1x32xf32>
    %481 = vector.shape_cast %480 : vector<1x1x32xf32> to vector<1x32xf32>
    %c0_180 = arith.constant 0 : index
    %c0_181 = arith.constant 0 : index
    %c0_182 = arith.constant 0 : index
    %482 = vector.load %arg6[%c0_180, %c0_181, %c0_182] : memref<2x1x32xf32, #tpu.memory_space<vmem>>, vector<1x1x32xf32>
    %483 = vector.shape_cast %482 : vector<1x1x32xf32> to vector<1x32xf32>
    %cst_183 = arith.constant dense<0.000000e+00> : vector<16xf32>
    %484 = vector.multi_reduction <add>, %479, %cst_183 [1] : vector<16x32xf32> to vector<16xf32>
    %485 = vector.shape_cast %484 : vector<16xf32> to vector<16x1xf32>
    %cst_184 = arith.constant 3.200000e+01 : f32
    %486 = vector.broadcast %cst_184 : f32 to vector<16x1xf32>
    %487 = arith.divf %485, %486 : vector<16x1xf32>
    %488 = vector.broadcast %487 : vector<16x1xf32> to vector<16x32xf32>
    %489 = arith.subf %479, %488 : vector<16x32xf32>
    %490 = arith.mulf %489, %489 : vector<16x32xf32>
    %cst_185 = arith.constant dense<0.000000e+00> : vector<16xf32>
    %491 = vector.multi_reduction <add>, %490, %cst_185 [1] : vector<16x32xf32> to vector<16xf32>
    %492 = vector.shape_cast %491 : vector<16xf32> to vector<16x1xf32>
    %cst_186 = arith.constant 3.200000e+01 : f32
    %493 = vector.broadcast %cst_186 : f32 to vector<16x1xf32>
    %494 = arith.divf %492, %493 : vector<16x1xf32>
    %495 = vector.broadcast %487 : vector<16x1xf32> to vector<16x32xf32>
    %496 = arith.subf %479, %495 : vector<16x32xf32>
    %cst_187 = arith.constant 9.99999974E-6 : f32
    %497 = vector.broadcast %cst_187 : f32 to vector<16x1xf32>
    %498 = arith.addf %494, %497 : vector<16x1xf32>
    %499 = math.rsqrt %498 : vector<16x1xf32>
    %500 = vector.broadcast %499 : vector<16x1xf32> to vector<16x32xf32>
    %501 = arith.mulf %496, %500 : vector<16x32xf32>
    %502 = vector.broadcast %481 : vector<1x32xf32> to vector<16x32xf32>
    %503 = arith.mulf %501, %502 : vector<16x32xf32>
    %504 = vector.broadcast %483 : vector<1x32xf32> to vector<16x32xf32>
    %505 = arith.addf %503, %504 : vector<16x32xf32>
    %c0_188 = arith.constant 0 : index
    %c0_189 = arith.constant 0 : index
    %c0_190 = arith.constant 0 : index
    %506 = vector.load %arg7[%c0_188, %c0_189, %c0_190] : memref<2x32x64xbf16, #tpu.memory_space<vmem>>, vector<1x32x64xbf16>
    %507 = vector.shape_cast %506 : vector<1x32x64xbf16> to vector<32x64xbf16>
    %508 = arith.truncf %505 : vector<16x32xf32> to vector<16x32xbf16>
    %cst_191 = arith.constant dense<0.000000e+00> : vector<16x64xf32>
    %509 = tpu.matmul %508, %507, %cst_191 {dimension_numbers = #tpu.dot_dimension_numbers<[1], [0], [0], [1], [0, 0, 1, 1], [], []>} : vector<16x32xbf16>, vector<32x64xbf16>, vector<16x64xf32> -> vector<16x64xf32>
    %c0_192 = arith.constant 0 : index
    %c0_193 = arith.constant 0 : index
    %c0_194 = arith.constant 0 : index
    %510 = vector.load %arg8[%c0_192, %c0_193, %c0_194] : memref<2x1x64xf32, #tpu.memory_space<vmem>>, vector<1x1x64xf32>
    %511 = vector.shape_cast %510 : vector<1x1x64xf32> to vector<1x64xf32>
    %512 = vector.broadcast %511 : vector<1x64xf32> to vector<16x64xf32>
    %513 = arith.addf %509, %512 : vector<16x64xf32>
    %cst_195 = arith.constant 0.000000e+00 : f32
    %514 = vector.broadcast %cst_195 : f32 to vector<16x64xf32>
    %515 = arith.maximumf %513, %514 : vector<16x64xf32>
    %c0_196 = arith.constant 0 : index
    %c0_197 = arith.constant 0 : index
    %c0_198 = arith.constant 0 : index
    %516 = vector.load %arg9[%c0_196, %c0_197, %c0_198] : memref<2x64x32xbf16, #tpu.memory_space<vmem>>, vector<1x64x32xbf16>
    %517 = vector.shape_cast %516 : vector<1x64x32xbf16> to vector<64x32xbf16>
    %518 = arith.truncf %515 : vector<16x64xf32> to vector<16x64xbf16>
    %cst_199 = arith.constant dense<0.000000e+00> : vector<16x32xf32>
    %519 = tpu.matmul %518, %517, %cst_199 {dimension_numbers = #tpu.dot_dimension_numbers<[1], [0], [0], [1], [0, 0, 1, 1], [], []>} : vector<16x64xbf16>, vector<64x32xbf16>, vector<16x32xf32> -> vector<16x32xf32>
    %c0_200 = arith.constant 0 : index
    %c0_201 = arith.constant 0 : index
    %c0_202 = arith.constant 0 : index
    %520 = vector.load %arg10[%c0_200, %c0_201, %c0_202] : memref<2x1x32xf32, #tpu.memory_space<vmem>>, vector<1x1x32xf32>
    %521 = vector.shape_cast %520 : vector<1x1x32xf32> to vector<1x32xf32>
    %522 = vector.broadcast %521 : vector<1x32xf32> to vector<16x32xf32>
    %523 = arith.addf %519, %522 : vector<16x32xf32>
    %524 = arith.addf %505, %523 : vector<16x32xf32>
    %c0_203 = arith.constant 0 : index
    %c0_204 = arith.constant 0 : index
    %c0_205 = arith.constant 0 : index
    %525 = vector.load %arg11[%c0_203, %c0_204, %c0_205] : memref<2x1x32xf32, #tpu.memory_space<vmem>>, vector<1x1x32xf32>
    %526 = vector.shape_cast %525 : vector<1x1x32xf32> to vector<1x32xf32>
    %c0_206 = arith.constant 0 : index
    %c0_207 = arith.constant 0 : index
    %c0_208 = arith.constant 0 : index
    %527 = vector.load %arg12[%c0_206, %c0_207, %c0_208] : memref<2x1x32xf32, #tpu.memory_space<vmem>>, vector<1x1x32xf32>
    %528 = vector.shape_cast %527 : vector<1x1x32xf32> to vector<1x32xf32>
    %cst_209 = arith.constant dense<0.000000e+00> : vector<16xf32>
    %529 = vector.multi_reduction <add>, %524, %cst_209 [1] : vector<16x32xf32> to vector<16xf32>
    %530 = vector.shape_cast %529 : vector<16xf32> to vector<16x1xf32>
    %cst_210 = arith.constant 3.200000e+01 : f32
    %531 = vector.broadcast %cst_210 : f32 to vector<16x1xf32>
    %532 = arith.divf %530, %531 : vector<16x1xf32>
    %533 = vector.broadcast %532 : vector<16x1xf32> to vector<16x32xf32>
    %534 = arith.subf %524, %533 : vector<16x32xf32>
    %535 = arith.mulf %534, %534 : vector<16x32xf32>
    %cst_211 = arith.constant dense<0.000000e+00> : vector<16xf32>
    %536 = vector.multi_reduction <add>, %535, %cst_211 [1] : vector<16x32xf32> to vector<16xf32>
    %537 = vector.shape_cast %536 : vector<16xf32> to vector<16x1xf32>
    %cst_212 = arith.constant 3.200000e+01 : f32
    %538 = vector.broadcast %cst_212 : f32 to vector<16x1xf32>
    %539 = arith.divf %537, %538 : vector<16x1xf32>
    %540 = vector.broadcast %532 : vector<16x1xf32> to vector<16x32xf32>
    %541 = arith.subf %524, %540 : vector<16x32xf32>
    %cst_213 = arith.constant 9.99999974E-6 : f32
    %542 = vector.broadcast %cst_213 : f32 to vector<16x1xf32>
    %543 = arith.addf %539, %542 : vector<16x1xf32>
    %544 = math.rsqrt %543 : vector<16x1xf32>
    %545 = vector.broadcast %544 : vector<16x1xf32> to vector<16x32xf32>
    %546 = arith.mulf %541, %545 : vector<16x32xf32>
    %547 = vector.broadcast %526 : vector<1x32xf32> to vector<16x32xf32>
    %548 = arith.mulf %546, %547 : vector<16x32xf32>
    %549 = vector.broadcast %528 : vector<1x32xf32> to vector<16x32xf32>
    %550 = arith.addf %548, %549 : vector<16x32xf32>
    %c1_214 = arith.constant 1 : index
    %c0_215 = arith.constant 0 : index
    %c0_216 = arith.constant 0 : index
    %551 = vector.load %arg1[%c1_214, %c0_215, %c0_216] : memref<2x32x96xbf16, #tpu.memory_space<vmem>>, vector<1x32x96xbf16>
    %552 = vector.shape_cast %551 : vector<1x32x96xbf16> to vector<32x96xbf16>
    %553 = arith.truncf %550 : vector<16x32xf32> to vector<16x32xbf16>
    %cst_217 = arith.constant dense<0.000000e+00> : vector<16x96xf32>
    %554 = tpu.matmul %553, %552, %cst_217 {dimension_numbers = #tpu.dot_dimension_numbers<[1], [0], [0], [1], [0, 0, 1, 1], [], []>} : vector<16x32xbf16>, vector<32x96xbf16>, vector<16x96xf32> -> vector<16x96xf32>
    %c1_218 = arith.constant 1 : index
    %c0_219 = arith.constant 0 : index
    %c0_220 = arith.constant 0 : index
    %555 = vector.load %arg2[%c1_218, %c0_219, %c0_220] : memref<2x1x96xf32, #tpu.memory_space<vmem>>, vector<1x1x96xf32>
    %556 = vector.shape_cast %555 : vector<1x1x96xf32> to vector<1x96xf32>
    %557 = vector.broadcast %556 : vector<1x96xf32> to vector<16x96xf32>
    %558 = arith.addf %554, %557 : vector<16x96xf32>
    %559 = vector.extract_strided_slice %558 {offsets = [0, 0], sizes = [16, 32], strides = [1, 1]} : vector<16x96xf32> to vector<16x32xf32>
    %cst_221 = arith.constant 0.353553385 : f32
    %560 = vector.broadcast %cst_221 : f32 to vector<16x32xf32>
    %561 = arith.mulf %559, %560 : vector<16x32xf32>
    %562 = vector.shape_cast %561 : vector<16x32xf32> to vector<2x8x32xf32>
    %563 = arith.truncf %562 : vector<2x8x32xf32> to vector<2x8x32xbf16>
    %564 = vector.extract_strided_slice %558 {offsets = [0, 32], sizes = [16, 32], strides = [1, 1]} : vector<16x96xf32> to vector<16x32xf32>
    %565 = vector.shape_cast %564 : vector<16x32xf32> to vector<2x8x32xf32>
    %566 = arith.truncf %565 : vector<2x8x32xf32> to vector<2x8x32xbf16>
    %567 = vector.extract_strided_slice %558 {offsets = [0, 64], sizes = [16, 32], strides = [1, 1]} : vector<16x96xf32> to vector<16x32xf32>
    %568 = vector.shape_cast %567 : vector<16x32xf32> to vector<2x8x32xf32>
    %569 = arith.truncf %568 : vector<2x8x32xf32> to vector<2x8x32xbf16>
    %570 = vector.extract_strided_slice %563 {offsets = [0, 0, 0], sizes = [2, 8, 8], strides = [1, 1, 1]} : vector<2x8x32xbf16> to vector<2x8x8xbf16>
    %571 = vector.extract_strided_slice %566 {offsets = [0, 0, 0], sizes = [2, 8, 8], strides = [1, 1, 1]} : vector<2x8x32xbf16> to vector<2x8x8xbf16>
    "tpu.trace_start"() <{level = 10 : i32, message = "bqd,bkd->bqk"}> : () -> ()
    %cst_222 = arith.constant dense<0.000000e+00> : vector<2x8x8xf32>
    %572 = tpu.matmul %570, %571, %cst_222 {dimension_numbers = #tpu.dot_dimension_numbers<[2], [2], [1], [1], [0, 0, 0, 1, 1, 1], [0], [0]>} : vector<2x8x8xbf16>, vector<2x8x8xbf16>, vector<2x8x8xf32> -> vector<2x8x8xf32>
    "tpu.trace_stop"() : () -> ()
    %573 = vector.broadcast %7 : vector<1x8x8xf32> to vector<2x8x8xf32>
    %574 = arith.addf %572, %573 : vector<2x8x8xf32>
    %cst_223 = arith.constant dense<0xFF800000> : vector<2x8xf32>
    %575 = vector.multi_reduction <maximumf>, %574, %cst_223 [2] : vector<2x8x8xf32> to vector<2x8xf32>
    %576 = vector.shape_cast %575 : vector<2x8xf32> to vector<2x8x1xf32>
    %577 = vector.broadcast %576 : vector<2x8x1xf32> to vector<2x8x8xf32>
    %578 = arith.subf %574, %577 : vector<2x8x8xf32>
    %579 = math.exp %578 : vector<2x8x8xf32>
    %cst_224 = arith.constant dense<0.000000e+00> : vector<2x8xf32>
    %580 = vector.multi_reduction <add>, %579, %cst_224 [2] : vector<2x8x8xf32> to vector<2x8xf32>
    %581 = vector.shape_cast %580 : vector<2x8xf32> to vector<2x8x1xf32>
    %582 = tpu.reciprocal %581 {approx = true} : vector<2x8x1xf32> -> vector<2x8x1xf32>
    %583 = vector.broadcast %582 : vector<2x8x1xf32> to vector<2x8x8xf32>
    %584 = arith.mulf %579, %583 : vector<2x8x8xf32>
    %585 = arith.truncf %584 : vector<2x8x8xf32> to vector<2x8x8xbf16>
    %586 = vector.extract_strided_slice %569 {offsets = [0, 0, 0], sizes = [2, 8, 8], strides = [1, 1, 1]} : vector<2x8x32xbf16> to vector<2x8x8xbf16>
    "tpu.trace_start"() <{level = 10 : i32, message = "bqk,bkd->bqd"}> : () -> ()
    %cst_225 = arith.constant dense<0.000000e+00> : vector<2x8x8xf32>
    %587 = tpu.matmul %585, %586, %cst_225 {dimension_numbers = #tpu.dot_dimension_numbers<[2], [1], [1], [2], [0, 0, 0, 1, 1, 2], [0], [0]>} : vector<2x8x8xbf16>, vector<2x8x8xbf16>, vector<2x8x8xf32> -> vector<2x8x8xf32>
    "tpu.trace_stop"() : () -> ()
    %588 = vector.extract_strided_slice %563 {offsets = [0, 0, 8], sizes = [2, 8, 8], strides = [1, 1, 1]} : vector<2x8x32xbf16> to vector<2x8x8xbf16>
    %589 = vector.extract_strided_slice %566 {offsets = [0, 0, 8], sizes = [2, 8, 8], strides = [1, 1, 1]} : vector<2x8x32xbf16> to vector<2x8x8xbf16>
    "tpu.trace_start"() <{level = 10 : i32, message = "bqd,bkd->bqk"}> : () -> ()
    %cst_226 = arith.constant dense<0.000000e+00> : vector<2x8x8xf32>
    %590 = tpu.matmul %588, %589, %cst_226 {dimension_numbers = #tpu.dot_dimension_numbers<[2], [2], [1], [1], [0, 0, 0, 1, 1, 1], [0], [0]>} : vector<2x8x8xbf16>, vector<2x8x8xbf16>, vector<2x8x8xf32> -> vector<2x8x8xf32>
    "tpu.trace_stop"() : () -> ()
    %591 = vector.broadcast %7 : vector<1x8x8xf32> to vector<2x8x8xf32>
    %592 = arith.addf %590, %591 : vector<2x8x8xf32>
    %cst_227 = arith.constant dense<0xFF800000> : vector<2x8xf32>
    %593 = vector.multi_reduction <maximumf>, %592, %cst_227 [2] : vector<2x8x8xf32> to vector<2x8xf32>
    %594 = vector.shape_cast %593 : vector<2x8xf32> to vector<2x8x1xf32>
    %595 = vector.broadcast %594 : vector<2x8x1xf32> to vector<2x8x8xf32>
    %596 = arith.subf %592, %595 : vector<2x8x8xf32>
    %597 = math.exp %596 : vector<2x8x8xf32>
    %cst_228 = arith.constant dense<0.000000e+00> : vector<2x8xf32>
    %598 = vector.multi_reduction <add>, %597, %cst_228 [2] : vector<2x8x8xf32> to vector<2x8xf32>
    %599 = vector.shape_cast %598 : vector<2x8xf32> to vector<2x8x1xf32>
    %600 = tpu.reciprocal %599 {approx = true} : vector<2x8x1xf32> -> vector<2x8x1xf32>
    %601 = vector.broadcast %600 : vector<2x8x1xf32> to vector<2x8x8xf32>
    %602 = arith.mulf %597, %601 : vector<2x8x8xf32>
    %603 = arith.truncf %602 : vector<2x8x8xf32> to vector<2x8x8xbf16>
    %604 = vector.extract_strided_slice %569 {offsets = [0, 0, 8], sizes = [2, 8, 8], strides = [1, 1, 1]} : vector<2x8x32xbf16> to vector<2x8x8xbf16>
    "tpu.trace_start"() <{level = 10 : i32, message = "bqk,bkd->bqd"}> : () -> ()
    %cst_229 = arith.constant dense<0.000000e+00> : vector<2x8x8xf32>
    %605 = tpu.matmul %603, %604, %cst_229 {dimension_numbers = #tpu.dot_dimension_numbers<[2], [1], [1], [2], [0, 0, 0, 1, 1, 2], [0], [0]>} : vector<2x8x8xbf16>, vector<2x8x8xbf16>, vector<2x8x8xf32> -> vector<2x8x8xf32>
    "tpu.trace_stop"() : () -> ()
    %606 = vector.extract_strided_slice %563 {offsets = [0, 0, 16], sizes = [2, 8, 8], strides = [1, 1, 1]} : vector<2x8x32xbf16> to vector<2x8x8xbf16>
    %607 = vector.extract_strided_slice %566 {offsets = [0, 0, 16], sizes = [2, 8, 8], strides = [1, 1, 1]} : vector<2x8x32xbf16> to vector<2x8x8xbf16>
    "tpu.trace_start"() <{level = 10 : i32, message = "bqd,bkd->bqk"}> : () -> ()
    %cst_230 = arith.constant dense<0.000000e+00> : vector<2x8x8xf32>
    %608 = tpu.matmul %606, %607, %cst_230 {dimension_numbers = #tpu.dot_dimension_numbers<[2], [2], [1], [1], [0, 0, 0, 1, 1, 1], [0], [0]>} : vector<2x8x8xbf16>, vector<2x8x8xbf16>, vector<2x8x8xf32> -> vector<2x8x8xf32>
    "tpu.trace_stop"() : () -> ()
    %609 = vector.broadcast %7 : vector<1x8x8xf32> to vector<2x8x8xf32>
    %610 = arith.addf %608, %609 : vector<2x8x8xf32>
    %cst_231 = arith.constant dense<0xFF800000> : vector<2x8xf32>
    %611 = vector.multi_reduction <maximumf>, %610, %cst_231 [2] : vector<2x8x8xf32> to vector<2x8xf32>
    %612 = vector.shape_cast %611 : vector<2x8xf32> to vector<2x8x1xf32>
    %613 = vector.broadcast %612 : vector<2x8x1xf32> to vector<2x8x8xf32>
    %614 = arith.subf %610, %613 : vector<2x8x8xf32>
    %615 = math.exp %614 : vector<2x8x8xf32>
    %cst_232 = arith.constant dense<0.000000e+00> : vector<2x8xf32>
    %616 = vector.multi_reduction <add>, %615, %cst_232 [2] : vector<2x8x8xf32> to vector<2x8xf32>
    %617 = vector.shape_cast %616 : vector<2x8xf32> to vector<2x8x1xf32>
    %618 = tpu.reciprocal %617 {approx = true} : vector<2x8x1xf32> -> vector<2x8x1xf32>
    %619 = vector.broadcast %618 : vector<2x8x1xf32> to vector<2x8x8xf32>
    %620 = arith.mulf %615, %619 : vector<2x8x8xf32>
    %621 = arith.truncf %620 : vector<2x8x8xf32> to vector<2x8x8xbf16>
    %622 = vector.extract_strided_slice %569 {offsets = [0, 0, 16], sizes = [2, 8, 8], strides = [1, 1, 1]} : vector<2x8x32xbf16> to vector<2x8x8xbf16>
    "tpu.trace_start"() <{level = 10 : i32, message = "bqk,bkd->bqd"}> : () -> ()
    %cst_233 = arith.constant dense<0.000000e+00> : vector<2x8x8xf32>
    %623 = tpu.matmul %621, %622, %cst_233 {dimension_numbers = #tpu.dot_dimension_numbers<[2], [1], [1], [2], [0, 0, 0, 1, 1, 2], [0], [0]>} : vector<2x8x8xbf16>, vector<2x8x8xbf16>, vector<2x8x8xf32> -> vector<2x8x8xf32>
    "tpu.trace_stop"() : () -> ()
    %624 = vector.extract_strided_slice %563 {offsets = [0, 0, 24], sizes = [2, 8, 8], strides = [1, 1, 1]} : vector<2x8x32xbf16> to vector<2x8x8xbf16>
    %625 = vector.extract_strided_slice %566 {offsets = [0, 0, 24], sizes = [2, 8, 8], strides = [1, 1, 1]} : vector<2x8x32xbf16> to vector<2x8x8xbf16>
    "tpu.trace_start"() <{level = 10 : i32, message = "bqd,bkd->bqk"}> : () -> ()
    %cst_234 = arith.constant dense<0.000000e+00> : vector<2x8x8xf32>
    %626 = tpu.matmul %624, %625, %cst_234 {dimension_numbers = #tpu.dot_dimension_numbers<[2], [2], [1], [1], [0, 0, 0, 1, 1, 1], [0], [0]>} : vector<2x8x8xbf16>, vector<2x8x8xbf16>, vector<2x8x8xf32> -> vector<2x8x8xf32>
    "tpu.trace_stop"() : () -> ()
    %627 = vector.broadcast %7 : vector<1x8x8xf32> to vector<2x8x8xf32>
    %628 = arith.addf %626, %627 : vector<2x8x8xf32>
    %cst_235 = arith.constant dense<0xFF800000> : vector<2x8xf32>
    %629 = vector.multi_reduction <maximumf>, %628, %cst_235 [2] : vector<2x8x8xf32> to vector<2x8xf32>
    %630 = vector.shape_cast %629 : vector<2x8xf32> to vector<2x8x1xf32>
    %631 = vector.broadcast %630 : vector<2x8x1xf32> to vector<2x8x8xf32>
    %632 = arith.subf %628, %631 : vector<2x8x8xf32>
    %633 = math.exp %632 : vector<2x8x8xf32>
    %cst_236 = arith.constant dense<0.000000e+00> : vector<2x8xf32>
    %634 = vector.multi_reduction <add>, %633, %cst_236 [2] : vector<2x8x8xf32> to vector<2x8xf32>
    %635 = vector.shape_cast %634 : vector<2x8xf32> to vector<2x8x1xf32>
    %636 = tpu.reciprocal %635 {approx = true} : vector<2x8x1xf32> -> vector<2x8x1xf32>
    %637 = vector.broadcast %636 : vector<2x8x1xf32> to vector<2x8x8xf32>
    %638 = arith.mulf %633, %637 : vector<2x8x8xf32>
    %639 = arith.truncf %638 : vector<2x8x8xf32> to vector<2x8x8xbf16>
    %640 = vector.extract_strided_slice %569 {offsets = [0, 0, 24], sizes = [2, 8, 8], strides = [1, 1, 1]} : vector<2x8x32xbf16> to vector<2x8x8xbf16>
    "tpu.trace_start"() <{level = 10 : i32, message = "bqk,bkd->bqd"}> : () -> ()
    %cst_237 = arith.constant dense<0.000000e+00> : vector<2x8x8xf32>
    %641 = tpu.matmul %639, %640, %cst_237 {dimension_numbers = #tpu.dot_dimension_numbers<[2], [1], [1], [2], [0, 0, 0, 1, 1, 2], [0], [0]>} : vector<2x8x8xbf16>, vector<2x8x8xbf16>, vector<2x8x8xf32> -> vector<2x8x8xf32>
    "tpu.trace_stop"() : () -> ()
    %642 = tpu.concatenate %587, %605, %623, %641 in 2 : vector<2x8x8xf32>, vector<2x8x8xf32>, vector<2x8x8xf32>, vector<2x8x8xf32> -> vector<2x8x32xf32>
    %643 = vector.shape_cast %642 : vector<2x8x32xf32> to vector<16x32xf32>
    %c1_238 = arith.constant 1 : index
    %c0_239 = arith.constant 0 : index
    %c0_240 = arith.constant 0 : index
    %644 = vector.load %arg3[%c1_238, %c0_239, %c0_240] : memref<2x32x32xbf16, #tpu.memory_space<vmem>>, vector<1x32x32xbf16>
    %645 = vector.shape_cast %644 : vector<1x32x32xbf16> to vector<32x32xbf16>
    %646 = arith.truncf %643 : vector<16x32xf32> to vector<16x32xbf16>
    %cst_241 = arith.constant dense<0.000000e+00> : vector<16x32xf32>
    %647 = tpu.matmul %646, %645, %cst_241 {dimension_numbers = #tpu.dot_dimension_numbers<[1], [0], [0], [1], [0, 0, 1, 1], [], []>} : vector<16x32xbf16>, vector<32x32xbf16>, vector<16x32xf32> -> vector<16x32xf32>
    %c1_242 = arith.constant 1 : index
    %c0_243 = arith.constant 0 : index
    %c0_244 = arith.constant 0 : index
    %648 = vector.load %arg4[%c1_242, %c0_243, %c0_244] : memref<2x1x32xf32, #tpu.memory_space<vmem>>, vector<1x1x32xf32>
    %649 = vector.shape_cast %648 : vector<1x1x32xf32> to vector<1x32xf32>
    %650 = vector.broadcast %649 : vector<1x32xf32> to vector<16x32xf32>
    %651 = arith.addf %647, %650 : vector<16x32xf32>
    %652 = arith.addf %550, %651 : vector<16x32xf32>
    %c1_245 = arith.constant 1 : index
    %c0_246 = arith.constant 0 : index
    %c0_247 = arith.constant 0 : index
    %653 = vector.load %arg5[%c1_245, %c0_246, %c0_247] : memref<2x1x32xf32, #tpu.memory_space<vmem>>, vector<1x1x32xf32>
    %654 = vector.shape_cast %653 : vector<1x1x32xf32> to vector<1x32xf32>
    %c1_248 = arith.constant 1 : index
    %c0_249 = arith.constant 0 : index
    %c0_250 = arith.constant 0 : index
    %655 = vector.load %arg6[%c1_248, %c0_249, %c0_250] : memref<2x1x32xf32, #tpu.memory_space<vmem>>, vector<1x1x32xf32>
    %656 = vector.shape_cast %655 : vector<1x1x32xf32> to vector<1x32xf32>
    %cst_251 = arith.constant dense<0.000000e+00> : vector<16xf32>
    %657 = vector.multi_reduction <add>, %652, %cst_251 [1] : vector<16x32xf32> to vector<16xf32>
    %658 = vector.shape_cast %657 : vector<16xf32> to vector<16x1xf32>
    %cst_252 = arith.constant 3.200000e+01 : f32
    %659 = vector.broadcast %cst_252 : f32 to vector<16x1xf32>
    %660 = arith.divf %658, %659 : vector<16x1xf32>
    %661 = vector.broadcast %660 : vector<16x1xf32> to vector<16x32xf32>
    %662 = arith.subf %652, %661 : vector<16x32xf32>
    %663 = arith.mulf %662, %662 : vector<16x32xf32>
    %cst_253 = arith.constant dense<0.000000e+00> : vector<16xf32>
    %664 = vector.multi_reduction <add>, %663, %cst_253 [1] : vector<16x32xf32> to vector<16xf32>
    %665 = vector.shape_cast %664 : vector<16xf32> to vector<16x1xf32>
    %cst_254 = arith.constant 3.200000e+01 : f32
    %666 = vector.broadcast %cst_254 : f32 to vector<16x1xf32>
    %667 = arith.divf %665, %666 : vector<16x1xf32>
    %668 = vector.broadcast %660 : vector<16x1xf32> to vector<16x32xf32>
    %669 = arith.subf %652, %668 : vector<16x32xf32>
    %cst_255 = arith.constant 9.99999974E-6 : f32
    %670 = vector.broadcast %cst_255 : f32 to vector<16x1xf32>
    %671 = arith.addf %667, %670 : vector<16x1xf32>
    %672 = math.rsqrt %671 : vector<16x1xf32>
    %673 = vector.broadcast %672 : vector<16x1xf32> to vector<16x32xf32>
    %674 = arith.mulf %669, %673 : vector<16x32xf32>
    %675 = vector.broadcast %654 : vector<1x32xf32> to vector<16x32xf32>
    %676 = arith.mulf %674, %675 : vector<16x32xf32>
    %677 = vector.broadcast %656 : vector<1x32xf32> to vector<16x32xf32>
    %678 = arith.addf %676, %677 : vector<16x32xf32>
    %c1_256 = arith.constant 1 : index
    %c0_257 = arith.constant 0 : index
    %c0_258 = arith.constant 0 : index
    %679 = vector.load %arg7[%c1_256, %c0_257, %c0_258] : memref<2x32x64xbf16, #tpu.memory_space<vmem>>, vector<1x32x64xbf16>
    %680 = vector.shape_cast %679 : vector<1x32x64xbf16> to vector<32x64xbf16>
    %681 = arith.truncf %678 : vector<16x32xf32> to vector<16x32xbf16>
    %cst_259 = arith.constant dense<0.000000e+00> : vector<16x64xf32>
    %682 = tpu.matmul %681, %680, %cst_259 {dimension_numbers = #tpu.dot_dimension_numbers<[1], [0], [0], [1], [0, 0, 1, 1], [], []>} : vector<16x32xbf16>, vector<32x64xbf16>, vector<16x64xf32> -> vector<16x64xf32>
    %c1_260 = arith.constant 1 : index
    %c0_261 = arith.constant 0 : index
    %c0_262 = arith.constant 0 : index
    %683 = vector.load %arg8[%c1_260, %c0_261, %c0_262] : memref<2x1x64xf32, #tpu.memory_space<vmem>>, vector<1x1x64xf32>
    %684 = vector.shape_cast %683 : vector<1x1x64xf32> to vector<1x64xf32>
    %685 = vector.broadcast %684 : vector<1x64xf32> to vector<16x64xf32>
    %686 = arith.addf %682, %685 : vector<16x64xf32>
    %cst_263 = arith.constant 0.000000e+00 : f32
    %687 = vector.broadcast %cst_263 : f32 to vector<16x64xf32>
    %688 = arith.maximumf %686, %687 : vector<16x64xf32>
    %c1_264 = arith.constant 1 : index
    %c0_265 = arith.constant 0 : index
    %c0_266 = arith.constant 0 : index
    %689 = vector.load %arg9[%c1_264, %c0_265, %c0_266] : memref<2x64x32xbf16, #tpu.memory_space<vmem>>, vector<1x64x32xbf16>
    %690 = vector.shape_cast %689 : vector<1x64x32xbf16> to vector<64x32xbf16>
    %691 = arith.truncf %688 : vector<16x64xf32> to vector<16x64xbf16>
    %cst_267 = arith.constant dense<0.000000e+00> : vector<16x32xf32>
    %692 = tpu.matmul %691, %690, %cst_267 {dimension_numbers = #tpu.dot_dimension_numbers<[1], [0], [0], [1], [0, 0, 1, 1], [], []>} : vector<16x64xbf16>, vector<64x32xbf16>, vector<16x32xf32> -> vector<16x32xf32>
    %c1_268 = arith.constant 1 : index
    %c0_269 = arith.constant 0 : index
    %c0_270 = arith.constant 0 : index
    %693 = vector.load %arg10[%c1_268, %c0_269, %c0_270] : memref<2x1x32xf32, #tpu.memory_space<vmem>>, vector<1x1x32xf32>
    %694 = vector.shape_cast %693 : vector<1x1x32xf32> to vector<1x32xf32>
    %695 = vector.broadcast %694 : vector<1x32xf32> to vector<16x32xf32>
    %696 = arith.addf %692, %695 : vector<16x32xf32>
    %697 = arith.addf %678, %696 : vector<16x32xf32>
    %c1_271 = arith.constant 1 : index
    %c0_272 = arith.constant 0 : index
    %c0_273 = arith.constant 0 : index
    %698 = vector.load %arg11[%c1_271, %c0_272, %c0_273] : memref<2x1x32xf32, #tpu.memory_space<vmem>>, vector<1x1x32xf32>
    %699 = vector.shape_cast %698 : vector<1x1x32xf32> to vector<1x32xf32>
    %c1_274 = arith.constant 1 : index
    %c0_275 = arith.constant 0 : index
    %c0_276 = arith.constant 0 : index
    %700 = vector.load %arg12[%c1_274, %c0_275, %c0_276] : memref<2x1x32xf32, #tpu.memory_space<vmem>>, vector<1x1x32xf32>
    %701 = vector.shape_cast %700 : vector<1x1x32xf32> to vector<1x32xf32>
    %cst_277 = arith.constant dense<0.000000e+00> : vector<16xf32>
    %702 = vector.multi_reduction <add>, %697, %cst_277 [1] : vector<16x32xf32> to vector<16xf32>
    %703 = vector.shape_cast %702 : vector<16xf32> to vector<16x1xf32>
    %cst_278 = arith.constant 3.200000e+01 : f32
    %704 = vector.broadcast %cst_278 : f32 to vector<16x1xf32>
    %705 = arith.divf %703, %704 : vector<16x1xf32>
    %706 = vector.broadcast %705 : vector<16x1xf32> to vector<16x32xf32>
    %707 = arith.subf %697, %706 : vector<16x32xf32>
    %708 = arith.mulf %707, %707 : vector<16x32xf32>
    %cst_279 = arith.constant dense<0.000000e+00> : vector<16xf32>
    %709 = vector.multi_reduction <add>, %708, %cst_279 [1] : vector<16x32xf32> to vector<16xf32>
    %710 = vector.shape_cast %709 : vector<16xf32> to vector<16x1xf32>
    %cst_280 = arith.constant 3.200000e+01 : f32
    %711 = vector.broadcast %cst_280 : f32 to vector<16x1xf32>
    %712 = arith.divf %710, %711 : vector<16x1xf32>
    %713 = vector.broadcast %705 : vector<16x1xf32> to vector<16x32xf32>
    %714 = arith.subf %697, %713 : vector<16x32xf32>
    %cst_281 = arith.constant 9.99999974E-6 : f32
    %715 = vector.broadcast %cst_281 : f32 to vector<16x1xf32>
    %716 = arith.addf %712, %715 : vector<16x1xf32>
    %717 = math.rsqrt %716 : vector<16x1xf32>
    %718 = vector.broadcast %717 : vector<16x1xf32> to vector<16x32xf32>
    %719 = arith.mulf %714, %718 : vector<16x32xf32>
    %720 = vector.broadcast %699 : vector<1x32xf32> to vector<16x32xf32>
    %721 = arith.mulf %719, %720 : vector<16x32xf32>
    %722 = vector.broadcast %701 : vector<1x32xf32> to vector<16x32xf32>
    %723 = arith.addf %721, %722 : vector<16x32xf32>
    %c0_282 = arith.constant 0 : index
    %c0_283 = arith.constant 0 : index
    %724 = vector.load %arg13[%c0_282, %c0_283] : memref<1x32xf32, #tpu.memory_space<vmem>>, vector<1x32xf32>
    %c0_284 = arith.constant 0 : index
    %c0_285 = arith.constant 0 : index
    %725 = vector.load %arg14[%c0_284, %c0_285] : memref<1x32xf32, #tpu.memory_space<vmem>>, vector<1x32xf32>
    %cst_286 = arith.constant dense<0.000000e+00> : vector<16xf32>
    %726 = vector.multi_reduction <add>, %723, %cst_286 [1] : vector<16x32xf32> to vector<16xf32>
    %727 = vector.shape_cast %726 : vector<16xf32> to vector<16x1xf32>
    %cst_287 = arith.constant 3.200000e+01 : f32
    %728 = vector.broadcast %cst_287 : f32 to vector<16x1xf32>
    %729 = arith.divf %727, %728 : vector<16x1xf32>
    %730 = vector.broadcast %729 : vector<16x1xf32> to vector<16x32xf32>
    %731 = arith.subf %723, %730 : vector<16x32xf32>
    %732 = arith.mulf %731, %731 : vector<16x32xf32>
    %cst_288 = arith.constant dense<0.000000e+00> : vector<16xf32>
    %733 = vector.multi_reduction <add>, %732, %cst_288 [1] : vector<16x32xf32> to vector<16xf32>
    %734 = vector.shape_cast %733 : vector<16xf32> to vector<16x1xf32>
    %cst_289 = arith.constant 3.200000e+01 : f32
    %735 = vector.broadcast %cst_289 : f32 to vector<16x1xf32>
    %736 = arith.divf %734, %735 : vector<16x1xf32>
    %737 = vector.broadcast %729 : vector<16x1xf32> to vector<16x32xf32>
    %738 = arith.subf %723, %737 : vector<16x32xf32>
    %cst_290 = arith.constant 9.99999974E-6 : f32
    %739 = vector.broadcast %cst_290 : f32 to vector<16x1xf32>
    %740 = arith.addf %736, %739 : vector<16x1xf32>
    %741 = math.rsqrt %740 : vector<16x1xf32>
    %742 = vector.broadcast %741 : vector<16x1xf32> to vector<16x32xf32>
    %743 = arith.mulf %738, %742 : vector<16x32xf32>
    %744 = vector.broadcast %724 : vector<1x32xf32> to vector<16x32xf32>
    %745 = arith.mulf %743, %744 : vector<16x32xf32>
    %746 = vector.broadcast %725 : vector<1x32xf32> to vector<16x32xf32>
    %747 = arith.addf %745, %746 : vector<16x32xf32>
    %c0_291 = arith.constant 0 : index
    %c0_292 = arith.constant 0 : index
    %748 = vector.load %arg15[%c0_291, %c0_292] : memref<32x128xbf16, #tpu.memory_space<vmem>>, vector<32x128xbf16>
    %749 = arith.truncf %747 : vector<16x32xf32> to vector<16x32xbf16>
    %cst_293 = arith.constant dense<0.000000e+00> : vector<16x128xf32>
    %750 = tpu.matmul %749, %748, %cst_293 {dimension_numbers = #tpu.dot_dimension_numbers<[1], [0], [0], [1], [0, 0, 1, 1], [], []>} : vector<16x32xbf16>, vector<32x128xbf16>, vector<16x128xf32> -> vector<16x128xf32>
    %c0_294 = arith.constant 0 : index
    %c0_295 = arith.constant 0 : index
    %751 = vector.load %arg16[%c0_294, %c0_295] : memref<1x128xf32, #tpu.memory_space<vmem>>, vector<1x128xf32>
    %752 = vector.broadcast %751 : vector<1x128xf32> to vector<16x128xf32>
    %753 = arith.addf %750, %752 : vector<16x128xf32>
    %c0_296 = arith.constant 0 : index
    %c0_297 = arith.constant 0 : index
    %754 = vector.load %arg17[%c0_296, %c0_297] : memref<16x128xf32, #tpu.memory_space<vmem>>, vector<16x128xf32>
    tpu.vector_store %arg17[%c0_296, %c0_297], %753 {strides = array<i32>} : memref<16x128xf32, #tpu.memory_space<vmem>>, vector<16x128xf32>,
    return
  }
}

</mosaic_0001>

<llo_original>
// kernel: gpt_decoder_forward.1
$region0: #{gpt_decoder_forward.1}
  #allocation0 [shape = 'u32[]', space=smem, size = 0x4, offset = 0x4, fixed_abs, tag = 'smem constant byte address 0x4 - core index']
  #allocation1 [shape = 'u32[144,128]{1,0:T(1,128)}', space=vmem, size = 0x12000, scoped, tag = 'internal scratch']
  %s0 = inlined_call_operand.vmem [shape: f32[16,32], index: 0, kind: input, shape index: {}]
  %s1 = inlined_call_operand.vmem [shape: bf16[2,32,96], index: 1, kind: input, shape index: {}]
  %s2 = inlined_call_operand.vmem [shape: f32[2,1,96], index: 2, kind: input, shape index: {}]
  %s3 = inlined_call_operand.vmem [shape: bf16[2,32,32], index: 3, kind: input, shape index: {}]
  %s4 = inlined_call_operand.vmem [shape: f32[2,1,32], index: 4, kind: input, shape index: {}]
  %s5 = inlined_call_operand.vmem [shape: f32[2,1,32], index: 5, kind: input, shape index: {}]
  %s6 = inlined_call_operand.vmem [shape: f32[2,1,32], index: 6, kind: input, shape index: {}]
  %s7 = inlined_call_operand.vmem [shape: bf16[2,32,64], index: 7, kind: input, shape index: {}]
  %s8 = inlined_call_operand.vmem [shape: f32[2,1,64], index: 8, kind: input, shape index: {}]
  %s9 = inlined_call_operand.vmem [shape: bf16[2,64,32], index: 9, kind: input, shape index: {}]
  %s10 = inlined_call_operand.vmem [shape: f32[2,1,32], index: 10, kind: input, shape index: {}]
  %s11 = inlined_call_operand.vmem [shape: f32[2,1,32], index: 11, kind: input, shape index: {}]
  %s12 = inlined_call_operand.vmem [shape: f32[2,1,32], index: 12, kind: input, shape index: {}]
  %s13 = inlined_call_operand.vmem [shape: f32[1,32], index: 13, kind: input, shape index: {}]
  %s14 = inlined_call_operand.vmem [shape: f32[1,32], index: 14, kind: input, shape index: {}]
  %s15 = inlined_call_operand.vmem [shape: bf16[32,128], index: 15, kind: input, shape index: {}]
  %s16 = inlined_call_operand.vmem [shape: f32[1,128], index: 16, kind: input, shape index: {}]
  %s17 = inlined_call_operand.hbm [shape: f32[16,128], index: 17, kind: output, shape index: {}]
  %s18 = sld [smem:[#allocation0]]
  $region78: #{gpt_decoder_forward.1} parent=0
    _
  %s20 = ssub.s32 1, %s18
  %s21 = scalar_select 0, %s20, %s18
  $region1: #{gpt_decoder_forward.1} parent=0
    #allocation2 [shape = 'u8[8192]{0}', space=vmem, size = 0x2000, scoped, tag = 'output window, operand 0, single buffered']
    #allocation3 [shape = 's32[1]{0}', space=sflag, size = 0x4, scoped, tag = 'scoped memory for gpt_decoder_forward.1']
    %22 = vsyncpa [#allocation3], 0
    // Predicated region
    $region2: #{gpt_decoder_forward.1} parent=1 // pred_check
      _
    $region3: #{gpt_decoder_forward.1} parent=1 // pred_check_branch
      %24 = sbr.rel (0) target = $region5
    $region4: #{gpt_decoder_forward.1} parent=1 // pred_region
      _
    $region5: #{gpt_decoder_forward.1} parent=1 // pred_fallthru
      _
    // Predicated region
    $region6: #{gpt_decoder_forward.1} parent=1 // pred_check
      _
    $region7: #{gpt_decoder_forward.1} parent=1 // pred_check_branch
      %26 = sbr.rel (0) target = $region9
    $region8: #{gpt_decoder_forward.1} parent=1 // pred_region
      _
    $region9: #{gpt_decoder_forward.1} parent=1 // pred_fallthru
      _
    // Predicated region
    $region10: #{gpt_decoder_forward.1} parent=1 // pred_check
      _
    $region11: #{gpt_decoder_forward.1} parent=1 // pred_check_branch
      %28 = sbr.rel (0) target = $region13
    $region12: #{gpt_decoder_forward.1} parent=1 // pred_region
      _
    $region13: #{gpt_decoder_forward.1} parent=1 // pred_fallthru
      _
    // Predicated region
    $region14: #{gpt_decoder_forward.1} parent=1 // pred_check
      _
    $region15: #{gpt_decoder_forward.1} parent=1 // pred_check_branch
      %30 = sbr.rel (0) target = $region17
    $region16: #{gpt_decoder_forward.1} parent=1 // pred_region
      _
    $region17: #{gpt_decoder_forward.1} parent=1 // pred_fallthru
      _
    // Predicated region
    $region18: #{gpt_decoder_forward.1} parent=1 // pred_check
      _
    $region19: #{gpt_decoder_forward.1} parent=1 // pred_check_branch
      %32 = sbr.rel (0) target = $region21
    $region20: #{gpt_decoder_forward.1} parent=1 // pred_region
      _
    $region21: #{gpt_decoder_forward.1} parent=1 // pred_fallthru
      _
    // Predicated region
    $region22: #{gpt_decoder_forward.1} parent=1 // pred_check
      _
    $region23: #{gpt_decoder_forward.1} parent=1 // pred_check_branch
      %34 = sbr.rel (0) target = $region25
    $region24: #{gpt_decoder_forward.1} parent=1 // pred_region
      _
    $region25: #{gpt_decoder_forward.1} parent=1 // pred_fallthru
      _
    // Predicated region
    $region26: #{gpt_decoder_forward.1} parent=1 // pred_check
      _
    $region27: #{gpt_decoder_forward.1} parent=1 // pred_check_branch
      %36 = sbr.rel (0) target = $region29
    $region28: #{gpt_decoder_forward.1} parent=1 // pred_region
      _
    $region29: #{gpt_decoder_forward.1} parent=1 // pred_fallthru
      _
    // Predicated region
    $region30: #{gpt_decoder_forward.1} parent=1 // pred_check
      _
    $region31: #{gpt_decoder_forward.1} parent=1 // pred_check_branch
      %38 = sbr.rel (0) target = $region33
    $region32: #{gpt_decoder_forward.1} parent=1 // pred_region
      _
    $region33: #{gpt_decoder_forward.1} parent=1 // pred_fallthru
      _
    // Predicated region
    $region34: #{gpt_decoder_forward.1} parent=1 // pred_check
      _
    $region35: #{gpt_decoder_forward.1} parent=1 // pred_check_branch
      %40 = sbr.rel (0) target = $region37
    $region36: #{gpt_decoder_forward.1} parent=1 // pred_region
      _
    $region37: #{gpt_decoder_forward.1} parent=1 // pred_fallthru
      _
    // Predicated region
    $region38: #{gpt_decoder_forward.1} parent=1 // pred_check
      _
    $region39: #{gpt_decoder_forward.1} parent=1 // pred_check_branch
      %42 = sbr.rel (0) target = $region41
    $region40: #{gpt_decoder_forward.1} parent=1 // pred_region
      _
    $region41: #{gpt_decoder_forward.1} parent=1 // pred_fallthru
      _
    // Predicated region
    $region42: #{gpt_decoder_forward.1} parent=1 // pred_check
      _
    $region43: #{gpt_decoder_forward.1} parent=1 // pred_check_branch
      %44 = sbr.rel (0) target = $region45
    $region44: #{gpt_decoder_forward.1} parent=1 // pred_region
      _
    $region45: #{gpt_decoder_forward.1} parent=1 // pred_fallthru
      _
    // Predicated region
    $region46: #{gpt_decoder_forward.1} parent=1 // pred_check
      _
    $region47: #{gpt_decoder_forward.1} parent=1 // pred_check_branch
      %46 = sbr.rel (0) target = $region49
    $region48: #{gpt_decoder_forward.1} parent=1 // pred_region
      _
    $region49: #{gpt_decoder_forward.1} parent=1 // pred_fallthru
      _
    // Predicated region
    $region50: #{gpt_decoder_forward.1} parent=1 // pred_check
      _
    $region51: #{gpt_decoder_forward.1} parent=1 // pred_check_branch
      %48 = sbr.rel (0) target = $region53
    $region52: #{gpt_decoder_forward.1} parent=1 // pred_region
      _
    $region53: #{gpt_decoder_forward.1} parent=1 // pred_fallthru
      _
    // Predicated region
    $region54: #{gpt_decoder_forward.1} parent=1 // pred_check
      _
    $region55: #{gpt_decoder_forward.1} parent=1 // pred_check_branch
      %50 = sbr.rel (0) target = $region57
    $region56: #{gpt_decoder_forward.1} parent=1 // pred_region
      _
    $region57: #{gpt_decoder_forward.1} parent=1 // pred_fallthru
      _
    // Predicated region
    $region58: #{gpt_decoder_forward.1} parent=1 // pred_check
      _
    $region59: #{gpt_decoder_forward.1} parent=1 // pred_check_branch
      %52 = sbr.rel (0) target = $region61
    $region60: #{gpt_decoder_forward.1} parent=1 // pred_region
      _
    $region61: #{gpt_decoder_forward.1} parent=1 // pred_fallthru
      _
    // Predicated region
    $region62: #{gpt_decoder_forward.1} parent=1 // pred_check
      _
    $region63: #{gpt_decoder_forward.1} parent=1 // pred_check_branch
      %54 = sbr.rel (0) target = $region65
    $region64: #{gpt_decoder_forward.1} parent=1 // pred_region
      _
    $region65: #{gpt_decoder_forward.1} parent=1 // pred_fallthru
      _
    // Predicated region
    $region66: #{gpt_decoder_forward.1} parent=1 // pred_check
      _
    $region67: #{gpt_decoder_forward.1} parent=1 // pred_check_branch
      %56 = sbr.rel (0) target = $region69
    $region68: #{gpt_decoder_forward.1} parent=1 // pred_region
      _
    $region69: #{gpt_decoder_forward.1} parent=1 // pred_fallthru
      _
    %v58 = vld [vmem:[%s0] sm:$0xff]
    %v59 = vld [vmem:[%s0 + $0x8] sm:$0xff]
    %v60 = vlaneseq
    %v61 = vshrl.u32 %v60, 7
    %v62 = vlaneseq
    %v63 = vand.u32 %v62, 127
    %vm64 = vcmp.le.s32.totalorder %v63, %v61
    %v65 = vsel %vm64, 0.0, -1e+30
    %v66 = vld [vmem:[%s1] sm:$0xf]
    %v67 = vld [vmem:[%s1 + $0x4] sm:$0xf]
    %v68 = vld [vmem:[%s1 + $0x8] sm:$0xf]
    %v69 = vld [vmem:[%s1 + $0xc] sm:$0xf]
    %v70 = vpack.c.bf16 %v59, %v58
    %v71 = vld [vmem:[%s2] sm:$0x1]
    %v73 = vlaneseq
    %v74 = vshrl.u32 %v73, 7
    %v75 = vsub.s32 0, %v74
    %v76 = vrot.slane %v71, %v75
    %v82 = vunpack.c.l.b16 %v66
    %v83 = vunpack.c.l.b16 %v67
    %v84 = vunpack.c.l.b16 %v68
    %v85 = vunpack.c.l.b16 %v69
    %v86 = vpack.c.b16 %v83, %v82
    %v87 = vpack.c.b16 %v85, %v84
    %vm90 = vcmask 261120
    %v92 = vsel %vm90, %v70, 0
    %94 = vmatprep.subr.bf16.mxu0 0
    %95 = vmatpush1.bf16.msra.mxu0 %v86
    %96 = vmatprep.subr.bf16.mxu0 0
    %97 = vmatpush1.bf16.msra.mxu0 %v87
    %98 = vmatprep.subr.bf16.mxu0 0
    %99 = vmatpush1.bf16.msra.mxu0 0
    %100 = vmatprep.subr.bf16.mxu0 0
    %101 = vmatpush1.bf16.msra.mxu0 0
    %102 = vmatprep.subr.bf16.mxu0 0
    %103 = vmatpush1.bf16.msra.mxu0 0
    %104 = vmatprep.subr.bf16.mxu0 0
    %105 = vmatpush1.bf16.msra.mxu0 0
    %106 = vmatprep.subr.bf16.mxu0 0
    %107 = vmatpush1.bf16.msra.mxu0 0
    %108 = vmatprep.subr.bf16.mxu0 0
    %109 = vmatpush1.bf16.msra.mxu0 0
    %110 = vmatprep.subr.bf16.mxu0 0
    %111 = vmatpush1.bf16.msra.mxu0 0
    %112 = vmatprep.subr.bf16.mxu0 0
    %113 = vmatpush1.bf16.msra.mxu0 0
    %114 = vmatprep.subr.bf16.mxu0 0
    %115 = vmatpush1.bf16.msra.mxu0 0
    %116 = vmatprep.subr.bf16.mxu0 0
    %117 = vmatpush1.bf16.msra.mxu0 0
    %118 = vmatprep.subr.bf16.mxu0 0
    %119 = vmatpush1.bf16.msra.mxu0 0
    %120 = vmatprep.subr.bf16.mxu0 0
    %121 = vmatpush1.bf16.msra.mxu0 0
    %122 = vmatprep.subr.bf16.mxu0 0
    %123 = vmatpush1.bf16.msra.mxu0 0
    %124 = vmatprep.subr.bf16.mxu0 0
    %125 = vmatpush1.bf16.msra.mxu0 0
    %126 = vmatprep.mubr.bf16.mxu0 0
    %127 = vmatmul.mubr.bf16.gmra.mrb[0].mxu0 %v92
    %v128 = vpop.f32.mrb[0].mxu0
    %v129 = vadd.f32 %v76, %v128
    %v130 = vpop.f32.mrb[0].mxu0
    %v131 = vpop.f32.mrb[0].mxu0
    %v132 = vadd.f32 %v76, %v131
    %v133 = vpop.f32.mrb[0].mxu0
    %134 = vdwg.mxu0
    %v135 = vmul.f32 %v129, 0.35355338
    %v136 = vmul.f32 %v132, 0.35355338
    %v137 = vpack.c.bf16 %v135, %v135
    %v138 = vpack.c.bf16 %v136, %v136
    %v139 = vpack.c.bf16 %v129, %v129
    %v140 = vpack.c.bf16 %v132, %v132
    %142 = vrot.lane.b32.xlu0 %v139, 96
    %v143 = vpop.permute.xlu0 %142
    %vm144 = vcmask 64512
    %v146 = vsel %vm144, %v137, 0
    %v149 = vsel %vm144, %v143, 0
    %151 = vmatprep.subr.bf16.mxu0 0
    %152 = vmatpush1.bf16.xpose.msra.mxu0 %v149
    %153 = vmatprep.subr.bf16.mxu0 0
    %154 = vmatpush1.bf16.xpose.msra.mxu0 0
    %155 = vmatprep.subr.bf16.mxu0 0
    %156 = vmatpush1.bf16.xpose.msra.mxu0 0
    %157 = vmatprep.subr.bf16.mxu0 0
    %158 = vmatpush1.bf16.xpose.msra.mxu0 0
    %159 = vmatprep.subr.bf16.mxu0 0
    %160 = vmatpush1.bf16.xpose.msra.mxu0 0
    %161 = vmatprep.subr.bf16.mxu0 0
    %162 = vmatpush1.bf16.xpose.msra.mxu0 0
    %163 = vmatprep.subr.bf16.mxu0 0
    %164 = vmatpush1.bf16.xpose.msra.mxu0 0
    %165 = vmatprep.subr.bf16.mxu0 0
    %166 = vmatpush1.bf16.xpose.msra.mxu0 0
    %167 = vmatprep.subr.bf16.mxu0 0
    %168 = vmatpush1.bf16.xpose.msra.mxu0 0
    %169 = vmatprep.subr.bf16.mxu0 0
    %170 = vmatpush1.bf16.xpose.msra.mxu0 0
    %171 = vmatprep.subr.bf16.mxu0 0
    %172 = vmatpush1.bf16.xpose.msra.mxu0 0
    %173 = vmatprep.subr.bf16.mxu0 0
    %174 = vmatpush1.bf16.xpose.msra.mxu0 0
    %175 = vmatprep.subr.bf16.mxu0 0
    %176 = vmatpush1.bf16.xpose.msra.mxu0 0
    %177 = vmatprep.subr.bf16.mxu0 0
    %178 = vmatpush1.bf16.xpose.msra.mxu0 0
    %179 = vmatprep.subr.bf16.mxu0 0
    %180 = vmatpush1.bf16.xpose.msra.mxu0 0
    %181 = vmatprep.subr.bf16.mxu0 0
    %182 = vmatpush1.bf16.xpose.msra.mxu0 0
    %183 = vmatprep.mubr.bf16.mxu0 0
    %184 = vmatmul.mubr.bf16.gmra.mrb[0].mxu0 %v146
    %v185 = vpop.f32.mrb[0].mxu0
    %v186 = vadd.f32 %v65, %v185
    %v187 = vpop.f32.mrb[0].mxu0
    %v188 = vpop.f32.mrb[0].mxu0
    %v189 = vpop.f32.mrb[0].mxu0
    %190 = vdwg.mxu0
    %192 = vrot.lane.b32.xlu0 %v140, 96
    %v193 = vpop.permute.xlu0 %192
    %v195 = vsel %vm144, %v138, 0
    %v198 = vsel %vm144, %v193, 0
    %200 = vmatprep.subr.bf16.mxu0 0
    %201 = vmatpush1.bf16.xpose.msra.mxu0 %v198
    %202 = vmatprep.subr.bf16.mxu0 0
    %203 = vmatpush1.bf16.xpose.msra.mxu0 0
    %204 = vmatprep.subr.bf16.mxu0 0
    %205 = vmatpush1.bf16.xpose.msra.mxu0 0
    %206 = vmatprep.subr.bf16.mxu0 0
    %207 = vmatpush1.bf16.xpose.msra.mxu0 0
    %208 = vmatprep.subr.bf16.mxu0 0
    %209 = vmatpush1.bf16.xpose.msra.mxu0 0
    %210 = vmatprep.subr.bf16.mxu0 0
    %211 = vmatpush1.bf16.xpose.msra.mxu0 0
    %212 = vmatprep.subr.bf16.mxu0 0
    %213 = vmatpush1.bf16.xpose.msra.mxu0 0
    %214 = vmatprep.subr.bf16.mxu0 0
    %215 = vmatpush1.bf16.xpose.msra.mxu0 0
    %216 = vmatprep.subr.bf16.mxu0 0
    %217 = vmatpush1.bf16.xpose.msra.mxu0 0
    %218 = vmatprep.subr.bf16.mxu0 0
    %219 = vmatpush1.bf16.xpose.msra.mxu0 0
    %220 = vmatprep.subr.bf16.mxu0 0
    %221 = vmatpush1.bf16.xpose.msra.mxu0 0
    %222 = vmatprep.subr.bf16.mxu0 0
    %223 = vmatpush1.bf16.xpose.msra.mxu0 0
    %224 = vmatprep.subr.bf16.mxu0 0
    %225 = vmatpush1.bf16.xpose.msra.mxu0 0
    %226 = vmatprep.subr.bf16.mxu0 0
    %227 = vmatpush1.bf16.xpose.msra.mxu0 0
    %228 = vmatprep.subr.bf16.mxu0 0
    %229 = vmatpush1.bf16.xpose.msra.mxu0 0
    %230 = vmatprep.subr.bf16.mxu0 0
    %231 = vmatpush1.bf16.xpose.msra.mxu0 0
    %232 = vmatprep.mubr.bf16.mxu0 0
    %233 = vmatmul.mubr.bf16.gmra.mrb[0].mxu0 %v195
    %v234 = vpop.f32.mrb[0].mxu0
    %v235 = vadd.f32 %v65, %v234
    %v236 = vpop.f32.mrb[0].mxu0
    %v237 = vpop.f32.mrb[0].mxu0
    %v238 = vpop.f32.mrb[0].mxu0
    %239 = vdwg.mxu0
    %v240 = vsel %vm144, %v186, -inf
    %241 = vmax.xlane.f32.xlu0 %v240
    %v242 = vpop.xlane.xlu0 %241
    %v243 = vsel %vm144, %v235, -inf
    %244 = vmax.xlane.f32.xlu0 %v243
    %v245 = vpop.xlane.xlu0 %244
    %v246 = vsub.f32 %v186, %v242
    %v247 = vsub.f32 %v235, %v245
    %v248 = vmul.f32 %v246, 1.442695
    %v249 = vpow.pop %v248
    %v250 = vmul.f32 %v247, 1.442695
    %v251 = vpow.pop %v250
    %v252 = vsel %vm144, %v249, 0.0
    %253 = vadd.xlane.f32.xlu0 %v252
    %v254 = vpop.xlane.xlu0 %253
    %v255 = vsel %vm144, %v251, 0.0
    %256 = vadd.xlane.f32.xlu0 %v255
    %v257 = vpop.xlane.xlu0 %256
    %v258 = vrcp.pop %v254
    %v259 = vrcp.pop %v257
    %v260 = vmul.f32 %v249, %v258
    %v261 = vmul.f32 %v251, %v259
    %v262 = vpack.c.bf16 %v260, %v260
    %v263 = vpack.c.bf16 %v261, %v261
    %264 = vrot.lane.b32.xlu0 %v139, 64
    %v265 = vpop.permute.xlu0 %264
    %v267 = vsel %vm144, %v262, 0
    %vm269 = vcmask 1043456
    %v271 = vsel %vm269, %v265, 0
    %273 = vmatprep.subr.bf16.mxu0 0
    %274 = vmatpush1.bf16.msra.mxu0 %v271
    %275 = vmatprep.subr.bf16.mxu0 0
    %276 = vmatpush1.bf16.msra.mxu0 0
    %277 = vmatprep.subr.bf16.mxu0 0
    %278 = vmatpush1.bf16.msra.mxu0 0
    %279 = vmatprep.subr.bf16.mxu0 0
    %280 = vmatpush1.bf16.msra.mxu0 0
    %281 = vmatprep.subr.bf16.mxu0 0
    %282 = vmatpush1.bf16.msra.mxu0 0
    %283 = vmatprep.subr.bf16.mxu0 0
    %284 = vmatpush1.bf16.msra.mxu0 0
    %285 = vmatprep.subr.bf16.mxu0 0
    %286 = vmatpush1.bf16.msra.mxu0 0
    %287 = vmatprep.subr.bf16.mxu0 0
    %288 = vmatpush1.bf16.msra.mxu0 0
    %289 = vmatprep.subr.bf16.mxu0 0
    %290 = vmatpush1.bf16.msra.mxu0 0
    %291 = vmatprep.subr.bf16.mxu0 0
    %292 = vmatpush1.bf16.msra.mxu0 0
    %293 = vmatprep.subr.bf16.mxu0 0
    %294 = vmatpush1.bf16.msra.mxu0 0
    %295 = vmatprep.subr.bf16.mxu0 0
    %296 = vmatpush1.bf16.msra.mxu0 0
    %297 = vmatprep.subr.bf16.mxu0 0
    %298 = vmatpush1.bf16.msra.mxu0 0
    %299 = vmatprep.subr.bf16.mxu0 0
    %300 = vmatpush1.bf16.msra.mxu0 0
    %301 = vmatprep.subr.bf16.mxu0 0
    %302 = vmatpush1.bf16.msra.mxu0 0
    %303 = vmatprep.subr.bf16.mxu0 0
    %304 = vmatpush1.bf16.msra.mxu0 0
    %305 = vmatprep.mubr.bf16.mxu0 0
    %306 = vmatmul.mubr.bf16.gmra.mrb[0].mxu0 %v267
    %v307 = vpop.f32.mrb[0].mxu0
    %v308 = vadd.f32 0.0, %v307
    %v309 = vpop.f32.mrb[0].mxu0
    %v310 = vpop.f32.mrb[0].mxu0
    %v311 = vpop.f32.mrb[0].mxu0
    %312 = vdwg.mxu0
    %313 = vrot.lane.b32.xlu0 %v140, 64
    %v314 = vpop.permute.xlu0 %313
    %v316 = vsel %vm144, %v263, 0
    %v319 = vsel %vm269, %v314, 0
    %321 = vmatprep.subr.bf16.mxu0 0
    %322 = vmatpush1.bf16.msra.mxu0 %v319
    %323 = vmatprep.subr.bf16.mxu0 0
    %324 = vmatpush1.bf16.msra.mxu0 0
    %325 = vmatprep.subr.bf16.mxu0 0
    %326 = vmatpush1.bf16.msra.mxu0 0
    %327 = vmatprep.subr.bf16.mxu0 0
    %328 = vmatpush1.bf16.msra.mxu0 0
    %329 = vmatprep.subr.bf16.mxu0 0
    %330 = vmatpush1.bf16.msra.mxu0 0
    %331 = vmatprep.subr.bf16.mxu0 0
    %332 = vmatpush1.bf16.msra.mxu0 0
    %333 = vmatprep.subr.bf16.mxu0 0
    %334 = vmatpush1.bf16.msra.mxu0 0
    %335 = vmatprep.subr.bf16.mxu0 0
    %336 = vmatpush1.bf16.msra.mxu0 0
    %337 = vmatprep.subr.bf16.mxu0 0
    %338 = vmatpush1.bf16.msra.mxu0 0
    %339 = vmatprep.subr.bf16.mxu0 0
    %340 = vmatpush1.bf16.msra.mxu0 0
    %341 = vmatprep.subr.bf16.mxu0 0
    %342 = vmatpush1.bf16.msra.mxu0 0
    %343 = vmatprep.subr.bf16.mxu0 0
    %344 = vmatpush1.bf16.msra.mxu0 0
    %345 = vmatprep.subr.bf16.mxu0 0
    %346 = vmatpush1.bf16.msra.mxu0 0
    %347 = vmatprep.subr.bf16.mxu0 0
    %348 = vmatpush1.bf16.msra.mxu0 0
    %349 = vmatprep.subr.bf16.mxu0 0
    %350 = vmatpush1.bf16.msra.mxu0 0
    %351 = vmatprep.subr.bf16.mxu0 0
    %352 = vmatpush1.bf16.msra.mxu0 0
    %353 = vmatprep.mubr.bf16.mxu0 0
    %354 = vmatmul.mubr.bf16.gmra.mrb[0].mxu0 %v316
    %v355 = vpop.f32.mrb[0].mxu0
    %v356 = vadd.f32 0.0, %v355
    %v357 = vpop.f32.mrb[0].mxu0
    %v358 = vpop.f32.mrb[0].mxu0
    %v359 = vpop.f32.mrb[0].mxu0
    %360 = vdwg.mxu0
    %362 = vrot.lane.b32.xlu0 %v137, 120
    %v363 = vpop.permute.xlu0 %362
    %364 = vrot.lane.b32.xlu0 %v139, 88
    %v365 = vpop.permute.xlu0 %364
    %v367 = vsel %vm144, %v363, 0
    %v370 = vsel %vm144, %v365, 0
    %372 = vmatprep.subr.bf16.mxu0 0
    %373 = vmatpush1.bf16.xpose.msra.mxu0 %v370
    %374 = vmatprep.subr.bf16.mxu0 0
    %375 = vmatpush1.bf16.xpose.msra.mxu0 0
    %376 = vmatprep.subr.bf16.mxu0 0
    %377 = vmatpush1.bf16.xpose.msra.mxu0 0
    %378 = vmatprep.subr.bf16.mxu0 0
    %379 = vmatpush1.bf16.xpose.msra.mxu0 0
    %380 = vmatprep.subr.bf16.mxu0 0
    %381 = vmatpush1.bf16.xpose.msra.mxu0 0
    %382 = vmatprep.subr.bf16.mxu0 0
    %383 = vmatpush1.bf16.xpose.msra.mxu0 0
    %384 = vmatprep.subr.bf16.mxu0 0
    %385 = vmatpush1.bf16.xpose.msra.mxu0 0
    %386 = vmatprep.subr.bf16.mxu0 0
    %387 = vmatpush1.bf16.xpose.msra.mxu0 0
    %388 = vmatprep.subr.bf16.mxu0 0
    %389 = vmatpush1.bf16.xpose.msra.mxu0 0
    %390 = vmatprep.subr.bf16.mxu0 0
    %391 = vmatpush1.bf16.xpose.msra.mxu0 0
    %392 = vmatprep.subr.bf16.mxu0 0
    %393 = vmatpush1.bf16.xpose.msra.mxu0 0
    %394 = vmatprep.subr.bf16.mxu0 0
    %395 = vmatpush1.bf16.xpose.msra.mxu0 0
    %396 = vmatprep.subr.bf16.mxu0 0
    %397 = vmatpush1.bf16.xpose.msra.mxu0 0
    %398 = vmatprep.subr.bf16.mxu0 0
    %399 = vmatpush1.bf16.xpose.msra.mxu0 0
    %400 = vmatprep.subr.bf16.mxu0 0
    %401 = vmatpush1.bf16.xpose.msra.mxu0 0
    %402 = vmatprep.subr.bf16.mxu0 0
    %403 = vmatpush1.bf16.xpose.msra.mxu0 0
    %404 = vmatprep.mubr.bf16.mxu0 0
    %405 = vmatmul.mubr.bf16.gmra.mrb[0].mxu0 %v367
    %v406 = vpop.f32.mrb[0].mxu0
    %v407 = vadd.f32 %v65, %v406
    %v408 = vpop.f32.mrb[0].mxu0
    %v409 = vpop.f32.mrb[0].mxu0
    %v410 = vpop.f32.mrb[0].mxu0
    %411 = vdwg.mxu0
    %413 = vrot.lane.b32.xlu0 %v138, 120
    %v414 = vpop.permute.xlu0 %413
    %415 = vrot.lane.b32.xlu0 %v140, 88
    %v416 = vpop.permute.xlu0 %415
    %v418 = vsel %vm144, %v414, 0
    %v421 = vsel %vm144, %v416, 0
    %423 = vmatprep.subr.bf16.mxu0 0
    %424 = vmatpush1.bf16.xpose.msra.mxu0 %v421
    %425 = vmatprep.subr.bf16.mxu0 0
    %426 = vmatpush1.bf16.xpose.msra.mxu0 0
    %427 = vmatprep.subr.bf16.mxu0 0
    %428 = vmatpush1.bf16.xpose.msra.mxu0 0
    %429 = vmatprep.subr.bf16.mxu0 0
    %430 = vmatpush1.bf16.xpose.msra.mxu0 0
    %431 = vmatprep.subr.bf16.mxu0 0
    %432 = vmatpush1.bf16.xpose.msra.mxu0 0
    %433 = vmatprep.subr.bf16.mxu0 0
    %434 = vmatpush1.bf16.xpose.msra.mxu0 0
    %435 = vmatprep.subr.bf16.mxu0 0
    %436 = vmatpush1.bf16.xpose.msra.mxu0 0
    %437 = vmatprep.subr.bf16.mxu0 0
    %438 = vmatpush1.bf16.xpose.msra.mxu0 0
    %439 = vmatprep.subr.bf16.mxu0 0
    %440 = vmatpush1.bf16.xpose.msra.mxu0 0
    %441 = vmatprep.subr.bf16.mxu0 0
    %442 = vmatpush1.bf16.xpose.msra.mxu0 0
    %443 = vmatprep.subr.bf16.mxu0 0
    %444 = vmatpush1.bf16.xpose.msra.mxu0 0
    %445 = vmatprep.subr.bf16.mxu0 0
    %446 = vmatpush1.bf16.xpose.msra.mxu0 0
    %447 = vmatprep.subr.bf16.mxu0 0
    %448 = vmatpush1.bf16.xpose.msra.mxu0 0
    %449 = vmatprep.subr.bf16.mxu0 0
    %450 = vmatpush1.bf16.xpose.msra.mxu0 0
    %451 = vmatprep.subr.bf16.mxu0 0
    %452 = vmatpush1.bf16.xpose.msra.mxu0 0
    %453 = vmatprep.subr.bf16.mxu0 0
    %454 = vmatpush1.bf16.xpose.msra.mxu0 0
    %455 = vmatprep.mubr.bf16.mxu0 0
    %456 = vmatmul.mubr.bf16.gmra.mrb[0].mxu0 %v418
    %v457 = vpop.f32.mrb[0].mxu0
    %v458 = vadd.f32 %v65, %v457
    %v459 = vpop.f32.mrb[0].mxu0
    %v460 = vpop.f32.mrb[0].mxu0
    %v461 = vpop.f32.mrb[0].mxu0
    %462 = vdwg.mxu0
    %v463 = vsel %vm144, %v407, -inf
    %464 = vmax.xlane.f32.xlu0 %v463
    %v465 = vpop.xlane.xlu0 %464
    %v466 = vsel %vm144, %v458, -inf
    %467 = vmax.xlane.f32.xlu0 %v466
    %v468 = vpop.xlane.xlu0 %467
    %v469 = vsub.f32 %v407, %v465
    %v470 = vsub.f32 %v458, %v468
    %v471 = vmul.f32 %v469, 1.442695
    %v472 = vpow.pop %v471
    %v473 = vmul.f32 %v470, 1.442695
    %v474 = vpow.pop %v473
    %v475 = vsel %vm144, %v472, 0.0
    %476 = vadd.xlane.f32.xlu0 %v475
    %v477 = vpop.xlane.xlu0 %476
    %v478 = vsel %vm144, %v474, 0.0
    %479 = vadd.xlane.f32.xlu0 %v478
    %v480 = vpop.xlane.xlu0 %479
    %v481 = vrcp.pop %v477
    %v482 = vrcp.pop %v480
    %v483 = vmul.f32 %v472, %v481
    %v484 = vmul.f32 %v474, %v482
    %v485 = vpack.c.bf16 %v483, %v483
    %v486 = vpack.c.bf16 %v484, %v484
    %487 = vrot.lane.b32.xlu0 %v139, 56
    %v488 = vpop.permute.xlu0 %487
    %v490 = vsel %vm144, %v485, 0
    %v493 = vsel %vm269, %v488, 0
    %495 = vmatprep.subr.bf16.mxu0 0
    %496 = vmatpush1.bf16.msra.mxu0 %v493
    %497 = vmatprep.subr.bf16.mxu0 0
    %498 = vmatpush1.bf16.msra.mxu0 0
    %499 = vmatprep.subr.bf16.mxu0 0
    %500 = vmatpush1.bf16.msra.mxu0 0
    %501 = vmatprep.subr.bf16.mxu0 0
    %502 = vmatpush1.bf16.msra.mxu0 0
    %503 = vmatprep.subr.bf16.mxu0 0
    %504 = vmatpush1.bf16.msra.mxu0 0
    %505 = vmatprep.subr.bf16.mxu0 0
    %506 = vmatpush1.bf16.msra.mxu0 0
    %507 = vmatprep.subr.bf16.mxu0 0
    %508 = vmatpush1.bf16.msra.mxu0 0
    %509 = vmatprep.subr.bf16.mxu0 0
    %510 = vmatpush1.bf16.msra.mxu0 0
    %511 = vmatprep.subr.bf16.mxu0 0
    %512 = vmatpush1.bf16.msra.mxu0 0
    %513 = vmatprep.subr.bf16.mxu0 0
    %514 = vmatpush1.bf16.msra.mxu0 0
    %515 = vmatprep.subr.bf16.mxu0 0
    %516 = vmatpush1.bf16.msra.mxu0 0
    %517 = vmatprep.subr.bf16.mxu0 0
    %518 = vmatpush1.bf16.msra.mxu0 0
    %519 = vmatprep.subr.bf16.mxu0 0
    %520 = vmatpush1.bf16.msra.mxu0 0
    %521 = vmatprep.subr.bf16.mxu0 0
    %522 = vmatpush1.bf16.msra.mxu0 0
    %523 = vmatprep.subr.bf16.mxu0 0
    %524 = vmatpush1.bf16.msra.mxu0 0
    %525 = vmatprep.subr.bf16.mxu0 0
    %526 = vmatpush1.bf16.msra.mxu0 0
    %527 = vmatprep.mubr.bf16.mxu0 0
    %528 = vmatmul.mubr.bf16.gmra.mrb[0].mxu0 %v490
    %v529 = vpop.f32.mrb[0].mxu0
    %v530 = vadd.f32 0.0, %v529
    %v531 = vpop.f32.mrb[0].mxu0
    %v532 = vpop.f32.mrb[0].mxu0
    %v533 = vpop.f32.mrb[0].mxu0
    %534 = vdwg.mxu0
    %535 = vrot.lane.b32.xlu0 %v140, 56
    %v536 = vpop.permute.xlu0 %535
    %v538 = vsel %vm144, %v486, 0
    %v541 = vsel %vm269, %v536, 0
    %543 = vmatprep.subr.bf16.mxu0 0
    %544 = vmatpush1.bf16.msra.mxu0 %v541
    %545 = vmatprep.subr.bf16.mxu0 0
    %546 = vmatpush1.bf16.msra.mxu0 0
    %547 = vmatprep.subr.bf16.mxu0 0
    %548 = vmatpush1.bf16.msra.mxu0 0
    %549 = vmatprep.subr.bf16.mxu0 0
    %550 = vmatpush1.bf16.msra.mxu0 0
    %551 = vmatprep.subr.bf16.mxu0 0
    %552 = vmatpush1.bf16.msra.mxu0 0
    %553 = vmatprep.subr.bf16.mxu0 0
    %554 = vmatpush1.bf16.msra.mxu0 0
    %555 = vmatprep.subr.bf16.mxu0 0
    %556 = vmatpush1.bf16.msra.mxu0 0
    %557 = vmatprep.subr.bf16.mxu0 0
    %558 = vmatpush1.bf16.msra.mxu0 0
    %559 = vmatprep.subr.bf16.mxu0 0
    %560 = vmatpush1.bf16.msra.mxu0 0
    %561 = vmatprep.subr.bf16.mxu0 0
    %562 = vmatpush1.bf16.msra.mxu0 0
    %563 = vmatprep.subr.bf16.mxu0 0
    %564 = vmatpush1.bf16.msra.mxu0 0
    %565 = vmatprep.subr.bf16.mxu0 0
    %566 = vmatpush1.bf16.msra.mxu0 0
    %567 = vmatprep.subr.bf16.mxu0 0
    %568 = vmatpush1.bf16.msra.mxu0 0
    %569 = vmatprep.subr.bf16.mxu0 0
    %570 = vmatpush1.bf16.msra.mxu0 0
    %571 = vmatprep.subr.bf16.mxu0 0
    %572 = vmatpush1.bf16.msra.mxu0 0
    %573 = vmatprep.subr.bf16.mxu0 0
    %574 = vmatpush1.bf16.msra.mxu0 0
    %575 = vmatprep.mubr.bf16.mxu0 0
    %576 = vmatmul.mubr.bf16.gmra.mrb[0].mxu0 %v538
    %v577 = vpop.f32.mrb[0].mxu0
    %v578 = vadd.f32 0.0, %v577
    %v579 = vpop.f32.mrb[0].mxu0
    %v580 = vpop.f32.mrb[0].mxu0
    %v581 = vpop.f32.mrb[0].mxu0
    %582 = vdwg.mxu0
    %583 = vrot.lane.b32.xlu0 %v137, 112
    %v584 = vpop.permute.xlu0 %583
    %585 = vrot.lane.b32.xlu0 %v139, 80
    %v586 = vpop.permute.xlu0 %585
    %v588 = vsel %vm144, %v584, 0
    %v591 = vsel %vm144, %v586, 0
    %593 = vmatprep.subr.bf16.mxu0 0
    %594 = vmatpush1.bf16.xpose.msra.mxu0 %v591
    %595 = vmatprep.subr.bf16.mxu0 0
    %596 = vmatpush1.bf16.xpose.msra.mxu0 0
    %597 = vmatprep.subr.bf16.mxu0 0
    %598 = vmatpush1.bf16.xpose.msra.mxu0 0
    %599 = vmatprep.subr.bf16.mxu0 0
    %600 = vmatpush1.bf16.xpose.msra.mxu0 0
    %601 = vmatprep.subr.bf16.mxu0 0
    %602 = vmatpush1.bf16.xpose.msra.mxu0 0
    %603 = vmatprep.subr.bf16.mxu0 0
    %604 = vmatpush1.bf16.xpose.msra.mxu0 0
    %605 = vmatprep.subr.bf16.mxu0 0
    %606 = vmatpush1.bf16.xpose.msra.mxu0 0
    %607 = vmatprep.subr.bf16.mxu0 0
    %608 = vmatpush1.bf16.xpose.msra.mxu0 0
    %609 = vmatprep.subr.bf16.mxu0 0
    %610 = vmatpush1.bf16.xpose.msra.mxu0 0
    %611 = vmatprep.subr.bf16.mxu0 0
    %612 = vmatpush1.bf16.xpose.msra.mxu0 0
    %613 = vmatprep.subr.bf16.mxu0 0
    %614 = vmatpush1.bf16.xpose.msra.mxu0 0
    %615 = vmatprep.subr.bf16.mxu0 0
    %616 = vmatpush1.bf16.xpose.msra.mxu0 0
    %617 = vmatprep.subr.bf16.mxu0 0
    %618 = vmatpush1.bf16.xpose.msra.mxu0 0
    %619 = vmatprep.subr.bf16.mxu0 0
    %620 = vmatpush1.bf16.xpose.msra.mxu0 0
    %621 = vmatprep.subr.bf16.mxu0 0
    %622 = vmatpush1.bf16.xpose.msra.mxu0 0
    %623 = vmatprep.subr.bf16.mxu0 0
    %624 = vmatpush1.bf16.xpose.msra.mxu0 0
    %625 = vmatprep.mubr.bf16.mxu0 0
    %626 = vmatmul.mubr.bf16.gmra.mrb[0].mxu0 %v588
    %v627 = vpop.f32.mrb[0].mxu0
    %v628 = vadd.f32 %v65, %v627
    %v629 = vpop.f32.mrb[0].mxu0
    %v630 = vpop.f32.mrb[0].mxu0
    %v631 = vpop.f32.mrb[0].mxu0
    %632 = vdwg.mxu0
    %633 = vrot.lane.b32.xlu0 %v138, 112
    %v634 = vpop.permute.xlu0 %633
    %635 = vrot.lane.b32.xlu0 %v140, 80
    %v636 = vpop.permute.xlu0 %635
    %v638 = vsel %vm144, %v634, 0
    %v641 = vsel %vm144, %v636, 0
    %643 = vmatprep.subr.bf16.mxu0 0
    %644 = vmatpush1.bf16.xpose.msra.mxu0 %v641
    %645 = vmatprep.subr.bf16.mxu0 0
    %646 = vmatpush1.bf16.xpose.msra.mxu0 0
    %647 = vmatprep.subr.bf16.mxu0 0
    %648 = vmatpush1.bf16.xpose.msra.mxu0 0
    %649 = vmatprep.subr.bf16.mxu0 0
    %650 = vmatpush1.bf16.xpose.msra.mxu0 0
    %651 = vmatprep.subr.bf16.mxu0 0
    %652 = vmatpush1.bf16.xpose.msra.mxu0 0
    %653 = vmatprep.subr.bf16.mxu0 0
    %654 = vmatpush1.bf16.xpose.msra.mxu0 0
    %655 = vmatprep.subr.bf16.mxu0 0
    %656 = vmatpush1.bf16.xpose.msra.mxu0 0
    %657 = vmatprep.subr.bf16.mxu0 0
    %658 = vmatpush1.bf16.xpose.msra.mxu0 0
    %659 = vmatprep.subr.bf16.mxu0 0
    %660 = vmatpush1.bf16.xpose.msra.mxu0 0
    %661 = vmatprep.subr.bf16.mxu0 0
    %662 = vmatpush1.bf16.xpose.msra.mxu0 0
    %663 = vmatprep.subr.bf16.mxu0 0
    %664 = vmatpush1.bf16.xpose.msra.mxu0 0
    %665 = vmatprep.subr.bf16.mxu0 0
    %666 = vmatpush1.bf16.xpose.msra.mxu0 0
    %667 = vmatprep.subr.bf16.mxu0 0
    %668 = vmatpush1.bf16.xpose.msra.mxu0 0
    %669 = vmatprep.subr.bf16.mxu0 0
    %670 = vmatpush1.bf16.xpose.msra.mxu0 0
    %671 = vmatprep.subr.bf16.mxu0 0
    %672 = vmatpush1.bf16.xpose.msra.mxu0 0
    %673 = vmatprep.subr.bf16.mxu0 0
    %674 = vmatpush1.bf16.xpose.msra.mxu0 0
    %675 = vmatprep.mubr.bf16.mxu0 0
    %676 = vmatmul.mubr.bf16.gmra.mrb[0].mxu0 %v638
    %v677 = vpop.f32.mrb[0].mxu0
    %v678 = vadd.f32 %v65, %v677
    %v679 = vpop.f32.mrb[0].mxu0
    %v680 = vpop.f32.mrb[0].mxu0
    %v681 = vpop.f32.mrb[0].mxu0
    %682 = vdwg.mxu0
    %v683 = vsel %vm144, %v628, -inf
    %684 = vmax.xlane.f32.xlu0 %v683
    %v685 = vpop.xlane.xlu0 %684
    %v686 = vsel %vm144, %v678, -inf
    %687 = vmax.xlane.f32.xlu0 %v686
    %v688 = vpop.xlane.xlu0 %687
    %v689 = vsub.f32 %v628, %v685
    %v690 = vsub.f32 %v678, %v688
    %v691 = vmul.f32 %v689, 1.442695
    %v692 = vpow.pop %v691
    %v693 = vmul.f32 %v690, 1.442695
    %v694 = vpow.pop %v693
    %v695 = vsel %vm144, %v692, 0.0
    %696 = vadd.xlane.f32.xlu0 %v695
    %v697 = vpop.xlane.xlu0 %696
    %v698 = vsel %vm144, %v694, 0.0
    %699 = vadd.xlane.f32.xlu0 %v698
    %v700 = vpop.xlane.xlu0 %699
    %v701 = vrcp.pop %v697
    %v702 = vrcp.pop %v700
    %v703 = vmul.f32 %v692, %v701
    %v704 = vmul.f32 %v694, %v702
    %v705 = vpack.c.bf16 %v703, %v703
    %v706 = vpack.c.bf16 %v704, %v704
    %707 = vrot.lane.b32.xlu0 %v139, 48
    %v708 = vpop.permute.xlu0 %707
    %v710 = vsel %vm144, %v705, 0
    %v713 = vsel %vm269, %v708, 0
    %715 = vmatprep.subr.bf16.mxu0 0
    %716 = vmatpush1.bf16.msra.mxu0 %v713
    %717 = vmatprep.subr.bf16.mxu0 0
    %718 = vmatpush1.bf16.msra.mxu0 0
    %719 = vmatprep.subr.bf16.mxu0 0
    %720 = vmatpush1.bf16.msra.mxu0 0
    %721 = vmatprep.subr.bf16.mxu0 0
    %722 = vmatpush1.bf16.msra.mxu0 0
    %723 = vmatprep.subr.bf16.mxu0 0
    %724 = vmatpush1.bf16.msra.mxu0 0
    %725 = vmatprep.subr.bf16.mxu0 0
    %726 = vmatpush1.bf16.msra.mxu0 0
    %727 = vmatprep.subr.bf16.mxu0 0
    %728 = vmatpush1.bf16.msra.mxu0 0
    %729 = vmatprep.subr.bf16.mxu0 0
    %730 = vmatpush1.bf16.msra.mxu0 0
    %731 = vmatprep.subr.bf16.mxu0 0
    %732 = vmatpush1.bf16.msra.mxu0 0
    %733 = vmatprep.subr.bf16.mxu0 0
    %734 = vmatpush1.bf16.msra.mxu0 0
    %735 = vmatprep.subr.bf16.mxu0 0
    %736 = vmatpush1.bf16.msra.mxu0 0
    %737 = vmatprep.subr.bf16.mxu0 0
    %738 = vmatpush1.bf16.msra.mxu0 0
    %739 = vmatprep.subr.bf16.mxu0 0
    %740 = vmatpush1.bf16.msra.mxu0 0
    %741 = vmatprep.subr.bf16.mxu0 0
    %742 = vmatpush1.bf16.msra.mxu0 0
    %743 = vmatprep.subr.bf16.mxu0 0
    %744 = vmatpush1.bf16.msra.mxu0 0
    %745 = vmatprep.subr.bf16.mxu0 0
    %746 = vmatpush1.bf16.msra.mxu0 0
    %747 = vmatprep.mubr.bf16.mxu0 0
    %748 = vmatmul.mubr.bf16.gmra.mrb[0].mxu0 %v710
    %v749 = vpop.f32.mrb[0].mxu0
    %v750 = vadd.f32 0.0, %v749
    %v751 = vpop.f32.mrb[0].mxu0
    %v752 = vpop.f32.mrb[0].mxu0
    %v753 = vpop.f32.mrb[0].mxu0
    %754 = vdwg.mxu0
    %755 = vrot.lane.b32.xlu0 %v140, 48
    %v756 = vpop.permute.xlu0 %755
    %v758 = vsel %vm144, %v706, 0
    %v761 = vsel %vm269, %v756, 0
    %763 = vmatprep.subr.bf16.mxu0 0
    %764 = vmatpush1.bf16.msra.mxu0 %v761
    %765 = vmatprep.subr.bf16.mxu0 0
    %766 = vmatpush1.bf16.msra.mxu0 0
    %767 = vmatprep.subr.bf16.mxu0 0
    %768 = vmatpush1.bf16.msra.mxu0 0
    %769 = vmatprep.subr.bf16.mxu0 0
    %770 = vmatpush1.bf16.msra.mxu0 0
    %771 = vmatprep.subr.bf16.mxu0 0
    %772 = vmatpush1.bf16.msra.mxu0 0
    %773 = vmatprep.subr.bf16.mxu0 0
    %774 = vmatpush1.bf16.msra.mxu0 0
    %775 = vmatprep.subr.bf16.mxu0 0
    %776 = vmatpush1.bf16.msra.mxu0 0
    %777 = vmatprep.subr.bf16.mxu0 0
    %778 = vmatpush1.bf16.msra.mxu0 0
    %779 = vmatprep.subr.bf16.mxu0 0
    %780 = vmatpush1.bf16.msra.mxu0 0
    %781 = vmatprep.subr.bf16.mxu0 0
    %782 = vmatpush1.bf16.msra.mxu0 0
    %783 = vmatprep.subr.bf16.mxu0 0
    %784 = vmatpush1.bf16.msra.mxu0 0
    %785 = vmatprep.subr.bf16.mxu0 0
    %786 = vmatpush1.bf16.msra.mxu0 0
    %787 = vmatprep.subr.bf16.mxu0 0
    %788 = vmatpush1.bf16.msra.mxu0 0
    %789 = vmatprep.subr.bf16.mxu0 0
    %790 = vmatpush1.bf16.msra.mxu0 0
    %791 = vmatprep.subr.bf16.mxu0 0
    %792 = vmatpush1.bf16.msra.mxu0 0
    %793 = vmatprep.subr.bf16.mxu0 0
    %794 = vmatpush1.bf16.msra.mxu0 0
    %795 = vmatprep.mubr.bf16.mxu0 0
    %796 = vmatmul.mubr.bf16.gmra.mrb[0].mxu0 %v758
    %v797 = vpop.f32.mrb[0].mxu0
    %v798 = vadd.f32 0.0, %v797
    %v799 = vpop.f32.mrb[0].mxu0
    %v800 = vpop.f32.mrb[0].mxu0
    %v801 = vpop.f32.mrb[0].mxu0
    %802 = vdwg.mxu0
    %803 = vrot.lane.b32.xlu0 %v137, 104
    %v804 = vpop.permute.xlu0 %803
    %805 = vrot.lane.b32.xlu0 %v139, 72
    %v806 = vpop.permute.xlu0 %805
    %v808 = vsel %vm144, %v804, 0
    %v811 = vsel %vm144, %v806, 0
    %813 = vmatprep.subr.bf16.mxu0 0
    %814 = vmatpush1.bf16.xpose.msra.mxu0 %v811
    %815 = vmatprep.subr.bf16.mxu0 0
    %816 = vmatpush1.bf16.xpose.msra.mxu0 0
    %817 = vmatprep.subr.bf16.mxu0 0
    %818 = vmatpush1.bf16.xpose.msra.mxu0 0
    %819 = vmatprep.subr.bf16.mxu0 0
    %820 = vmatpush1.bf16.xpose.msra.mxu0 0
    %821 = vmatprep.subr.bf16.mxu0 0
    %822 = vmatpush1.bf16.xpose.msra.mxu0 0
    %823 = vmatprep.subr.bf16.mxu0 0
    %824 = vmatpush1.bf16.xpose.msra.mxu0 0
    %825 = vmatprep.subr.bf16.mxu0 0
    %826 = vmatpush1.bf16.xpose.msra.mxu0 0
    %827 = vmatprep.subr.bf16.mxu0 0
    %828 = vmatpush1.bf16.xpose.msra.mxu0 0
    %829 = vmatprep.subr.bf16.mxu0 0
    %830 = vmatpush1.bf16.xpose.msra.mxu0 0
    %831 = vmatprep.subr.bf16.mxu0 0
    %832 = vmatpush1.bf16.xpose.msra.mxu0 0
    %833 = vmatprep.subr.bf16.mxu0 0
    %834 = vmatpush1.bf16.xpose.msra.mxu0 0
    %835 = vmatprep.subr.bf16.mxu0 0
    %836 = vmatpush1.bf16.xpose.msra.mxu0 0
    %837 = vmatprep.subr.bf16.mxu0 0
    %838 = vmatpush1.bf16.xpose.msra.mxu0 0
    %839 = vmatprep.subr.bf16.mxu0 0
    %840 = vmatpush1.bf16.xpose.msra.mxu0 0
    %841 = vmatprep.subr.bf16.mxu0 0
    %842 = vmatpush1.bf16.xpose.msra.mxu0 0
    %843 = vmatprep.subr.bf16.mxu0 0
    %844 = vmatpush1.bf16.xpose.msra.mxu0 0
    %845 = vmatprep.mubr.bf16.mxu0 0
    %846 = vmatmul.mubr.bf16.gmra.mrb[0].mxu0 %v808
    %v847 = vpop.f32.mrb[0].mxu0
    %v848 = vadd.f32 %v65, %v847
    %v849 = vpop.f32.mrb[0].mxu0
    %v850 = vpop.f32.mrb[0].mxu0
    %v851 = vpop.f32.mrb[0].mxu0
    %852 = vdwg.mxu0
    %853 = vrot.lane.b32.xlu0 %v138, 104
    %v854 = vpop.permute.xlu0 %853
    %855 = vrot.lane.b32.xlu0 %v140, 72
    %v856 = vpop.permute.xlu0 %855
    %v858 = vsel %vm144, %v854, 0
    %v861 = vsel %vm144, %v856, 0
    %863 = vmatprep.subr.bf16.mxu0 0
    %864 = vmatpush1.bf16.xpose.msra.mxu0 %v861
    %865 = vmatprep.subr.bf16.mxu0 0
    %866 = vmatpush1.bf16.xpose.msra.mxu0 0
    %867 = vmatprep.subr.bf16.mxu0 0
    %868 = vmatpush1.bf16.xpose.msra.mxu0 0
    %869 = vmatprep.subr.bf16.mxu0 0
    %870 = vmatpush1.bf16.xpose.msra.mxu0 0
    %871 = vmatprep.subr.bf16.mxu0 0
    %872 = vmatpush1.bf16.xpose.msra.mxu0 0
    %873 = vmatprep.subr.bf16.mxu0 0
    %874 = vmatpush1.bf16.xpose.msra.mxu0 0
    %875 = vmatprep.subr.bf16.mxu0 0
    %876 = vmatpush1.bf16.xpose.msra.mxu0 0
    %877 = vmatprep.subr.bf16.mxu0 0
    %878 = vmatpush1.bf16.xpose.msra.mxu0 0
    %879 = vmatprep.subr.bf16.mxu0 0
    %880 = vmatpush1.bf16.xpose.msra.mxu0 0
    %881 = vmatprep.subr.bf16.mxu0 0
    %882 = vmatpush1.bf16.xpose.msra.mxu0 0
    %883 = vmatprep.subr.bf16.mxu0 0
    %884 = vmatpush1.bf16.xpose.msra.mxu0 0
    %885 = vmatprep.subr.bf16.mxu0 0
    %886 = vmatpush1.bf16.xpose.msra.mxu0 0
    %887 = vmatprep.subr.bf16.mxu0 0
    %888 = vmatpush1.bf16.xpose.msra.mxu0 0
    %889 = vmatprep.subr.bf16.mxu0 0
    %890 = vmatpush1.bf16.xpose.msra.mxu0 0
    %891 = vmatprep.subr.bf16.mxu0 0
    %892 = vmatpush1.bf16.xpose.msra.mxu0 0
    %893 = vmatprep.subr.bf16.mxu0 0
    %894 = vmatpush1.bf16.xpose.msra.mxu0 0
    %895 = vmatprep.mubr.bf16.mxu0 0
    %896 = vmatmul.mubr.bf16.gmra.mrb[0].mxu0 %v858
    %v897 = vpop.f32.mrb[0].mxu0
    %v898 = vadd.f32 %v65, %v897
    %v899 = vpop.f32.mrb[0].mxu0
    %v900 = vpop.f32.mrb[0].mxu0
    %v901 = vpop.f32.mrb[0].mxu0
    %902 = vdwg.mxu0
    %v903 = vsel %vm144, %v848, -inf
    %904 = vmax.xlane.f32.xlu0 %v903
    %v905 = vpop.xlane.xlu0 %904
    %v906 = vsel %vm144, %v898, -inf
    %907 = vmax.xlane.f32.xlu0 %v906
    %v908 = vpop.xlane.xlu0 %907
    %v909 = vsub.f32 %v848, %v905
    %v910 = vsub.f32 %v898, %v908
    %v911 = vmul.f32 %v909, 1.442695
    %v912 = vpow.pop %v911
    %v913 = vmul.f32 %v910, 1.442695
    %v914 = vpow.pop %v913
    %v915 = vsel %vm144, %v912, 0.0
    %916 = vadd.xlane.f32.xlu0 %v915
    %v917 = vpop.xlane.xlu0 %916
    %v918 = vsel %vm144, %v914, 0.0
    %919 = vadd.xlane.f32.xlu0 %v918
    %v920 = vpop.xlane.xlu0 %919
    %v921 = vrcp.pop %v917
    %v922 = vrcp.pop %v920
    %v923 = vmul.f32 %v912, %v921
    %v924 = vmul.f32 %v914, %v922
    %v925 = vpack.c.bf16 %v923, %v923
    %v926 = vpack.c.bf16 %v924, %v924
    %927 = vrot.lane.b32.xlu0 %v139, 40
    %v928 = vpop.permute.xlu0 %927
    %v930 = vsel %vm144, %v925, 0
    %v933 = vsel %vm269, %v928, 0
    %935 = vmatprep.subr.bf16.mxu0 0
    %936 = vmatpush1.bf16.msra.mxu0 %v933
    %937 = vmatprep.subr.bf16.mxu0 0
    %938 = vmatpush1.bf16.msra.mxu0 0
    %939 = vmatprep.subr.bf16.mxu0 0
    %940 = vmatpush1.bf16.msra.mxu0 0
    %941 = vmatprep.subr.bf16.mxu0 0
    %942 = vmatpush1.bf16.msra.mxu0 0
    %943 = vmatprep.subr.bf16.mxu0 0
    %944 = vmatpush1.bf16.msra.mxu0 0
    %945 = vmatprep.subr.bf16.mxu0 0
    %946 = vmatpush1.bf16.msra.mxu0 0
    %947 = vmatprep.subr.bf16.mxu0 0
    %948 = vmatpush1.bf16.msra.mxu0 0
    %949 = vmatprep.subr.bf16.mxu0 0
    %950 = vmatpush1.bf16.msra.mxu0 0
    %951 = vmatprep.subr.bf16.mxu0 0
    %952 = vmatpush1.bf16.msra.mxu0 0
    %953 = vmatprep.subr.bf16.mxu0 0
    %954 = vmatpush1.bf16.msra.mxu0 0
    %955 = vmatprep.subr.bf16.mxu0 0
    %956 = vmatpush1.bf16.msra.mxu0 0
    %957 = vmatprep.subr.bf16.mxu0 0
    %958 = vmatpush1.bf16.msra.mxu0 0
    %959 = vmatprep.subr.bf16.mxu0 0
    %960 = vmatpush1.bf16.msra.mxu0 0
    %961 = vmatprep.subr.bf16.mxu0 0
    %962 = vmatpush1.bf16.msra.mxu0 0
    %963 = vmatprep.subr.bf16.mxu0 0
    %964 = vmatpush1.bf16.msra.mxu0 0
    %965 = vmatprep.subr.bf16.mxu0 0
    %966 = vmatpush1.bf16.msra.mxu0 0
    %967 = vmatprep.mubr.bf16.mxu0 0
    %968 = vmatmul.mubr.bf16.gmra.mrb[0].mxu0 %v930
    %v969 = vpop.f32.mrb[0].mxu0
    %v970 = vadd.f32 0.0, %v969
    %v971 = vpop.f32.mrb[0].mxu0
    %v972 = vpop.f32.mrb[0].mxu0
    %v973 = vpop.f32.mrb[0].mxu0
    %974 = vdwg.mxu0
    %975 = vrot.lane.b32.xlu0 %v140, 40
    %v976 = vpop.permute.xlu0 %975
    %v978 = vsel %vm144, %v926, 0
    %v981 = vsel %vm269, %v976, 0
    %983 = vmatprep.subr.bf16.mxu0 0
    %984 = vmatpush1.bf16.msra.mxu0 %v981
    %985 = vmatprep.subr.bf16.mxu0 0
    %986 = vmatpush1.bf16.msra.mxu0 0
    %987 = vmatprep.subr.bf16.mxu0 0
    %988 = vmatpush1.bf16.msra.mxu0 0
    %989 = vmatprep.subr.bf16.mxu0 0
    %990 = vmatpush1.bf16.msra.mxu0 0
    %991 = vmatprep.subr.bf16.mxu0 0
    %992 = vmatpush1.bf16.msra.mxu0 0
    %993 = vmatprep.subr.bf16.mxu0 0
    %994 = vmatpush1.bf16.msra.mxu0 0
    %995 = vmatprep.subr.bf16.mxu0 0
    %996 = vmatpush1.bf16.msra.mxu0 0
    %997 = vmatprep.subr.bf16.mxu0 0
    %998 = vmatpush1.bf16.msra.mxu0 0
    %999 = vmatprep.subr.bf16.mxu0 0
    %1000 = vmatpush1.bf16.msra.mxu0 0
    %1001 = vmatprep.subr.bf16.mxu0 0
    %1002 = vmatpush1.bf16.msra.mxu0 0
    %1003 = vmatprep.subr.bf16.mxu0 0
    %1004 = vmatpush1.bf16.msra.mxu0 0
    %1005 = vmatprep.subr.bf16.mxu0 0
    %1006 = vmatpush1.bf16.msra.mxu0 0
    %1007 = vmatprep.subr.bf16.mxu0 0
    %1008 = vmatpush1.bf16.msra.mxu0 0
    %1009 = vmatprep.subr.bf16.mxu0 0
    %1010 = vmatpush1.bf16.msra.mxu0 0
    %1011 = vmatprep.subr.bf16.mxu0 0
    %1012 = vmatpush1.bf16.msra.mxu0 0
    %1013 = vmatprep.subr.bf16.mxu0 0
    %1014 = vmatpush1.bf16.msra.mxu0 0
    %1015 = vmatprep.mubr.bf16.mxu0 0
    %1016 = vmatmul.mubr.bf16.gmra.mrb[0].mxu0 %v978
    %v1017 = vpop.f32.mrb[0].mxu0
    %v1018 = vadd.f32 0.0, %v1017
    %v1019 = vpop.f32.mrb[0].mxu0
    %v1020 = vpop.f32.mrb[0].mxu0
    %v1021 = vpop.f32.mrb[0].mxu0
    %1022 = vdwg.mxu0
    %1025 = vrot.lane.b32.xlu0 %v530, 8
    %v1026 = vpop.permute.xlu0 %1025
    %1027 = vrot.lane.b32.xlu0 %v578, 8
    %v1028 = vpop.permute.xlu0 %1027
    %1033 = vrot.lane.b32.xlu0 %v750, 16
    %v1034 = vpop.permute.xlu0 %1033
    %1035 = vrot.lane.b32.xlu0 %v798, 16
    %v1036 = vpop.permute.xlu0 %1035
    %1041 = vrot.lane.b32.xlu0 %v970, 24
    %v1042 = vpop.permute.xlu0 %1041
    %1043 = vrot.lane.b32.xlu0 %v1018, 24
    %v1044 = vpop.permute.xlu0 %1043
    %v1047 = vsel %vm144, %v308, %v1026
    %v1048 = vsel %vm144, %v356, %v1028
    %vm1049 = vcmask 130048
    %v1050 = vsel %vm1049, %v1047, %v1034
    %v1051 = vsel %vm1049, %v1048, %v1036
    %vm1052 = vcmask 195584
    %v1053 = vsel %vm1052, %v1050, %v1042
    %v1054 = vsel %vm1052, %v1051, %v1044
    %v1055 = vld [vmem:[%s3] sm:$0xf]
    %v1056 = vld [vmem:[%s3 + $0x4] sm:$0xf]
    %v1057 = vld [vmem:[%s3 + $0x8] sm:$0xf]
    %v1058 = vld [vmem:[%s3 + $0xc] sm:$0xf]
    %v1059 = vpack.c.bf16 %v1054, %v1053
    %v1060 = vld [vmem:[%s4] sm:$0x1]
    %v1062 = vlaneseq
    %v1063 = vshrl.u32 %v1062, 7
    %v1064 = vsub.s32 0, %v1063
    %v1065 = vrot.slane %v1060, %v1064
    %v1071 = vunpack.c.l.b16 %v1055
    %v1072 = vunpack.c.l.b16 %v1056
    %v1073 = vunpack.c.l.b16 %v1057
    %v1074 = vunpack.c.l.b16 %v1058
    %v1075 = vpack.c.b16 %v1072, %v1071
    %v1076 = vpack.c.b16 %v1074, %v1073
    %v1080 = vsel %vm90, %v1059, 0
    %1082 = vmatprep.subr.bf16.mxu0 0
    %1083 = vmatpush1.bf16.msra.mxu0 %v1075
    %1084 = vmatprep.subr.bf16.mxu0 0
    %1085 = vmatpush1.bf16.msra.mxu0 %v1076
    %1086 = vmatprep.subr.bf16.mxu0 0
    %1087 = vmatpush1.bf16.msra.mxu0 0
    %1088 = vmatprep.subr.bf16.mxu0 0
    %1089 = vmatpush1.bf16.msra.mxu0 0
    %1090 = vmatprep.subr.bf16.mxu0 0
    %1091 = vmatpush1.bf16.msra.mxu0 0
    %1092 = vmatprep.subr.bf16.mxu0 0
    %1093 = vmatpush1.bf16.msra.mxu0 0
    %1094 = vmatprep.subr.bf16.mxu0 0
    %1095 = vmatpush1.bf16.msra.mxu0 0
    %1096 = vmatprep.subr.bf16.mxu0 0
    %1097 = vmatpush1.bf16.msra.mxu0 0
    %1098 = vmatprep.subr.bf16.mxu0 0
    %1099 = vmatpush1.bf16.msra.mxu0 0
    %1100 = vmatprep.subr.bf16.mxu0 0
    %1101 = vmatpush1.bf16.msra.mxu0 0
    %1102 = vmatprep.subr.bf16.mxu0 0
    %1103 = vmatpush1.bf16.msra.mxu0 0
    %1104 = vmatprep.subr.bf16.mxu0 0
    %1105 = vmatpush1.bf16.msra.mxu0 0
    %1106 = vmatprep.subr.bf16.mxu0 0
    %1107 = vmatpush1.bf16.msra.mxu0 0
    %1108 = vmatprep.subr.bf16.mxu0 0
    %1109 = vmatpush1.bf16.msra.mxu0 0
    %1110 = vmatprep.subr.bf16.mxu0 0
    %1111 = vmatpush1.bf16.msra.mxu0 0
    %1112 = vmatprep.subr.bf16.mxu0 0
    %1113 = vmatpush1.bf16.msra.mxu0 0
    %1114 = vmatprep.mubr.bf16.mxu0 0
    %1115 = vmatmul.mubr.bf16.gmra.mrb[0].mxu0 %v1080
    %v1116 = vpop.f32.mrb[0].mxu0
    %v1117 = vadd.f32 %v1065, %v1116
    %v1118 = vpop.f32.mrb[0].mxu0
    %v1119 = vpop.f32.mrb[0].mxu0
    %v1120 = vadd.f32 %v1065, %v1119
    %v1121 = vpop.f32.mrb[0].mxu0
    %1122 = vdwg.mxu0
    %v1123 = vadd.f32 %v58, %v1117
    %v1124 = vadd.f32 %v59, %v1120
    %v1125 = vld [vmem:[%s5] sm:$0x1]
    %v1126 = vld [vmem:[%s6] sm:$0x1]
    %v1127 = vsel %vm90, %v1123, 0.0
    %1128 = vadd.xlane.f32.xlu0 %v1127
    %v1129 = vpop.xlane.xlu0 %1128
    %v1130 = vsel %vm90, %v1124, 0.0
    %1131 = vadd.xlane.f32.xlu0 %v1130
    %v1132 = vpop.xlane.xlu0 %1131
    %v1133 = vrcp.pop 32.0
    %v1134 = vmul.f32 %v1129, %v1133
    %v1135 = vmul.f32 %v1132, %v1133
    %v1136 = vsub.f32 %v1123, %v1134
    %v1137 = vsub.f32 %v1124, %v1135
    %v1138 = vmul.f32 %v1136, %v1136
    %v1139 = vmul.f32 %v1137, %v1137
    %v1140 = vsel %vm90, %v1138, 0.0
    %1141 = vadd.xlane.f32.xlu0 %v1140
    %v1142 = vpop.xlane.xlu0 %1141
    %v1143 = vsel %vm90, %v1139, 0.0
    %1144 = vadd.xlane.f32.xlu0 %v1143
    %v1145 = vpop.xlane.xlu0 %1144
    %v1146 = vmul.f32 %v1142, %v1133
    %v1147 = vmul.f32 %v1145, %v1133
    %v1148 = vadd.f32 %v1146, 1e-05
    %v1149 = vadd.f32 %v1147, 1e-05
    %v1150 = vrsqrt.pop %v1148
    %v1151 = vrsqrt.pop %v1149
    %v1152 = vmul.f32 %v1136, %v1150
    %v1153 = vmul.f32 %v1137, %v1151
    %v1155 = vlaneseq
    %v1156 = vshrl.u32 %v1155, 7
    %v1157 = vsub.s32 0, %v1156
    %v1158 = vrot.slane %v1125, %v1157
    %v1160 = vmul.f32 %v1152, %v1158
    %v1161 = vmul.f32 %v1153, %v1158
    %v1163 = vlaneseq
    %v1164 = vshrl.u32 %v1163, 7
    %v1165 = vsub.s32 0, %v1164
    %v1166 = vrot.slane %v1126, %v1165
    %v1168 = vadd.f32 %v1160, %v1166
    %v1169 = vadd.f32 %v1161, %v1166
    %v1170 = vld [vmem:[%s7] sm:$0xf]
    %v1171 = vld [vmem:[%s7 + $0x4] sm:$0xf]
    %v1172 = vld [vmem:[%s7 + $0x8] sm:$0xf]
    %v1173 = vld [vmem:[%s7 + $0xc] sm:$0xf]
    %v1174 = vpack.c.bf16 %v1169, %v1168
    %v1175 = vld [vmem:[%s8] sm:$0x1]
    %v1177 = vlaneseq
    %v1178 = vshrl.u32 %v1177, 7
    %v1179 = vsub.s32 0, %v1178
    %v1180 = vrot.slane %v1175, %v1179
    %v1186 = vunpack.c.l.b16 %v1170
    %v1187 = vunpack.c.l.b16 %v1171
    %v1188 = vunpack.c.l.b16 %v1172
    %v1189 = vunpack.c.l.b16 %v1173
    %v1190 = vpack.c.b16 %v1187, %v1186
    %v1191 = vpack.c.b16 %v1189, %v1188
    %v1195 = vsel %vm90, %v1174, 0
    %1197 = vmatprep.subr.bf16.mxu0 0
    %1198 = vmatpush1.bf16.msra.mxu0 %v1190
    %1199 = vmatprep.subr.bf16.mxu0 0
    %1200 = vmatpush1.bf16.msra.mxu0 %v1191
    %1201 = vmatprep.subr.bf16.mxu0 0
    %1202 = vmatpush1.bf16.msra.mxu0 0
    %1203 = vmatprep.subr.bf16.mxu0 0
    %1204 = vmatpush1.bf16.msra.mxu0 0
    %1205 = vmatprep.subr.bf16.mxu0 0
    %1206 = vmatpush1.bf16.msra.mxu0 0
    %1207 = vmatprep.subr.bf16.mxu0 0
    %1208 = vmatpush1.bf16.msra.mxu0 0
    %1209 = vmatprep.subr.bf16.mxu0 0
    %1210 = vmatpush1.bf16.msra.mxu0 0
    %1211 = vmatprep.subr.bf16.mxu0 0
    %1212 = vmatpush1.bf16.msra.mxu0 0
    %1213 = vmatprep.subr.bf16.mxu0 0
    %1214 = vmatpush1.bf16.msra.mxu0 0
    %1215 = vmatprep.subr.bf16.mxu0 0
    %1216 = vmatpush1.bf16.msra.mxu0 0
    %1217 = vmatprep.subr.bf16.mxu0 0
    %1218 = vmatpush1.bf16.msra.mxu0 0
    %1219 = vmatprep.subr.bf16.mxu0 0
    %1220 = vmatpush1.bf16.msra.mxu0 0
    %1221 = vmatprep.subr.bf16.mxu0 0
    %1222 = vmatpush1.bf16.msra.mxu0 0
    %1223 = vmatprep.subr.bf16.mxu0 0
    %1224 = vmatpush1.bf16.msra.mxu0 0
    %1225 = vmatprep.subr.bf16.mxu0 0
    %1226 = vmatpush1.bf16.msra.mxu0 0
    %1227 = vmatprep.subr.bf16.mxu0 0
    %1228 = vmatpush1.bf16.msra.mxu0 0
    %1229 = vmatprep.mubr.bf16.mxu0 0
    %1230 = vmatmul.mubr.bf16.gmra.mrb[0].mxu0 %v1195
    %v1231 = vpop.f32.mrb[0].mxu0
    %v1232 = vadd.f32 %v1180, %v1231
    %v1233 = vpop.f32.mrb[0].mxu0
    %v1234 = vpop.f32.mrb[0].mxu0
    %v1235 = vadd.f32 %v1180, %v1234
    %v1236 = vpop.f32.mrb[0].mxu0
    %1237 = vdwg.mxu0
    %v1238 = vmax.f32 %v1232, 0.0
    %v1239 = vmax.f32 %v1235, 0.0
    %v1240 = vld [vmem:[%s9] sm:$0xf]
    %v1241 = vld [vmem:[%s9 + $0x4] sm:$0xf]
    %v1242 = vld [vmem:[%s9 + $0x8] sm:$0xf]
    %v1243 = vld [vmem:[%s9 + $0xc] sm:$0xf]
    %v1244 = vld [vmem:[%s9 + $0x10] sm:$0xf]
    %v1245 = vld [vmem:[%s9 + $0x14] sm:$0xf]
    %v1246 = vld [vmem:[%s9 + $0x18] sm:$0xf]
    %v1247 = vld [vmem:[%s9 + $0x1c] sm:$0xf]
    %v1248 = vpack.c.bf16 %v1239, %v1238
    %v1249 = vld [vmem:[%s10] sm:$0x1]
    %v1251 = vlaneseq
    %v1252 = vshrl.u32 %v1251, 7
    %v1253 = vsub.s32 0, %v1252
    %v1254 = vrot.slane %v1249, %v1253
    %v1264 = vunpack.c.l.b16 %v1240
    %v1265 = vunpack.c.l.b16 %v1241
    %v1266 = vunpack.c.l.b16 %v1242
    %v1267 = vunpack.c.l.b16 %v1243
    %v1268 = vunpack.c.l.b16 %v1244
    %v1269 = vunpack.c.l.b16 %v1245
    %v1270 = vunpack.c.l.b16 %v1246
    %v1271 = vunpack.c.l.b16 %v1247
    %v1272 = vpack.c.b16 %v1265, %v1264
    %v1273 = vpack.c.b16 %v1267, %v1266
    %v1274 = vpack.c.b16 %v1269, %v1268
    %v1275 = vpack.c.b16 %v1271, %v1270
    %vm1280 = vcmask 523264
    %v1282 = vsel %vm1280, %v1248, 0
    %1284 = vmatprep.subr.bf16.mxu0 0
    %1285 = vmatpush1.bf16.msra.mxu0 %v1272
    %1286 = vmatprep.subr.bf16.mxu0 0
    %1287 = vmatpush1.bf16.msra.mxu0 %v1273
    %1288 = vmatprep.subr.bf16.mxu0 0
    %1289 = vmatpush1.bf16.msra.mxu0 %v1274
    %1290 = vmatprep.subr.bf16.mxu0 0
    %1291 = vmatpush1.bf16.msra.mxu0 %v1275
    %1292 = vmatprep.subr.bf16.mxu0 0
    %1293 = vmatpush1.bf16.msra.mxu0 0
    %1294 = vmatprep.subr.bf16.mxu0 0
    %1295 = vmatpush1.bf16.msra.mxu0 0
    %1296 = vmatprep.subr.bf16.mxu0 0
    %1297 = vmatpush1.bf16.msra.mxu0 0
    %1298 = vmatprep.subr.bf16.mxu0 0
    %1299 = vmatpush1.bf16.msra.mxu0 0
    %1300 = vmatprep.subr.bf16.mxu0 0
    %1301 = vmatpush1.bf16.msra.mxu0 0
    %1302 = vmatprep.subr.bf16.mxu0 0
    %1303 = vmatpush1.bf16.msra.mxu0 0
    %1304 = vmatprep.subr.bf16.mxu0 0
    %1305 = vmatpush1.bf16.msra.mxu0 0
    %1306 = vmatprep.subr.bf16.mxu0 0
    %1307 = vmatpush1.bf16.msra.mxu0 0
    %1308 = vmatprep.subr.bf16.mxu0 0
    %1309 = vmatpush1.bf16.msra.mxu0 0
    %1310 = vmatprep.subr.bf16.mxu0 0
    %1311 = vmatpush1.bf16.msra.mxu0 0
    %1312 = vmatprep.subr.bf16.mxu0 0
    %1313 = vmatpush1.bf16.msra.mxu0 0
    %1314 = vmatprep.subr.bf16.mxu0 0
    %1315 = vmatpush1.bf16.msra.mxu0 0
    %1316 = vmatprep.mubr.bf16.mxu0 0
    %1317 = vmatmul.mubr.bf16.gmra.mrb[0].mxu0 %v1282
    %v1318 = vpop.f32.mrb[0].mxu0
    %v1319 = vadd.f32 %v1254, %v1318
    %v1320 = vpop.f32.mrb[0].mxu0
    %v1321 = vpop.f32.mrb[0].mxu0
    %v1322 = vadd.f32 %v1254, %v1321
    %v1323 = vpop.f32.mrb[0].mxu0
    %1324 = vdwg.mxu0
    %v1325 = vadd.f32 %v1168, %v1319
    %v1326 = vadd.f32 %v1169, %v1322
    %v1327 = vld [vmem:[%s11] sm:$0x1]
    %v1328 = vld [vmem:[%s12] sm:$0x1]
    %v1329 = vsel %vm90, %v1325, 0.0
    %1330 = vadd.xlane.f32.xlu0 %v1329
    %v1331 = vpop.xlane.xlu0 %1330
    %v1332 = vsel %vm90, %v1326, 0.0
    %1333 = vadd.xlane.f32.xlu0 %v1332
    %v1334 = vpop.xlane.xlu0 %1333
    %v1335 = vmul.f32 %v1331, %v1133
    %v1336 = vmul.f32 %v1334, %v1133
    %v1337 = vsub.f32 %v1325, %v1335
    %v1338 = vsub.f32 %v1326, %v1336
    %v1339 = vmul.f32 %v1337, %v1337
    %v1340 = vmul.f32 %v1338, %v1338
    %v1341 = vsel %vm90, %v1339, 0.0
    %1342 = vadd.xlane.f32.xlu0 %v1341
    %v1343 = vpop.xlane.xlu0 %1342
    %v1344 = vsel %vm90, %v1340, 0.0
    %1345 = vadd.xlane.f32.xlu0 %v1344
    %v1346 = vpop.xlane.xlu0 %1345
    %v1347 = vmul.f32 %v1343, %v1133
    %v1348 = vmul.f32 %v1346, %v1133
    %v1349 = vadd.f32 %v1347, 1e-05
    %v1350 = vadd.f32 %v1348, 1e-05
    %v1351 = vrsqrt.pop %v1349
    %v1352 = vrsqrt.pop %v1350
    %v1353 = vmul.f32 %v1337, %v1351
    %v1354 = vmul.f32 %v1338, %v1352
    %v1356 = vlaneseq
    %v1357 = vshrl.u32 %v1356, 7
    %v1358 = vsub.s32 0, %v1357
    %v1359 = vrot.slane %v1327, %v1358
    %v1361 = vmul.f32 %v1353, %v1359
    %v1362 = vmul.f32 %v1354, %v1359
    %v1364 = vlaneseq
    %v1365 = vshrl.u32 %v1364, 7
    %v1366 = vsub.s32 0, %v1365
    %v1367 = vrot.slane %v1328, %v1366
    %v1369 = vadd.f32 %v1361, %v1367
    %v1370 = vadd.f32 %v1362, %v1367
    %s1371 = scalar_lea.vmem %s1, 16
    %v1372 = vld [vmem:[%s1371] sm:$0xf]
    %v1373 = vld [vmem:[%s1371 + $0x4] sm:$0xf]
    %v1374 = vld [vmem:[%s1371 + $0x8] sm:$0xf]
    %v1375 = vld [vmem:[%s1371 + $0xc] sm:$0xf]
    %v1376 = vpack.c.bf16 %v1370, %v1369
    %s1377 = scalar_lea.vmem %s2, 1
    %v1378 = vld [vmem:[%s1377] sm:$0x1]
    %v1380 = vlaneseq
    %v1381 = vshrl.u32 %v1380, 7
    %v1382 = vsub.s32 0, %v1381
    %v1383 = vrot.slane %v1378, %v1382
    %v1389 = vunpack.c.l.b16 %v1372
    %v1390 = vunpack.c.l.b16 %v1373
    %v1391 = vunpack.c.l.b16 %v1374
    %v1392 = vunpack.c.l.b16 %v1375
    %v1393 = vpack.c.b16 %v1390, %v1389
    %v1394 = vpack.c.b16 %v1392, %v1391
    %v1398 = vsel %vm90, %v1376, 0
    %1400 = vmatprep.subr.bf16.mxu0 0
    %1401 = vmatpush1.bf16.msra.mxu0 %v1393
    %1402 = vmatprep.subr.bf16.mxu0 0
    %1403 = vmatpush1.bf16.msra.mxu0 %v1394
    %1404 = vmatprep.subr.bf16.mxu0 0
    %1405 = vmatpush1.bf16.msra.mxu0 0
    %1406 = vmatprep.subr.bf16.mxu0 0
    %1407 = vmatpush1.bf16.msra.mxu0 0
    %1408 = vmatprep.subr.bf16.mxu0 0
    %1409 = vmatpush1.bf16.msra.mxu0 0
    %1410 = vmatprep.subr.bf16.mxu0 0
    %1411 = vmatpush1.bf16.msra.mxu0 0
    %1412 = vmatprep.subr.bf16.mxu0 0
    %1413 = vmatpush1.bf16.msra.mxu0 0
    %1414 = vmatprep.subr.bf16.mxu0 0
    %1415 = vmatpush1.bf16.msra.mxu0 0
    %1416 = vmatprep.subr.bf16.mxu0 0
    %1417 = vmatpush1.bf16.msra.mxu0 0
    %1418 = vmatprep.subr.bf16.mxu0 0
    %1419 = vmatpush1.bf16.msra.mxu0 0
    %1420 = vmatprep.subr.bf16.mxu0 0
    %1421 = vmatpush1.bf16.msra.mxu0 0
    %1422 = vmatprep.subr.bf16.mxu0 0
    %1423 = vmatpush1.bf16.msra.mxu0 0
    %1424 = vmatprep.subr.bf16.mxu0 0
    %1425 = vmatpush1.bf16.msra.mxu0 0
    %1426 = vmatprep.subr.bf16.mxu0 0
    %1427 = vmatpush1.bf16.msra.mxu0 0
    %1428 = vmatprep.subr.bf16.mxu0 0
    %1429 = vmatpush1.bf16.msra.mxu0 0
    %1430 = vmatprep.subr.bf16.mxu0 0
    %1431 = vmatpush1.bf16.msra.mxu0 0
    %1432 = vmatprep.mubr.bf16.mxu0 0
    %1433 = vmatmul.mubr.bf16.gmra.mrb[0].mxu0 %v1398
    %v1434 = vpop.f32.mrb[0].mxu0
    %v1435 = vadd.f32 %v1383, %v1434
    %v1436 = vpop.f32.mrb[0].mxu0
    %v1437 = vpop.f32.mrb[0].mxu0
    %v1438 = vadd.f32 %v1383, %v1437
    %v1439 = vpop.f32.mrb[0].mxu0
    %1440 = vdwg.mxu0
    %v1441 = vmul.f32 %v1435, 0.35355338
    %v1442 = vmul.f32 %v1438, 0.35355338
    %v1443 = vpack.c.bf16 %v1441, %v1441
    %v1444 = vpack.c.bf16 %v1442, %v1442
    %v1445 = vpack.c.bf16 %v1435, %v1435
    %v1446 = vpack.c.bf16 %v1438, %v1438
    %1448 = vrot.lane.b32.xlu0 %v1445, 96
    %v1449 = vpop.permute.xlu0 %1448
    %v1451 = vsel %vm144, %v1443, 0
    %v1454 = vsel %vm144, %v1449, 0
    %1456 = vmatprep.subr.bf16.mxu0 0
    %1457 = vmatpush1.bf16.xpose.msra.mxu0 %v1454
    %1458 = vmatprep.subr.bf16.mxu0 0
    %1459 = vmatpush1.bf16.xpose.msra.mxu0 0
    %1460 = vmatprep.subr.bf16.mxu0 0
    %1461 = vmatpush1.bf16.xpose.msra.mxu0 0
    %1462 = vmatprep.subr.bf16.mxu0 0
    %1463 = vmatpush1.bf16.xpose.msra.mxu0 0
    %1464 = vmatprep.subr.bf16.mxu0 0
    %1465 = vmatpush1.bf16.xpose.msra.mxu0 0
    %1466 = vmatprep.subr.bf16.mxu0 0
    %1467 = vmatpush1.bf16.xpose.msra.mxu0 0
    %1468 = vmatprep.subr.bf16.mxu0 0
    %1469 = vmatpush1.bf16.xpose.msra.mxu0 0
    %1470 = vmatprep.subr.bf16.mxu0 0
    %1471 = vmatpush1.bf16.xpose.msra.mxu0 0
    %1472 = vmatprep.subr.bf16.mxu0 0
    %1473 = vmatpush1.bf16.xpose.msra.mxu0 0
    %1474 = vmatprep.subr.bf16.mxu0 0
    %1475 = vmatpush1.bf16.xpose.msra.mxu0 0
    %1476 = vmatprep.subr.bf16.mxu0 0
    %1477 = vmatpush1.bf16.xpose.msra.mxu0 0
    %1478 = vmatprep.subr.bf16.mxu0 0
    %1479 = vmatpush1.bf16.xpose.msra.mxu0 0
    %1480 = vmatprep.subr.bf16.mxu0 0
    %1481 = vmatpush1.bf16.xpose.msra.mxu0 0
    %1482 = vmatprep.subr.bf16.mxu0 0
    %1483 = vmatpush1.bf16.xpose.msra.mxu0 0
    %1484 = vmatprep.subr.bf16.mxu0 0
    %1485 = vmatpush1.bf16.xpose.msra.mxu0 0
    %1486 = vmatprep.subr.bf16.mxu0 0
    %1487 = vmatpush1.bf16.xpose.msra.mxu0 0
    %1488 = vmatprep.mubr.bf16.mxu0 0
    %1489 = vmatmul.mubr.bf16.gmra.mrb[0].mxu0 %v1451
    %v1490 = vpop.f32.mrb[0].mxu0
    %v1491 = vadd.f32 %v65, %v1490
    %v1492 = vpop.f32.mrb[0].mxu0
    %v1493 = vpop.f32.mrb[0].mxu0
    %v1494 = vpop.f32.mrb[0].mxu0
    %1495 = vdwg.mxu0
    %1497 = vrot.lane.b32.xlu0 %v1446, 96
    %v1498 = vpop.permute.xlu0 %1497
    %v1500 = vsel %vm144, %v1444, 0
    %v1503 = vsel %vm144, %v1498, 0
    %1505 = vmatprep.subr.bf16.mxu0 0
    %1506 = vmatpush1.bf16.xpose.msra.mxu0 %v1503
    %1507 = vmatprep.subr.bf16.mxu0 0
    %1508 = vmatpush1.bf16.xpose.msra.mxu0 0
    %1509 = vmatprep.subr.bf16.mxu0 0
    %1510 = vmatpush1.bf16.xpose.msra.mxu0 0
    %1511 = vmatprep.subr.bf16.mxu0 0
    %1512 = vmatpush1.bf16.xpose.msra.mxu0 0
    %1513 = vmatprep.subr.bf16.mxu0 0
    %1514 = vmatpush1.bf16.xpose.msra.mxu0 0
    %1515 = vmatprep.subr.bf16.mxu0 0
    %1516 = vmatpush1.bf16.xpose.msra.mxu0 0
    %1517 = vmatprep.subr.bf16.mxu0 0
    %1518 = vmatpush1.bf16.xpose.msra.mxu0 0
    %1519 = vmatprep.subr.bf16.mxu0 0
    %1520 = vmatpush1.bf16.xpose.msra.mxu0 0
    %1521 = vmatprep.subr.bf16.mxu0 0
    %1522 = vmatpush1.bf16.xpose.msra.mxu0 0
    %1523 = vmatprep.subr.bf16.mxu0 0
    %1524 = vmatpush1.bf16.xpose.msra.mxu0 0
    %1525 = vmatprep.subr.bf16.mxu0 0
    %1526 = vmatpush1.bf16.xpose.msra.mxu0 0
    %1527 = vmatprep.subr.bf16.mxu0 0
    %1528 = vmatpush1.bf16.xpose.msra.mxu0 0
    %1529 = vmatprep.subr.bf16.mxu0 0
    %1530 = vmatpush1.bf16.xpose.msra.mxu0 0
    %1531 = vmatprep.subr.bf16.mxu0 0
    %1532 = vmatpush1.bf16.xpose.msra.mxu0 0
    %1533 = vmatprep.subr.bf16.mxu0 0
    %1534 = vmatpush1.bf16.xpose.msra.mxu0 0
    %1535 = vmatprep.subr.bf16.mxu0 0
    %1536 = vmatpush1.bf16.xpose.msra.mxu0 0
    %1537 = vmatprep.mubr.bf16.mxu0 0
    %1538 = vmatmul.mubr.bf16.gmra.mrb[0].mxu0 %v1500
    %v1539 = vpop.f32.mrb[0].mxu0
    %v1540 = vadd.f32 %v65, %v1539
    %v1541 = vpop.f32.mrb[0].mxu0
    %v1542 = vpop.f32.mrb[0].mxu0
    %v1543 = vpop.f32.mrb[0].mxu0
    %1544 = vdwg.mxu0
    %v1545 = vsel %vm144, %v1491, -inf
    %1546 = vmax.xlane.f32.xlu0 %v1545
    %v1547 = vpop.xlane.xlu0 %1546
    %v1548 = vsel %vm144, %v1540, -inf
    %1549 = vmax.xlane.f32.xlu0 %v1548
    %v1550 = vpop.xlane.xlu0 %1549
    %v1551 = vsub.f32 %v1491, %v1547
    %v1552 = vsub.f32 %v1540, %v1550
    %v1553 = vmul.f32 %v1551, 1.442695
    %v1554 = vpow.pop %v1553
    %v1555 = vmul.f32 %v1552, 1.442695
    %v1556 = vpow.pop %v1555
    %v1557 = vsel %vm144, %v1554, 0.0
    %1558 = vadd.xlane.f32.xlu0 %v1557
    %v1559 = vpop.xlane.xlu0 %1558
    %v1560 = vsel %vm144, %v1556, 0.0
    %1561 = vadd.xlane.f32.xlu0 %v1560
    %v1562 = vpop.xlane.xlu0 %1561
    %v1563 = vrcp.pop %v1559
    %v1564 = vrcp.pop %v1562
    %v1565 = vmul.f32 %v1554, %v1563
    %v1566 = vmul.f32 %v1556, %v1564
    %v1567 = vpack.c.bf16 %v1565, %v1565
    %v1568 = vpack.c.bf16 %v1566, %v1566
    %1569 = vrot.lane.b32.xlu0 %v1445, 64
    %v1570 = vpop.permute.xlu0 %1569
    %v1572 = vsel %vm144, %v1567, 0
    %v1575 = vsel %vm269, %v1570, 0
    %1577 = vmatprep.subr.bf16.mxu0 0
    %1578 = vmatpush1.bf16.msra.mxu0 %v1575
    %1579 = vmatprep.subr.bf16.mxu0 0
    %1580 = vmatpush1.bf16.msra.mxu0 0
    %1581 = vmatprep.subr.bf16.mxu0 0
    %1582 = vmatpush1.bf16.msra.mxu0 0
    %1583 = vmatprep.subr.bf16.mxu0 0
    %1584 = vmatpush1.bf16.msra.mxu0 0
    %1585 = vmatprep.subr.bf16.mxu0 0
    %1586 = vmatpush1.bf16.msra.mxu0 0
    %1587 = vmatprep.subr.bf16.mxu0 0
    %1588 = vmatpush1.bf16.msra.mxu0 0
    %1589 = vmatprep.subr.bf16.mxu0 0
    %1590 = vmatpush1.bf16.msra.mxu0 0
    %1591 = vmatprep.subr.bf16.mxu0 0
    %1592 = vmatpush1.bf16.msra.mxu0 0
    %1593 = vmatprep.subr.bf16.mxu0 0
    %1594 = vmatpush1.bf16.msra.mxu0 0
    %1595 = vmatprep.subr.bf16.mxu0 0
    %1596 = vmatpush1.bf16.msra.mxu0 0
    %1597 = vmatprep.subr.bf16.mxu0 0
    %1598 = vmatpush1.bf16.msra.mxu0 0
    %1599 = vmatprep.subr.bf16.mxu0 0
    %1600 = vmatpush1.bf16.msra.mxu0 0
    %1601 = vmatprep.subr.bf16.mxu0 0
    %1602 = vmatpush1.bf16.msra.mxu0 0
    %1603 = vmatprep.subr.bf16.mxu0 0
    %1604 = vmatpush1.bf16.msra.mxu0 0
    %1605 = vmatprep.subr.bf16.mxu0 0
    %1606 = vmatpush1.bf16.msra.mxu0 0
    %1607 = vmatprep.subr.bf16.mxu0 0
    %1608 = vmatpush1.bf16.msra.mxu0 0
    %1609 = vmatprep.mubr.bf16.mxu0 0
    %1610 = vmatmul.mubr.bf16.gmra.mrb[0].mxu0 %v1572
    %v1611 = vpop.f32.mrb[0].mxu0
    %v1612 = vadd.f32 0.0, %v1611
    %v1613 = vpop.f32.mrb[0].mxu0
    %v1614 = vpop.f32.mrb[0].mxu0
    %v1615 = vpop.f32.mrb[0].mxu0
    %1616 = vdwg.mxu0
    %1617 = vrot.lane.b32.xlu0 %v1446, 64
    %v1618 = vpop.permute.xlu0 %1617
    %v1620 = vsel %vm144, %v1568, 0
    %v1623 = vsel %vm269, %v1618, 0
    %1625 = vmatprep.subr.bf16.mxu0 0
    %1626 = vmatpush1.bf16.msra.mxu0 %v1623
    %1627 = vmatprep.subr.bf16.mxu0 0
    %1628 = vmatpush1.bf16.msra.mxu0 0
    %1629 = vmatprep.subr.bf16.mxu0 0
    %1630 = vmatpush1.bf16.msra.mxu0 0
    %1631 = vmatprep.subr.bf16.mxu0 0
    %1632 = vmatpush1.bf16.msra.mxu0 0
    %1633 = vmatprep.subr.bf16.mxu0 0
    %1634 = vmatpush1.bf16.msra.mxu0 0
    %1635 = vmatprep.subr.bf16.mxu0 0
    %1636 = vmatpush1.bf16.msra.mxu0 0
    %1637 = vmatprep.subr.bf16.mxu0 0
    %1638 = vmatpush1.bf16.msra.mxu0 0
    %1639 = vmatprep.subr.bf16.mxu0 0
    %1640 = vmatpush1.bf16.msra.mxu0 0
    %1641 = vmatprep.subr.bf16.mxu0 0
    %1642 = vmatpush1.bf16.msra.mxu0 0
    %1643 = vmatprep.subr.bf16.mxu0 0
    %1644 = vmatpush1.bf16.msra.mxu0 0
    %1645 = vmatprep.subr.bf16.mxu0 0
    %1646 = vmatpush1.bf16.msra.mxu0 0
    %1647 = vmatprep.subr.bf16.mxu0 0
    %1648 = vmatpush1.bf16.msra.mxu0 0
    %1649 = vmatprep.subr.bf16.mxu0 0
    %1650 = vmatpush1.bf16.msra.mxu0 0
    %1651 = vmatprep.subr.bf16.mxu0 0
    %1652 = vmatpush1.bf16.msra.mxu0 0
    %1653 = vmatprep.subr.bf16.mxu0 0
    %1654 = vmatpush1.bf16.msra.mxu0 0
    %1655 = vmatprep.subr.bf16.mxu0 0
    %1656 = vmatpush1.bf16.msra.mxu0 0
    %1657 = vmatprep.mubr.bf16.mxu0 0
    %1658 = vmatmul.mubr.bf16.gmra.mrb[0].mxu0 %v1620
    %v1659 = vpop.f32.mrb[0].mxu0
    %v1660 = vadd.f32 0.0, %v1659
    %v1661 = vpop.f32.mrb[0].mxu0
    %v1662 = vpop.f32.mrb[0].mxu0
    %v1663 = vpop.f32.mrb[0].mxu0
    %1664 = vdwg.mxu0
    %1666 = vrot.lane.b32.xlu0 %v1443, 120
    %v1667 = vpop.permute.xlu0 %1666
    %1668 = vrot.lane.b32.xlu0 %v1445, 88
    %v1669 = vpop.permute.xlu0 %1668
    %v1671 = vsel %vm144, %v1667, 0
    %v1674 = vsel %vm144, %v1669, 0
    %1676 = vmatprep.subr.bf16.mxu0 0
    %1677 = vmatpush1.bf16.xpose.msra.mxu0 %v1674
    %1678 = vmatprep.subr.bf16.mxu0 0
    %1679 = vmatpush1.bf16.xpose.msra.mxu0 0
    %1680 = vmatprep.subr.bf16.mxu0 0
    %1681 = vmatpush1.bf16.xpose.msra.mxu0 0
    %1682 = vmatprep.subr.bf16.mxu0 0
    %1683 = vmatpush1.bf16.xpose.msra.mxu0 0
    %1684 = vmatprep.subr.bf16.mxu0 0
    %1685 = vmatpush1.bf16.xpose.msra.mxu0 0
    %1686 = vmatprep.subr.bf16.mxu0 0
    %1687 = vmatpush1.bf16.xpose.msra.mxu0 0
    %1688 = vmatprep.subr.bf16.mxu0 0
    %1689 = vmatpush1.bf16.xpose.msra.mxu0 0
    %1690 = vmatprep.subr.bf16.mxu0 0
    %1691 = vmatpush1.bf16.xpose.msra.mxu0 0
    %1692 = vmatprep.subr.bf16.mxu0 0
    %1693 = vmatpush1.bf16.xpose.msra.mxu0 0
    %1694 = vmatprep.subr.bf16.mxu0 0
    %1695 = vmatpush1.bf16.xpose.msra.mxu0 0
    %1696 = vmatprep.subr.bf16.mxu0 0
    %1697 = vmatpush1.bf16.xpose.msra.mxu0 0
    %1698 = vmatprep.subr.bf16.mxu0 0
    %1699 = vmatpush1.bf16.xpose.msra.mxu0 0
    %1700 = vmatprep.subr.bf16.mxu0 0
    %1701 = vmatpush1.bf16.xpose.msra.mxu0 0
    %1702 = vmatprep.subr.bf16.mxu0 0
    %1703 = vmatpush1.bf16.xpose.msra.mxu0 0
    %1704 = vmatprep.subr.bf16.mxu0 0
    %1705 = vmatpush1.bf16.xpose.msra.mxu0 0
    %1706 = vmatprep.subr.bf16.mxu0 0
    %1707 = vmatpush1.bf16.xpose.msra.mxu0 0
    %1708 = vmatprep.mubr.bf16.mxu0 0
    %1709 = vmatmul.mubr.bf16.gmra.mrb[0].mxu0 %v1671
    %v1710 = vpop.f32.mrb[0].mxu0
    %v1711 = vadd.f32 %v65, %v1710
    %v1712 = vpop.f32.mrb[0].mxu0
    %v1713 = vpop.f32.mrb[0].mxu0
    %v1714 = vpop.f32.mrb[0].mxu0
    %1715 = vdwg.mxu0
    %1717 = vrot.lane.b32.xlu0 %v1444, 120
    %v1718 = vpop.permute.xlu0 %1717
    %1719 = vrot.lane.b32.xlu0 %v1446, 88
    %v1720 = vpop.permute.xlu0 %1719
    %v1722 = vsel %vm144, %v1718, 0
    %v1725 = vsel %vm144, %v1720, 0
    %1727 = vmatprep.subr.bf16.mxu0 0
    %1728 = vmatpush1.bf16.xpose.msra.mxu0 %v1725
    %1729 = vmatprep.subr.bf16.mxu0 0
    %1730 = vmatpush1.bf16.xpose.msra.mxu0 0
    %1731 = vmatprep.subr.bf16.mxu0 0
    %1732 = vmatpush1.bf16.xpose.msra.mxu0 0
    %1733 = vmatprep.subr.bf16.mxu0 0
    %1734 = vmatpush1.bf16.xpose.msra.mxu0 0
    %1735 = vmatprep.subr.bf16.mxu0 0
    %1736 = vmatpush1.bf16.xpose.msra.mxu0 0
    %1737 = vmatprep.subr.bf16.mxu0 0
    %1738 = vmatpush1.bf16.xpose.msra.mxu0 0
    %1739 = vmatprep.subr.bf16.mxu0 0
    %1740 = vmatpush1.bf16.xpose.msra.mxu0 0
    %1741 = vmatprep.subr.bf16.mxu0 0
    %1742 = vmatpush1.bf16.xpose.msra.mxu0 0
    %1743 = vmatprep.subr.bf16.mxu0 0
    %1744 = vmatpush1.bf16.xpose.msra.mxu0 0
    %1745 = vmatprep.subr.bf16.mxu0 0
    %1746 = vmatpush1.bf16.xpose.msra.mxu0 0
    %1747 = vmatprep.subr.bf16.mxu0 0
    %1748 = vmatpush1.bf16.xpose.msra.mxu0 0
    %1749 = vmatprep.subr.bf16.mxu0 0
    %1750 = vmatpush1.bf16.xpose.msra.mxu0 0
    %1751 = vmatprep.subr.bf16.mxu0 0
    %1752 = vmatpush1.bf16.xpose.msra.mxu0 0
    %1753 = vmatprep.subr.bf16.mxu0 0
    %1754 = vmatpush1.bf16.xpose.msra.mxu0 0
    %1755 = vmatprep.subr.bf16.mxu0 0
    %1756 = vmatpush1.bf16.xpose.msra.mxu0 0
    %1757 = vmatprep.subr.bf16.mxu0 0
    %1758 = vmatpush1.bf16.xpose.msra.mxu0 0
    %1759 = vmatprep.mubr.bf16.mxu0 0
    %1760 = vmatmul.mubr.bf16.gmra.mrb[0].mxu0 %v1722
    %v1761 = vpop.f32.mrb[0].mxu0
    %v1762 = vadd.f32 %v65, %v1761
    %v1763 = vpop.f32.mrb[0].mxu0
    %v1764 = vpop.f32.mrb[0].mxu0
    %v1765 = vpop.f32.mrb[0].mxu0
    %1766 = vdwg.mxu0
    %v1767 = vsel %vm144, %v1711, -inf
    %1768 = vmax.xlane.f32.xlu0 %v1767
    %v1769 = vpop.xlane.xlu0 %1768
    %v1770 = vsel %vm144, %v1762, -inf
    %1771 = vmax.xlane.f32.xlu0 %v1770
    %v1772 = vpop.xlane.xlu0 %1771
    %v1773 = vsub.f32 %v1711, %v1769
    %v1774 = vsub.f32 %v1762, %v1772
    %v1775 = vmul.f32 %v1773, 1.442695
    %v1776 = vpow.pop %v1775
    %v1777 = vmul.f32 %v1774, 1.442695
    %v1778 = vpow.pop %v1777
    %v1779 = vsel %vm144, %v1776, 0.0
    %1780 = vadd.xlane.f32.xlu0 %v1779
    %v1781 = vpop.xlane.xlu0 %1780
    %v1782 = vsel %vm144, %v1778, 0.0
    %1783 = vadd.xlane.f32.xlu0 %v1782
    %v1784 = vpop.xlane.xlu0 %1783
    %v1785 = vrcp.pop %v1781
    %v1786 = vrcp.pop %v1784
    %v1787 = vmul.f32 %v1776, %v1785
    %v1788 = vmul.f32 %v1778, %v1786
    %v1789 = vpack.c.bf16 %v1787, %v1787
    %v1790 = vpack.c.bf16 %v1788, %v1788
    %1791 = vrot.lane.b32.xlu0 %v1445, 56
    %v1792 = vpop.permute.xlu0 %1791
    %v1794 = vsel %vm144, %v1789, 0
    %v1797 = vsel %vm269, %v1792, 0
    %1799 = vmatprep.subr.bf16.mxu0 0
    %1800 = vmatpush1.bf16.msra.mxu0 %v1797
    %1801 = vmatprep.subr.bf16.mxu0 0
    %1802 = vmatpush1.bf16.msra.mxu0 0
    %1803 = vmatprep.subr.bf16.mxu0 0
    %1804 = vmatpush1.bf16.msra.mxu0 0
    %1805 = vmatprep.subr.bf16.mxu0 0
    %1806 = vmatpush1.bf16.msra.mxu0 0
    %1807 = vmatprep.subr.bf16.mxu0 0
    %1808 = vmatpush1.bf16.msra.mxu0 0
    %1809 = vmatprep.subr.bf16.mxu0 0
    %1810 = vmatpush1.bf16.msra.mxu0 0
    %1811 = vmatprep.subr.bf16.mxu0 0
    %1812 = vmatpush1.bf16.msra.mxu0 0
    %1813 = vmatprep.subr.bf16.mxu0 0
    %1814 = vmatpush1.bf16.msra.mxu0 0
    %1815 = vmatprep.subr.bf16.mxu0 0
    %1816 = vmatpush1.bf16.msra.mxu0 0
    %1817 = vmatprep.subr.bf16.mxu0 0
    %1818 = vmatpush1.bf16.msra.mxu0 0
    %1819 = vmatprep.subr.bf16.mxu0 0
    %1820 = vmatpush1.bf16.msra.mxu0 0
    %1821 = vmatprep.subr.bf16.mxu0 0
    %1822 = vmatpush1.bf16.msra.mxu0 0
    %1823 = vmatprep.subr.bf16.mxu0 0
    %1824 = vmatpush1.bf16.msra.mxu0 0
    %1825 = vmatprep.subr.bf16.mxu0 0
    %1826 = vmatpush1.bf16.msra.mxu0 0
    %1827 = vmatprep.subr.bf16.mxu0 0
    %1828 = vmatpush1.bf16.msra.mxu0 0
    %1829 = vmatprep.subr.bf16.mxu0 0
    %1830 = vmatpush1.bf16.msra.mxu0 0
    %1831 = vmatprep.mubr.bf16.mxu0 0
    %1832 = vmatmul.mubr.bf16.gmra.mrb[0].mxu0 %v1794
    %v1833 = vpop.f32.mrb[0].mxu0
    %v1834 = vadd.f32 0.0, %v1833
    %v1835 = vpop.f32.mrb[0].mxu0
    %v1836 = vpop.f32.mrb[0].mxu0
    %v1837 = vpop.f32.mrb[0].mxu0
    %1838 = vdwg.mxu0
    %1839 = vrot.lane.b32.xlu0 %v1446, 56
    %v1840 = vpop.permute.xlu0 %1839
    %v1842 = vsel %vm144, %v1790, 0
    %v1845 = vsel %vm269, %v1840, 0
    %1847 = vmatprep.subr.bf16.mxu0 0
    %1848 = vmatpush1.bf16.msra.mxu0 %v1845
    %1849 = vmatprep.subr.bf16.mxu0 0
    %1850 = vmatpush1.bf16.msra.mxu0 0
    %1851 = vmatprep.subr.bf16.mxu0 0
    %1852 = vmatpush1.bf16.msra.mxu0 0
    %1853 = vmatprep.subr.bf16.mxu0 0
    %1854 = vmatpush1.bf16.msra.mxu0 0
    %1855 = vmatprep.subr.bf16.mxu0 0
    %1856 = vmatpush1.bf16.msra.mxu0 0
    %1857 = vmatprep.subr.bf16.mxu0 0
    %1858 = vmatpush1.bf16.msra.mxu0 0
    %1859 = vmatprep.subr.bf16.mxu0 0
    %1860 = vmatpush1.bf16.msra.mxu0 0
    %1861 = vmatprep.subr.bf16.mxu0 0
    %1862 = vmatpush1.bf16.msra.mxu0 0
    %1863 = vmatprep.subr.bf16.mxu0 0
    %1864 = vmatpush1.bf16.msra.mxu0 0
    %1865 = vmatprep.subr.bf16.mxu0 0
    %1866 = vmatpush1.bf16.msra.mxu0 0
    %1867 = vmatprep.subr.bf16.mxu0 0
    %1868 = vmatpush1.bf16.msra.mxu0 0
    %1869 = vmatprep.subr.bf16.mxu0 0
    %1870 = vmatpush1.bf16.msra.mxu0 0
    %1871 = vmatprep.subr.bf16.mxu0 0
    %1872 = vmatpush1.bf16.msra.mxu0 0
    %1873 = vmatprep.subr.bf16.mxu0 0
    %1874 = vmatpush1.bf16.msra.mxu0 0
    %1875 = vmatprep.subr.bf16.mxu0 0
    %1876 = vmatpush1.bf16.msra.mxu0 0
    %1877 = vmatprep.subr.bf16.mxu0 0
    %1878 = vmatpush1.bf16.msra.mxu0 0
    %1879 = vmatprep.mubr.bf16.mxu0 0
    %1880 = vmatmul.mubr.bf16.gmra.mrb[0].mxu0 %v1842
    %v1881 = vpop.f32.mrb[0].mxu0
    %v1882 = vadd.f32 0.0, %v1881
    %v1883 = vpop.f32.mrb[0].mxu0
    %v1884 = vpop.f32.mrb[0].mxu0
    %v1885 = vpop.f32.mrb[0].mxu0
    %1886 = vdwg.mxu0
    %1887 = vrot.lane.b32.xlu0 %v1443, 112
    %v1888 = vpop.permute.xlu0 %1887
    %1889 = vrot.lane.b32.xlu0 %v1445, 80
    %v1890 = vpop.permute.xlu0 %1889
    %v1892 = vsel %vm144, %v1888, 0
    %v1895 = vsel %vm144, %v1890, 0
    %1897 = vmatprep.subr.bf16.mxu0 0
    %1898 = vmatpush1.bf16.xpose.msra.mxu0 %v1895
    %1899 = vmatprep.subr.bf16.mxu0 0
    %1900 = vmatpush1.bf16.xpose.msra.mxu0 0
    %1901 = vmatprep.subr.bf16.mxu0 0
    %1902 = vmatpush1.bf16.xpose.msra.mxu0 0
    %1903 = vmatprep.subr.bf16.mxu0 0
    %1904 = vmatpush1.bf16.xpose.msra.mxu0 0
    %1905 = vmatprep.subr.bf16.mxu0 0
    %1906 = vmatpush1.bf16.xpose.msra.mxu0 0
    %1907 = vmatprep.subr.bf16.mxu0 0
    %1908 = vmatpush1.bf16.xpose.msra.mxu0 0
    %1909 = vmatprep.subr.bf16.mxu0 0
    %1910 = vmatpush1.bf16.xpose.msra.mxu0 0
    %1911 = vmatprep.subr.bf16.mxu0 0
    %1912 = vmatpush1.bf16.xpose.msra.mxu0 0
    %1913 = vmatprep.subr.bf16.mxu0 0
    %1914 = vmatpush1.bf16.xpose.msra.mxu0 0
    %1915 = vmatprep.subr.bf16.mxu0 0
    %1916 = vmatpush1.bf16.xpose.msra.mxu0 0
    %1917 = vmatprep.subr.bf16.mxu0 0
    %1918 = vmatpush1.bf16.xpose.msra.mxu0 0
    %1919 = vmatprep.subr.bf16.mxu0 0
    %1920 = vmatpush1.bf16.xpose.msra.mxu0 0
    %1921 = vmatprep.subr.bf16.mxu0 0
    %1922 = vmatpush1.bf16.xpose.msra.mxu0 0
    %1923 = vmatprep.subr.bf16.mxu0 0
    %1924 = vmatpush1.bf16.xpose.msra.mxu0 0
    %1925 = vmatprep.subr.bf16.mxu0 0
    %1926 = vmatpush1.bf16.xpose.msra.mxu0 0
    %1927 = vmatprep.subr.bf16.mxu0 0
    %1928 = vmatpush1.bf16.xpose.msra.mxu0 0
    %1929 = vmatprep.mubr.bf16.mxu0 0
    %1930 = vmatmul.mubr.bf16.gmra.mrb[0].mxu0 %v1892
    %v1931 = vpop.f32.mrb[0].mxu0
    %v1932 = vadd.f32 %v65, %v1931
    %v1933 = vpop.f32.mrb[0].mxu0
    %v1934 = vpop.f32.mrb[0].mxu0
    %v1935 = vpop.f32.mrb[0].mxu0
    %1936 = vdwg.mxu0
    %1937 = vrot.lane.b32.xlu0 %v1444, 112
    %v1938 = vpop.permute.xlu0 %1937
    %1939 = vrot.lane.b32.xlu0 %v1446, 80
    %v1940 = vpop.permute.xlu0 %1939
    %v1942 = vsel %vm144, %v1938, 0
    %v1945 = vsel %vm144, %v1940, 0
    %1947 = vmatprep.subr.bf16.mxu0 0
    %1948 = vmatpush1.bf16.xpose.msra.mxu0 %v1945
    %1949 = vmatprep.subr.bf16.mxu0 0
    %1950 = vmatpush1.bf16.xpose.msra.mxu0 0
    %1951 = vmatprep.subr.bf16.mxu0 0
    %1952 = vmatpush1.bf16.xpose.msra.mxu0 0
    %1953 = vmatprep.subr.bf16.mxu0 0
    %1954 = vmatpush1.bf16.xpose.msra.mxu0 0
    %1955 = vmatprep.subr.bf16.mxu0 0
    %1956 = vmatpush1.bf16.xpose.msra.mxu0 0
    %1957 = vmatprep.subr.bf16.mxu0 0
    %1958 = vmatpush1.bf16.xpose.msra.mxu0 0
    %1959 = vmatprep.subr.bf16.mxu0 0
    %1960 = vmatpush1.bf16.xpose.msra.mxu0 0
    %1961 = vmatprep.subr.bf16.mxu0 0
    %1962 = vmatpush1.bf16.xpose.msra.mxu0 0
    %1963 = vmatprep.subr.bf16.mxu0 0
    %1964 = vmatpush1.bf16.xpose.msra.mxu0 0
    %1965 = vmatprep.subr.bf16.mxu0 0
    %1966 = vmatpush1.bf16.xpose.msra.mxu0 0
    %1967 = vmatprep.subr.bf16.mxu0 0
    %1968 = vmatpush1.bf16.xpose.msra.mxu0 0
    %1969 = vmatprep.subr.bf16.mxu0 0
    %1970 = vmatpush1.bf16.xpose.msra.mxu0 0
    %1971 = vmatprep.subr.bf16.mxu0 0
    %1972 = vmatpush1.bf16.xpose.msra.mxu0 0
    %1973 = vmatprep.subr.bf16.mxu0 0
    %1974 = vmatpush1.bf16.xpose.msra.mxu0 0
    %1975 = vmatprep.subr.bf16.mxu0 0
    %1976 = vmatpush1.bf16.xpose.msra.mxu0 0
    %1977 = vmatprep.subr.bf16.mxu0 0
    %1978 = vmatpush1.bf16.xpose.msra.mxu0 0
    %1979 = vmatprep.mubr.bf16.mxu0 0
    %1980 = vmatmul.mubr.bf16.gmra.mrb[0].mxu0 %v1942
    %v1981 = vpop.f32.mrb[0].mxu0
    %v1982 = vadd.f32 %v65, %v1981
    %v1983 = vpop.f32.mrb[0].mxu0
    %v1984 = vpop.f32.mrb[0].mxu0
    %v1985 = vpop.f32.mrb[0].mxu0
    %1986 = vdwg.mxu0
    %v1987 = vsel %vm144, %v1932, -inf
    %1988 = vmax.xlane.f32.xlu0 %v1987
    %v1989 = vpop.xlane.xlu0 %1988
    %v1990 = vsel %vm144, %v1982, -inf
    %1991 = vmax.xlane.f32.xlu0 %v1990
    %v1992 = vpop.xlane.xlu0 %1991
    %v1993 = vsub.f32 %v1932, %v1989
    %v1994 = vsub.f32 %v1982, %v1992
    %v1995 = vmul.f32 %v1993, 1.442695
    %v1996 = vpow.pop %v1995
    %v1997 = vmul.f32 %v1994, 1.442695
    %v1998 = vpow.pop %v1997
    %v1999 = vsel %vm144, %v1996, 0.0
    %2000 = vadd.xlane.f32.xlu0 %v1999
    %v2001 = vpop.xlane.xlu0 %2000
    %v2002 = vsel %vm144, %v1998, 0.0
    %2003 = vadd.xlane.f32.xlu0 %v2002
    %v2004 = vpop.xlane.xlu0 %2003
    %v2005 = vrcp.pop %v2001
    %v2006 = vrcp.pop %v2004
    %v2007 = vmul.f32 %v1996, %v2005
    %v2008 = vmul.f32 %v1998, %v2006
    %v2009 = vpack.c.bf16 %v2007, %v2007
    %v2010 = vpack.c.bf16 %v2008, %v2008
    %2011 = vrot.lane.b32.xlu0 %v1445, 48
    %v2012 = vpop.permute.xlu0 %2011
    %v2014 = vsel %vm144, %v2009, 0
    %v2017 = vsel %vm269, %v2012, 0
    %2019 = vmatprep.subr.bf16.mxu0 0
    %2020 = vmatpush1.bf16.msra.mxu0 %v2017
    %2021 = vmatprep.subr.bf16.mxu0 0
    %2022 = vmatpush1.bf16.msra.mxu0 0
    %2023 = vmatprep.subr.bf16.mxu0 0
    %2024 = vmatpush1.bf16.msra.mxu0 0
    %2025 = vmatprep.subr.bf16.mxu0 0
    %2026 = vmatpush1.bf16.msra.mxu0 0
    %2027 = vmatprep.subr.bf16.mxu0 0
    %2028 = vmatpush1.bf16.msra.mxu0 0
    %2029 = vmatprep.subr.bf16.mxu0 0
    %2030 = vmatpush1.bf16.msra.mxu0 0
    %2031 = vmatprep.subr.bf16.mxu0 0
    %2032 = vmatpush1.bf16.msra.mxu0 0
    %2033 = vmatprep.subr.bf16.mxu0 0
    %2034 = vmatpush1.bf16.msra.mxu0 0
    %2035 = vmatprep.subr.bf16.mxu0 0
    %2036 = vmatpush1.bf16.msra.mxu0 0
    %2037 = vmatprep.subr.bf16.mxu0 0
    %2038 = vmatpush1.bf16.msra.mxu0 0
    %2039 = vmatprep.subr.bf16.mxu0 0
    %2040 = vmatpush1.bf16.msra.mxu0 0
    %2041 = vmatprep.subr.bf16.mxu0 0
    %2042 = vmatpush1.bf16.msra.mxu0 0
    %2043 = vmatprep.subr.bf16.mxu0 0
    %2044 = vmatpush1.bf16.msra.mxu0 0
    %2045 = vmatprep.subr.bf16.mxu0 0
    %2046 = vmatpush1.bf16.msra.mxu0 0
    %2047 = vmatprep.subr.bf16.mxu0 0
    %2048 = vmatpush1.bf16.msra.mxu0 0
    %2049 = vmatprep.subr.bf16.mxu0 0
    %2050 = vmatpush1.bf16.msra.mxu0 0
    %2051 = vmatprep.mubr.bf16.mxu0 0
    %2052 = vmatmul.mubr.bf16.gmra.mrb[0].mxu0 %v2014
    %v2053 = vpop.f32.mrb[0].mxu0
    %v2054 = vadd.f32 0.0, %v2053
    %v2055 = vpop.f32.mrb[0].mxu0
    %v2056 = vpop.f32.mrb[0].mxu0
    %v2057 = vpop.f32.mrb[0].mxu0
    %2058 = vdwg.mxu0
    %2059 = vrot.lane.b32.xlu0 %v1446, 48
    %v2060 = vpop.permute.xlu0 %2059
    %v2062 = vsel %vm144, %v2010, 0
    %v2065 = vsel %vm269, %v2060, 0
    %2067 = vmatprep.subr.bf16.mxu0 0
    %2068 = vmatpush1.bf16.msra.mxu0 %v2065
    %2069 = vmatprep.subr.bf16.mxu0 0
    %2070 = vmatpush1.bf16.msra.mxu0 0
    %2071 = vmatprep.subr.bf16.mxu0 0
    %2072 = vmatpush1.bf16.msra.mxu0 0
    %2073 = vmatprep.subr.bf16.mxu0 0
    %2074 = vmatpush1.bf16.msra.mxu0 0
    %2075 = vmatprep.subr.bf16.mxu0 0
    %2076 = vmatpush1.bf16.msra.mxu0 0
    %2077 = vmatprep.subr.bf16.mxu0 0
    %2078 = vmatpush1.bf16.msra.mxu0 0
    %2079 = vmatprep.subr.bf16.mxu0 0
    %2080 = vmatpush1.bf16.msra.mxu0 0
    %2081 = vmatprep.subr.bf16.mxu0 0
    %2082 = vmatpush1.bf16.msra.mxu0 0
    %2083 = vmatprep.subr.bf16.mxu0 0
    %2084 = vmatpush1.bf16.msra.mxu0 0
    %2085 = vmatprep.subr.bf16.mxu0 0
    %2086 = vmatpush1.bf16.msra.mxu0 0
    %2087 = vmatprep.subr.bf16.mxu0 0
    %2088 = vmatpush1.bf16.msra.mxu0 0
    %2089 = vmatprep.subr.bf16.mxu0 0
    %2090 = vmatpush1.bf16.msra.mxu0 0
    %2091 = vmatprep.subr.bf16.mxu0 0
    %2092 = vmatpush1.bf16.msra.mxu0 0
    %2093 = vmatprep.subr.bf16.mxu0 0
    %2094 = vmatpush1.bf16.msra.mxu0 0
    %2095 = vmatprep.subr.bf16.mxu0 0
    %2096 = vmatpush1.bf16.msra.mxu0 0
    %2097 = vmatprep.subr.bf16.mxu0 0
    %2098 = vmatpush1.bf16.msra.mxu0 0
    %2099 = vmatprep.mubr.bf16.mxu0 0
    %2100 = vmatmul.mubr.bf16.gmra.mrb[0].mxu0 %v2062
    %v2101 = vpop.f32.mrb[0].mxu0
    %v2102 = vadd.f32 0.0, %v2101
    %v2103 = vpop.f32.mrb[0].mxu0
    %v2104 = vpop.f32.mrb[0].mxu0
    %v2105 = vpop.f32.mrb[0].mxu0
    %2106 = vdwg.mxu0
    %2107 = vrot.lane.b32.xlu0 %v1443, 104
    %v2108 = vpop.permute.xlu0 %2107
    %2109 = vrot.lane.b32.xlu0 %v1445, 72
    %v2110 = vpop.permute.xlu0 %2109
    %v2112 = vsel %vm144, %v2108, 0
    %v2115 = vsel %vm144, %v2110, 0
    %2117 = vmatprep.subr.bf16.mxu0 0
    %2118 = vmatpush1.bf16.xpose.msra.mxu0 %v2115
    %2119 = vmatprep.subr.bf16.mxu0 0
    %2120 = vmatpush1.bf16.xpose.msra.mxu0 0
    %2121 = vmatprep.subr.bf16.mxu0 0
    %2122 = vmatpush1.bf16.xpose.msra.mxu0 0
    %2123 = vmatprep.subr.bf16.mxu0 0
    %2124 = vmatpush1.bf16.xpose.msra.mxu0 0
    %2125 = vmatprep.subr.bf16.mxu0 0
    %2126 = vmatpush1.bf16.xpose.msra.mxu0 0
    %2127 = vmatprep.subr.bf16.mxu0 0
    %2128 = vmatpush1.bf16.xpose.msra.mxu0 0
    %2129 = vmatprep.subr.bf16.mxu0 0
    %2130 = vmatpush1.bf16.xpose.msra.mxu0 0
    %2131 = vmatprep.subr.bf16.mxu0 0
    %2132 = vmatpush1.bf16.xpose.msra.mxu0 0
    %2133 = vmatprep.subr.bf16.mxu0 0
    %2134 = vmatpush1.bf16.xpose.msra.mxu0 0
    %2135 = vmatprep.subr.bf16.mxu0 0
    %2136 = vmatpush1.bf16.xpose.msra.mxu0 0
    %2137 = vmatprep.subr.bf16.mxu0 0
    %2138 = vmatpush1.bf16.xpose.msra.mxu0 0
    %2139 = vmatprep.subr.bf16.mxu0 0
    %2140 = vmatpush1.bf16.xpose.msra.mxu0 0
    %2141 = vmatprep.subr.bf16.mxu0 0
    %2142 = vmatpush1.bf16.xpose.msra.mxu0 0
    %2143 = vmatprep.subr.bf16.mxu0 0
    %2144 = vmatpush1.bf16.xpose.msra.mxu0 0
    %2145 = vmatprep.subr.bf16.mxu0 0
    %2146 = vmatpush1.bf16.xpose.msra.mxu0 0
    %2147 = vmatprep.subr.bf16.mxu0 0
    %2148 = vmatpush1.bf16.xpose.msra.mxu0 0
    %2149 = vmatprep.mubr.bf16.mxu0 0
    %2150 = vmatmul.mubr.bf16.gmra.mrb[0].mxu0 %v2112
    %v2151 = vpop.f32.mrb[0].mxu0
    %v2152 = vadd.f32 %v65, %v2151
    %v2153 = vpop.f32.mrb[0].mxu0
    %v2154 = vpop.f32.mrb[0].mxu0
    %v2155 = vpop.f32.mrb[0].mxu0
    %2156 = vdwg.mxu0
    %2157 = vrot.lane.b32.xlu0 %v1444, 104
    %v2158 = vpop.permute.xlu0 %2157
    %2159 = vrot.lane.b32.xlu0 %v1446, 72
    %v2160 = vpop.permute.xlu0 %2159
    %v2162 = vsel %vm144, %v2158, 0
    %v2165 = vsel %vm144, %v2160, 0
    %2167 = vmatprep.subr.bf16.mxu0 0
    %2168 = vmatpush1.bf16.xpose.msra.mxu0 %v2165
    %2169 = vmatprep.subr.bf16.mxu0 0
    %2170 = vmatpush1.bf16.xpose.msra.mxu0 0
    %2171 = vmatprep.subr.bf16.mxu0 0
    %2172 = vmatpush1.bf16.xpose.msra.mxu0 0
    %2173 = vmatprep.subr.bf16.mxu0 0
    %2174 = vmatpush1.bf16.xpose.msra.mxu0 0
    %2175 = vmatprep.subr.bf16.mxu0 0
    %2176 = vmatpush1.bf16.xpose.msra.mxu0 0
    %2177 = vmatprep.subr.bf16.mxu0 0
    %2178 = vmatpush1.bf16.xpose.msra.mxu0 0
    %2179 = vmatprep.subr.bf16.mxu0 0
    %2180 = vmatpush1.bf16.xpose.msra.mxu0 0
    %2181 = vmatprep.subr.bf16.mxu0 0
    %2182 = vmatpush1.bf16.xpose.msra.mxu0 0
    %2183 = vmatprep.subr.bf16.mxu0 0
    %2184 = vmatpush1.bf16.xpose.msra.mxu0 0
    %2185 = vmatprep.subr.bf16.mxu0 0
    %2186 = vmatpush1.bf16.xpose.msra.mxu0 0
    %2187 = vmatprep.subr.bf16.mxu0 0
    %2188 = vmatpush1.bf16.xpose.msra.mxu0 0
    %2189 = vmatprep.subr.bf16.mxu0 0
    %2190 = vmatpush1.bf16.xpose.msra.mxu0 0
    %2191 = vmatprep.subr.bf16.mxu0 0
    %2192 = vmatpush1.bf16.xpose.msra.mxu0 0
    %2193 = vmatprep.subr.bf16.mxu0 0
    %2194 = vmatpush1.bf16.xpose.msra.mxu0 0
    %2195 = vmatprep.subr.bf16.mxu0 0
    %2196 = vmatpush1.bf16.xpose.msra.mxu0 0
    %2197 = vmatprep.subr.bf16.mxu0 0
    %2198 = vmatpush1.bf16.xpose.msra.mxu0 0
    %2199 = vmatprep.mubr.bf16.mxu0 0
    %2200 = vmatmul.mubr.bf16.gmra.mrb[0].mxu0 %v2162
    %v2201 = vpop.f32.mrb[0].mxu0
    %v2202 = vadd.f32 %v65, %v2201
    %v2203 = vpop.f32.mrb[0].mxu0
    %v2204 = vpop.f32.mrb[0].mxu0
    %v2205 = vpop.f32.mrb[0].mxu0
    %2206 = vdwg.mxu0
    %v2207 = vsel %vm144, %v2152, -inf
    %2208 = vmax.xlane.f32.xlu0 %v2207
    %v2209 = vpop.xlane.xlu0 %2208
    %v2210 = vsel %vm144, %v2202, -inf
    %2211 = vmax.xlane.f32.xlu0 %v2210
    %v2212 = vpop.xlane.xlu0 %2211
    %v2213 = vsub.f32 %v2152, %v2209
    %v2214 = vsub.f32 %v2202, %v2212
    %v2215 = vmul.f32 %v2213, 1.442695
    %v2216 = vpow.pop %v2215
    %v2217 = vmul.f32 %v2214, 1.442695
    %v2218 = vpow.pop %v2217
    %v2219 = vsel %vm144, %v2216, 0.0
    %2220 = vadd.xlane.f32.xlu0 %v2219
    %v2221 = vpop.xlane.xlu0 %2220
    %v2222 = vsel %vm144, %v2218, 0.0
    %2223 = vadd.xlane.f32.xlu0 %v2222
    %v2224 = vpop.xlane.xlu0 %2223
    %v2225 = vrcp.pop %v2221
    %v2226 = vrcp.pop %v2224
    %v2227 = vmul.f32 %v2216, %v2225
    %v2228 = vmul.f32 %v2218, %v2226
    %v2229 = vpack.c.bf16 %v2227, %v2227
    %v2230 = vpack.c.bf16 %v2228, %v2228
    %2231 = vrot.lane.b32.xlu0 %v1445, 40
    %v2232 = vpop.permute.xlu0 %2231
    %v2234 = vsel %vm144, %v2229, 0
    %v2237 = vsel %vm269, %v2232, 0
    %2239 = vmatprep.subr.bf16.mxu0 0
    %2240 = vmatpush1.bf16.msra.mxu0 %v2237
    %2241 = vmatprep.subr.bf16.mxu0 0
    %2242 = vmatpush1.bf16.msra.mxu0 0
    %2243 = vmatprep.subr.bf16.mxu0 0
    %2244 = vmatpush1.bf16.msra.mxu0 0
    %2245 = vmatprep.subr.bf16.mxu0 0
    %2246 = vmatpush1.bf16.msra.mxu0 0
    %2247 = vmatprep.subr.bf16.mxu0 0
    %2248 = vmatpush1.bf16.msra.mxu0 0
    %2249 = vmatprep.subr.bf16.mxu0 0
    %2250 = vmatpush1.bf16.msra.mxu0 0
    %2251 = vmatprep.subr.bf16.mxu0 0
    %2252 = vmatpush1.bf16.msra.mxu0 0
    %2253 = vmatprep.subr.bf16.mxu0 0
    %2254 = vmatpush1.bf16.msra.mxu0 0
    %2255 = vmatprep.subr.bf16.mxu0 0
    %2256 = vmatpush1.bf16.msra.mxu0 0
    %2257 = vmatprep.subr.bf16.mxu0 0
    %2258 = vmatpush1.bf16.msra.mxu0 0
    %2259 = vmatprep.subr.bf16.mxu0 0
    %2260 = vmatpush1.bf16.msra.mxu0 0
    %2261 = vmatprep.subr.bf16.mxu0 0
    %2262 = vmatpush1.bf16.msra.mxu0 0
    %2263 = vmatprep.subr.bf16.mxu0 0
    %2264 = vmatpush1.bf16.msra.mxu0 0
    %2265 = vmatprep.subr.bf16.mxu0 0
    %2266 = vmatpush1.bf16.msra.mxu0 0
    %2267 = vmatprep.subr.bf16.mxu0 0
    %2268 = vmatpush1.bf16.msra.mxu0 0
    %2269 = vmatprep.subr.bf16.mxu0 0
    %2270 = vmatpush1.bf16.msra.mxu0 0
    %2271 = vmatprep.mubr.bf16.mxu0 0
    %2272 = vmatmul.mubr.bf16.gmra.mrb[0].mxu0 %v2234
    %v2273 = vpop.f32.mrb[0].mxu0
    %v2274 = vadd.f32 0.0, %v2273
    %v2275 = vpop.f32.mrb[0].mxu0
    %v2276 = vpop.f32.mrb[0].mxu0
    %v2277 = vpop.f32.mrb[0].mxu0
    %2278 = vdwg.mxu0
    %2279 = vrot.lane.b32.xlu0 %v1446, 40
    %v2280 = vpop.permute.xlu0 %2279
    %v2282 = vsel %vm144, %v2230, 0
    %v2285 = vsel %vm269, %v2280, 0
    %2287 = vmatprep.subr.bf16.mxu0 0
    %2288 = vmatpush1.bf16.msra.mxu0 %v2285
    %2289 = vmatprep.subr.bf16.mxu0 0
    %2290 = vmatpush1.bf16.msra.mxu0 0
    %2291 = vmatprep.subr.bf16.mxu0 0
    %2292 = vmatpush1.bf16.msra.mxu0 0
    %2293 = vmatprep.subr.bf16.mxu0 0
    %2294 = vmatpush1.bf16.msra.mxu0 0
    %2295 = vmatprep.subr.bf16.mxu0 0
    %2296 = vmatpush1.bf16.msra.mxu0 0
    %2297 = vmatprep.subr.bf16.mxu0 0
    %2298 = vmatpush1.bf16.msra.mxu0 0
    %2299 = vmatprep.subr.bf16.mxu0 0
    %2300 = vmatpush1.bf16.msra.mxu0 0
    %2301 = vmatprep.subr.bf16.mxu0 0
    %2302 = vmatpush1.bf16.msra.mxu0 0
    %2303 = vmatprep.subr.bf16.mxu0 0
    %2304 = vmatpush1.bf16.msra.mxu0 0
    %2305 = vmatprep.subr.bf16.mxu0 0
    %2306 = vmatpush1.bf16.msra.mxu0 0
    %2307 = vmatprep.subr.bf16.mxu0 0
    %2308 = vmatpush1.bf16.msra.mxu0 0
    %2309 = vmatprep.subr.bf16.mxu0 0
    %2310 = vmatpush1.bf16.msra.mxu0 0
    %2311 = vmatprep.subr.bf16.mxu0 0
    %2312 = vmatpush1.bf16.msra.mxu0 0
    %2313 = vmatprep.subr.bf16.mxu0 0
    %2314 = vmatpush1.bf16.msra.mxu0 0
    %2315 = vmatprep.subr.bf16.mxu0 0
    %2316 = vmatpush1.bf16.msra.mxu0 0
    %2317 = vmatprep.subr.bf16.mxu0 0
    %2318 = vmatpush1.bf16.msra.mxu0 0
    %2319 = vmatprep.mubr.bf16.mxu0 0
    %2320 = vmatmul.mubr.bf16.gmra.mrb[0].mxu0 %v2282
    %v2321 = vpop.f32.mrb[0].mxu0
    %v2322 = vadd.f32 0.0, %v2321
    %v2323 = vpop.f32.mrb[0].mxu0
    %v2324 = vpop.f32.mrb[0].mxu0
    %v2325 = vpop.f32.mrb[0].mxu0
    %2326 = vdwg.mxu0
    %2329 = vrot.lane.b32.xlu0 %v1834, 8
    %v2330 = vpop.permute.xlu0 %2329
    %2331 = vrot.lane.b32.xlu0 %v1882, 8
    %v2332 = vpop.permute.xlu0 %2331
    %2337 = vrot.lane.b32.xlu0 %v2054, 16
    %v2338 = vpop.permute.xlu0 %2337
    %2339 = vrot.lane.b32.xlu0 %v2102, 16
    %v2340 = vpop.permute.xlu0 %2339
    %2345 = vrot.lane.b32.xlu0 %v2274, 24
    %v2346 = vpop.permute.xlu0 %2345
    %2347 = vrot.lane.b32.xlu0 %v2322, 24
    %v2348 = vpop.permute.xlu0 %2347
    %v2351 = vsel %vm144, %v1612, %v2330
    %v2352 = vsel %vm144, %v1660, %v2332
    %v2353 = vsel %vm1049, %v2351, %v2338
    %v2354 = vsel %vm1049, %v2352, %v2340
    %v2355 = vsel %vm1052, %v2353, %v2346
    %v2356 = vsel %vm1052, %v2354, %v2348
    %s2357 = scalar_lea.vmem %s3, 16
    %v2358 = vld [vmem:[%s2357] sm:$0xf]
    %v2359 = vld [vmem:[%s2357 + $0x4] sm:$0xf]
    %v2360 = vld [vmem:[%s2357 + $0x8] sm:$0xf]
    %v2361 = vld [vmem:[%s2357 + $0xc] sm:$0xf]
    %v2362 = vpack.c.bf16 %v2356, %v2355
    %s2363 = scalar_lea.vmem %s4, 1
    %v2364 = vld [vmem:[%s2363] sm:$0x1]
    %v2366 = vlaneseq
    %v2367 = vshrl.u32 %v2366, 7
    %v2368 = vsub.s32 0, %v2367
    %v2369 = vrot.slane %v2364, %v2368
    %v2375 = vunpack.c.l.b16 %v2358
    %v2376 = vunpack.c.l.b16 %v2359
    %v2377 = vunpack.c.l.b16 %v2360
    %v2378 = vunpack.c.l.b16 %v2361
    %v2379 = vpack.c.b16 %v2376, %v2375
    %v2380 = vpack.c.b16 %v2378, %v2377
    %v2384 = vsel %vm90, %v2362, 0
    %2386 = vmatprep.subr.bf16.mxu0 0
    %2387 = vmatpush1.bf16.msra.mxu0 %v2379
    %2388 = vmatprep.subr.bf16.mxu0 0
    %2389 = vmatpush1.bf16.msra.mxu0 %v2380
    %2390 = vmatprep.subr.bf16.mxu0 0
    %2391 = vmatpush1.bf16.msra.mxu0 0
    %2392 = vmatprep.subr.bf16.mxu0 0
    %2393 = vmatpush1.bf16.msra.mxu0 0
    %2394 = vmatprep.subr.bf16.mxu0 0
    %2395 = vmatpush1.bf16.msra.mxu0 0
    %2396 = vmatprep.subr.bf16.mxu0 0
    %2397 = vmatpush1.bf16.msra.mxu0 0
    %2398 = vmatprep.subr.bf16.mxu0 0
    %2399 = vmatpush1.bf16.msra.mxu0 0
    %2400 = vmatprep.subr.bf16.mxu0 0
    %2401 = vmatpush1.bf16.msra.mxu0 0
    %2402 = vmatprep.subr.bf16.mxu0 0
    %2403 = vmatpush1.bf16.msra.mxu0 0
    %2404 = vmatprep.subr.bf16.mxu0 0
    %2405 = vmatpush1.bf16.msra.mxu0 0
    %2406 = vmatprep.subr.bf16.mxu0 0
    %2407 = vmatpush1.bf16.msra.mxu0 0
    %2408 = vmatprep.subr.bf16.mxu0 0
    %2409 = vmatpush1.bf16.msra.mxu0 0
    %2410 = vmatprep.subr.bf16.mxu0 0
    %2411 = vmatpush1.bf16.msra.mxu0 0
    %2412 = vmatprep.subr.bf16.mxu0 0
    %2413 = vmatpush1.bf16.msra.mxu0 0
    %2414 = vmatprep.subr.bf16.mxu0 0
    %2415 = vmatpush1.bf16.msra.mxu0 0
    %2416 = vmatprep.subr.bf16.mxu0 0
    %2417 = vmatpush1.bf16.msra.mxu0 0
    %2418 = vmatprep.mubr.bf16.mxu0 0
    %2419 = vmatmul.mubr.bf16.gmra.mrb[0].mxu0 %v2384
    %v2420 = vpop.f32.mrb[0].mxu0
    %v2421 = vadd.f32 %v2369, %v2420
    %v2422 = vpop.f32.mrb[0].mxu0
    %v2423 = vpop.f32.mrb[0].mxu0
    %v2424 = vadd.f32 %v2369, %v2423
    %v2425 = vpop.f32.mrb[0].mxu0
    %2426 = vdwg.mxu0
    %v2427 = vadd.f32 %v1369, %v2421
    %v2428 = vadd.f32 %v1370, %v2424
    %s2429 = scalar_lea.vmem %s5, 1
    %v2430 = vld [vmem:[%s2429] sm:$0x1]
    %s2431 = scalar_lea.vmem %s6, 1
    %v2432 = vld [vmem:[%s2431] sm:$0x1]
    %v2433 = vsel %vm90, %v2427, 0.0
    %2434 = vadd.xlane.f32.xlu0 %v2433
    %v2435 = vpop.xlane.xlu0 %2434
    %v2436 = vsel %vm90, %v2428, 0.0
    %2437 = vadd.xlane.f32.xlu0 %v2436
    %v2438 = vpop.xlane.xlu0 %2437
    %v2439 = vmul.f32 %v2435, %v1133
    %v2440 = vmul.f32 %v2438, %v1133
    %v2441 = vsub.f32 %v2427, %v2439
    %v2442 = vsub.f32 %v2428, %v2440
    %v2443 = vmul.f32 %v2441, %v2441
    %v2444 = vmul.f32 %v2442, %v2442
    %v2445 = vsel %vm90, %v2443, 0.0
    %2446 = vadd.xlane.f32.xlu0 %v2445
    %v2447 = vpop.xlane.xlu0 %2446
    %v2448 = vsel %vm90, %v2444, 0.0
    %2449 = vadd.xlane.f32.xlu0 %v2448
    %v2450 = vpop.xlane.xlu0 %2449
    %v2451 = vmul.f32 %v2447, %v1133
    %v2452 = vmul.f32 %v2450, %v1133
    %v2453 = vadd.f32 %v2451, 1e-05
    %v2454 = vadd.f32 %v2452, 1e-05
    %v2455 = vrsqrt.pop %v2453
    %v2456 = vrsqrt.pop %v2454
    %v2457 = vmul.f32 %v2441, %v2455
    %v2458 = vmul.f32 %v2442, %v2456
    %v2460 = vlaneseq
    %v2461 = vshrl.u32 %v2460, 7
    %v2462 = vsub.s32 0, %v2461
    %v2463 = vrot.slane %v2430, %v2462
    %v2465 = vmul.f32 %v2457, %v2463
    %v2466 = vmul.f32 %v2458, %v2463
    %v2468 = vlaneseq
    %v2469 = vshrl.u32 %v2468, 7
    %v2470 = vsub.s32 0, %v2469
    %v2471 = vrot.slane %v2432, %v2470
    %v2473 = vadd.f32 %v2465, %v2471
    %v2474 = vadd.f32 %v2466, %v2471
    %s2475 = scalar_lea.vmem %s7, 16
    %v2476 = vld [vmem:[%s2475] sm:$0xf]
    %v2477 = vld [vmem:[%s2475 + $0x4] sm:$0xf]
    %v2478 = vld [vmem:[%s2475 + $0x8] sm:$0xf]
    %v2479 = vld [vmem:[%s2475 + $0xc] sm:$0xf]
    %v2480 = vpack.c.bf16 %v2474, %v2473
    %s2481 = scalar_lea.vmem %s8, 1
    %v2482 = vld [vmem:[%s2481] sm:$0x1]
    %v2484 = vlaneseq
    %v2485 = vshrl.u32 %v2484, 7
    %v2486 = vsub.s32 0, %v2485
    %v2487 = vrot.slane %v2482, %v2486
    %v2493 = vunpack.c.l.b16 %v2476
    %v2494 = vunpack.c.l.b16 %v2477
    %v2495 = vunpack.c.l.b16 %v2478
    %v2496 = vunpack.c.l.b16 %v2479
    %v2497 = vpack.c.b16 %v2494, %v2493
    %v2498 = vpack.c.b16 %v2496, %v2495
    %v2502 = vsel %vm90, %v2480, 0
    %2504 = vmatprep.subr.bf16.mxu0 0
    %2505 = vmatpush1.bf16.msra.mxu0 %v2497
    %2506 = vmatprep.subr.bf16.mxu0 0
    %2507 = vmatpush1.bf16.msra.mxu0 %v2498
    %2508 = vmatprep.subr.bf16.mxu0 0
    %2509 = vmatpush1.bf16.msra.mxu0 0
    %2510 = vmatprep.subr.bf16.mxu0 0
    %2511 = vmatpush1.bf16.msra.mxu0 0
    %2512 = vmatprep.subr.bf16.mxu0 0
    %2513 = vmatpush1.bf16.msra.mxu0 0
    %2514 = vmatprep.subr.bf16.mxu0 0
    %2515 = vmatpush1.bf16.msra.mxu0 0
    %2516 = vmatprep.subr.bf16.mxu0 0
    %2517 = vmatpush1.bf16.msra.mxu0 0
    %2518 = vmatprep.subr.bf16.mxu0 0
    %2519 = vmatpush1.bf16.msra.mxu0 0
    %2520 = vmatprep.subr.bf16.mxu0 0
    %2521 = vmatpush1.bf16.msra.mxu0 0
    %2522 = vmatprep.subr.bf16.mxu0 0
    %2523 = vmatpush1.bf16.msra.mxu0 0
    %2524 = vmatprep.subr.bf16.mxu0 0
    %2525 = vmatpush1.bf16.msra.mxu0 0
    %2526 = vmatprep.subr.bf16.mxu0 0
    %2527 = vmatpush1.bf16.msra.mxu0 0
    %2528 = vmatprep.subr.bf16.mxu0 0
    %2529 = vmatpush1.bf16.msra.mxu0 0
    %2530 = vmatprep.subr.bf16.mxu0 0
    %2531 = vmatpush1.bf16.msra.mxu0 0
    %2532 = vmatprep.subr.bf16.mxu0 0
    %2533 = vmatpush1.bf16.msra.mxu0 0
    %2534 = vmatprep.subr.bf16.mxu0 0
    %2535 = vmatpush1.bf16.msra.mxu0 0
    %2536 = vmatprep.mubr.bf16.mxu0 0
    %2537 = vmatmul.mubr.bf16.gmra.mrb[0].mxu0 %v2502
    %v2538 = vpop.f32.mrb[0].mxu0
    %v2539 = vadd.f32 %v2487, %v2538
    %v2540 = vpop.f32.mrb[0].mxu0
    %v2541 = vpop.f32.mrb[0].mxu0
    %v2542 = vadd.f32 %v2487, %v2541
    %v2543 = vpop.f32.mrb[0].mxu0
    %2544 = vdwg.mxu0
    %v2545 = vmax.f32 %v2539, 0.0
    %v2546 = vmax.f32 %v2542, 0.0
    %s2547 = scalar_lea.vmem %s9, 32
    %v2548 = vld [vmem:[%s2547] sm:$0xf]
    %v2549 = vld [vmem:[%s2547 + $0x4] sm:$0xf]
    %v2550 = vld [vmem:[%s2547 + $0x8] sm:$0xf]
    %v2551 = vld [vmem:[%s2547 + $0xc] sm:$0xf]
    %v2552 = vld [vmem:[%s2547 + $0x10] sm:$0xf]
    %v2553 = vld [vmem:[%s2547 + $0x14] sm:$0xf]
    %v2554 = vld [vmem:[%s2547 + $0x18] sm:$0xf]
    %v2555 = vld [vmem:[%s2547 + $0x1c] sm:$0xf]
    %v2556 = vpack.c.bf16 %v2546, %v2545
    %s2557 = scalar_lea.vmem %s10, 1
    %v2558 = vld [vmem:[%s2557] sm:$0x1]
    %v2560 = vlaneseq
    %v2561 = vshrl.u32 %v2560, 7
    %v2562 = vsub.s32 0, %v2561
    %v2563 = vrot.slane %v2558, %v2562
    %v2573 = vunpack.c.l.b16 %v2548
    %v2574 = vunpack.c.l.b16 %v2549
    %v2575 = vunpack.c.l.b16 %v2550
    %v2576 = vunpack.c.l.b16 %v2551
    %v2577 = vunpack.c.l.b16 %v2552
    %v2578 = vunpack.c.l.b16 %v2553
    %v2579 = vunpack.c.l.b16 %v2554
    %v2580 = vunpack.c.l.b16 %v2555
    %v2581 = vpack.c.b16 %v2574, %v2573
    %v2582 = vpack.c.b16 %v2576, %v2575
    %v2583 = vpack.c.b16 %v2578, %v2577
    %v2584 = vpack.c.b16 %v2580, %v2579
    %v2590 = vsel %vm1280, %v2556, 0
    %2592 = vmatprep.subr.bf16.mxu0 0
    %2593 = vmatpush1.bf16.msra.mxu0 %v2581
    %2594 = vmatprep.subr.bf16.mxu0 0
    %2595 = vmatpush1.bf16.msra.mxu0 %v2582
    %2596 = vmatprep.subr.bf16.mxu0 0
    %2597 = vmatpush1.bf16.msra.mxu0 %v2583
    %2598 = vmatprep.subr.bf16.mxu0 0
    %2599 = vmatpush1.bf16.msra.mxu0 %v2584
    %2600 = vmatprep.subr.bf16.mxu0 0
    %2601 = vmatpush1.bf16.msra.mxu0 0
    %2602 = vmatprep.subr.bf16.mxu0 0
    %2603 = vmatpush1.bf16.msra.mxu0 0
    %2604 = vmatprep.subr.bf16.mxu0 0
    %2605 = vmatpush1.bf16.msra.mxu0 0
    %2606 = vmatprep.subr.bf16.mxu0 0
    %2607 = vmatpush1.bf16.msra.mxu0 0
    %2608 = vmatprep.subr.bf16.mxu0 0
    %2609 = vmatpush1.bf16.msra.mxu0 0
    %2610 = vmatprep.subr.bf16.mxu0 0
    %2611 = vmatpush1.bf16.msra.mxu0 0
    %2612 = vmatprep.subr.bf16.mxu0 0
    %2613 = vmatpush1.bf16.msra.mxu0 0
    %2614 = vmatprep.subr.bf16.mxu0 0
    %2615 = vmatpush1.bf16.msra.mxu0 0
    %2616 = vmatprep.subr.bf16.mxu0 0
    %2617 = vmatpush1.bf16.msra.mxu0 0
    %2618 = vmatprep.subr.bf16.mxu0 0
    %2619 = vmatpush1.bf16.msra.mxu0 0
    %2620 = vmatprep.subr.bf16.mxu0 0
    %2621 = vmatpush1.bf16.msra.mxu0 0
    %2622 = vmatprep.subr.bf16.mxu0 0
    %2623 = vmatpush1.bf16.msra.mxu0 0
    %2624 = vmatprep.mubr.bf16.mxu0 0
    %2625 = vmatmul.mubr.bf16.gmra.mrb[0].mxu0 %v2590
    %v2626 = vpop.f32.mrb[0].mxu0
    %v2627 = vadd.f32 %v2563, %v2626
    %v2628 = vpop.f32.mrb[0].mxu0
    %v2629 = vpop.f32.mrb[0].mxu0
    %v2630 = vadd.f32 %v2563, %v2629
    %v2631 = vpop.f32.mrb[0].mxu0
    %2632 = vdwg.mxu0
    %v2633 = vadd.f32 %v2473, %v2627
    %v2634 = vadd.f32 %v2474, %v2630
    %s2635 = scalar_lea.vmem %s11, 1
    %v2636 = vld [vmem:[%s2635] sm:$0x1]
    %s2637 = scalar_lea.vmem %s12, 1
    %v2638 = vld [vmem:[%s2637] sm:$0x1]
    %v2639 = vsel %vm90, %v2633, 0.0
    %2640 = vadd.xlane.f32.xlu0 %v2639
    %v2641 = vpop.xlane.xlu0 %2640
    %v2642 = vsel %vm90, %v2634, 0.0
    %2643 = vadd.xlane.f32.xlu0 %v2642
    %v2644 = vpop.xlane.xlu0 %2643
    %v2645 = vmul.f32 %v2641, %v1133
    %v2646 = vmul.f32 %v2644, %v1133
    %v2647 = vsub.f32 %v2633, %v2645
    %v2648 = vsub.f32 %v2634, %v2646
    %v2649 = vmul.f32 %v2647, %v2647
    %v2650 = vmul.f32 %v2648, %v2648
    %v2651 = vsel %vm90, %v2649, 0.0
    %2652 = vadd.xlane.f32.xlu0 %v2651
    %v2653 = vpop.xlane.xlu0 %2652
    %v2654 = vsel %vm90, %v2650, 0.0
    %2655 = vadd.xlane.f32.xlu0 %v2654
    %v2656 = vpop.xlane.xlu0 %2655
    %v2657 = vmul.f32 %v2653, %v1133
    %v2658 = vmul.f32 %v2656, %v1133
    %v2659 = vadd.f32 %v2657, 1e-05
    %v2660 = vadd.f32 %v2658, 1e-05
    %v2661 = vrsqrt.pop %v2659
    %v2662 = vrsqrt.pop %v2660
    %v2663 = vmul.f32 %v2647, %v2661
    %v2664 = vmul.f32 %v2648, %v2662
    %v2666 = vlaneseq
    %v2667 = vshrl.u32 %v2666, 7
    %v2668 = vsub.s32 0, %v2667
    %v2669 = vrot.slane %v2636, %v2668
    %v2671 = vmul.f32 %v2663, %v2669
    %v2672 = vmul.f32 %v2664, %v2669
    %v2674 = vlaneseq
    %v2675 = vshrl.u32 %v2674, 7
    %v2676 = vsub.s32 0, %v2675
    %v2677 = vrot.slane %v2638, %v2676
    %v2679 = vadd.f32 %v2671, %v2677
    %v2680 = vadd.f32 %v2672, %v2677
    %v2681 = vld [vmem:[%s13] sm:$0x1]
    %v2682 = vld [vmem:[%s14] sm:$0x1]
    %v2683 = vsel %vm90, %v2679, 0.0
    %2684 = vadd.xlane.f32.xlu0 %v2683
    %v2685 = vpop.xlane.xlu0 %2684
    %v2686 = vsel %vm90, %v2680, 0.0
    %2687 = vadd.xlane.f32.xlu0 %v2686
    %v2688 = vpop.xlane.xlu0 %2687
    %v2689 = vmul.f32 %v2685, %v1133
    %v2690 = vmul.f32 %v2688, %v1133
    %v2691 = vsub.f32 %v2679, %v2689
    %v2692 = vsub.f32 %v2680, %v2690
    %v2693 = vmul.f32 %v2691, %v2691
    %v2694 = vmul.f32 %v2692, %v2692
    %v2695 = vsel %vm90, %v2693, 0.0
    %2696 = vadd.xlane.f32.xlu0 %v2695
    %v2697 = vpop.xlane.xlu0 %2696
    %v2698 = vsel %vm90, %v2694, 0.0
    %2699 = vadd.xlane.f32.xlu0 %v2698
    %v2700 = vpop.xlane.xlu0 %2699
    %v2701 = vmul.f32 %v2697, %v1133
    %v2702 = vmul.f32 %v2700, %v1133
    %v2703 = vadd.f32 %v2701, 1e-05
    %v2704 = vadd.f32 %v2702, 1e-05
    %v2705 = vrsqrt.pop %v2703
    %v2706 = vrsqrt.pop %v2704
    %v2707 = vmul.f32 %v2691, %v2705
    %v2708 = vmul.f32 %v2692, %v2706
    %v2710 = vlaneseq
    %v2711 = vshrl.u32 %v2710, 7
    %v2712 = vsub.s32 0, %v2711
    %v2713 = vrot.slane %v2681, %v2712
    %v2715 = vmul.f32 %v2707, %v2713
    %v2716 = vmul.f32 %v2708, %v2713
    %v2718 = vlaneseq
    %v2719 = vshrl.u32 %v2718, 7
    %v2720 = vsub.s32 0, %v2719
    %v2721 = vrot.slane %v2682, %v2720
    %v2723 = vadd.f32 %v2715, %v2721
    %v2724 = vadd.f32 %v2716, %v2721
    %v2725 = vld [vmem:[%s1] sm:$0xf]
    %v2726 = vld [vmem:[%s1 + $0x4] sm:$0xf]
    %v2727 = vld [vmem:[%s1 + $0x8] sm:$0xf]
    %v2728 = vld [vmem:[%s1 + $0xc] sm:$0xf]
    %v2729 = vpack.c.bf16 %v2724, %v2723
    %v2730 = vld [vmem:[%s2] sm:$0x1]
    %v2732 = vlaneseq
    %v2733 = vshrl.u32 %v2732, 7
    %v2734 = vsub.s32 0, %v2733
    %v2735 = vrot.slane %v2730, %v2734
    %v2741 = vunpack.c.l.b16 %v2725
    %v2742 = vunpack.c.l.b16 %v2726
    %v2743 = vunpack.c.l.b16 %v2727
    %v2744 = vunpack.c.l.b16 %v2728
    %v2745 = vpack.c.b16 %v2742, %v2741
    %v2746 = vpack.c.b16 %v2744, %v2743
    %v2750 = vsel %vm90, %v2729, 0
    %2752 = vmatprep.subr.bf16.mxu0 0
    %2753 = vmatpush1.bf16.msra.mxu0 %v2745
    %2754 = vmatprep.subr.bf16.mxu0 0
    %2755 = vmatpush1.bf16.msra.mxu0 %v2746
    %2756 = vmatprep.subr.bf16.mxu0 0
    %2757 = vmatpush1.bf16.msra.mxu0 0
    %2758 = vmatprep.subr.bf16.mxu0 0
    %2759 = vmatpush1.bf16.msra.mxu0 0
    %2760 = vmatprep.subr.bf16.mxu0 0
    %2761 = vmatpush1.bf16.msra.mxu0 0
    %2762 = vmatprep.subr.bf16.mxu0 0
    %2763 = vmatpush1.bf16.msra.mxu0 0
    %2764 = vmatprep.subr.bf16.mxu0 0
    %2765 = vmatpush1.bf16.msra.mxu0 0
    %2766 = vmatprep.subr.bf16.mxu0 0
    %2767 = vmatpush1.bf16.msra.mxu0 0
    %2768 = vmatprep.subr.bf16.mxu0 0
    %2769 = vmatpush1.bf16.msra.mxu0 0
    %2770 = vmatprep.subr.bf16.mxu0 0
    %2771 = vmatpush1.bf16.msra.mxu0 0
    %2772 = vmatprep.subr.bf16.mxu0 0
    %2773 = vmatpush1.bf16.msra.mxu0 0
    %2774 = vmatprep.subr.bf16.mxu0 0
    %2775 = vmatpush1.bf16.msra.mxu0 0
    %2776 = vmatprep.subr.bf16.mxu0 0
    %2777 = vmatpush1.bf16.msra.mxu0 0
    %2778 = vmatprep.subr.bf16.mxu0 0
    %2779 = vmatpush1.bf16.msra.mxu0 0
    %2780 = vmatprep.subr.bf16.mxu0 0
    %2781 = vmatpush1.bf16.msra.mxu0 0
    %2782 = vmatprep.subr.bf16.mxu0 0
    %2783 = vmatpush1.bf16.msra.mxu0 0
    %2784 = vmatprep.mubr.bf16.mxu0 0
    %2785 = vmatmul.mubr.bf16.gmra.mrb[0].mxu0 %v2750
    %v2786 = vpop.f32.mrb[0].mxu0
    %v2787 = vadd.f32 %v2735, %v2786
    %v2788 = vpop.f32.mrb[0].mxu0
    %v2789 = vpop.f32.mrb[0].mxu0
    %v2790 = vadd.f32 %v2735, %v2789
    %v2791 = vpop.f32.mrb[0].mxu0
    %2792 = vdwg.mxu0
    %v2793 = vmul.f32 %v2787, 0.35355338
    %v2794 = vmul.f32 %v2790, 0.35355338
    %v2795 = vpack.c.bf16 %v2793, %v2793
    %v2796 = vpack.c.bf16 %v2794, %v2794
    %v2797 = vpack.c.bf16 %v2787, %v2787
    %v2798 = vpack.c.bf16 %v2790, %v2790
    %2800 = vrot.lane.b32.xlu0 %v2797, 96
    %v2801 = vpop.permute.xlu0 %2800
    %v2803 = vsel %vm144, %v2795, 0
    %v2806 = vsel %vm144, %v2801, 0
    %2808 = vmatprep.subr.bf16.mxu0 0
    %2809 = vmatpush1.bf16.xpose.msra.mxu0 %v2806
    %2810 = vmatprep.subr.bf16.mxu0 0
    %2811 = vmatpush1.bf16.xpose.msra.mxu0 0
    %2812 = vmatprep.subr.bf16.mxu0 0
    %2813 = vmatpush1.bf16.xpose.msra.mxu0 0
    %2814 = vmatprep.subr.bf16.mxu0 0
    %2815 = vmatpush1.bf16.xpose.msra.mxu0 0
    %2816 = vmatprep.subr.bf16.mxu0 0
    %2817 = vmatpush1.bf16.xpose.msra.mxu0 0
    %2818 = vmatprep.subr.bf16.mxu0 0
    %2819 = vmatpush1.bf16.xpose.msra.mxu0 0
    %2820 = vmatprep.subr.bf16.mxu0 0
    %2821 = vmatpush1.bf16.xpose.msra.mxu0 0
    %2822 = vmatprep.subr.bf16.mxu0 0
    %2823 = vmatpush1.bf16.xpose.msra.mxu0 0
    %2824 = vmatprep.subr.bf16.mxu0 0
    %2825 = vmatpush1.bf16.xpose.msra.mxu0 0
    %2826 = vmatprep.subr.bf16.mxu0 0
    %2827 = vmatpush1.bf16.xpose.msra.mxu0 0
    %2828 = vmatprep.subr.bf16.mxu0 0
    %2829 = vmatpush1.bf16.xpose.msra.mxu0 0
    %2830 = vmatprep.subr.bf16.mxu0 0
    %2831 = vmatpush1.bf16.xpose.msra.mxu0 0
    %2832 = vmatprep.subr.bf16.mxu0 0
    %2833 = vmatpush1.bf16.xpose.msra.mxu0 0
    %2834 = vmatprep.subr.bf16.mxu0 0
    %2835 = vmatpush1.bf16.xpose.msra.mxu0 0
    %2836 = vmatprep.subr.bf16.mxu0 0
    %2837 = vmatpush1.bf16.xpose.msra.mxu0 0
    %2838 = vmatprep.subr.bf16.mxu0 0
    %2839 = vmatpush1.bf16.xpose.msra.mxu0 0
    %2840 = vmatprep.mubr.bf16.mxu0 0
    %2841 = vmatmul.mubr.bf16.gmra.mrb[0].mxu0 %v2803
    %v2842 = vpop.f32.mrb[0].mxu0
    %v2843 = vadd.f32 %v65, %v2842
    %v2844 = vpop.f32.mrb[0].mxu0
    %v2845 = vpop.f32.mrb[0].mxu0
    %v2846 = vpop.f32.mrb[0].mxu0
    %2847 = vdwg.mxu0
    %2849 = vrot.lane.b32.xlu0 %v2798, 96
    %v2850 = vpop.permute.xlu0 %2849
    %v2852 = vsel %vm144, %v2796, 0
    %v2855 = vsel %vm144, %v2850, 0
    %2857 = vmatprep.subr.bf16.mxu0 0
    %2858 = vmatpush1.bf16.xpose.msra.mxu0 %v2855
    %2859 = vmatprep.subr.bf16.mxu0 0
    %2860 = vmatpush1.bf16.xpose.msra.mxu0 0
    %2861 = vmatprep.subr.bf16.mxu0 0
    %2862 = vmatpush1.bf16.xpose.msra.mxu0 0
    %2863 = vmatprep.subr.bf16.mxu0 0
    %2864 = vmatpush1.bf16.xpose.msra.mxu0 0
    %2865 = vmatprep.subr.bf16.mxu0 0
    %2866 = vmatpush1.bf16.xpose.msra.mxu0 0
    %2867 = vmatprep.subr.bf16.mxu0 0
    %2868 = vmatpush1.bf16.xpose.msra.mxu0 0
    %2869 = vmatprep.subr.bf16.mxu0 0
    %2870 = vmatpush1.bf16.xpose.msra.mxu0 0
    %2871 = vmatprep.subr.bf16.mxu0 0
    %2872 = vmatpush1.bf16.xpose.msra.mxu0 0
    %2873 = vmatprep.subr.bf16.mxu0 0
    %2874 = vmatpush1.bf16.xpose.msra.mxu0 0
    %2875 = vmatprep.subr.bf16.mxu0 0
    %2876 = vmatpush1.bf16.xpose.msra.mxu0 0
    %2877 = vmatprep.subr.bf16.mxu0 0
    %2878 = vmatpush1.bf16.xpose.msra.mxu0 0
    %2879 = vmatprep.subr.bf16.mxu0 0
    %2880 = vmatpush1.bf16.xpose.msra.mxu0 0
    %2881 = vmatprep.subr.bf16.mxu0 0
    %2882 = vmatpush1.bf16.xpose.msra.mxu0 0
    %2883 = vmatprep.subr.bf16.mxu0 0
    %2884 = vmatpush1.bf16.xpose.msra.mxu0 0
    %2885 = vmatprep.subr.bf16.mxu0 0
    %2886 = vmatpush1.bf16.xpose.msra.mxu0 0
    %2887 = vmatprep.subr.bf16.mxu0 0
    %2888 = vmatpush1.bf16.xpose.msra.mxu0 0
    %2889 = vmatprep.mubr.bf16.mxu0 0
    %2890 = vmatmul.mubr.bf16.gmra.mrb[0].mxu0 %v2852
    %v2891 = vpop.f32.mrb[0].mxu0
    %v2892 = vadd.f32 %v65, %v2891
    %v2893 = vpop.f32.mrb[0].mxu0
    %v2894 = vpop.f32.mrb[0].mxu0
    %v2895 = vpop.f32.mrb[0].mxu0
    %2896 = vdwg.mxu0
    %v2897 = vsel %vm144, %v2843, -inf
    %2898 = vmax.xlane.f32.xlu0 %v2897
    %v2899 = vpop.xlane.xlu0 %2898
    %v2900 = vsel %vm144, %v2892, -inf
    %2901 = vmax.xlane.f32.xlu0 %v2900
    %v2902 = vpop.xlane.xlu0 %2901
    %v2903 = vsub.f32 %v2843, %v2899
    %v2904 = vsub.f32 %v2892, %v2902
    %v2905 = vmul.f32 %v2903, 1.442695
    %v2906 = vpow.pop %v2905
    %v2907 = vmul.f32 %v2904, 1.442695
    %v2908 = vpow.pop %v2907
    %v2909 = vsel %vm144, %v2906, 0.0
    %2910 = vadd.xlane.f32.xlu0 %v2909
    %v2911 = vpop.xlane.xlu0 %2910
    %v2912 = vsel %vm144, %v2908, 0.0
    %2913 = vadd.xlane.f32.xlu0 %v2912
    %v2914 = vpop.xlane.xlu0 %2913
    %v2915 = vrcp.pop %v2911
    %v2916 = vrcp.pop %v2914
    %v2917 = vmul.f32 %v2906, %v2915
    %v2918 = vmul.f32 %v2908, %v2916
    %v2919 = vpack.c.bf16 %v2917, %v2917
    %v2920 = vpack.c.bf16 %v2918, %v2918
    %2921 = vrot.lane.b32.xlu0 %v2797, 64
    %v2922 = vpop.permute.xlu0 %2921
    %v2924 = vsel %vm144, %v2919, 0
    %v2927 = vsel %vm269, %v2922, 0
    %2929 = vmatprep.subr.bf16.mxu0 0
    %2930 = vmatpush1.bf16.msra.mxu0 %v2927
    %2931 = vmatprep.subr.bf16.mxu0 0
    %2932 = vmatpush1.bf16.msra.mxu0 0
    %2933 = vmatprep.subr.bf16.mxu0 0
    %2934 = vmatpush1.bf16.msra.mxu0 0
    %2935 = vmatprep.subr.bf16.mxu0 0
    %2936 = vmatpush1.bf16.msra.mxu0 0
    %2937 = vmatprep.subr.bf16.mxu0 0
    %2938 = vmatpush1.bf16.msra.mxu0 0
    %2939 = vmatprep.subr.bf16.mxu0 0
    %2940 = vmatpush1.bf16.msra.mxu0 0
    %2941 = vmatprep.subr.bf16.mxu0 0
    %2942 = vmatpush1.bf16.msra.mxu0 0
    %2943 = vmatprep.subr.bf16.mxu0 0
    %2944 = vmatpush1.bf16.msra.mxu0 0
    %2945 = vmatprep.subr.bf16.mxu0 0
    %2946 = vmatpush1.bf16.msra.mxu0 0
    %2947 = vmatprep.subr.bf16.mxu0 0
    %2948 = vmatpush1.bf16.msra.mxu0 0
    %2949 = vmatprep.subr.bf16.mxu0 0
    %2950 = vmatpush1.bf16.msra.mxu0 0
    %2951 = vmatprep.subr.bf16.mxu0 0
    %2952 = vmatpush1.bf16.msra.mxu0 0
    %2953 = vmatprep.subr.bf16.mxu0 0
    %2954 = vmatpush1.bf16.msra.mxu0 0
    %2955 = vmatprep.subr.bf16.mxu0 0
    %2956 = vmatpush1.bf16.msra.mxu0 0
    %2957 = vmatprep.subr.bf16.mxu0 0
    %2958 = vmatpush1.bf16.msra.mxu0 0
    %2959 = vmatprep.subr.bf16.mxu0 0
    %2960 = vmatpush1.bf16.msra.mxu0 0
    %2961 = vmatprep.mubr.bf16.mxu0 0
    %2962 = vmatmul.mubr.bf16.gmra.mrb[0].mxu0 %v2924
    %v2963 = vpop.f32.mrb[0].mxu0
    %v2964 = vadd.f32 0.0, %v2963
    %v2965 = vpop.f32.mrb[0].mxu0
    %v2966 = vpop.f32.mrb[0].mxu0
    %v2967 = vpop.f32.mrb[0].mxu0
    %2968 = vdwg.mxu0
    %2969 = vrot.lane.b32.xlu0 %v2798, 64
    %v2970 = vpop.permute.xlu0 %2969
    %v2972 = vsel %vm144, %v2920, 0
    %v2975 = vsel %vm269, %v2970, 0
    %2977 = vmatprep.subr.bf16.mxu0 0
    %2978 = vmatpush1.bf16.msra.mxu0 %v2975
    %2979 = vmatprep.subr.bf16.mxu0 0
    %2980 = vmatpush1.bf16.msra.mxu0 0
    %2981 = vmatprep.subr.bf16.mxu0 0
    %2982 = vmatpush1.bf16.msra.mxu0 0
    %2983 = vmatprep.subr.bf16.mxu0 0
    %2984 = vmatpush1.bf16.msra.mxu0 0
    %2985 = vmatprep.subr.bf16.mxu0 0
    %2986 = vmatpush1.bf16.msra.mxu0 0
    %2987 = vmatprep.subr.bf16.mxu0 0
    %2988 = vmatpush1.bf16.msra.mxu0 0
    %2989 = vmatprep.subr.bf16.mxu0 0
    %2990 = vmatpush1.bf16.msra.mxu0 0
    %2991 = vmatprep.subr.bf16.mxu0 0
    %2992 = vmatpush1.bf16.msra.mxu0 0
    %2993 = vmatprep.subr.bf16.mxu0 0
    %2994 = vmatpush1.bf16.msra.mxu0 0
    %2995 = vmatprep.subr.bf16.mxu0 0
    %2996 = vmatpush1.bf16.msra.mxu0 0
    %2997 = vmatprep.subr.bf16.mxu0 0
    %2998 = vmatpush1.bf16.msra.mxu0 0
    %2999 = vmatprep.subr.bf16.mxu0 0
    %3000 = vmatpush1.bf16.msra.mxu0 0
    %3001 = vmatprep.subr.bf16.mxu0 0
    %3002 = vmatpush1.bf16.msra.mxu0 0
    %3003 = vmatprep.subr.bf16.mxu0 0
    %3004 = vmatpush1.bf16.msra.mxu0 0
    %3005 = vmatprep.subr.bf16.mxu0 0
    %3006 = vmatpush1.bf16.msra.mxu0 0
    %3007 = vmatprep.subr.bf16.mxu0 0
    %3008 = vmatpush1.bf16.msra.mxu0 0
    %3009 = vmatprep.mubr.bf16.mxu0 0
    %3010 = vmatmul.mubr.bf16.gmra.mrb[0].mxu0 %v2972
    %v3011 = vpop.f32.mrb[0].mxu0
    %v3012 = vadd.f32 0.0, %v3011
    %v3013 = vpop.f32.mrb[0].mxu0
    %v3014 = vpop.f32.mrb[0].mxu0
    %v3015 = vpop.f32.mrb[0].mxu0
    %3016 = vdwg.mxu0
    %3018 = vrot.lane.b32.xlu0 %v2795, 120
    %v3019 = vpop.permute.xlu0 %3018
    %3020 = vrot.lane.b32.xlu0 %v2797, 88
    %v3021 = vpop.permute.xlu0 %3020
    %v3023 = vsel %vm144, %v3019, 0
    %v3026 = vsel %vm144, %v3021, 0
    %3028 = vmatprep.subr.bf16.mxu0 0
    %3029 = vmatpush1.bf16.xpose.msra.mxu0 %v3026
    %3030 = vmatprep.subr.bf16.mxu0 0
    %3031 = vmatpush1.bf16.xpose.msra.mxu0 0
    %3032 = vmatprep.subr.bf16.mxu0 0
    %3033 = vmatpush1.bf16.xpose.msra.mxu0 0
    %3034 = vmatprep.subr.bf16.mxu0 0
    %3035 = vmatpush1.bf16.xpose.msra.mxu0 0
    %3036 = vmatprep.subr.bf16.mxu0 0
    %3037 = vmatpush1.bf16.xpose.msra.mxu0 0
    %3038 = vmatprep.subr.bf16.mxu0 0
    %3039 = vmatpush1.bf16.xpose.msra.mxu0 0
    %3040 = vmatprep.subr.bf16.mxu0 0
    %3041 = vmatpush1.bf16.xpose.msra.mxu0 0
    %3042 = vmatprep.subr.bf16.mxu0 0
    %3043 = vmatpush1.bf16.xpose.msra.mxu0 0
    %3044 = vmatprep.subr.bf16.mxu0 0
    %3045 = vmatpush1.bf16.xpose.msra.mxu0 0
    %3046 = vmatprep.subr.bf16.mxu0 0
    %3047 = vmatpush1.bf16.xpose.msra.mxu0 0
    %3048 = vmatprep.subr.bf16.mxu0 0
    %3049 = vmatpush1.bf16.xpose.msra.mxu0 0
    %3050 = vmatprep.subr.bf16.mxu0 0
    %3051 = vmatpush1.bf16.xpose.msra.mxu0 0
    %3052 = vmatprep.subr.bf16.mxu0 0
    %3053 = vmatpush1.bf16.xpose.msra.mxu0 0
    %3054 = vmatprep.subr.bf16.mxu0 0
    %3055 = vmatpush1.bf16.xpose.msra.mxu0 0
    %3056 = vmatprep.subr.bf16.mxu0 0
    %3057 = vmatpush1.bf16.xpose.msra.mxu0 0
    %3058 = vmatprep.subr.bf16.mxu0 0
    %3059 = vmatpush1.bf16.xpose.msra.mxu0 0
    %3060 = vmatprep.mubr.bf16.mxu0 0
    %3061 = vmatmul.mubr.bf16.gmra.mrb[0].mxu0 %v3023
    %v3062 = vpop.f32.mrb[0].mxu0
    %v3063 = vadd.f32 %v65, %v3062
    %v3064 = vpop.f32.mrb[0].mxu0
    %v3065 = vpop.f32.mrb[0].mxu0
    %v3066 = vpop.f32.mrb[0].mxu0
    %3067 = vdwg.mxu0
    %3069 = vrot.lane.b32.xlu0 %v2796, 120
    %v3070 = vpop.permute.xlu0 %3069
    %3071 = vrot.lane.b32.xlu0 %v2798, 88
    %v3072 = vpop.permute.xlu0 %3071
    %v3074 = vsel %vm144, %v3070, 0
    %v3077 = vsel %vm144, %v3072, 0
    %3079 = vmatprep.subr.bf16.mxu0 0
    %3080 = vmatpush1.bf16.xpose.msra.mxu0 %v3077
    %3081 = vmatprep.subr.bf16.mxu0 0
    %3082 = vmatpush1.bf16.xpose.msra.mxu0 0
    %3083 = vmatprep.subr.bf16.mxu0 0
    %3084 = vmatpush1.bf16.xpose.msra.mxu0 0
    %3085 = vmatprep.subr.bf16.mxu0 0
    %3086 = vmatpush1.bf16.xpose.msra.mxu0 0
    %3087 = vmatprep.subr.bf16.mxu0 0
    %3088 = vmatpush1.bf16.xpose.msra.mxu0 0
    %3089 = vmatprep.subr.bf16.mxu0 0
    %3090 = vmatpush1.bf16.xpose.msra.mxu0 0
    %3091 = vmatprep.subr.bf16.mxu0 0
    %3092 = vmatpush1.bf16.xpose.msra.mxu0 0
    %3093 = vmatprep.subr.bf16.mxu0 0
    %3094 = vmatpush1.bf16.xpose.msra.mxu0 0
    %3095 = vmatprep.subr.bf16.mxu0 0
    %3096 = vmatpush1.bf16.xpose.msra.mxu0 0
    %3097 = vmatprep.subr.bf16.mxu0 0
    %3098 = vmatpush1.bf16.xpose.msra.mxu0 0
    %3099 = vmatprep.subr.bf16.mxu0 0
    %3100 = vmatpush1.bf16.xpose.msra.mxu0 0
    %3101 = vmatprep.subr.bf16.mxu0 0
    %3102 = vmatpush1.bf16.xpose.msra.mxu0 0
    %3103 = vmatprep.subr.bf16.mxu0 0
    %3104 = vmatpush1.bf16.xpose.msra.mxu0 0
    %3105 = vmatprep.subr.bf16.mxu0 0
    %3106 = vmatpush1.bf16.xpose.msra.mxu0 0
    %3107 = vmatprep.subr.bf16.mxu0 0
    %3108 = vmatpush1.bf16.xpose.msra.mxu0 0
    %3109 = vmatprep.subr.bf16.mxu0 0
    %3110 = vmatpush1.bf16.xpose.msra.mxu0 0
    %3111 = vmatprep.mubr.bf16.mxu0 0
    %3112 = vmatmul.mubr.bf16.gmra.mrb[0].mxu0 %v3074
    %v3113 = vpop.f32.mrb[0].mxu0
    %v3114 = vadd.f32 %v65, %v3113
    %v3115 = vpop.f32.mrb[0].mxu0
    %v3116 = vpop.f32.mrb[0].mxu0
    %v3117 = vpop.f32.mrb[0].mxu0
    %3118 = vdwg.mxu0
    %v3119 = vsel %vm144, %v3063, -inf
    %3120 = vmax.xlane.f32.xlu0 %v3119
    %v3121 = vpop.xlane.xlu0 %3120
    %v3122 = vsel %vm144, %v3114, -inf
    %3123 = vmax.xlane.f32.xlu0 %v3122
    %v3124 = vpop.xlane.xlu0 %3123
    %v3125 = vsub.f32 %v3063, %v3121
    %v3126 = vsub.f32 %v3114, %v3124
    %v3127 = vmul.f32 %v3125, 1.442695
    %v3128 = vpow.pop %v3127
    %v3129 = vmul.f32 %v3126, 1.442695
    %v3130 = vpow.pop %v3129
    %v3131 = vsel %vm144, %v3128, 0.0
    %3132 = vadd.xlane.f32.xlu0 %v3131
    %v3133 = vpop.xlane.xlu0 %3132
    %v3134 = vsel %vm144, %v3130, 0.0
    %3135 = vadd.xlane.f32.xlu0 %v3134
    %v3136 = vpop.xlane.xlu0 %3135
    %v3137 = vrcp.pop %v3133
    %v3138 = vrcp.pop %v3136
    %v3139 = vmul.f32 %v3128, %v3137
    %v3140 = vmul.f32 %v3130, %v3138
    %v3141 = vpack.c.bf16 %v3139, %v3139
    %v3142 = vpack.c.bf16 %v3140, %v3140
    %3143 = vrot.lane.b32.xlu0 %v2797, 56
    %v3144 = vpop.permute.xlu0 %3143
    %v3146 = vsel %vm144, %v3141, 0
    %v3149 = vsel %vm269, %v3144, 0
    %3151 = vmatprep.subr.bf16.mxu0 0
    %3152 = vmatpush1.bf16.msra.mxu0 %v3149
    %3153 = vmatprep.subr.bf16.mxu0 0
    %3154 = vmatpush1.bf16.msra.mxu0 0
    %3155 = vmatprep.subr.bf16.mxu0 0
    %3156 = vmatpush1.bf16.msra.mxu0 0
    %3157 = vmatprep.subr.bf16.mxu0 0
    %3158 = vmatpush1.bf16.msra.mxu0 0
    %3159 = vmatprep.subr.bf16.mxu0 0
    %3160 = vmatpush1.bf16.msra.mxu0 0
    %3161 = vmatprep.subr.bf16.mxu0 0
    %3162 = vmatpush1.bf16.msra.mxu0 0
    %3163 = vmatprep.subr.bf16.mxu0 0
    %3164 = vmatpush1.bf16.msra.mxu0 0
    %3165 = vmatprep.subr.bf16.mxu0 0
    %3166 = vmatpush1.bf16.msra.mxu0 0
    %3167 = vmatprep.subr.bf16.mxu0 0
    %3168 = vmatpush1.bf16.msra.mxu0 0
    %3169 = vmatprep.subr.bf16.mxu0 0
    %3170 = vmatpush1.bf16.msra.mxu0 0
    %3171 = vmatprep.subr.bf16.mxu0 0
    %3172 = vmatpush1.bf16.msra.mxu0 0
    %3173 = vmatprep.subr.bf16.mxu0 0
    %3174 = vmatpush1.bf16.msra.mxu0 0
    %3175 = vmatprep.subr.bf16.mxu0 0
    %3176 = vmatpush1.bf16.msra.mxu0 0
    %3177 = vmatprep.subr.bf16.mxu0 0
    %3178 = vmatpush1.bf16.msra.mxu0 0
    %3179 = vmatprep.subr.bf16.mxu0 0
    %3180 = vmatpush1.bf16.msra.mxu0 0
    %3181 = vmatprep.subr.bf16.mxu0 0
    %3182 = vmatpush1.bf16.msra.mxu0 0
    %3183 = vmatprep.mubr.bf16.mxu0 0
    %3184 = vmatmul.mubr.bf16.gmra.mrb[0].mxu0 %v3146
    %v3185 = vpop.f32.mrb[0].mxu0
    %v3186 = vadd.f32 0.0, %v3185
    %v3187 = vpop.f32.mrb[0].mxu0
    %v3188 = vpop.f32.mrb[0].mxu0
    %v3189 = vpop.f32.mrb[0].mxu0
    %3190 = vdwg.mxu0
    %3191 = vrot.lane.b32.xlu0 %v2798, 56
    %v3192 = vpop.permute.xlu0 %3191
    %v3194 = vsel %vm144, %v3142, 0
    %v3197 = vsel %vm269, %v3192, 0
    %3199 = vmatprep.subr.bf16.mxu0 0
    %3200 = vmatpush1.bf16.msra.mxu0 %v3197
    %3201 = vmatprep.subr.bf16.mxu0 0
    %3202 = vmatpush1.bf16.msra.mxu0 0
    %3203 = vmatprep.subr.bf16.mxu0 0
    %3204 = vmatpush1.bf16.msra.mxu0 0
    %3205 = vmatprep.subr.bf16.mxu0 0
    %3206 = vmatpush1.bf16.msra.mxu0 0
    %3207 = vmatprep.subr.bf16.mxu0 0
    %3208 = vmatpush1.bf16.msra.mxu0 0
    %3209 = vmatprep.subr.bf16.mxu0 0
    %3210 = vmatpush1.bf16.msra.mxu0 0
    %3211 = vmatprep.subr.bf16.mxu0 0
    %3212 = vmatpush1.bf16.msra.mxu0 0
    %3213 = vmatprep.subr.bf16.mxu0 0
    %3214 = vmatpush1.bf16.msra.mxu0 0
    %3215 = vmatprep.subr.bf16.mxu0 0
    %3216 = vmatpush1.bf16.msra.mxu0 0
    %3217 = vmatprep.subr.bf16.mxu0 0
    %3218 = vmatpush1.bf16.msra.mxu0 0
    %3219 = vmatprep.subr.bf16.mxu0 0
    %3220 = vmatpush1.bf16.msra.mxu0 0
    %3221 = vmatprep.subr.bf16.mxu0 0
    %3222 = vmatpush1.bf16.msra.mxu0 0
    %3223 = vmatprep.subr.bf16.mxu0 0
    %3224 = vmatpush1.bf16.msra.mxu0 0
    %3225 = vmatprep.subr.bf16.mxu0 0
    %3226 = vmatpush1.bf16.msra.mxu0 0
    %3227 = vmatprep.subr.bf16.mxu0 0
    %3228 = vmatpush1.bf16.msra.mxu0 0
    %3229 = vmatprep.subr.bf16.mxu0 0
    %3230 = vmatpush1.bf16.msra.mxu0 0
    %3231 = vmatprep.mubr.bf16.mxu0 0
    %3232 = vmatmul.mubr.bf16.gmra.mrb[0].mxu0 %v3194
    %v3233 = vpop.f32.mrb[0].mxu0
    %v3234 = vadd.f32 0.0, %v3233
    %v3235 = vpop.f32.mrb[0].mxu0
    %v3236 = vpop.f32.mrb[0].mxu0
    %v3237 = vpop.f32.mrb[0].mxu0
    %3238 = vdwg.mxu0
    %3239 = vrot.lane.b32.xlu0 %v2795, 112
    %v3240 = vpop.permute.xlu0 %3239
    %3241 = vrot.lane.b32.xlu0 %v2797, 80
    %v3242 = vpop.permute.xlu0 %3241
    %v3244 = vsel %vm144, %v3240, 0
    %v3247 = vsel %vm144, %v3242, 0
    %3249 = vmatprep.subr.bf16.mxu0 0
    %3250 = vmatpush1.bf16.xpose.msra.mxu0 %v3247
    %3251 = vmatprep.subr.bf16.mxu0 0
    %3252 = vmatpush1.bf16.xpose.msra.mxu0 0
    %3253 = vmatprep.subr.bf16.mxu0 0
    %3254 = vmatpush1.bf16.xpose.msra.mxu0 0
    %3255 = vmatprep.subr.bf16.mxu0 0
    %3256 = vmatpush1.bf16.xpose.msra.mxu0 0
    %3257 = vmatprep.subr.bf16.mxu0 0
    %3258 = vmatpush1.bf16.xpose.msra.mxu0 0
    %3259 = vmatprep.subr.bf16.mxu0 0
    %3260 = vmatpush1.bf16.xpose.msra.mxu0 0
    %3261 = vmatprep.subr.bf16.mxu0 0
    %3262 = vmatpush1.bf16.xpose.msra.mxu0 0
    %3263 = vmatprep.subr.bf16.mxu0 0
    %3264 = vmatpush1.bf16.xpose.msra.mxu0 0
    %3265 = vmatprep.subr.bf16.mxu0 0
    %3266 = vmatpush1.bf16.xpose.msra.mxu0 0
    %3267 = vmatprep.subr.bf16.mxu0 0
    %3268 = vmatpush1.bf16.xpose.msra.mxu0 0
    %3269 = vmatprep.subr.bf16.mxu0 0
    %3270 = vmatpush1.bf16.xpose.msra.mxu0 0
    %3271 = vmatprep.subr.bf16.mxu0 0
    %3272 = vmatpush1.bf16.xpose.msra.mxu0 0
    %3273 = vmatprep.subr.bf16.mxu0 0
    %3274 = vmatpush1.bf16.xpose.msra.mxu0 0
    %3275 = vmatprep.subr.bf16.mxu0 0
    %3276 = vmatpush1.bf16.xpose.msra.mxu0 0
    %3277 = vmatprep.subr.bf16.mxu0 0
    %3278 = vmatpush1.bf16.xpose.msra.mxu0 0
    %3279 = vmatprep.subr.bf16.mxu0 0
    %3280 = vmatpush1.bf16.xpose.msra.mxu0 0
    %3281 = vmatprep.mubr.bf16.mxu0 0
    %3282 = vmatmul.mubr.bf16.gmra.mrb[0].mxu0 %v3244
    %v3283 = vpop.f32.mrb[0].mxu0
    %v3284 = vadd.f32 %v65, %v3283
    %v3285 = vpop.f32.mrb[0].mxu0
    %v3286 = vpop.f32.mrb[0].mxu0
    %v3287 = vpop.f32.mrb[0].mxu0
    %3288 = vdwg.mxu0
    %3289 = vrot.lane.b32.xlu0 %v2796, 112
    %v3290 = vpop.permute.xlu0 %3289
    %3291 = vrot.lane.b32.xlu0 %v2798, 80
    %v3292 = vpop.permute.xlu0 %3291
    %v3294 = vsel %vm144, %v3290, 0
    %v3297 = vsel %vm144, %v3292, 0
    %3299 = vmatprep.subr.bf16.mxu0 0
    %3300 = vmatpush1.bf16.xpose.msra.mxu0 %v3297
    %3301 = vmatprep.subr.bf16.mxu0 0
    %3302 = vmatpush1.bf16.xpose.msra.mxu0 0
    %3303 = vmatprep.subr.bf16.mxu0 0
    %3304 = vmatpush1.bf16.xpose.msra.mxu0 0
    %3305 = vmatprep.subr.bf16.mxu0 0
    %3306 = vmatpush1.bf16.xpose.msra.mxu0 0
    %3307 = vmatprep.subr.bf16.mxu0 0
    %3308 = vmatpush1.bf16.xpose.msra.mxu0 0
    %3309 = vmatprep.subr.bf16.mxu0 0
    %3310 = vmatpush1.bf16.xpose.msra.mxu0 0
    %3311 = vmatprep.subr.bf16.mxu0 0
    %3312 = vmatpush1.bf16.xpose.msra.mxu0 0
    %3313 = vmatprep.subr.bf16.mxu0 0
    %3314 = vmatpush1.bf16.xpose.msra.mxu0 0
    %3315 = vmatprep.subr.bf16.mxu0 0
    %3316 = vmatpush1.bf16.xpose.msra.mxu0 0
    %3317 = vmatprep.subr.bf16.mxu0 0
    %3318 = vmatpush1.bf16.xpose.msra.mxu0 0
    %3319 = vmatprep.subr.bf16.mxu0 0
    %3320 = vmatpush1.bf16.xpose.msra.mxu0 0
    %3321 = vmatprep.subr.bf16.mxu0 0
    %3322 = vmatpush1.bf16.xpose.msra.mxu0 0
    %3323 = vmatprep.subr.bf16.mxu0 0
    %3324 = vmatpush1.bf16.xpose.msra.mxu0 0
    %3325 = vmatprep.subr.bf16.mxu0 0
    %3326 = vmatpush1.bf16.xpose.msra.mxu0 0
    %3327 = vmatprep.subr.bf16.mxu0 0
    %3328 = vmatpush1.bf16.xpose.msra.mxu0 0
    %3329 = vmatprep.subr.bf16.mxu0 0
    %3330 = vmatpush1.bf16.xpose.msra.mxu0 0
    %3331 = vmatprep.mubr.bf16.mxu0 0
    %3332 = vmatmul.mubr.bf16.gmra.mrb[0].mxu0 %v3294
    %v3333 = vpop.f32.mrb[0].mxu0
    %v3334 = vadd.f32 %v65, %v3333
    %v3335 = vpop.f32.mrb[0].mxu0
    %v3336 = vpop.f32.mrb[0].mxu0
    %v3337 = vpop.f32.mrb[0].mxu0
    %3338 = vdwg.mxu0
    %v3339 = vsel %vm144, %v3284, -inf
    %3340 = vmax.xlane.f32.xlu0 %v3339
    %v3341 = vpop.xlane.xlu0 %3340
    %v3342 = vsel %vm144, %v3334, -inf
    %3343 = vmax.xlane.f32.xlu0 %v3342
    %v3344 = vpop.xlane.xlu0 %3343
    %v3345 = vsub.f32 %v3284, %v3341
    %v3346 = vsub.f32 %v3334, %v3344
    %v3347 = vmul.f32 %v3345, 1.442695
    %v3348 = vpow.pop %v3347
    %v3349 = vmul.f32 %v3346, 1.442695
    %v3350 = vpow.pop %v3349
    %v3351 = vsel %vm144, %v3348, 0.0
    %3352 = vadd.xlane.f32.xlu0 %v3351
    %v3353 = vpop.xlane.xlu0 %3352
    %v3354 = vsel %vm144, %v3350, 0.0
    %3355 = vadd.xlane.f32.xlu0 %v3354
    %v3356 = vpop.xlane.xlu0 %3355
    %v3357 = vrcp.pop %v3353
    %v3358 = vrcp.pop %v3356
    %v3359 = vmul.f32 %v3348, %v3357
    %v3360 = vmul.f32 %v3350, %v3358
    %v3361 = vpack.c.bf16 %v3359, %v3359
    %v3362 = vpack.c.bf16 %v3360, %v3360
    %3363 = vrot.lane.b32.xlu0 %v2797, 48
    %v3364 = vpop.permute.xlu0 %3363
    %v3366 = vsel %vm144, %v3361, 0
    %v3369 = vsel %vm269, %v3364, 0
    %3371 = vmatprep.subr.bf16.mxu0 0
    %3372 = vmatpush1.bf16.msra.mxu0 %v3369
    %3373 = vmatprep.subr.bf16.mxu0 0
    %3374 = vmatpush1.bf16.msra.mxu0 0
    %3375 = vmatprep.subr.bf16.mxu0 0
    %3376 = vmatpush1.bf16.msra.mxu0 0
    %3377 = vmatprep.subr.bf16.mxu0 0
    %3378 = vmatpush1.bf16.msra.mxu0 0
    %3379 = vmatprep.subr.bf16.mxu0 0
    %3380 = vmatpush1.bf16.msra.mxu0 0
    %3381 = vmatprep.subr.bf16.mxu0 0
    %3382 = vmatpush1.bf16.msra.mxu0 0
    %3383 = vmatprep.subr.bf16.mxu0 0
    %3384 = vmatpush1.bf16.msra.mxu0 0
    %3385 = vmatprep.subr.bf16.mxu0 0
    %3386 = vmatpush1.bf16.msra.mxu0 0
    %3387 = vmatprep.subr.bf16.mxu0 0
    %3388 = vmatpush1.bf16.msra.mxu0 0
    %3389 = vmatprep.subr.bf16.mxu0 0
    %3390 = vmatpush1.bf16.msra.mxu0 0
    %3391 = vmatprep.subr.bf16.mxu0 0
    %3392 = vmatpush1.bf16.msra.mxu0 0
    %3393 = vmatprep.subr.bf16.mxu0 0
    %3394 = vmatpush1.bf16.msra.mxu0 0
    %3395 = vmatprep.subr.bf16.mxu0 0
    %3396 = vmatpush1.bf16.msra.mxu0 0
    %3397 = vmatprep.subr.bf16.mxu0 0
    %3398 = vmatpush1.bf16.msra.mxu0 0
    %3399 = vmatprep.subr.bf16.mxu0 0
    %3400 = vmatpush1.bf16.msra.mxu0 0
    %3401 = vmatprep.subr.bf16.mxu0 0
    %3402 = vmatpush1.bf16.msra.mxu0 0
    %3403 = vmatprep.mubr.bf16.mxu0 0
    %3404 = vmatmul.mubr.bf16.gmra.mrb[0].mxu0 %v3366
    %v3405 = vpop.f32.mrb[0].mxu0
    %v3406 = vadd.f32 0.0, %v3405
    %v3407 = vpop.f32.mrb[0].mxu0
    %v3408 = vpop.f32.mrb[0].mxu0
    %v3409 = vpop.f32.mrb[0].mxu0
    %3410 = vdwg.mxu0
    %3411 = vrot.lane.b32.xlu0 %v2798, 48
    %v3412 = vpop.permute.xlu0 %3411
    %v3414 = vsel %vm144, %v3362, 0
    %v3417 = vsel %vm269, %v3412, 0
    %3419 = vmatprep.subr.bf16.mxu0 0
    %3420 = vmatpush1.bf16.msra.mxu0 %v3417
    %3421 = vmatprep.subr.bf16.mxu0 0
    %3422 = vmatpush1.bf16.msra.mxu0 0
    %3423 = vmatprep.subr.bf16.mxu0 0
    %3424 = vmatpush1.bf16.msra.mxu0 0
    %3425 = vmatprep.subr.bf16.mxu0 0
    %3426 = vmatpush1.bf16.msra.mxu0 0
    %3427 = vmatprep.subr.bf16.mxu0 0
    %3428 = vmatpush1.bf16.msra.mxu0 0
    %3429 = vmatprep.subr.bf16.mxu0 0
    %3430 = vmatpush1.bf16.msra.mxu0 0
    %3431 = vmatprep.subr.bf16.mxu0 0
    %3432 = vmatpush1.bf16.msra.mxu0 0
    %3433 = vmatprep.subr.bf16.mxu0 0
    %3434 = vmatpush1.bf16.msra.mxu0 0
    %3435 = vmatprep.subr.bf16.mxu0 0
    %3436 = vmatpush1.bf16.msra.mxu0 0
    %3437 = vmatprep.subr.bf16.mxu0 0
    %3438 = vmatpush1.bf16.msra.mxu0 0
    %3439 = vmatprep.subr.bf16.mxu0 0
    %3440 = vmatpush1.bf16.msra.mxu0 0
    %3441 = vmatprep.subr.bf16.mxu0 0
    %3442 = vmatpush1.bf16.msra.mxu0 0
    %3443 = vmatprep.subr.bf16.mxu0 0
    %3444 = vmatpush1.bf16.msra.mxu0 0
    %3445 = vmatprep.subr.bf16.mxu0 0
    %3446 = vmatpush1.bf16.msra.mxu0 0
    %3447 = vmatprep.subr.bf16.mxu0 0
    %3448 = vmatpush1.bf16.msra.mxu0 0
    %3449 = vmatprep.subr.bf16.mxu0 0
    %3450 = vmatpush1.bf16.msra.mxu0 0
    %3451 = vmatprep.mubr.bf16.mxu0 0
    %3452 = vmatmul.mubr.bf16.gmra.mrb[0].mxu0 %v3414
    %v3453 = vpop.f32.mrb[0].mxu0
    %v3454 = vadd.f32 0.0, %v3453
    %v3455 = vpop.f32.mrb[0].mxu0
    %v3456 = vpop.f32.mrb[0].mxu0
    %v3457 = vpop.f32.mrb[0].mxu0
    %3458 = vdwg.mxu0
    %3459 = vrot.lane.b32.xlu0 %v2795, 104
    %v3460 = vpop.permute.xlu0 %3459
    %3461 = vrot.lane.b32.xlu0 %v2797, 72
    %v3462 = vpop.permute.xlu0 %3461
    %v3464 = vsel %vm144, %v3460, 0
    %v3467 = vsel %vm144, %v3462, 0
    %3469 = vmatprep.subr.bf16.mxu0 0
    %3470 = vmatpush1.bf16.xpose.msra.mxu0 %v3467
    %3471 = vmatprep.subr.bf16.mxu0 0
    %3472 = vmatpush1.bf16.xpose.msra.mxu0 0
    %3473 = vmatprep.subr.bf16.mxu0 0
    %3474 = vmatpush1.bf16.xpose.msra.mxu0 0
    %3475 = vmatprep.subr.bf16.mxu0 0
    %3476 = vmatpush1.bf16.xpose.msra.mxu0 0
    %3477 = vmatprep.subr.bf16.mxu0 0
    %3478 = vmatpush1.bf16.xpose.msra.mxu0 0
    %3479 = vmatprep.subr.bf16.mxu0 0
    %3480 = vmatpush1.bf16.xpose.msra.mxu0 0
    %3481 = vmatprep.subr.bf16.mxu0 0
    %3482 = vmatpush1.bf16.xpose.msra.mxu0 0
    %3483 = vmatprep.subr.bf16.mxu0 0
    %3484 = vmatpush1.bf16.xpose.msra.mxu0 0
    %3485 = vmatprep.subr.bf16.mxu0 0
    %3486 = vmatpush1.bf16.xpose.msra.mxu0 0
    %3487 = vmatprep.subr.bf16.mxu0 0
    %3488 = vmatpush1.bf16.xpose.msra.mxu0 0
    %3489 = vmatprep.subr.bf16.mxu0 0
    %3490 = vmatpush1.bf16.xpose.msra.mxu0 0
    %3491 = vmatprep.subr.bf16.mxu0 0
    %3492 = vmatpush1.bf16.xpose.msra.mxu0 0
    %3493 = vmatprep.subr.bf16.mxu0 0
    %3494 = vmatpush1.bf16.xpose.msra.mxu0 0
    %3495 = vmatprep.subr.bf16.mxu0 0
    %3496 = vmatpush1.bf16.xpose.msra.mxu0 0
    %3497 = vmatprep.subr.bf16.mxu0 0
    %3498 = vmatpush1.bf16.xpose.msra.mxu0 0
    %3499 = vmatprep.subr.bf16.mxu0 0
    %3500 = vmatpush1.bf16.xpose.msra.mxu0 0
    %3501 = vmatprep.mubr.bf16.mxu0 0
    %3502 = vmatmul.mubr.bf16.gmra.mrb[0].mxu0 %v3464
    %v3503 = vpop.f32.mrb[0].mxu0
    %v3504 = vadd.f32 %v65, %v3503
    %v3505 = vpop.f32.mrb[0].mxu0
    %v3506 = vpop.f32.mrb[0].mxu0
    %v3507 = vpop.f32.mrb[0].mxu0
    %3508 = vdwg.mxu0
    %3509 = vrot.lane.b32.xlu0 %v2796, 104
    %v3510 = vpop.permute.xlu0 %3509
    %3511 = vrot.lane.b32.xlu0 %v2798, 72
    %v3512 = vpop.permute.xlu0 %3511
    %v3514 = vsel %vm144, %v3510, 0
    %v3517 = vsel %vm144, %v3512, 0
    %3519 = vmatprep.subr.bf16.mxu0 0
    %3520 = vmatpush1.bf16.xpose.msra.mxu0 %v3517
    %3521 = vmatprep.subr.bf16.mxu0 0
    %3522 = vmatpush1.bf16.xpose.msra.mxu0 0
    %3523 = vmatprep.subr.bf16.mxu0 0
    %3524 = vmatpush1.bf16.xpose.msra.mxu0 0
    %3525 = vmatprep.subr.bf16.mxu0 0
    %3526 = vmatpush1.bf16.xpose.msra.mxu0 0
    %3527 = vmatprep.subr.bf16.mxu0 0
    %3528 = vmatpush1.bf16.xpose.msra.mxu0 0
    %3529 = vmatprep.subr.bf16.mxu0 0
    %3530 = vmatpush1.bf16.xpose.msra.mxu0 0
    %3531 = vmatprep.subr.bf16.mxu0 0
    %3532 = vmatpush1.bf16.xpose.msra.mxu0 0
    %3533 = vmatprep.subr.bf16.mxu0 0
    %3534 = vmatpush1.bf16.xpose.msra.mxu0 0
    %3535 = vmatprep.subr.bf16.mxu0 0
    %3536 = vmatpush1.bf16.xpose.msra.mxu0 0
    %3537 = vmatprep.subr.bf16.mxu0 0
    %3538 = vmatpush1.bf16.xpose.msra.mxu0 0
    %3539 = vmatprep.subr.bf16.mxu0 0
    %3540 = vmatpush1.bf16.xpose.msra.mxu0 0
    %3541 = vmatprep.subr.bf16.mxu0 0
    %3542 = vmatpush1.bf16.xpose.msra.mxu0 0
    %3543 = vmatprep.subr.bf16.mxu0 0
    %3544 = vmatpush1.bf16.xpose.msra.mxu0 0
    %3545 = vmatprep.subr.bf16.mxu0 0
    %3546 = vmatpush1.bf16.xpose.msra.mxu0 0
    %3547 = vmatprep.subr.bf16.mxu0 0
    %3548 = vmatpush1.bf16.xpose.msra.mxu0 0
    %3549 = vmatprep.subr.bf16.mxu0 0
    %3550 = vmatpush1.bf16.xpose.msra.mxu0 0
    %3551 = vmatprep.mubr.bf16.mxu0 0
    %3552 = vmatmul.mubr.bf16.gmra.mrb[0].mxu0 %v3514
    %v3553 = vpop.f32.mrb[0].mxu0
    %v3554 = vadd.f32 %v65, %v3553
    %v3555 = vpop.f32.mrb[0].mxu0
    %v3556 = vpop.f32.mrb[0].mxu0
    %v3557 = vpop.f32.mrb[0].mxu0
    %3558 = vdwg.mxu0
    %v3559 = vsel %vm144, %v3504, -inf
    %3560 = vmax.xlane.f32.xlu0 %v3559
    %v3561 = vpop.xlane.xlu0 %3560
    %v3562 = vsel %vm144, %v3554, -inf
    %3563 = vmax.xlane.f32.xlu0 %v3562
    %v3564 = vpop.xlane.xlu0 %3563
    %v3565 = vsub.f32 %v3504, %v3561
    %v3566 = vsub.f32 %v3554, %v3564
    %v3567 = vmul.f32 %v3565, 1.442695
    %v3568 = vpow.pop %v3567
    %v3569 = vmul.f32 %v3566, 1.442695
    %v3570 = vpow.pop %v3569
    %v3571 = vsel %vm144, %v3568, 0.0
    %3572 = vadd.xlane.f32.xlu0 %v3571
    %v3573 = vpop.xlane.xlu0 %3572
    %v3574 = vsel %vm144, %v3570, 0.0
    %3575 = vadd.xlane.f32.xlu0 %v3574
    %v3576 = vpop.xlane.xlu0 %3575
    %v3577 = vrcp.pop %v3573
    %v3578 = vrcp.pop %v3576
    %v3579 = vmul.f32 %v3568, %v3577
    %v3580 = vmul.f32 %v3570, %v3578
    %v3581 = vpack.c.bf16 %v3579, %v3579
    %v3582 = vpack.c.bf16 %v3580, %v3580
    %3583 = vrot.lane.b32.xlu0 %v2797, 40
    %v3584 = vpop.permute.xlu0 %3583
    %v3586 = vsel %vm144, %v3581, 0
    %v3589 = vsel %vm269, %v3584, 0
    %3591 = vmatprep.subr.bf16.mxu0 0
    %3592 = vmatpush1.bf16.msra.mxu0 %v3589
    %3593 = vmatprep.subr.bf16.mxu0 0
    %3594 = vmatpush1.bf16.msra.mxu0 0
    %3595 = vmatprep.subr.bf16.mxu0 0
    %3596 = vmatpush1.bf16.msra.mxu0 0
    %3597 = vmatprep.subr.bf16.mxu0 0
    %3598 = vmatpush1.bf16.msra.mxu0 0
    %3599 = vmatprep.subr.bf16.mxu0 0
    %3600 = vmatpush1.bf16.msra.mxu0 0
    %3601 = vmatprep.subr.bf16.mxu0 0
    %3602 = vmatpush1.bf16.msra.mxu0 0
    %3603 = vmatprep.subr.bf16.mxu0 0
    %3604 = vmatpush1.bf16.msra.mxu0 0
    %3605 = vmatprep.subr.bf16.mxu0 0
    %3606 = vmatpush1.bf16.msra.mxu0 0
    %3607 = vmatprep.subr.bf16.mxu0 0
    %3608 = vmatpush1.bf16.msra.mxu0 0
    %3609 = vmatprep.subr.bf16.mxu0 0
    %3610 = vmatpush1.bf16.msra.mxu0 0
    %3611 = vmatprep.subr.bf16.mxu0 0
    %3612 = vmatpush1.bf16.msra.mxu0 0
    %3613 = vmatprep.subr.bf16.mxu0 0
    %3614 = vmatpush1.bf16.msra.mxu0 0
    %3615 = vmatprep.subr.bf16.mxu0 0
    %3616 = vmatpush1.bf16.msra.mxu0 0
    %3617 = vmatprep.subr.bf16.mxu0 0
    %3618 = vmatpush1.bf16.msra.mxu0 0
    %3619 = vmatprep.subr.bf16.mxu0 0
    %3620 = vmatpush1.bf16.msra.mxu0 0
    %3621 = vmatprep.subr.bf16.mxu0 0
    %3622 = vmatpush1.bf16.msra.mxu0 0
    %3623 = vmatprep.mubr.bf16.mxu0 0
    %3624 = vmatmul.mubr.bf16.gmra.mrb[0].mxu0 %v3586
    %v3625 = vpop.f32.mrb[0].mxu0
    %v3626 = vadd.f32 0.0, %v3625
    %v3627 = vpop.f32.mrb[0].mxu0
    %v3628 = vpop.f32.mrb[0].mxu0
    %v3629 = vpop.f32.mrb[0].mxu0
    %3630 = vdwg.mxu0
    %3631 = vrot.lane.b32.xlu0 %v2798, 40
    %v3632 = vpop.permute.xlu0 %3631
    %v3634 = vsel %vm144, %v3582, 0
    %v3637 = vsel %vm269, %v3632, 0
    %3639 = vmatprep.subr.bf16.mxu0 0
    %3640 = vmatpush1.bf16.msra.mxu0 %v3637
    %3641 = vmatprep.subr.bf16.mxu0 0
    %3642 = vmatpush1.bf16.msra.mxu0 0
    %3643 = vmatprep.subr.bf16.mxu0 0
    %3644 = vmatpush1.bf16.msra.mxu0 0
    %3645 = vmatprep.subr.bf16.mxu0 0
    %3646 = vmatpush1.bf16.msra.mxu0 0
    %3647 = vmatprep.subr.bf16.mxu0 0
    %3648 = vmatpush1.bf16.msra.mxu0 0
    %3649 = vmatprep.subr.bf16.mxu0 0
    %3650 = vmatpush1.bf16.msra.mxu0 0
    %3651 = vmatprep.subr.bf16.mxu0 0
    %3652 = vmatpush1.bf16.msra.mxu0 0
    %3653 = vmatprep.subr.bf16.mxu0 0
    %3654 = vmatpush1.bf16.msra.mxu0 0
    %3655 = vmatprep.subr.bf16.mxu0 0
    %3656 = vmatpush1.bf16.msra.mxu0 0
    %3657 = vmatprep.subr.bf16.mxu0 0
    %3658 = vmatpush1.bf16.msra.mxu0 0
    %3659 = vmatprep.subr.bf16.mxu0 0
    %3660 = vmatpush1.bf16.msra.mxu0 0
    %3661 = vmatprep.subr.bf16.mxu0 0
    %3662 = vmatpush1.bf16.msra.mxu0 0
    %3663 = vmatprep.subr.bf16.mxu0 0
    %3664 = vmatpush1.bf16.msra.mxu0 0
    %3665 = vmatprep.subr.bf16.mxu0 0
    %3666 = vmatpush1.bf16.msra.mxu0 0
    %3667 = vmatprep.subr.bf16.mxu0 0
    %3668 = vmatpush1.bf16.msra.mxu0 0
    %3669 = vmatprep.subr.bf16.mxu0 0
    %3670 = vmatpush1.bf16.msra.mxu0 0
    %3671 = vmatprep.mubr.bf16.mxu0 0
    %3672 = vmatmul.mubr.bf16.gmra.mrb[0].mxu0 %v3634
    %v3673 = vpop.f32.mrb[0].mxu0
    %v3674 = vadd.f32 0.0, %v3673
    %v3675 = vpop.f32.mrb[0].mxu0
    %v3676 = vpop.f32.mrb[0].mxu0
    %v3677 = vpop.f32.mrb[0].mxu0
    %3678 = vdwg.mxu0
    %3681 = vrot.lane.b32.xlu0 %v3186, 8
    %v3682 = vpop.permute.xlu0 %3681
    %3683 = vrot.lane.b32.xlu0 %v3234, 8
    %v3684 = vpop.permute.xlu0 %3683
    %3689 = vrot.lane.b32.xlu0 %v3406, 16
    %v3690 = vpop.permute.xlu0 %3689
    %3691 = vrot.lane.b32.xlu0 %v3454, 16
    %v3692 = vpop.permute.xlu0 %3691
    %3697 = vrot.lane.b32.xlu0 %v3626, 24
    %v3698 = vpop.permute.xlu0 %3697
    %3699 = vrot.lane.b32.xlu0 %v3674, 24
    %v3700 = vpop.permute.xlu0 %3699
    %v3703 = vsel %vm144, %v2964, %v3682
    %v3704 = vsel %vm144, %v3012, %v3684
    %v3705 = vsel %vm1049, %v3703, %v3690
    %v3706 = vsel %vm1049, %v3704, %v3692
    %v3707 = vsel %vm1052, %v3705, %v3698
    %v3708 = vsel %vm1052, %v3706, %v3700
    %v3709 = vld [vmem:[%s3] sm:$0xf]
    %v3710 = vld [vmem:[%s3 + $0x4] sm:$0xf]
    %v3711 = vld [vmem:[%s3 + $0x8] sm:$0xf]
    %v3712 = vld [vmem:[%s3 + $0xc] sm:$0xf]
    %v3713 = vpack.c.bf16 %v3708, %v3707
    %v3714 = vld [vmem:[%s4] sm:$0x1]
    %v3716 = vlaneseq
    %v3717 = vshrl.u32 %v3716, 7
    %v3718 = vsub.s32 0, %v3717
    %v3719 = vrot.slane %v3714, %v3718
    %v3725 = vunpack.c.l.b16 %v3709
    %v3726 = vunpack.c.l.b16 %v3710
    %v3727 = vunpack.c.l.b16 %v3711
    %v3728 = vunpack.c.l.b16 %v3712
    %v3729 = vpack.c.b16 %v3726, %v3725
    %v3730 = vpack.c.b16 %v3728, %v3727
    %v3734 = vsel %vm90, %v3713, 0
    %3736 = vmatprep.subr.bf16.mxu0 0
    %3737 = vmatpush1.bf16.msra.mxu0 %v3729
    %3738 = vmatprep.subr.bf16.mxu0 0
    %3739 = vmatpush1.bf16.msra.mxu0 %v3730
    %3740 = vmatprep.subr.bf16.mxu0 0
    %3741 = vmatpush1.bf16.msra.mxu0 0
    %3742 = vmatprep.subr.bf16.mxu0 0
    %3743 = vmatpush1.bf16.msra.mxu0 0
    %3744 = vmatprep.subr.bf16.mxu0 0
    %3745 = vmatpush1.bf16.msra.mxu0 0
    %3746 = vmatprep.subr.bf16.mxu0 0
    %3747 = vmatpush1.bf16.msra.mxu0 0
    %3748 = vmatprep.subr.bf16.mxu0 0
    %3749 = vmatpush1.bf16.msra.mxu0 0
    %3750 = vmatprep.subr.bf16.mxu0 0
    %3751 = vmatpush1.bf16.msra.mxu0 0
    %3752 = vmatprep.subr.bf16.mxu0 0
    %3753 = vmatpush1.bf16.msra.mxu0 0
    %3754 = vmatprep.subr.bf16.mxu0 0
    %3755 = vmatpush1.bf16.msra.mxu0 0
    %3756 = vmatprep.subr.bf16.mxu0 0
    %3757 = vmatpush1.bf16.msra.mxu0 0
    %3758 = vmatprep.subr.bf16.mxu0 0
    %3759 = vmatpush1.bf16.msra.mxu0 0
    %3760 = vmatprep.subr.bf16.mxu0 0
    %3761 = vmatpush1.bf16.msra.mxu0 0
    %3762 = vmatprep.subr.bf16.mxu0 0
    %3763 = vmatpush1.bf16.msra.mxu0 0
    %3764 = vmatprep.subr.bf16.mxu0 0
    %3765 = vmatpush1.bf16.msra.mxu0 0
    %3766 = vmatprep.subr.bf16.mxu0 0
    %3767 = vmatpush1.bf16.msra.mxu0 0
    %3768 = vmatprep.mubr.bf16.mxu0 0
    %3769 = vmatmul.mubr.bf16.gmra.mrb[0].mxu0 %v3734
    %v3770 = vpop.f32.mrb[0].mxu0
    %v3771 = vadd.f32 %v3719, %v3770
    %v3772 = vpop.f32.mrb[0].mxu0
    %v3773 = vpop.f32.mrb[0].mxu0
    %v3774 = vadd.f32 %v3719, %v3773
    %v3775 = vpop.f32.mrb[0].mxu0
    %3776 = vdwg.mxu0
    %v3777 = vadd.f32 %v2723, %v3771
    %v3778 = vadd.f32 %v2724, %v3774
    %v3779 = vld [vmem:[%s5] sm:$0x1]
    %v3780 = vld [vmem:[%s6] sm:$0x1]
    %v3781 = vsel %vm90, %v3777, 0.0
    %3782 = vadd.xlane.f32.xlu0 %v3781
    %v3783 = vpop.xlane.xlu0 %3782
    %v3784 = vsel %vm90, %v3778, 0.0
    %3785 = vadd.xlane.f32.xlu0 %v3784
    %v3786 = vpop.xlane.xlu0 %3785
    %v3787 = vmul.f32 %v3783, %v1133
    %v3788 = vmul.f32 %v3786, %v1133
    %v3789 = vsub.f32 %v3777, %v3787
    %v3790 = vsub.f32 %v3778, %v3788
    %v3791 = vmul.f32 %v3789, %v3789
    %v3792 = vmul.f32 %v3790, %v3790
    %v3793 = vsel %vm90, %v3791, 0.0
    %3794 = vadd.xlane.f32.xlu0 %v3793
    %v3795 = vpop.xlane.xlu0 %3794
    %v3796 = vsel %vm90, %v3792, 0.0
    %3797 = vadd.xlane.f32.xlu0 %v3796
    %v3798 = vpop.xlane.xlu0 %3797
    %v3799 = vmul.f32 %v3795, %v1133
    %v3800 = vmul.f32 %v3798, %v1133
    %v3801 = vadd.f32 %v3799, 1e-05
    %v3802 = vadd.f32 %v3800, 1e-05
    %v3803 = vrsqrt.pop %v3801
    %v3804 = vrsqrt.pop %v3802
    %v3805 = vmul.f32 %v3789, %v3803
    %v3806 = vmul.f32 %v3790, %v3804
    %v3808 = vlaneseq
    %v3809 = vshrl.u32 %v3808, 7
    %v3810 = vsub.s32 0, %v3809
    %v3811 = vrot.slane %v3779, %v3810
    %v3813 = vmul.f32 %v3805, %v3811
    %v3814 = vmul.f32 %v3806, %v3811
    %v3816 = vlaneseq
    %v3817 = vshrl.u32 %v3816, 7
    %v3818 = vsub.s32 0, %v3817
    %v3819 = vrot.slane %v3780, %v3818
    %v3821 = vadd.f32 %v3813, %v3819
    %v3822 = vadd.f32 %v3814, %v3819
    %v3823 = vld [vmem:[%s7] sm:$0xf]
    %v3824 = vld [vmem:[%s7 + $0x4] sm:$0xf]
    %v3825 = vld [vmem:[%s7 + $0x8] sm:$0xf]
    %v3826 = vld [vmem:[%s7 + $0xc] sm:$0xf]
    %v3827 = vpack.c.bf16 %v3822, %v3821
    %v3828 = vld [vmem:[%s8] sm:$0x1]
    %v3830 = vlaneseq
    %v3831 = vshrl.u32 %v3830, 7
    %v3832 = vsub.s32 0, %v3831
    %v3833 = vrot.slane %v3828, %v3832
    %v3839 = vunpack.c.l.b16 %v3823
    %v3840 = vunpack.c.l.b16 %v3824
    %v3841 = vunpack.c.l.b16 %v3825
    %v3842 = vunpack.c.l.b16 %v3826
    %v3843 = vpack.c.b16 %v3840, %v3839
    %v3844 = vpack.c.b16 %v3842, %v3841
    %v3848 = vsel %vm90, %v3827, 0
    %3850 = vmatprep.subr.bf16.mxu0 0
    %3851 = vmatpush1.bf16.msra.mxu0 %v3843
    %3852 = vmatprep.subr.bf16.mxu0 0
    %3853 = vmatpush1.bf16.msra.mxu0 %v3844
    %3854 = vmatprep.subr.bf16.mxu0 0
    %3855 = vmatpush1.bf16.msra.mxu0 0
    %3856 = vmatprep.subr.bf16.mxu0 0
    %3857 = vmatpush1.bf16.msra.mxu0 0
    %3858 = vmatprep.subr.bf16.mxu0 0
    %3859 = vmatpush1.bf16.msra.mxu0 0
    %3860 = vmatprep.subr.bf16.mxu0 0
    %3861 = vmatpush1.bf16.msra.mxu0 0
    %3862 = vmatprep.subr.bf16.mxu0 0
    %3863 = vmatpush1.bf16.msra.mxu0 0
    %3864 = vmatprep.subr.bf16.mxu0 0
    %3865 = vmatpush1.bf16.msra.mxu0 0
    %3866 = vmatprep.subr.bf16.mxu0 0
    %3867 = vmatpush1.bf16.msra.mxu0 0
    %3868 = vmatprep.subr.bf16.mxu0 0
    %3869 = vmatpush1.bf16.msra.mxu0 0
    %3870 = vmatprep.subr.bf16.mxu0 0
    %3871 = vmatpush1.bf16.msra.mxu0 0
    %3872 = vmatprep.subr.bf16.mxu0 0
    %3873 = vmatpush1.bf16.msra.mxu0 0
    %3874 = vmatprep.subr.bf16.mxu0 0
    %3875 = vmatpush1.bf16.msra.mxu0 0
    %3876 = vmatprep.subr.bf16.mxu0 0
    %3877 = vmatpush1.bf16.msra.mxu0 0
    %3878 = vmatprep.subr.bf16.mxu0 0
    %3879 = vmatpush1.bf16.msra.mxu0 0
    %3880 = vmatprep.subr.bf16.mxu0 0
    %3881 = vmatpush1.bf16.msra.mxu0 0
    %3882 = vmatprep.mubr.bf16.mxu0 0
    %3883 = vmatmul.mubr.bf16.gmra.mrb[0].mxu0 %v3848
    %v3884 = vpop.f32.mrb[0].mxu0
    %v3885 = vadd.f32 %v3833, %v3884
    %v3886 = vpop.f32.mrb[0].mxu0
    %v3887 = vpop.f32.mrb[0].mxu0
    %v3888 = vadd.f32 %v3833, %v3887
    %v3889 = vpop.f32.mrb[0].mxu0
    %3890 = vdwg.mxu0
    %v3891 = vmax.f32 %v3885, 0.0
    %v3892 = vmax.f32 %v3888, 0.0
    %v3893 = vld [vmem:[%s9] sm:$0xf]
    %v3894 = vld [vmem:[%s9 + $0x4] sm:$0xf]
    %v3895 = vld [vmem:[%s9 + $0x8] sm:$0xf]
    %v3896 = vld [vmem:[%s9 + $0xc] sm:$0xf]
    %v3897 = vld [vmem:[%s9 + $0x10] sm:$0xf]
    %v3898 = vld [vmem:[%s9 + $0x14] sm:$0xf]
    %v3899 = vld [vmem:[%s9 + $0x18] sm:$0xf]
    %v3900 = vld [vmem:[%s9 + $0x1c] sm:$0xf]
    %v3901 = vpack.c.bf16 %v3892, %v3891
    %v3902 = vld [vmem:[%s10] sm:$0x1]
    %v3904 = vlaneseq
    %v3905 = vshrl.u32 %v3904, 7
    %v3906 = vsub.s32 0, %v3905
    %v3907 = vrot.slane %v3902, %v3906
    %v3917 = vunpack.c.l.b16 %v3893
    %v3918 = vunpack.c.l.b16 %v3894
    %v3919 = vunpack.c.l.b16 %v3895
    %v3920 = vunpack.c.l.b16 %v3896
    %v3921 = vunpack.c.l.b16 %v3897
    %v3922 = vunpack.c.l.b16 %v3898
    %v3923 = vunpack.c.l.b16 %v3899
    %v3924 = vunpack.c.l.b16 %v3900
    %v3925 = vpack.c.b16 %v3918, %v3917
    %v3926 = vpack.c.b16 %v3920, %v3919
    %v3927 = vpack.c.b16 %v3922, %v3921
    %v3928 = vpack.c.b16 %v3924, %v3923
    %v3934 = vsel %vm1280, %v3901, 0
    %3936 = vmatprep.subr.bf16.mxu0 0
    %3937 = vmatpush1.bf16.msra.mxu0 %v3925
    %3938 = vmatprep.subr.bf16.mxu0 0
    %3939 = vmatpush1.bf16.msra.mxu0 %v3926
    %3940 = vmatprep.subr.bf16.mxu0 0
    %3941 = vmatpush1.bf16.msra.mxu0 %v3927
    %3942 = vmatprep.subr.bf16.mxu0 0
    %3943 = vmatpush1.bf16.msra.mxu0 %v3928
    %3944 = vmatprep.subr.bf16.mxu0 0
    %3945 = vmatpush1.bf16.msra.mxu0 0
    %3946 = vmatprep.subr.bf16.mxu0 0
    %3947 = vmatpush1.bf16.msra.mxu0 0
    %3948 = vmatprep.subr.bf16.mxu0 0
    %3949 = vmatpush1.bf16.msra.mxu0 0
    %3950 = vmatprep.subr.bf16.mxu0 0
    %3951 = vmatpush1.bf16.msra.mxu0 0
    %3952 = vmatprep.subr.bf16.mxu0 0
    %3953 = vmatpush1.bf16.msra.mxu0 0
    %3954 = vmatprep.subr.bf16.mxu0 0
    %3955 = vmatpush1.bf16.msra.mxu0 0
    %3956 = vmatprep.subr.bf16.mxu0 0
    %3957 = vmatpush1.bf16.msra.mxu0 0
    %3958 = vmatprep.subr.bf16.mxu0 0
    %3959 = vmatpush1.bf16.msra.mxu0 0
    %3960 = vmatprep.subr.bf16.mxu0 0
    %3961 = vmatpush1.bf16.msra.mxu0 0
    %3962 = vmatprep.subr.bf16.mxu0 0
    %3963 = vmatpush1.bf16.msra.mxu0 0
    %3964 = vmatprep.subr.bf16.mxu0 0
    %3965 = vmatpush1.bf16.msra.mxu0 0
    %3966 = vmatprep.subr.bf16.mxu0 0
    %3967 = vmatpush1.bf16.msra.mxu0 0
    %3968 = vmatprep.mubr.bf16.mxu0 0
    %3969 = vmatmul.mubr.bf16.gmra.mrb[0].mxu0 %v3934
    %v3970 = vpop.f32.mrb[0].mxu0
    %v3971 = vadd.f32 %v3907, %v3970
    %v3972 = vpop.f32.mrb[0].mxu0
    %v3973 = vpop.f32.mrb[0].mxu0
    %v3974 = vadd.f32 %v3907, %v3973
    %v3975 = vpop.f32.mrb[0].mxu0
    %3976 = vdwg.mxu0
    %v3977 = vadd.f32 %v3821, %v3971
    %v3978 = vadd.f32 %v3822, %v3974
    %v3979 = vld [vmem:[%s11] sm:$0x1]
    %v3980 = vld [vmem:[%s12] sm:$0x1]
    %v3981 = vsel %vm90, %v3977, 0.0
    %3982 = vadd.xlane.f32.xlu0 %v3981
    %v3983 = vpop.xlane.xlu0 %3982
    %v3984 = vsel %vm90, %v3978, 0.0
    %3985 = vadd.xlane.f32.xlu0 %v3984
    %v3986 = vpop.xlane.xlu0 %3985
    %v3987 = vmul.f32 %v3983, %v1133
    %v3988 = vmul.f32 %v3986, %v1133
    %v3989 = vsub.f32 %v3977, %v3987
    %v3990 = vsub.f32 %v3978, %v3988
    %v3991 = vmul.f32 %v3989, %v3989
    %v3992 = vmul.f32 %v3990, %v3990
    %v3993 = vsel %vm90, %v3991, 0.0
    %3994 = vadd.xlane.f32.xlu0 %v3993
    %v3995 = vpop.xlane.xlu0 %3994
    %v3996 = vsel %vm90, %v3992, 0.0
    %3997 = vadd.xlane.f32.xlu0 %v3996
    %v3998 = vpop.xlane.xlu0 %3997
    %v3999 = vmul.f32 %v3995, %v1133
    %v4000 = vmul.f32 %v3998, %v1133
    %v4001 = vadd.f32 %v3999, 1e-05
    %v4002 = vadd.f32 %v4000, 1e-05
    %v4003 = vrsqrt.pop %v4001
    %v4004 = vrsqrt.pop %v4002
    %v4005 = vmul.f32 %v3989, %v4003
    %v4006 = vmul.f32 %v3990, %v4004
    %v4008 = vlaneseq
    %v4009 = vshrl.u32 %v4008, 7
    %v4010 = vsub.s32 0, %v4009
    %v4011 = vrot.slane %v3979, %v4010
    %v4013 = vmul.f32 %v4005, %v4011
    %v4014 = vmul.f32 %v4006, %v4011
    %v4016 = vlaneseq
    %v4017 = vshrl.u32 %v4016, 7
    %v4018 = vsub.s32 0, %v4017
    %v4019 = vrot.slane %v3980, %v4018
    %v4021 = vadd.f32 %v4013, %v4019
    %v4022 = vadd.f32 %v4014, %v4019
    %v4023 = vld [vmem:[%s1371] sm:$0xf]
    %v4024 = vld [vmem:[%s1371 + $0x4] sm:$0xf]
    %v4025 = vld [vmem:[%s1371 + $0x8] sm:$0xf]
    %v4026 = vld [vmem:[%s1371 + $0xc] sm:$0xf]
    %v4027 = vpack.c.bf16 %v4022, %v4021
    %v4028 = vld [vmem:[%s1377] sm:$0x1]
    %v4030 = vlaneseq
    %v4031 = vshrl.u32 %v4030, 7
    %v4032 = vsub.s32 0, %v4031
    %v4033 = vrot.slane %v4028, %v4032
    %v4039 = vunpack.c.l.b16 %v4023
    %v4040 = vunpack.c.l.b16 %v4024
    %v4041 = vunpack.c.l.b16 %v4025
    %v4042 = vunpack.c.l.b16 %v4026
    %v4043 = vpack.c.b16 %v4040, %v4039
    %v4044 = vpack.c.b16 %v4042, %v4041
    %v4048 = vsel %vm90, %v4027, 0
    %4050 = vmatprep.subr.bf16.mxu0 0
    %4051 = vmatpush1.bf16.msra.mxu0 %v4043
    %4052 = vmatprep.subr.bf16.mxu0 0
    %4053 = vmatpush1.bf16.msra.mxu0 %v4044
    %4054 = vmatprep.subr.bf16.mxu0 0
    %4055 = vmatpush1.bf16.msra.mxu0 0
    %4056 = vmatprep.subr.bf16.mxu0 0
    %4057 = vmatpush1.bf16.msra.mxu0 0
    %4058 = vmatprep.subr.bf16.mxu0 0
    %4059 = vmatpush1.bf16.msra.mxu0 0
    %4060 = vmatprep.subr.bf16.mxu0 0
    %4061 = vmatpush1.bf16.msra.mxu0 0
    %4062 = vmatprep.subr.bf16.mxu0 0
    %4063 = vmatpush1.bf16.msra.mxu0 0
    %4064 = vmatprep.subr.bf16.mxu0 0
    %4065 = vmatpush1.bf16.msra.mxu0 0
    %4066 = vmatprep.subr.bf16.mxu0 0
    %4067 = vmatpush1.bf16.msra.mxu0 0
    %4068 = vmatprep.subr.bf16.mxu0 0
    %4069 = vmatpush1.bf16.msra.mxu0 0
    %4070 = vmatprep.subr.bf16.mxu0 0
    %4071 = vmatpush1.bf16.msra.mxu0 0
    %4072 = vmatprep.subr.bf16.mxu0 0
    %4073 = vmatpush1.bf16.msra.mxu0 0
    %4074 = vmatprep.subr.bf16.mxu0 0
    %4075 = vmatpush1.bf16.msra.mxu0 0
    %4076 = vmatprep.subr.bf16.mxu0 0
    %4077 = vmatpush1.bf16.msra.mxu0 0
    %4078 = vmatprep.subr.bf16.mxu0 0
    %4079 = vmatpush1.bf16.msra.mxu0 0
    %4080 = vmatprep.subr.bf16.mxu0 0
    %4081 = vmatpush1.bf16.msra.mxu0 0
    %4082 = vmatprep.mubr.bf16.mxu0 0
    %4083 = vmatmul.mubr.bf16.gmra.mrb[0].mxu0 %v4048
    %v4084 = vpop.f32.mrb[0].mxu0
    %v4085 = vadd.f32 %v4033, %v4084
    %v4086 = vpop.f32.mrb[0].mxu0
    %v4087 = vpop.f32.mrb[0].mxu0
    %v4088 = vadd.f32 %v4033, %v4087
    %v4089 = vpop.f32.mrb[0].mxu0
    %4090 = vdwg.mxu0
    %v4091 = vmul.f32 %v4085, 0.35355338
    %v4092 = vmul.f32 %v4088, 0.35355338
    %v4093 = vpack.c.bf16 %v4091, %v4091
    %v4094 = vpack.c.bf16 %v4092, %v4092
    %v4095 = vpack.c.bf16 %v4085, %v4085
    %v4096 = vpack.c.bf16 %v4088, %v4088
    %4098 = vrot.lane.b32.xlu0 %v4095, 96
    %v4099 = vpop.permute.xlu0 %4098
    %v4101 = vsel %vm144, %v4093, 0
    %v4104 = vsel %vm144, %v4099, 0
    %4106 = vmatprep.subr.bf16.mxu0 0
    %4107 = vmatpush1.bf16.xpose.msra.mxu0 %v4104
    %4108 = vmatprep.subr.bf16.mxu0 0
    %4109 = vmatpush1.bf16.xpose.msra.mxu0 0
    %4110 = vmatprep.subr.bf16.mxu0 0
    %4111 = vmatpush1.bf16.xpose.msra.mxu0 0
    %4112 = vmatprep.subr.bf16.mxu0 0
    %4113 = vmatpush1.bf16.xpose.msra.mxu0 0
    %4114 = vmatprep.subr.bf16.mxu0 0
    %4115 = vmatpush1.bf16.xpose.msra.mxu0 0
    %4116 = vmatprep.subr.bf16.mxu0 0
    %4117 = vmatpush1.bf16.xpose.msra.mxu0 0
    %4118 = vmatprep.subr.bf16.mxu0 0
    %4119 = vmatpush1.bf16.xpose.msra.mxu0 0
    %4120 = vmatprep.subr.bf16.mxu0 0
    %4121 = vmatpush1.bf16.xpose.msra.mxu0 0
    %4122 = vmatprep.subr.bf16.mxu0 0
    %4123 = vmatpush1.bf16.xpose.msra.mxu0 0
    %4124 = vmatprep.subr.bf16.mxu0 0
    %4125 = vmatpush1.bf16.xpose.msra.mxu0 0
    %4126 = vmatprep.subr.bf16.mxu0 0
    %4127 = vmatpush1.bf16.xpose.msra.mxu0 0
    %4128 = vmatprep.subr.bf16.mxu0 0
    %4129 = vmatpush1.bf16.xpose.msra.mxu0 0
    %4130 = vmatprep.subr.bf16.mxu0 0
    %4131 = vmatpush1.bf16.xpose.msra.mxu0 0
    %4132 = vmatprep.subr.bf16.mxu0 0
    %4133 = vmatpush1.bf16.xpose.msra.mxu0 0
    %4134 = vmatprep.subr.bf16.mxu0 0
    %4135 = vmatpush1.bf16.xpose.msra.mxu0 0
    %4136 = vmatprep.subr.bf16.mxu0 0
    %4137 = vmatpush1.bf16.xpose.msra.mxu0 0
    %4138 = vmatprep.mubr.bf16.mxu0 0
    %4139 = vmatmul.mubr.bf16.gmra.mrb[0].mxu0 %v4101
    %v4140 = vpop.f32.mrb[0].mxu0
    %v4141 = vadd.f32 %v65, %v4140
    %v4142 = vpop.f32.mrb[0].mxu0
    %v4143 = vpop.f32.mrb[0].mxu0
    %v4144 = vpop.f32.mrb[0].mxu0
    %4145 = vdwg.mxu0
    %4147 = vrot.lane.b32.xlu0 %v4096, 96
    %v4148 = vpop.permute.xlu0 %4147
    %v4150 = vsel %vm144, %v4094, 0
    %v4153 = vsel %vm144, %v4148, 0
    %4155 = vmatprep.subr.bf16.mxu0 0
    %4156 = vmatpush1.bf16.xpose.msra.mxu0 %v4153
    %4157 = vmatprep.subr.bf16.mxu0 0
    %4158 = vmatpush1.bf16.xpose.msra.mxu0 0
    %4159 = vmatprep.subr.bf16.mxu0 0
    %4160 = vmatpush1.bf16.xpose.msra.mxu0 0
    %4161 = vmatprep.subr.bf16.mxu0 0
    %4162 = vmatpush1.bf16.xpose.msra.mxu0 0
    %4163 = vmatprep.subr.bf16.mxu0 0
    %4164 = vmatpush1.bf16.xpose.msra.mxu0 0
    %4165 = vmatprep.subr.bf16.mxu0 0
    %4166 = vmatpush1.bf16.xpose.msra.mxu0 0
    %4167 = vmatprep.subr.bf16.mxu0 0
    %4168 = vmatpush1.bf16.xpose.msra.mxu0 0
    %4169 = vmatprep.subr.bf16.mxu0 0
    %4170 = vmatpush1.bf16.xpose.msra.mxu0 0
    %4171 = vmatprep.subr.bf16.mxu0 0
    %4172 = vmatpush1.bf16.xpose.msra.mxu0 0
    %4173 = vmatprep.subr.bf16.mxu0 0
    %4174 = vmatpush1.bf16.xpose.msra.mxu0 0
    %4175 = vmatprep.subr.bf16.mxu0 0
    %4176 = vmatpush1.bf16.xpose.msra.mxu0 0
    %4177 = vmatprep.subr.bf16.mxu0 0
    %4178 = vmatpush1.bf16.xpose.msra.mxu0 0
    %4179 = vmatprep.subr.bf16.mxu0 0
    %4180 = vmatpush1.bf16.xpose.msra.mxu0 0
    %4181 = vmatprep.subr.bf16.mxu0 0
    %4182 = vmatpush1.bf16.xpose.msra.mxu0 0
    %4183 = vmatprep.subr.bf16.mxu0 0
    %4184 = vmatpush1.bf16.xpose.msra.mxu0 0
    %4185 = vmatprep.subr.bf16.mxu0 0
    %4186 = vmatpush1.bf16.xpose.msra.mxu0 0
    %4187 = vmatprep.mubr.bf16.mxu0 0
    %4188 = vmatmul.mubr.bf16.gmra.mrb[0].mxu0 %v4150
    %v4189 = vpop.f32.mrb[0].mxu0
    %v4190 = vadd.f32 %v65, %v4189
    %v4191 = vpop.f32.mrb[0].mxu0
    %v4192 = vpop.f32.mrb[0].mxu0
    %v4193 = vpop.f32.mrb[0].mxu0
    %4194 = vdwg.mxu0
    %v4195 = vsel %vm144, %v4141, -inf
    %4196 = vmax.xlane.f32.xlu0 %v4195
    %v4197 = vpop.xlane.xlu0 %4196
    %v4198 = vsel %vm144, %v4190, -inf
    %4199 = vmax.xlane.f32.xlu0 %v4198
    %v4200 = vpop.xlane.xlu0 %4199
    %v4201 = vsub.f32 %v4141, %v4197
    %v4202 = vsub.f32 %v4190, %v4200
    %v4203 = vmul.f32 %v4201, 1.442695
    %v4204 = vpow.pop %v4203
    %v4205 = vmul.f32 %v4202, 1.442695
    %v4206 = vpow.pop %v4205
    %v4207 = vsel %vm144, %v4204, 0.0
    %4208 = vadd.xlane.f32.xlu0 %v4207
    %v4209 = vpop.xlane.xlu0 %4208
    %v4210 = vsel %vm144, %v4206, 0.0
    %4211 = vadd.xlane.f32.xlu0 %v4210
    %v4212 = vpop.xlane.xlu0 %4211
    %v4213 = vrcp.pop %v4209
    %v4214 = vrcp.pop %v4212
    %v4215 = vmul.f32 %v4204, %v4213
    %v4216 = vmul.f32 %v4206, %v4214
    %v4217 = vpack.c.bf16 %v4215, %v4215
    %v4218 = vpack.c.bf16 %v4216, %v4216
    %4219 = vrot.lane.b32.xlu0 %v4095, 64
    %v4220 = vpop.permute.xlu0 %4219
    %v4222 = vsel %vm144, %v4217, 0
    %v4225 = vsel %vm269, %v4220, 0
    %4227 = vmatprep.subr.bf16.mxu0 0
    %4228 = vmatpush1.bf16.msra.mxu0 %v4225
    %4229 = vmatprep.subr.bf16.mxu0 0
    %4230 = vmatpush1.bf16.msra.mxu0 0
    %4231 = vmatprep.subr.bf16.mxu0 0
    %4232 = vmatpush1.bf16.msra.mxu0 0
    %4233 = vmatprep.subr.bf16.mxu0 0
    %4234 = vmatpush1.bf16.msra.mxu0 0
    %4235 = vmatprep.subr.bf16.mxu0 0
    %4236 = vmatpush1.bf16.msra.mxu0 0
    %4237 = vmatprep.subr.bf16.mxu0 0
    %4238 = vmatpush1.bf16.msra.mxu0 0
    %4239 = vmatprep.subr.bf16.mxu0 0
    %4240 = vmatpush1.bf16.msra.mxu0 0
    %4241 = vmatprep.subr.bf16.mxu0 0
    %4242 = vmatpush1.bf16.msra.mxu0 0
    %4243 = vmatprep.subr.bf16.mxu0 0
    %4244 = vmatpush1.bf16.msra.mxu0 0
    %4245 = vmatprep.subr.bf16.mxu0 0
    %4246 = vmatpush1.bf16.msra.mxu0 0
    %4247 = vmatprep.subr.bf16.mxu0 0
    %4248 = vmatpush1.bf16.msra.mxu0 0
    %4249 = vmatprep.subr.bf16.mxu0 0
    %4250 = vmatpush1.bf16.msra.mxu0 0
    %4251 = vmatprep.subr.bf16.mxu0 0
    %4252 = vmatpush1.bf16.msra.mxu0 0
    %4253 = vmatprep.subr.bf16.mxu0 0
    %4254 = vmatpush1.bf16.msra.mxu0 0
    %4255 = vmatprep.subr.bf16.mxu0 0
    %4256 = vmatpush1.bf16.msra.mxu0 0
    %4257 = vmatprep.subr.bf16.mxu0 0
    %4258 = vmatpush1.bf16.msra.mxu0 0
    %4259 = vmatprep.mubr.bf16.mxu0 0
    %4260 = vmatmul.mubr.bf16.gmra.mrb[0].mxu0 %v4222
    %v4261 = vpop.f32.mrb[0].mxu0
    %v4262 = vadd.f32 0.0, %v4261
    %v4263 = vpop.f32.mrb[0].mxu0
    %v4264 = vpop.f32.mrb[0].mxu0
    %v4265 = vpop.f32.mrb[0].mxu0
    %4266 = vdwg.mxu0
    %4267 = vrot.lane.b32.xlu0 %v4096, 64
    %v4268 = vpop.permute.xlu0 %4267
    %v4270 = vsel %vm144, %v4218, 0
    %v4273 = vsel %vm269, %v4268, 0
    %4275 = vmatprep.subr.bf16.mxu0 0
    %4276 = vmatpush1.bf16.msra.mxu0 %v4273
    %4277 = vmatprep.subr.bf16.mxu0 0
    %4278 = vmatpush1.bf16.msra.mxu0 0
    %4279 = vmatprep.subr.bf16.mxu0 0
    %4280 = vmatpush1.bf16.msra.mxu0 0
    %4281 = vmatprep.subr.bf16.mxu0 0
    %4282 = vmatpush1.bf16.msra.mxu0 0
    %4283 = vmatprep.subr.bf16.mxu0 0
    %4284 = vmatpush1.bf16.msra.mxu0 0
    %4285 = vmatprep.subr.bf16.mxu0 0
    %4286 = vmatpush1.bf16.msra.mxu0 0
    %4287 = vmatprep.subr.bf16.mxu0 0
    %4288 = vmatpush1.bf16.msra.mxu0 0
    %4289 = vmatprep.subr.bf16.mxu0 0
    %4290 = vmatpush1.bf16.msra.mxu0 0
    %4291 = vmatprep.subr.bf16.mxu0 0
    %4292 = vmatpush1.bf16.msra.mxu0 0
    %4293 = vmatprep.subr.bf16.mxu0 0
    %4294 = vmatpush1.bf16.msra.mxu0 0
    %4295 = vmatprep.subr.bf16.mxu0 0
    %4296 = vmatpush1.bf16.msra.mxu0 0
    %4297 = vmatprep.subr.bf16.mxu0 0
    %4298 = vmatpush1.bf16.msra.mxu0 0
    %4299 = vmatprep.subr.bf16.mxu0 0
    %4300 = vmatpush1.bf16.msra.mxu0 0
    %4301 = vmatprep.subr.bf16.mxu0 0
    %4302 = vmatpush1.bf16.msra.mxu0 0
    %4303 = vmatprep.subr.bf16.mxu0 0
    %4304 = vmatpush1.bf16.msra.mxu0 0
    %4305 = vmatprep.subr.bf16.mxu0 0
    %4306 = vmatpush1.bf16.msra.mxu0 0
    %4307 = vmatprep.mubr.bf16.mxu0 0
    %4308 = vmatmul.mubr.bf16.gmra.mrb[0].mxu0 %v4270
    %v4309 = vpop.f32.mrb[0].mxu0
    %v4310 = vadd.f32 0.0, %v4309
    %v4311 = vpop.f32.mrb[0].mxu0
    %v4312 = vpop.f32.mrb[0].mxu0
    %v4313 = vpop.f32.mrb[0].mxu0
    %4314 = vdwg.mxu0
    %4316 = vrot.lane.b32.xlu0 %v4093, 120
    %v4317 = vpop.permute.xlu0 %4316
    %4318 = vrot.lane.b32.xlu0 %v4095, 88
    %v4319 = vpop.permute.xlu0 %4318
    %v4321 = vsel %vm144, %v4317, 0
    %v4324 = vsel %vm144, %v4319, 0
    %4326 = vmatprep.subr.bf16.mxu0 0
    %4327 = vmatpush1.bf16.xpose.msra.mxu0 %v4324
    %4328 = vmatprep.subr.bf16.mxu0 0
    %4329 = vmatpush1.bf16.xpose.msra.mxu0 0
    %4330 = vmatprep.subr.bf16.mxu0 0
    %4331 = vmatpush1.bf16.xpose.msra.mxu0 0
    %4332 = vmatprep.subr.bf16.mxu0 0
    %4333 = vmatpush1.bf16.xpose.msra.mxu0 0
    %4334 = vmatprep.subr.bf16.mxu0 0
    %4335 = vmatpush1.bf16.xpose.msra.mxu0 0
    %4336 = vmatprep.subr.bf16.mxu0 0
    %4337 = vmatpush1.bf16.xpose.msra.mxu0 0
    %4338 = vmatprep.subr.bf16.mxu0 0
    %4339 = vmatpush1.bf16.xpose.msra.mxu0 0
    %4340 = vmatprep.subr.bf16.mxu0 0
    %4341 = vmatpush1.bf16.xpose.msra.mxu0 0
    %4342 = vmatprep.subr.bf16.mxu0 0
    %4343 = vmatpush1.bf16.xpose.msra.mxu0 0
    %4344 = vmatprep.subr.bf16.mxu0 0
    %4345 = vmatpush1.bf16.xpose.msra.mxu0 0
    %4346 = vmatprep.subr.bf16.mxu0 0
    %4347 = vmatpush1.bf16.xpose.msra.mxu0 0
    %4348 = vmatprep.subr.bf16.mxu0 0
    %4349 = vmatpush1.bf16.xpose.msra.mxu0 0
    %4350 = vmatprep.subr.bf16.mxu0 0
    %4351 = vmatpush1.bf16.xpose.msra.mxu0 0
    %4352 = vmatprep.subr.bf16.mxu0 0
    %4353 = vmatpush1.bf16.xpose.msra.mxu0 0
    %4354 = vmatprep.subr.bf16.mxu0 0
    %4355 = vmatpush1.bf16.xpose.msra.mxu0 0
    %4356 = vmatprep.subr.bf16.mxu0 0
    %4357 = vmatpush1.bf16.xpose.msra.mxu0 0
    %4358 = vmatprep.mubr.bf16.mxu0 0
    %4359 = vmatmul.mubr.bf16.gmra.mrb[0].mxu0 %v4321
    %v4360 = vpop.f32.mrb[0].mxu0
    %v4361 = vadd.f32 %v65, %v4360
    %v4362 = vpop.f32.mrb[0].mxu0
    %v4363 = vpop.f32.mrb[0].mxu0
    %v4364 = vpop.f32.mrb[0].mxu0
    %4365 = vdwg.mxu0
    %4367 = vrot.lane.b32.xlu0 %v4094, 120
    %v4368 = vpop.permute.xlu0 %4367
    %4369 = vrot.lane.b32.xlu0 %v4096, 88
    %v4370 = vpop.permute.xlu0 %4369
    %v4372 = vsel %vm144, %v4368, 0
    %v4375 = vsel %vm144, %v4370, 0
    %4377 = vmatprep.subr.bf16.mxu0 0
    %4378 = vmatpush1.bf16.xpose.msra.mxu0 %v4375
    %4379 = vmatprep.subr.bf16.mxu0 0
    %4380 = vmatpush1.bf16.xpose.msra.mxu0 0
    %4381 = vmatprep.subr.bf16.mxu0 0
    %4382 = vmatpush1.bf16.xpose.msra.mxu0 0
    %4383 = vmatprep.subr.bf16.mxu0 0
    %4384 = vmatpush1.bf16.xpose.msra.mxu0 0
    %4385 = vmatprep.subr.bf16.mxu0 0
    %4386 = vmatpush1.bf16.xpose.msra.mxu0 0
    %4387 = vmatprep.subr.bf16.mxu0 0
    %4388 = vmatpush1.bf16.xpose.msra.mxu0 0
    %4389 = vmatprep.subr.bf16.mxu0 0
    %4390 = vmatpush1.bf16.xpose.msra.mxu0 0
    %4391 = vmatprep.subr.bf16.mxu0 0
    %4392 = vmatpush1.bf16.xpose.msra.mxu0 0
    %4393 = vmatprep.subr.bf16.mxu0 0
    %4394 = vmatpush1.bf16.xpose.msra.mxu0 0
    %4395 = vmatprep.subr.bf16.mxu0 0
    %4396 = vmatpush1.bf16.xpose.msra.mxu0 0
    %4397 = vmatprep.subr.bf16.mxu0 0
    %4398 = vmatpush1.bf16.xpose.msra.mxu0 0
    %4399 = vmatprep.subr.bf16.mxu0 0
    %4400 = vmatpush1.bf16.xpose.msra.mxu0 0
    %4401 = vmatprep.subr.bf16.mxu0 0
    %4402 = vmatpush1.bf16.xpose.msra.mxu0 0
    %4403 = vmatprep.subr.bf16.mxu0 0
    %4404 = vmatpush1.bf16.xpose.msra.mxu0 0
    %4405 = vmatprep.subr.bf16.mxu0 0
    %4406 = vmatpush1.bf16.xpose.msra.mxu0 0
    %4407 = vmatprep.subr.bf16.mxu0 0
    %4408 = vmatpush1.bf16.xpose.msra.mxu0 0
    %4409 = vmatprep.mubr.bf16.mxu0 0
    %4410 = vmatmul.mubr.bf16.gmra.mrb[0].mxu0 %v4372
    %v4411 = vpop.f32.mrb[0].mxu0
    %v4412 = vadd.f32 %v65, %v4411
    %v4413 = vpop.f32.mrb[0].mxu0
    %v4414 = vpop.f32.mrb[0].mxu0
    %v4415 = vpop.f32.mrb[0].mxu0
    %4416 = vdwg.mxu0
    %v4417 = vsel %vm144, %v4361, -inf
    %4418 = vmax.xlane.f32.xlu0 %v4417
    %v4419 = vpop.xlane.xlu0 %4418
    %v4420 = vsel %vm144, %v4412, -inf
    %4421 = vmax.xlane.f32.xlu0 %v4420
    %v4422 = vpop.xlane.xlu0 %4421
    %v4423 = vsub.f32 %v4361, %v4419
    %v4424 = vsub.f32 %v4412, %v4422
    %v4425 = vmul.f32 %v4423, 1.442695
    %v4426 = vpow.pop %v4425
    %v4427 = vmul.f32 %v4424, 1.442695
    %v4428 = vpow.pop %v4427
    %v4429 = vsel %vm144, %v4426, 0.0
    %4430 = vadd.xlane.f32.xlu0 %v4429
    %v4431 = vpop.xlane.xlu0 %4430
    %v4432 = vsel %vm144, %v4428, 0.0
    %4433 = vadd.xlane.f32.xlu0 %v4432
    %v4434 = vpop.xlane.xlu0 %4433
    %v4435 = vrcp.pop %v4431
    %v4436 = vrcp.pop %v4434
    %v4437 = vmul.f32 %v4426, %v4435
    %v4438 = vmul.f32 %v4428, %v4436
    %v4439 = vpack.c.bf16 %v4437, %v4437
    %v4440 = vpack.c.bf16 %v4438, %v4438
    %4441 = vrot.lane.b32.xlu0 %v4095, 56
    %v4442 = vpop.permute.xlu0 %4441
    %v4444 = vsel %vm144, %v4439, 0
    %v4447 = vsel %vm269, %v4442, 0
    %4449 = vmatprep.subr.bf16.mxu0 0
    %4450 = vmatpush1.bf16.msra.mxu0 %v4447
    %4451 = vmatprep.subr.bf16.mxu0 0
    %4452 = vmatpush1.bf16.msra.mxu0 0
    %4453 = vmatprep.subr.bf16.mxu0 0
    %4454 = vmatpush1.bf16.msra.mxu0 0
    %4455 = vmatprep.subr.bf16.mxu0 0
    %4456 = vmatpush1.bf16.msra.mxu0 0
    %4457 = vmatprep.subr.bf16.mxu0 0
    %4458 = vmatpush1.bf16.msra.mxu0 0
    %4459 = vmatprep.subr.bf16.mxu0 0
    %4460 = vmatpush1.bf16.msra.mxu0 0
    %4461 = vmatprep.subr.bf16.mxu0 0
    %4462 = vmatpush1.bf16.msra.mxu0 0
    %4463 = vmatprep.subr.bf16.mxu0 0
    %4464 = vmatpush1.bf16.msra.mxu0 0
    %4465 = vmatprep.subr.bf16.mxu0 0
    %4466 = vmatpush1.bf16.msra.mxu0 0
    %4467 = vmatprep.subr.bf16.mxu0 0
    %4468 = vmatpush1.bf16.msra.mxu0 0
    %4469 = vmatprep.subr.bf16.mxu0 0
    %4470 = vmatpush1.bf16.msra.mxu0 0
    %4471 = vmatprep.subr.bf16.mxu0 0
    %4472 = vmatpush1.bf16.msra.mxu0 0
    %4473 = vmatprep.subr.bf16.mxu0 0
    %4474 = vmatpush1.bf16.msra.mxu0 0
    %4475 = vmatprep.subr.bf16.mxu0 0
    %4476 = vmatpush1.bf16.msra.mxu0 0
    %4477 = vmatprep.subr.bf16.mxu0 0
    %4478 = vmatpush1.bf16.msra.mxu0 0
    %4479 = vmatprep.subr.bf16.mxu0 0
    %4480 = vmatpush1.bf16.msra.mxu0 0
    %4481 = vmatprep.mubr.bf16.mxu0 0
    %4482 = vmatmul.mubr.bf16.gmra.mrb[0].mxu0 %v4444
    %v4483 = vpop.f32.mrb[0].mxu0
    %v4484 = vadd.f32 0.0, %v4483
    %v4485 = vpop.f32.mrb[0].mxu0
    %v4486 = vpop.f32.mrb[0].mxu0
    %v4487 = vpop.f32.mrb[0].mxu0
    %4488 = vdwg.mxu0
    %4489 = vrot.lane.b32.xlu0 %v4096, 56
    %v4490 = vpop.permute.xlu0 %4489
    %v4492 = vsel %vm144, %v4440, 0
    %v4495 = vsel %vm269, %v4490, 0
    %4497 = vmatprep.subr.bf16.mxu0 0
    %4498 = vmatpush1.bf16.msra.mxu0 %v4495
    %4499 = vmatprep.subr.bf16.mxu0 0
    %4500 = vmatpush1.bf16.msra.mxu0 0
    %4501 = vmatprep.subr.bf16.mxu0 0
    %4502 = vmatpush1.bf16.msra.mxu0 0
    %4503 = vmatprep.subr.bf16.mxu0 0
    %4504 = vmatpush1.bf16.msra.mxu0 0
    %4505 = vmatprep.subr.bf16.mxu0 0
    %4506 = vmatpush1.bf16.msra.mxu0 0
    %4507 = vmatprep.subr.bf16.mxu0 0
    %4508 = vmatpush1.bf16.msra.mxu0 0
    %4509 = vmatprep.subr.bf16.mxu0 0
    %4510 = vmatpush1.bf16.msra.mxu0 0
    %4511 = vmatprep.subr.bf16.mxu0 0
    %4512 = vmatpush1.bf16.msra.mxu0 0
    %4513 = vmatprep.subr.bf16.mxu0 0
    %4514 = vmatpush1.bf16.msra.mxu0 0
    %4515 = vmatprep.subr.bf16.mxu0 0
    %4516 = vmatpush1.bf16.msra.mxu0 0
    %4517 = vmatprep.subr.bf16.mxu0 0
    %4518 = vmatpush1.bf16.msra.mxu0 0
    %4519 = vmatprep.subr.bf16.mxu0 0
    %4520 = vmatpush1.bf16.msra.mxu0 0
    %4521 = vmatprep.subr.bf16.mxu0 0
    %4522 = vmatpush1.bf16.msra.mxu0 0
    %4523 = vmatprep.subr.bf16.mxu0 0
    %4524 = vmatpush1.bf16.msra.mxu0 0
    %4525 = vmatprep.subr.bf16.mxu0 0
    %4526 = vmatpush1.bf16.msra.mxu0 0
    %4527 = vmatprep.subr.bf16.mxu0 0
    %4528 = vmatpush1.bf16.msra.mxu0 0
    %4529 = vmatprep.mubr.bf16.mxu0 0
    %4530 = vmatmul.mubr.bf16.gmra.mrb[0].mxu0 %v4492
    %v4531 = vpop.f32.mrb[0].mxu0
    %v4532 = vadd.f32 0.0, %v4531
    %v4533 = vpop.f32.mrb[0].mxu0
    %v4534 = vpop.f32.mrb[0].mxu0
    %v4535 = vpop.f32.mrb[0].mxu0
    %4536 = vdwg.mxu0
    %4537 = vrot.lane.b32.xlu0 %v4093, 112
    %v4538 = vpop.permute.xlu0 %4537
    %4539 = vrot.lane.b32.xlu0 %v4095, 80
    %v4540 = vpop.permute.xlu0 %4539
    %v4542 = vsel %vm144, %v4538, 0
    %v4545 = vsel %vm144, %v4540, 0
    %4547 = vmatprep.subr.bf16.mxu0 0
    %4548 = vmatpush1.bf16.xpose.msra.mxu0 %v4545
    %4549 = vmatprep.subr.bf16.mxu0 0
    %4550 = vmatpush1.bf16.xpose.msra.mxu0 0
    %4551 = vmatprep.subr.bf16.mxu0 0
    %4552 = vmatpush1.bf16.xpose.msra.mxu0 0
    %4553 = vmatprep.subr.bf16.mxu0 0
    %4554 = vmatpush1.bf16.xpose.msra.mxu0 0
    %4555 = vmatprep.subr.bf16.mxu0 0
    %4556 = vmatpush1.bf16.xpose.msra.mxu0 0
    %4557 = vmatprep.subr.bf16.mxu0 0
    %4558 = vmatpush1.bf16.xpose.msra.mxu0 0
    %4559 = vmatprep.subr.bf16.mxu0 0
    %4560 = vmatpush1.bf16.xpose.msra.mxu0 0
    %4561 = vmatprep.subr.bf16.mxu0 0
    %4562 = vmatpush1.bf16.xpose.msra.mxu0 0
    %4563 = vmatprep.subr.bf16.mxu0 0
    %4564 = vmatpush1.bf16.xpose.msra.mxu0 0
    %4565 = vmatprep.subr.bf16.mxu0 0
    %4566 = vmatpush1.bf16.xpose.msra.mxu0 0
    %4567 = vmatprep.subr.bf16.mxu0 0
    %4568 = vmatpush1.bf16.xpose.msra.mxu0 0
    %4569 = vmatprep.subr.bf16.mxu0 0
    %4570 = vmatpush1.bf16.xpose.msra.mxu0 0
    %4571 = vmatprep.subr.bf16.mxu0 0
    %4572 = vmatpush1.bf16.xpose.msra.mxu0 0
    %4573 = vmatprep.subr.bf16.mxu0 0
    %4574 = vmatpush1.bf16.xpose.msra.mxu0 0
    %4575 = vmatprep.subr.bf16.mxu0 0
    %4576 = vmatpush1.bf16.xpose.msra.mxu0 0
    %4577 = vmatprep.subr.bf16.mxu0 0
    %4578 = vmatpush1.bf16.xpose.msra.mxu0 0
    %4579 = vmatprep.mubr.bf16.mxu0 0
    %4580 = vmatmul.mubr.bf16.gmra.mrb[0].mxu0 %v4542
    %v4581 = vpop.f32.mrb[0].mxu0
    %v4582 = vadd.f32 %v65, %v4581
    %v4583 = vpop.f32.mrb[0].mxu0
    %v4584 = vpop.f32.mrb[0].mxu0
    %v4585 = vpop.f32.mrb[0].mxu0
    %4586 = vdwg.mxu0
    %4587 = vrot.lane.b32.xlu0 %v4094, 112
    %v4588 = vpop.permute.xlu0 %4587
    %4589 = vrot.lane.b32.xlu0 %v4096, 80
    %v4590 = vpop.permute.xlu0 %4589
    %v4592 = vsel %vm144, %v4588, 0
    %v4595 = vsel %vm144, %v4590, 0
    %4597 = vmatprep.subr.bf16.mxu0 0
    %4598 = vmatpush1.bf16.xpose.msra.mxu0 %v4595
    %4599 = vmatprep.subr.bf16.mxu0 0
    %4600 = vmatpush1.bf16.xpose.msra.mxu0 0
    %4601 = vmatprep.subr.bf16.mxu0 0
    %4602 = vmatpush1.bf16.xpose.msra.mxu0 0
    %4603 = vmatprep.subr.bf16.mxu0 0
    %4604 = vmatpush1.bf16.xpose.msra.mxu0 0
    %4605 = vmatprep.subr.bf16.mxu0 0
    %4606 = vmatpush1.bf16.xpose.msra.mxu0 0
    %4607 = vmatprep.subr.bf16.mxu0 0
    %4608 = vmatpush1.bf16.xpose.msra.mxu0 0
    %4609 = vmatprep.subr.bf16.mxu0 0
    %4610 = vmatpush1.bf16.xpose.msra.mxu0 0
    %4611 = vmatprep.subr.bf16.mxu0 0
    %4612 = vmatpush1.bf16.xpose.msra.mxu0 0
    %4613 = vmatprep.subr.bf16.mxu0 0
    %4614 = vmatpush1.bf16.xpose.msra.mxu0 0
    %4615 = vmatprep.subr.bf16.mxu0 0
    %4616 = vmatpush1.bf16.xpose.msra.mxu0 0
    %4617 = vmatprep.subr.bf16.mxu0 0
    %4618 = vmatpush1.bf16.xpose.msra.mxu0 0
    %4619 = vmatprep.subr.bf16.mxu0 0
    %4620 = vmatpush1.bf16.xpose.msra.mxu0 0
    %4621 = vmatprep.subr.bf16.mxu0 0
    %4622 = vmatpush1.bf16.xpose.msra.mxu0 0
    %4623 = vmatprep.subr.bf16.mxu0 0
    %4624 = vmatpush1.bf16.xpose.msra.mxu0 0
    %4625 = vmatprep.subr.bf16.mxu0 0
    %4626 = vmatpush1.bf16.xpose.msra.mxu0 0
    %4627 = vmatprep.subr.bf16.mxu0 0
    %4628 = vmatpush1.bf16.xpose.msra.mxu0 0
    %4629 = vmatprep.mubr.bf16.mxu0 0
    %4630 = vmatmul.mubr.bf16.gmra.mrb[0].mxu0 %v4592
    %v4631 = vpop.f32.mrb[0].mxu0
    %v4632 = vadd.f32 %v65, %v4631
    %v4633 = vpop.f32.mrb[0].mxu0
    %v4634 = vpop.f32.mrb[0].mxu0
    %v4635 = vpop.f32.mrb[0].mxu0
    %4636 = vdwg.mxu0
    %v4637 = vsel %vm144, %v4582, -inf
    %4638 = vmax.xlane.f32.xlu0 %v4637
    %v4639 = vpop.xlane.xlu0 %4638
    %v4640 = vsel %vm144, %v4632, -inf
    %4641 = vmax.xlane.f32.xlu0 %v4640
    %v4642 = vpop.xlane.xlu0 %4641
    %v4643 = vsub.f32 %v4582, %v4639
    %v4644 = vsub.f32 %v4632, %v4642
    %v4645 = vmul.f32 %v4643, 1.442695
    %v4646 = vpow.pop %v4645
    %v4647 = vmul.f32 %v4644, 1.442695
    %v4648 = vpow.pop %v4647
    %v4649 = vsel %vm144, %v4646, 0.0
    %4650 = vadd.xlane.f32.xlu0 %v4649
    %v4651 = vpop.xlane.xlu0 %4650
    %v4652 = vsel %vm144, %v4648, 0.0
    %4653 = vadd.xlane.f32.xlu0 %v4652
    %v4654 = vpop.xlane.xlu0 %4653
    %v4655 = vrcp.pop %v4651
    %v4656 = vrcp.pop %v4654
    %v4657 = vmul.f32 %v4646, %v4655
    %v4658 = vmul.f32 %v4648, %v4656
    %v4659 = vpack.c.bf16 %v4657, %v4657
    %v4660 = vpack.c.bf16 %v4658, %v4658
    %4661 = vrot.lane.b32.xlu0 %v4095, 48
    %v4662 = vpop.permute.xlu0 %4661
    %v4664 = vsel %vm144, %v4659, 0
    %v4667 = vsel %vm269, %v4662, 0
    %4669 = vmatprep.subr.bf16.mxu0 0
    %4670 = vmatpush1.bf16.msra.mxu0 %v4667
    %4671 = vmatprep.subr.bf16.mxu0 0
    %4672 = vmatpush1.bf16.msra.mxu0 0
    %4673 = vmatprep.subr.bf16.mxu0 0
    %4674 = vmatpush1.bf16.msra.mxu0 0
    %4675 = vmatprep.subr.bf16.mxu0 0
    %4676 = vmatpush1.bf16.msra.mxu0 0
    %4677 = vmatprep.subr.bf16.mxu0 0
    %4678 = vmatpush1.bf16.msra.mxu0 0
    %4679 = vmatprep.subr.bf16.mxu0 0
    %4680 = vmatpush1.bf16.msra.mxu0 0
    %4681 = vmatprep.subr.bf16.mxu0 0
    %4682 = vmatpush1.bf16.msra.mxu0 0
    %4683 = vmatprep.subr.bf16.mxu0 0
    %4684 = vmatpush1.bf16.msra.mxu0 0
    %4685 = vmatprep.subr.bf16.mxu0 0
    %4686 = vmatpush1.bf16.msra.mxu0 0
    %4687 = vmatprep.subr.bf16.mxu0 0
    %4688 = vmatpush1.bf16.msra.mxu0 0
    %4689 = vmatprep.subr.bf16.mxu0 0
    %4690 = vmatpush1.bf16.msra.mxu0 0
    %4691 = vmatprep.subr.bf16.mxu0 0
    %4692 = vmatpush1.bf16.msra.mxu0 0
    %4693 = vmatprep.subr.bf16.mxu0 0
    %4694 = vmatpush1.bf16.msra.mxu0 0
    %4695 = vmatprep.subr.bf16.mxu0 0
    %4696 = vmatpush1.bf16.msra.mxu0 0
    %4697 = vmatprep.subr.bf16.mxu0 0
    %4698 = vmatpush1.bf16.msra.mxu0 0
    %4699 = vmatprep.subr.bf16.mxu0 0
    %4700 = vmatpush1.bf16.msra.mxu0 0
    %4701 = vmatprep.mubr.bf16.mxu0 0
    %4702 = vmatmul.mubr.bf16.gmra.mrb[0].mxu0 %v4664
    %v4703 = vpop.f32.mrb[0].mxu0
    %v4704 = vadd.f32 0.0, %v4703
    %v4705 = vpop.f32.mrb[0].mxu0
    %v4706 = vpop.f32.mrb[0].mxu0
    %v4707 = vpop.f32.mrb[0].mxu0
    %4708 = vdwg.mxu0
    %4709 = vrot.lane.b32.xlu0 %v4096, 48
    %v4710 = vpop.permute.xlu0 %4709
    %v4712 = vsel %vm144, %v4660, 0
    %v4715 = vsel %vm269, %v4710, 0
    %4717 = vmatprep.subr.bf16.mxu0 0
    %4718 = vmatpush1.bf16.msra.mxu0 %v4715
    %4719 = vmatprep.subr.bf16.mxu0 0
    %4720 = vmatpush1.bf16.msra.mxu0 0
    %4721 = vmatprep.subr.bf16.mxu0 0
    %4722 = vmatpush1.bf16.msra.mxu0 0
    %4723 = vmatprep.subr.bf16.mxu0 0
    %4724 = vmatpush1.bf16.msra.mxu0 0
    %4725 = vmatprep.subr.bf16.mxu0 0
    %4726 = vmatpush1.bf16.msra.mxu0 0
    %4727 = vmatprep.subr.bf16.mxu0 0
    %4728 = vmatpush1.bf16.msra.mxu0 0
    %4729 = vmatprep.subr.bf16.mxu0 0
    %4730 = vmatpush1.bf16.msra.mxu0 0
    %4731 = vmatprep.subr.bf16.mxu0 0
    %4732 = vmatpush1.bf16.msra.mxu0 0
    %4733 = vmatprep.subr.bf16.mxu0 0
    %4734 = vmatpush1.bf16.msra.mxu0 0
    %4735 = vmatprep.subr.bf16.mxu0 0
    %4736 = vmatpush1.bf16.msra.mxu0 0
    %4737 = vmatprep.subr.bf16.mxu0 0
    %4738 = vmatpush1.bf16.msra.mxu0 0
    %4739 = vmatprep.subr.bf16.mxu0 0
    %4740 = vmatpush1.bf16.msra.mxu0 0
    %4741 = vmatprep.subr.bf16.mxu0 0
    %4742 = vmatpush1.bf16.msra.mxu0 0
    %4743 = vmatprep.subr.bf16.mxu0 0
    %4744 = vmatpush1.bf16.msra.mxu0 0
    %4745 = vmatprep.subr.bf16.mxu0 0
    %4746 = vmatpush1.bf16.msra.mxu0 0
    %4747 = vmatprep.subr.bf16.mxu0 0
    %4748 = vmatpush1.bf16.msra.mxu0 0
    %4749 = vmatprep.mubr.bf16.mxu0 0
    %4750 = vmatmul.mubr.bf16.gmra.mrb[0].mxu0 %v4712
    %v4751 = vpop.f32.mrb[0].mxu0
    %v4752 = vadd.f32 0.0, %v4751
    %v4753 = vpop.f32.mrb[0].mxu0
    %v4754 = vpop.f32.mrb[0].mxu0
    %v4755 = vpop.f32.mrb[0].mxu0
    %4756 = vdwg.mxu0
    %4757 = vrot.lane.b32.xlu0 %v4093, 104
    %v4758 = vpop.permute.xlu0 %4757
    %4759 = vrot.lane.b32.xlu0 %v4095, 72
    %v4760 = vpop.permute.xlu0 %4759
    %v4762 = vsel %vm144, %v4758, 0
    %v4765 = vsel %vm144, %v4760, 0
    %4767 = vmatprep.subr.bf16.mxu0 0
    %4768 = vmatpush1.bf16.xpose.msra.mxu0 %v4765
    %4769 = vmatprep.subr.bf16.mxu0 0
    %4770 = vmatpush1.bf16.xpose.msra.mxu0 0
    %4771 = vmatprep.subr.bf16.mxu0 0
    %4772 = vmatpush1.bf16.xpose.msra.mxu0 0
    %4773 = vmatprep.subr.bf16.mxu0 0
    %4774 = vmatpush1.bf16.xpose.msra.mxu0 0
    %4775 = vmatprep.subr.bf16.mxu0 0
    %4776 = vmatpush1.bf16.xpose.msra.mxu0 0
    %4777 = vmatprep.subr.bf16.mxu0 0
    %4778 = vmatpush1.bf16.xpose.msra.mxu0 0
    %4779 = vmatprep.subr.bf16.mxu0 0
    %4780 = vmatpush1.bf16.xpose.msra.mxu0 0
    %4781 = vmatprep.subr.bf16.mxu0 0
    %4782 = vmatpush1.bf16.xpose.msra.mxu0 0
    %4783 = vmatprep.subr.bf16.mxu0 0
    %4784 = vmatpush1.bf16.xpose.msra.mxu0 0
    %4785 = vmatprep.subr.bf16.mxu0 0
    %4786 = vmatpush1.bf16.xpose.msra.mxu0 0
    %4787 = vmatprep.subr.bf16.mxu0 0
    %4788 = vmatpush1.bf16.xpose.msra.mxu0 0
    %4789 = vmatprep.subr.bf16.mxu0 0
    %4790 = vmatpush1.bf16.xpose.msra.mxu0 0
    %4791 = vmatprep.subr.bf16.mxu0 0
    %4792 = vmatpush1.bf16.xpose.msra.mxu0 0
    %4793 = vmatprep.subr.bf16.mxu0 0
    %4794 = vmatpush1.bf16.xpose.msra.mxu0 0
    %4795 = vmatprep.subr.bf16.mxu0 0
    %4796 = vmatpush1.bf16.xpose.msra.mxu0 0
    %4797 = vmatprep.subr.bf16.mxu0 0
    %4798 = vmatpush1.bf16.xpose.msra.mxu0 0
    %4799 = vmatprep.mubr.bf16.mxu0 0
    %4800 = vmatmul.mubr.bf16.gmra.mrb[0].mxu0 %v4762
    %v4801 = vpop.f32.mrb[0].mxu0
    %v4802 = vadd.f32 %v65, %v4801
    %v4803 = vpop.f32.mrb[0].mxu0
    %v4804 = vpop.f32.mrb[0].mxu0
    %v4805 = vpop.f32.mrb[0].mxu0
    %4806 = vdwg.mxu0
    %4807 = vrot.lane.b32.xlu0 %v4094, 104
    %v4808 = vpop.permute.xlu0 %4807
    %4809 = vrot.lane.b32.xlu0 %v4096, 72
    %v4810 = vpop.permute.xlu0 %4809
    %v4812 = vsel %vm144, %v4808, 0
    %v4815 = vsel %vm144, %v4810, 0
    %4817 = vmatprep.subr.bf16.mxu0 0
    %4818 = vmatpush1.bf16.xpose.msra.mxu0 %v4815
    %4819 = vmatprep.subr.bf16.mxu0 0
    %4820 = vmatpush1.bf16.xpose.msra.mxu0 0
    %4821 = vmatprep.subr.bf16.mxu0 0
    %4822 = vmatpush1.bf16.xpose.msra.mxu0 0
    %4823 = vmatprep.subr.bf16.mxu0 0
    %4824 = vmatpush1.bf16.xpose.msra.mxu0 0
    %4825 = vmatprep.subr.bf16.mxu0 0
    %4826 = vmatpush1.bf16.xpose.msra.mxu0 0
    %4827 = vmatprep.subr.bf16.mxu0 0
    %4828 = vmatpush1.bf16.xpose.msra.mxu0 0
    %4829 = vmatprep.subr.bf16.mxu0 0
    %4830 = vmatpush1.bf16.xpose.msra.mxu0 0
    %4831 = vmatprep.subr.bf16.mxu0 0
    %4832 = vmatpush1.bf16.xpose.msra.mxu0 0
    %4833 = vmatprep.subr.bf16.mxu0 0
    %4834 = vmatpush1.bf16.xpose.msra.mxu0 0
    %4835 = vmatprep.subr.bf16.mxu0 0
    %4836 = vmatpush1.bf16.xpose.msra.mxu0 0
    %4837 = vmatprep.subr.bf16.mxu0 0
    %4838 = vmatpush1.bf16.xpose.msra.mxu0 0
    %4839 = vmatprep.subr.bf16.mxu0 0
    %4840 = vmatpush1.bf16.xpose.msra.mxu0 0
    %4841 = vmatprep.subr.bf16.mxu0 0
    %4842 = vmatpush1.bf16.xpose.msra.mxu0 0
    %4843 = vmatprep.subr.bf16.mxu0 0
    %4844 = vmatpush1.bf16.xpose.msra.mxu0 0
    %4845 = vmatprep.subr.bf16.mxu0 0
    %4846 = vmatpush1.bf16.xpose.msra.mxu0 0
    %4847 = vmatprep.subr.bf16.mxu0 0
    %4848 = vmatpush1.bf16.xpose.msra.mxu0 0
    %4849 = vmatprep.mubr.bf16.mxu0 0
    %4850 = vmatmul.mubr.bf16.gmra.mrb[0].mxu0 %v4812
    %v4851 = vpop.f32.mrb[0].mxu0
    %v4852 = vadd.f32 %v65, %v4851
    %v4853 = vpop.f32.mrb[0].mxu0
    %v4854 = vpop.f32.mrb[0].mxu0
    %v4855 = vpop.f32.mrb[0].mxu0
    %4856 = vdwg.mxu0
    %v4857 = vsel %vm144, %v4802, -inf
    %4858 = vmax.xlane.f32.xlu0 %v4857
    %v4859 = vpop.xlane.xlu0 %4858
    %v4860 = vsel %vm144, %v4852, -inf
    %4861 = vmax.xlane.f32.xlu0 %v4860
    %v4862 = vpop.xlane.xlu0 %4861
    %v4863 = vsub.f32 %v4802, %v4859
    %v4864 = vsub.f32 %v4852, %v4862
    %v4865 = vmul.f32 %v4863, 1.442695
    %v4866 = vpow.pop %v4865
    %v4867 = vmul.f32 %v4864, 1.442695
    %v4868 = vpow.pop %v4867
    %v4869 = vsel %vm144, %v4866, 0.0
    %4870 = vadd.xlane.f32.xlu0 %v4869
    %v4871 = vpop.xlane.xlu0 %4870
    %v4872 = vsel %vm144, %v4868, 0.0
    %4873 = vadd.xlane.f32.xlu0 %v4872
    %v4874 = vpop.xlane.xlu0 %4873
    %v4875 = vrcp.pop %v4871
    %v4876 = vrcp.pop %v4874
    %v4877 = vmul.f32 %v4866, %v4875
    %v4878 = vmul.f32 %v4868, %v4876
    %v4879 = vpack.c.bf16 %v4877, %v4877
    %v4880 = vpack.c.bf16 %v4878, %v4878
    %4881 = vrot.lane.b32.xlu0 %v4095, 40
    %v4882 = vpop.permute.xlu0 %4881
    %v4884 = vsel %vm144, %v4879, 0
    %v4887 = vsel %vm269, %v4882, 0
    %4889 = vmatprep.subr.bf16.mxu0 0
    %4890 = vmatpush1.bf16.msra.mxu0 %v4887
    %4891 = vmatprep.subr.bf16.mxu0 0
    %4892 = vmatpush1.bf16.msra.mxu0 0
    %4893 = vmatprep.subr.bf16.mxu0 0
    %4894 = vmatpush1.bf16.msra.mxu0 0
    %4895 = vmatprep.subr.bf16.mxu0 0
    %4896 = vmatpush1.bf16.msra.mxu0 0
    %4897 = vmatprep.subr.bf16.mxu0 0
    %4898 = vmatpush1.bf16.msra.mxu0 0
    %4899 = vmatprep.subr.bf16.mxu0 0
    %4900 = vmatpush1.bf16.msra.mxu0 0
    %4901 = vmatprep.subr.bf16.mxu0 0
    %4902 = vmatpush1.bf16.msra.mxu0 0
    %4903 = vmatprep.subr.bf16.mxu0 0
    %4904 = vmatpush1.bf16.msra.mxu0 0
    %4905 = vmatprep.subr.bf16.mxu0 0
    %4906 = vmatpush1.bf16.msra.mxu0 0
    %4907 = vmatprep.subr.bf16.mxu0 0
    %4908 = vmatpush1.bf16.msra.mxu0 0
    %4909 = vmatprep.subr.bf16.mxu0 0
    %4910 = vmatpush1.bf16.msra.mxu0 0
    %4911 = vmatprep.subr.bf16.mxu0 0
    %4912 = vmatpush1.bf16.msra.mxu0 0
    %4913 = vmatprep.subr.bf16.mxu0 0
    %4914 = vmatpush1.bf16.msra.mxu0 0
    %4915 = vmatprep.subr.bf16.mxu0 0
    %4916 = vmatpush1.bf16.msra.mxu0 0
    %4917 = vmatprep.subr.bf16.mxu0 0
    %4918 = vmatpush1.bf16.msra.mxu0 0
    %4919 = vmatprep.subr.bf16.mxu0 0
    %4920 = vmatpush1.bf16.msra.mxu0 0
    %4921 = vmatprep.mubr.bf16.mxu0 0
    %4922 = vmatmul.mubr.bf16.gmra.mrb[0].mxu0 %v4884
    %v4923 = vpop.f32.mrb[0].mxu0
    %v4924 = vadd.f32 0.0, %v4923
    %v4925 = vpop.f32.mrb[0].mxu0
    %v4926 = vpop.f32.mrb[0].mxu0
    %v4927 = vpop.f32.mrb[0].mxu0
    %4928 = vdwg.mxu0
    %4929 = vrot.lane.b32.xlu0 %v4096, 40
    %v4930 = vpop.permute.xlu0 %4929
    %v4932 = vsel %vm144, %v4880, 0
    %v4935 = vsel %vm269, %v4930, 0
    %4937 = vmatprep.subr.bf16.mxu0 0
    %4938 = vmatpush1.bf16.msra.mxu0 %v4935
    %4939 = vmatprep.subr.bf16.mxu0 0
    %4940 = vmatpush1.bf16.msra.mxu0 0
    %4941 = vmatprep.subr.bf16.mxu0 0
    %4942 = vmatpush1.bf16.msra.mxu0 0
    %4943 = vmatprep.subr.bf16.mxu0 0
    %4944 = vmatpush1.bf16.msra.mxu0 0
    %4945 = vmatprep.subr.bf16.mxu0 0
    %4946 = vmatpush1.bf16.msra.mxu0 0
    %4947 = vmatprep.subr.bf16.mxu0 0
    %4948 = vmatpush1.bf16.msra.mxu0 0
    %4949 = vmatprep.subr.bf16.mxu0 0
    %4950 = vmatpush1.bf16.msra.mxu0 0
    %4951 = vmatprep.subr.bf16.mxu0 0
    %4952 = vmatpush1.bf16.msra.mxu0 0
    %4953 = vmatprep.subr.bf16.mxu0 0
    %4954 = vmatpush1.bf16.msra.mxu0 0
    %4955 = vmatprep.subr.bf16.mxu0 0
    %4956 = vmatpush1.bf16.msra.mxu0 0
    %4957 = vmatprep.subr.bf16.mxu0 0
    %4958 = vmatpush1.bf16.msra.mxu0 0
    %4959 = vmatprep.subr.bf16.mxu0 0
    %4960 = vmatpush1.bf16.msra.mxu0 0
    %4961 = vmatprep.subr.bf16.mxu0 0
    %4962 = vmatpush1.bf16.msra.mxu0 0
    %4963 = vmatprep.subr.bf16.mxu0 0
    %4964 = vmatpush1.bf16.msra.mxu0 0
    %4965 = vmatprep.subr.bf16.mxu0 0
    %4966 = vmatpush1.bf16.msra.mxu0 0
    %4967 = vmatprep.subr.bf16.mxu0 0
    %4968 = vmatpush1.bf16.msra.mxu0 0
    %4969 = vmatprep.mubr.bf16.mxu0 0
    %4970 = vmatmul.mubr.bf16.gmra.mrb[0].mxu0 %v4932
    %v4971 = vpop.f32.mrb[0].mxu0
    %v4972 = vadd.f32 0.0, %v4971
    %v4973 = vpop.f32.mrb[0].mxu0
    %v4974 = vpop.f32.mrb[0].mxu0
    %v4975 = vpop.f32.mrb[0].mxu0
    %4976 = vdwg.mxu0
    %4979 = vrot.lane.b32.xlu0 %v4484, 8
    %v4980 = vpop.permute.xlu0 %4979
    %4981 = vrot.lane.b32.xlu0 %v4532, 8
    %v4982 = vpop.permute.xlu0 %4981
    %4987 = vrot.lane.b32.xlu0 %v4704, 16
    %v4988 = vpop.permute.xlu0 %4987
    %4989 = vrot.lane.b32.xlu0 %v4752, 16
    %v4990 = vpop.permute.xlu0 %4989
    %4995 = vrot.lane.b32.xlu0 %v4924, 24
    %v4996 = vpop.permute.xlu0 %4995
    %4997 = vrot.lane.b32.xlu0 %v4972, 24
    %v4998 = vpop.permute.xlu0 %4997
    %v5001 = vsel %vm144, %v4262, %v4980
    %v5002 = vsel %vm144, %v4310, %v4982
    %v5003 = vsel %vm1049, %v5001, %v4988
    %v5004 = vsel %vm1049, %v5002, %v4990
    %v5005 = vsel %vm1052, %v5003, %v4996
    %v5006 = vsel %vm1052, %v5004, %v4998
    %v5007 = vld [vmem:[%s2357] sm:$0xf]
    %v5008 = vld [vmem:[%s2357 + $0x4] sm:$0xf]
    %v5009 = vld [vmem:[%s2357 + $0x8] sm:$0xf]
    %v5010 = vld [vmem:[%s2357 + $0xc] sm:$0xf]
    %v5011 = vpack.c.bf16 %v5006, %v5005
    %v5012 = vld [vmem:[%s2363] sm:$0x1]
    %v5014 = vlaneseq
    %v5015 = vshrl.u32 %v5014, 7
    %v5016 = vsub.s32 0, %v5015
    %v5017 = vrot.slane %v5012, %v5016
    %v5023 = vunpack.c.l.b16 %v5007
    %v5024 = vunpack.c.l.b16 %v5008
    %v5025 = vunpack.c.l.b16 %v5009
    %v5026 = vunpack.c.l.b16 %v5010
    %v5027 = vpack.c.b16 %v5024, %v5023
    %v5028 = vpack.c.b16 %v5026, %v5025
    %v5032 = vsel %vm90, %v5011, 0
    %5034 = vmatprep.subr.bf16.mxu0 0
    %5035 = vmatpush1.bf16.msra.mxu0 %v5027
    %5036 = vmatprep.subr.bf16.mxu0 0
    %5037 = vmatpush1.bf16.msra.mxu0 %v5028
    %5038 = vmatprep.subr.bf16.mxu0 0
    %5039 = vmatpush1.bf16.msra.mxu0 0
    %5040 = vmatprep.subr.bf16.mxu0 0
    %5041 = vmatpush1.bf16.msra.mxu0 0
    %5042 = vmatprep.subr.bf16.mxu0 0
    %5043 = vmatpush1.bf16.msra.mxu0 0
    %5044 = vmatprep.subr.bf16.mxu0 0
    %5045 = vmatpush1.bf16.msra.mxu0 0
    %5046 = vmatprep.subr.bf16.mxu0 0
    %5047 = vmatpush1.bf16.msra.mxu0 0
    %5048 = vmatprep.subr.bf16.mxu0 0
    %5049 = vmatpush1.bf16.msra.mxu0 0
    %5050 = vmatprep.subr.bf16.mxu0 0
    %5051 = vmatpush1.bf16.msra.mxu0 0
    %5052 = vmatprep.subr.bf16.mxu0 0
    %5053 = vmatpush1.bf16.msra.mxu0 0
    %5054 = vmatprep.subr.bf16.mxu0 0
    %5055 = vmatpush1.bf16.msra.mxu0 0
    %5056 = vmatprep.subr.bf16.mxu0 0
    %5057 = vmatpush1.bf16.msra.mxu0 0
    %5058 = vmatprep.subr.bf16.mxu0 0
    %5059 = vmatpush1.bf16.msra.mxu0 0
    %5060 = vmatprep.subr.bf16.mxu0 0
    %5061 = vmatpush1.bf16.msra.mxu0 0
    %5062 = vmatprep.subr.bf16.mxu0 0
    %5063 = vmatpush1.bf16.msra.mxu0 0
    %5064 = vmatprep.subr.bf16.mxu0 0
    %5065 = vmatpush1.bf16.msra.mxu0 0
    %5066 = vmatprep.mubr.bf16.mxu0 0
    %5067 = vmatmul.mubr.bf16.gmra.mrb[0].mxu0 %v5032
    %v5068 = vpop.f32.mrb[0].mxu0
    %v5069 = vadd.f32 %v5017, %v5068
    %v5070 = vpop.f32.mrb[0].mxu0
    %v5071 = vpop.f32.mrb[0].mxu0
    %v5072 = vadd.f32 %v5017, %v5071
    %v5073 = vpop.f32.mrb[0].mxu0
    %5074 = vdwg.mxu0
    %v5075 = vadd.f32 %v4021, %v5069
    %v5076 = vadd.f32 %v4022, %v5072
    %v5077 = vld [vmem:[%s2429] sm:$0x1]
    %v5078 = vld [vmem:[%s2431] sm:$0x1]
    %v5079 = vsel %vm90, %v5075, 0.0
    %5080 = vadd.xlane.f32.xlu0 %v5079
    %v5081 = vpop.xlane.xlu0 %5080
    %v5082 = vsel %vm90, %v5076, 0.0
    %5083 = vadd.xlane.f32.xlu0 %v5082
    %v5084 = vpop.xlane.xlu0 %5083
    %v5085 = vmul.f32 %v5081, %v1133
    %v5086 = vmul.f32 %v5084, %v1133
    %v5087 = vsub.f32 %v5075, %v5085
    %v5088 = vsub.f32 %v5076, %v5086
    %v5089 = vmul.f32 %v5087, %v5087
    %v5090 = vmul.f32 %v5088, %v5088
    %v5091 = vsel %vm90, %v5089, 0.0
    %5092 = vadd.xlane.f32.xlu0 %v5091
    %v5093 = vpop.xlane.xlu0 %5092
    %v5094 = vsel %vm90, %v5090, 0.0
    %5095 = vadd.xlane.f32.xlu0 %v5094
    %v5096 = vpop.xlane.xlu0 %5095
    %v5097 = vmul.f32 %v5093, %v1133
    %v5098 = vmul.f32 %v5096, %v1133
    %v5099 = vadd.f32 %v5097, 1e-05
    %v5100 = vadd.f32 %v5098, 1e-05
    %v5101 = vrsqrt.pop %v5099
    %v5102 = vrsqrt.pop %v5100
    %v5103 = vmul.f32 %v5087, %v5101
    %v5104 = vmul.f32 %v5088, %v5102
    %v5106 = vlaneseq
    %v5107 = vshrl.u32 %v5106, 7
    %v5108 = vsub.s32 0, %v5107
    %v5109 = vrot.slane %v5077, %v5108
    %v5111 = vmul.f32 %v5103, %v5109
    %v5112 = vmul.f32 %v5104, %v5109
    %v5114 = vlaneseq
    %v5115 = vshrl.u32 %v5114, 7
    %v5116 = vsub.s32 0, %v5115
    %v5117 = vrot.slane %v5078, %v5116
    %v5119 = vadd.f32 %v5111, %v5117
    %v5120 = vadd.f32 %v5112, %v5117
    %v5121 = vld [vmem:[%s2475] sm:$0xf]
    %v5122 = vld [vmem:[%s2475 + $0x4] sm:$0xf]
    %v5123 = vld [vmem:[%s2475 + $0x8] sm:$0xf]
    %v5124 = vld [vmem:[%s2475 + $0xc] sm:$0xf]
    %v5125 = vpack.c.bf16 %v5120, %v5119
    %v5126 = vld [vmem:[%s2481] sm:$0x1]
    %v5128 = vlaneseq
    %v5129 = vshrl.u32 %v5128, 7
    %v5130 = vsub.s32 0, %v5129
    %v5131 = vrot.slane %v5126, %v5130
    %v5137 = vunpack.c.l.b16 %v5121
    %v5138 = vunpack.c.l.b16 %v5122
    %v5139 = vunpack.c.l.b16 %v5123
    %v5140 = vunpack.c.l.b16 %v5124
    %v5141 = vpack.c.b16 %v5138, %v5137
    %v5142 = vpack.c.b16 %v5140, %v5139
    %v5146 = vsel %vm90, %v5125, 0
    %5148 = vmatprep.subr.bf16.mxu0 0
    %5149 = vmatpush1.bf16.msra.mxu0 %v5141
    %5150 = vmatprep.subr.bf16.mxu0 0
    %5151 = vmatpush1.bf16.msra.mxu0 %v5142
    %5152 = vmatprep.subr.bf16.mxu0 0
    %5153 = vmatpush1.bf16.msra.mxu0 0
    %5154 = vmatprep.subr.bf16.mxu0 0
    %5155 = vmatpush1.bf16.msra.mxu0 0
    %5156 = vmatprep.subr.bf16.mxu0 0
    %5157 = vmatpush1.bf16.msra.mxu0 0
    %5158 = vmatprep.subr.bf16.mxu0 0
    %5159 = vmatpush1.bf16.msra.mxu0 0
    %5160 = vmatprep.subr.bf16.mxu0 0
    %5161 = vmatpush1.bf16.msra.mxu0 0
    %5162 = vmatprep.subr.bf16.mxu0 0
    %5163 = vmatpush1.bf16.msra.mxu0 0
    %5164 = vmatprep.subr.bf16.mxu0 0
    %5165 = vmatpush1.bf16.msra.mxu0 0
    %5166 = vmatprep.subr.bf16.mxu0 0
    %5167 = vmatpush1.bf16.msra.mxu0 0
    %5168 = vmatprep.subr.bf16.mxu0 0
    %5169 = vmatpush1.bf16.msra.mxu0 0
    %5170 = vmatprep.subr.bf16.mxu0 0
    %5171 = vmatpush1.bf16.msra.mxu0 0
    %5172 = vmatprep.subr.bf16.mxu0 0
    %5173 = vmatpush1.bf16.msra.mxu0 0
    %5174 = vmatprep.subr.bf16.mxu0 0
    %5175 = vmatpush1.bf16.msra.mxu0 0
    %5176 = vmatprep.subr.bf16.mxu0 0
    %5177 = vmatpush1.bf16.msra.mxu0 0
    %5178 = vmatprep.subr.bf16.mxu0 0
    %5179 = vmatpush1.bf16.msra.mxu0 0
    %5180 = vmatprep.mubr.bf16.mxu0 0
    %5181 = vmatmul.mubr.bf16.gmra.mrb[0].mxu0 %v5146
    %v5182 = vpop.f32.mrb[0].mxu0
    %v5183 = vadd.f32 %v5131, %v5182
    %v5184 = vpop.f32.mrb[0].mxu0
    %v5185 = vpop.f32.mrb[0].mxu0
    %v5186 = vadd.f32 %v5131, %v5185
    %v5187 = vpop.f32.mrb[0].mxu0
    %5188 = vdwg.mxu0
    %v5189 = vmax.f32 %v5183, 0.0
    %v5190 = vmax.f32 %v5186, 0.0
    %v5191 = vld [vmem:[%s2547] sm:$0xf]
    %v5192 = vld [vmem:[%s2547 + $0x4] sm:$0xf]
    %v5193 = vld [vmem:[%s2547 + $0x8] sm:$0xf]
    %v5194 = vld [vmem:[%s2547 + $0xc] sm:$0xf]
    %v5195 = vld [vmem:[%s2547 + $0x10] sm:$0xf]
    %v5196 = vld [vmem:[%s2547 + $0x14] sm:$0xf]
    %v5197 = vld [vmem:[%s2547 + $0x18] sm:$0xf]
    %v5198 = vld [vmem:[%s2547 + $0x1c] sm:$0xf]
    %v5199 = vpack.c.bf16 %v5190, %v5189
    %v5200 = vld [vmem:[%s2557] sm:$0x1]
    %v5202 = vlaneseq
    %v5203 = vshrl.u32 %v5202, 7
    %v5204 = vsub.s32 0, %v5203
    %v5205 = vrot.slane %v5200, %v5204
    %v5215 = vunpack.c.l.b16 %v5191
    %v5216 = vunpack.c.l.b16 %v5192
    %v5217 = vunpack.c.l.b16 %v5193
    %v5218 = vunpack.c.l.b16 %v5194
    %v5219 = vunpack.c.l.b16 %v5195
    %v5220 = vunpack.c.l.b16 %v5196
    %v5221 = vunpack.c.l.b16 %v5197
    %v5222 = vunpack.c.l.b16 %v5198
    %v5223 = vpack.c.b16 %v5216, %v5215
    %v5224 = vpack.c.b16 %v5218, %v5217
    %v5225 = vpack.c.b16 %v5220, %v5219
    %v5226 = vpack.c.b16 %v5222, %v5221
    %v5232 = vsel %vm1280, %v5199, 0
    %5234 = vmatprep.subr.bf16.mxu0 0
    %5235 = vmatpush1.bf16.msra.mxu0 %v5223
    %5236 = vmatprep.subr.bf16.mxu0 0
    %5237 = vmatpush1.bf16.msra.mxu0 %v5224
    %5238 = vmatprep.subr.bf16.mxu0 0
    %5239 = vmatpush1.bf16.msra.mxu0 %v5225
    %5240 = vmatprep.subr.bf16.mxu0 0
    %5241 = vmatpush1.bf16.msra.mxu0 %v5226
    %5242 = vmatprep.subr.bf16.mxu0 0
    %5243 = vmatpush1.bf16.msra.mxu0 0
    %5244 = vmatprep.subr.bf16.mxu0 0
    %5245 = vmatpush1.bf16.msra.mxu0 0
    %5246 = vmatprep.subr.bf16.mxu0 0
    %5247 = vmatpush1.bf16.msra.mxu0 0
    %5248 = vmatprep.subr.bf16.mxu0 0
    %5249 = vmatpush1.bf16.msra.mxu0 0
    %5250 = vmatprep.subr.bf16.mxu0 0
    %5251 = vmatpush1.bf16.msra.mxu0 0
    %5252 = vmatprep.subr.bf16.mxu0 0
    %5253 = vmatpush1.bf16.msra.mxu0 0
    %5254 = vmatprep.subr.bf16.mxu0 0
    %5255 = vmatpush1.bf16.msra.mxu0 0
    %5256 = vmatprep.subr.bf16.mxu0 0
    %5257 = vmatpush1.bf16.msra.mxu0 0
    %5258 = vmatprep.subr.bf16.mxu0 0
    %5259 = vmatpush1.bf16.msra.mxu0 0
    %5260 = vmatprep.subr.bf16.mxu0 0
    %5261 = vmatpush1.bf16.msra.mxu0 0
    %5262 = vmatprep.subr.bf16.mxu0 0
    %5263 = vmatpush1.bf16.msra.mxu0 0
    %5264 = vmatprep.subr.bf16.mxu0 0
    %5265 = vmatpush1.bf16.msra.mxu0 0
    %5266 = vmatprep.mubr.bf16.mxu0 0
    %5267 = vmatmul.mubr.bf16.gmra.mrb[0].mxu0 %v5232
    %v5268 = vpop.f32.mrb[0].mxu0
    %v5269 = vadd.f32 %v5205, %v5268
    %v5270 = vpop.f32.mrb[0].mxu0
    %v5271 = vpop.f32.mrb[0].mxu0
    %v5272 = vadd.f32 %v5205, %v5271
    %v5273 = vpop.f32.mrb[0].mxu0
    %5274 = vdwg.mxu0
    %v5275 = vadd.f32 %v5119, %v5269
    %v5276 = vadd.f32 %v5120, %v5272
    %v5277 = vld [vmem:[%s2635] sm:$0x1]
    %v5278 = vld [vmem:[%s2637] sm:$0x1]
    %v5279 = vsel %vm90, %v5275, 0.0
    %5280 = vadd.xlane.f32.xlu0 %v5279
    %v5281 = vpop.xlane.xlu0 %5280
    %v5282 = vsel %vm90, %v5276, 0.0
    %5283 = vadd.xlane.f32.xlu0 %v5282
    %v5284 = vpop.xlane.xlu0 %5283
    %v5285 = vmul.f32 %v5281, %v1133
    %v5286 = vmul.f32 %v5284, %v1133
    %v5287 = vsub.f32 %v5275, %v5285
    %v5288 = vsub.f32 %v5276, %v5286
    %v5289 = vmul.f32 %v5287, %v5287
    %v5290 = vmul.f32 %v5288, %v5288
    %v5291 = vsel %vm90, %v5289, 0.0
    %5292 = vadd.xlane.f32.xlu0 %v5291
    %v5293 = vpop.xlane.xlu0 %5292
    %v5294 = vsel %vm90, %v5290, 0.0
    %5295 = vadd.xlane.f32.xlu0 %v5294
    %v5296 = vpop.xlane.xlu0 %5295
    %v5297 = vmul.f32 %v5293, %v1133
    %v5298 = vmul.f32 %v5296, %v1133
    %v5299 = vadd.f32 %v5297, 1e-05
    %v5300 = vadd.f32 %v5298, 1e-05
    %v5301 = vrsqrt.pop %v5299
    %v5302 = vrsqrt.pop %v5300
    %v5303 = vmul.f32 %v5287, %v5301
    %v5304 = vmul.f32 %v5288, %v5302
    %v5306 = vlaneseq
    %v5307 = vshrl.u32 %v5306, 7
    %v5308 = vsub.s32 0, %v5307
    %v5309 = vrot.slane %v5277, %v5308
    %v5311 = vmul.f32 %v5303, %v5309
    %v5312 = vmul.f32 %v5304, %v5309
    %v5314 = vlaneseq
    %v5315 = vshrl.u32 %v5314, 7
    %v5316 = vsub.s32 0, %v5315
    %v5317 = vrot.slane %v5278, %v5316
    %v5319 = vadd.f32 %v5311, %v5317
    %v5320 = vadd.f32 %v5312, %v5317
    %v5321 = vld [vmem:[%s13] sm:$0x1]
    %v5322 = vld [vmem:[%s14] sm:$0x1]
    %v5323 = vsel %vm90, %v5319, 0.0
    %5324 = vadd.xlane.f32.xlu0 %v5323
    %v5325 = vpop.xlane.xlu0 %5324
    %v5326 = vsel %vm90, %v5320, 0.0
    %5327 = vadd.xlane.f32.xlu0 %v5326
    %v5328 = vpop.xlane.xlu0 %5327
    %v5329 = vmul.f32 %v5325, %v1133
    %v5330 = vmul.f32 %v5328, %v1133
    %v5331 = vsub.f32 %v5319, %v5329
    %v5332 = vsub.f32 %v5320, %v5330
    %v5333 = vmul.f32 %v5331, %v5331
    %v5334 = vmul.f32 %v5332, %v5332
    %v5335 = vsel %vm90, %v5333, 0.0
    %5336 = vadd.xlane.f32.xlu0 %v5335
    %v5337 = vpop.xlane.xlu0 %5336
    %v5338 = vsel %vm90, %v5334, 0.0
    %5339 = vadd.xlane.f32.xlu0 %v5338
    %v5340 = vpop.xlane.xlu0 %5339
    %v5341 = vmul.f32 %v5337, %v1133
    %v5342 = vmul.f32 %v5340, %v1133
    %v5343 = vadd.f32 %v5341, 1e-05
    %v5344 = vadd.f32 %v5342, 1e-05
    %v5345 = vrsqrt.pop %v5343
    %v5346 = vrsqrt.pop %v5344
    %v5347 = vmul.f32 %v5331, %v5345
    %v5348 = vmul.f32 %v5332, %v5346
    %v5350 = vlaneseq
    %v5351 = vshrl.u32 %v5350, 7
    %v5352 = vsub.s32 0, %v5351
    %v5353 = vrot.slane %v5321, %v5352
    %v5355 = vmul.f32 %v5347, %v5353
    %v5356 = vmul.f32 %v5348, %v5353
    %v5358 = vlaneseq
    %v5359 = vshrl.u32 %v5358, 7
    %v5360 = vsub.s32 0, %v5359
    %v5361 = vrot.slane %v5322, %v5360
    %v5363 = vadd.f32 %v5355, %v5361
    %v5364 = vadd.f32 %v5356, %v5361
    %v5365 = vld [vmem:[%s15] sm:$0xf]
    %v5366 = vld [vmem:[%s15 + $0x4] sm:$0xf]
    %v5367 = vld [vmem:[%s15 + $0x8] sm:$0xf]
    %v5368 = vld [vmem:[%s15 + $0xc] sm:$0xf]
    %v5369 = vpack.c.bf16 %v5364, %v5363
    %v5370 = vld [vmem:[%s16] sm:$0x1]
    %v5372 = vlaneseq
    %v5373 = vshrl.u32 %v5372, 7
    %v5374 = vsub.s32 0, %v5373
    %v5375 = vrot.slane %v5370, %v5374
    %v5381 = vunpack.c.l.b16 %v5365
    %v5382 = vunpack.c.l.b16 %v5366
    %v5383 = vunpack.c.l.b16 %v5367
    %v5384 = vunpack.c.l.b16 %v5368
    %v5385 = vpack.c.b16 %v5382, %v5381
    %v5386 = vpack.c.b16 %v5384, %v5383
    %v5390 = vsel %vm90, %v5369, 0
    %5392 = vmatprep.subr.bf16.mxu0 0
    %5393 = vmatpush1.bf16.msra.mxu0 %v5385
    %5394 = vmatprep.subr.bf16.mxu0 0
    %5395 = vmatpush1.bf16.msra.mxu0 %v5386
    %5396 = vmatprep.subr.bf16.mxu0 0
    %5397 = vmatpush1.bf16.msra.mxu0 0
    %5398 = vmatprep.subr.bf16.mxu0 0
    %5399 = vmatpush1.bf16.msra.mxu0 0
    %5400 = vmatprep.subr.bf16.mxu0 0
    %5401 = vmatpush1.bf16.msra.mxu0 0
    %5402 = vmatprep.subr.bf16.mxu0 0
    %5403 = vmatpush1.bf16.msra.mxu0 0
    %5404 = vmatprep.subr.bf16.mxu0 0
    %5405 = vmatpush1.bf16.msra.mxu0 0
    %5406 = vmatprep.subr.bf16.mxu0 0
    %5407 = vmatpush1.bf16.msra.mxu0 0
    %5408 = vmatprep.subr.bf16.mxu0 0
    %5409 = vmatpush1.bf16.msra.mxu0 0
    %5410 = vmatprep.subr.bf16.mxu0 0
    %5411 = vmatpush1.bf16.msra.mxu0 0
    %5412 = vmatprep.subr.bf16.mxu0 0
    %5413 = vmatpush1.bf16.msra.mxu0 0
    %5414 = vmatprep.subr.bf16.mxu0 0
    %5415 = vmatpush1.bf16.msra.mxu0 0
    %5416 = vmatprep.subr.bf16.mxu0 0
    %5417 = vmatpush1.bf16.msra.mxu0 0
    %5418 = vmatprep.subr.bf16.mxu0 0
    %5419 = vmatpush1.bf16.msra.mxu0 0
    %5420 = vmatprep.subr.bf16.mxu0 0
    %5421 = vmatpush1.bf16.msra.mxu0 0
    %5422 = vmatprep.subr.bf16.mxu0 0
    %5423 = vmatpush1.bf16.msra.mxu0 0
    %5424 = vmatprep.mubr.bf16.mxu0 0
    %5425 = vmatmul.mubr.bf16.gmra.mrb[0].mxu0 %v5390
    %v5426 = vpop.f32.mrb[0].mxu0
    %v5427 = vadd.f32 %v5375, %v5426
    %v5428 = vpop.f32.mrb[0].mxu0
    %v5429 = vpop.f32.mrb[0].mxu0
    %v5430 = vadd.f32 %v5375, %v5429
    %v5431 = vpop.f32.mrb[0].mxu0
    %5432 = vdwg.mxu0
    %5433 = vst [vmem:[#allocation2] sm:$0xff] %v5427
    %5434 = vst [vmem:[#allocation2 + $0x8] sm:$0xff] %v5430
    // Predicated region
    $region70: #{gpt_decoder_forward.1} parent=1 // pred_check
      _
    $region71: #{gpt_decoder_forward.1} parent=1 // pred_check_branch
      %5436 = sbr.rel (0) target = $region73
    $region72: #{gpt_decoder_forward.1} parent=1 // pred_region
      %s5438 = ssub.s32 256, 256
      %5439 = vsyncadd [#allocation3], %s5438
      %s5440 = sshll.u32 [#allocation2], 4
      %s5441 = int_to_ptr.vmem [resolvable:$true] %s5440
      %5446 = dma.vmem_to_hbm [thread:$0]  %s5441, 256, %s17, [#allocation3], 128, 128, 8
    $region73: #{gpt_decoder_forward.1} parent=1 // pred_fallthru
      _
    // Predicated region
    $region74: #{gpt_decoder_forward.1} parent=1 // pred_check
      _
    $region75: #{gpt_decoder_forward.1} parent=1 // pred_check_branch
      %5448 = sbr.rel (0) target = $region77
    $region76: #{gpt_decoder_forward.1} parent=1 // pred_region
      %5449 = dma.done [#allocation3], 256
    $region77: #{gpt_decoder_forward.1} parent=1 // pred_fallthru
      _
    %5450 = vsyncpa [#allocation3], 1

</llo_original>
